<compile_context>
chip_gen: v6e
topology: v6e:2x2x1
jax: 0.10.0
libtpu: 0.0.40
codegen_flags: <defaults>
</compile_context>

<pallas_src>
import math

import jax
import jax.numpy as jnp
from jax.experimental import pallas as pl
from jax.experimental.pallas import tpu as pltpu  # noqa: F401  (kept for TPU-specific tuning hooks)

# ----------------------- synthetic config -----------------------
BS = 2              # number of code pairs (original "bs")
B = BS * 2          # flattened batch seen by the encoder
L = 8               # sequence length
D = 32              # hidden size
H = 4               # attention heads
DH = D // H         # head dim
FF = 64             # intermediate (FFN) size
NLAYERS = 2         # encoder layers
VOCAB = 50
MAXPOS = 32
EPS = 1e-5
NEG = -1e9          # additive mask value


def _ln(x, g, b):
    mu = jnp.mean(x, axis=-1, keepdims=True)
    var = jnp.mean((x - mu) ** 2, axis=-1, keepdims=True)
    return (x - mu) * jax.lax.rsqrt(var + EPS) * g + b


# =================================================================
# Single fused kernel: graph aggregation -> embeddings + LN ->
#                      NLAYERS transformer layers -> classifier head -> softmax
# =================================================================
def fused_forward_kernel(
        we_ref, pe_ref, te_ref, nm_ref, tm_ref, am_ref,
        eg_ref, eb_ref,
        wq_ref, bq_ref, wk_ref, bk_ref, wv_ref, bv_ref,
        wo_ref, bo_ref, l1g_ref, l1b_ref,
        w1_ref, b1_ref, w2_ref, b2_ref, l2g_ref, l2b_ref,
        wd_ref, bd_ref, wc_ref, bc_ref,
        prob_ref):
    we = we_ref[...]          # (B, L, D) gathered word embeddings
    pe = pe_ref[...]          # (B, L, D) gathered position embeddings
    te = te_ref[...]          # (1, D)    token-type embedding
    nm = nm_ref[...]          # (B, L, 1) nodes_mask (float 0/1)
    tm = tm_ref[...]          # (B, 1, L) token_mask (float 0/1)
    am = am_ref[...]          # (B, L, L) attention mask (float 0/1)

    # ---- graph-guided node/token embedding aggregation (batched) ----
    ntm = nm * tm * am                                       # (B, L, L)
    denom = jnp.sum(ntm, axis=-1, keepdims=True) + 1e-10
    ntm = ntm / denom
    avg = jnp.einsum('bqk,bkd->bqd', ntm, we,
                     preferred_element_type=jnp.float32)
    emb = we * (1.0 - nm) + avg * nm

    # ---- RoBERTa embeddings: word + position + token_type, LayerNorm ----
    x = _ln(emb + pe + te, eg_ref[...], eb_ref[...])          # (B, L, D)

    # ---- extended attention mask -> additive bias (shared across heads) ----
    bias = (1.0 - am) * NEG                                   # (B, L, L)

    # ---- transformer encoder layers (all weights resident in VMEM) ----
    for li in range(NLAYERS):
        wq = wq_ref[li]; bq = bq_ref[li]      # wq/bq pre-scaled by 1/sqrt(DH)
        wk = wk_ref[li]; bk = bk_ref[li]
        wv = wv_ref[li]; bv = bv_ref[li]
        wo = wo_ref[li]; bo = bo_ref[li]
        l1g = l1g_ref[li]; l1b = l1b_ref[li]
        w1 = w1_ref[li]; b1 = b1_ref[li]
        w2 = w2_ref[li]; b2 = b2_ref[li]
        l2g = l2g_ref[li]; l2b = l2b_ref[li]

        x2 = x.reshape(B * L, D)                              # lane-dense 2-D
        q = (jnp.dot(x2, wq, preferred_element_type=jnp.float32) + bq).reshape(B, L, D)
        k = (jnp.dot(x2, wk, preferred_element_type=jnp.float32) + bk).reshape(B, L, D)
        v = (jnp.dot(x2, wv, preferred_element_type=jnp.float32) + bv).reshape(B, L, D)

        # per-head attention; context never touches scratch memory:
        # attn = sum_h (softmax(q_h k_h^T + bias) v_h) @ wo[h-slice]
        attn2 = None
        for h in range(H):
            sl = slice(h * DH, (h + 1) * DH)
            qh = q[:, :, sl]
            kh = k[:, :, sl]
            vh = v[:, :, sl]
            s = jnp.einsum('bqd,bkd->bqk', qh, kh,
                           preferred_element_type=jnp.float32) + bias
            s = s - jnp.max(s, axis=-1, keepdims=True)
            p = jnp.exp(s)
            p = p * pl.reciprocal(jnp.sum(p, axis=-1, keepdims=True), approx=True)
            ctx = jnp.einsum('bqk,bkd->bqd', p, vh,
                             preferred_element_type=jnp.float32)
            part = jnp.dot(ctx.reshape(B * L, DH), wo[sl, :],
                           preferred_element_type=jnp.float32)
            attn2 = part if attn2 is None else attn2 + part
        attn2 = attn2 + bo                                    # (B*L, D)

        x1 = _ln(x2 + attn2, l1g, l1b)

        # TODO(synk): RoBERTa uses exact (erf) GELU; tanh approximation used
        # for robust Mosaic lowering.
        hmid = jax.nn.gelu(
            jnp.dot(x1, w1, preferred_element_type=jnp.float32) + b1,
            approximate=True)
        y = jnp.dot(hmid, w2, preferred_element_type=jnp.float32) + b2
        x = _ln(x1 + y, l2g, l2b).reshape(B, L, D)

    # ---- classification head: pair-concat of CLS vectors -> dense -> tanh
    #      -> out_proj -> softmax (dropout = identity in eval) ----
    wd = wd_ref[...]                                          # (2D, D)
    cls_a = jnp.concatenate([x[2 * p, 0:1, :] for p in range(BS)], axis=0)      # (BS, D)
    cls_b = jnp.concatenate([x[2 * p + 1, 0:1, :] for p in range(BS)], axis=0)  # (BS, D)
    hcls = jnp.tanh(
        jnp.dot(cls_a, wd[:D, :], preferred_element_type=jnp.float32)
        + jnp.dot(cls_b, wd[D:, :], preferred_element_type=jnp.float32)
        + bd_ref[...])
    logits = jnp.dot(hcls, wc_ref[...],
                     preferred_element_type=jnp.float32) + bc_ref[...]
    logits = logits - jnp.max(logits, axis=-1, keepdims=True)
    ez = jnp.exp(logits)
    prob_ref[...] = ez / jnp.sum(ez, axis=-1, keepdims=True)   # exact divide (2-wide)


# =================================================================
# Parameters (deterministic, synthetic)
# =================================================================
def init_params(key):
    keys = jax.random.split(key, 8 + NLAYERS)

    def nrm(k, shape, scale=0.02):
        return scale * jax.random.normal(k, shape, dtype=jnp.float32)

    params = dict(
        word_emb=nrm(keys[0], (VOCAB, D)),
        pos_emb=nrm(keys[1], (MAXPOS, D)),
        type_emb=nrm(keys[2], (1, D)),
        emb_ln_g=jnp.ones((D,), jnp.float32),
        emb_ln_b=jnp.zeros((D,), jnp.float32),
        cls_dense_w=nrm(keys[3], (2 * D, D)),
        cls_dense_b=jnp.zeros((1, D), jnp.float32),
        cls_out_w=nrm(keys[4], (D, 2)),
        cls_out_b=jnp.zeros((1, 2), jnp.float32),
    )
    layers = []
    for li in range(NLAYERS):
        lk = jax.random.split(keys[5 + li], 6)
        layers.append(dict(
            wq=nrm(lk[0], (D, D)), bq=jnp.zeros((1, D), jnp.float32),
            wk=nrm(lk[1], (D, D)), bk=jnp.zeros((1, D), jnp.float32),
            wv=nrm(lk[2], (D, D)), bv=jnp.zeros((1, D), jnp.float32),
            wo=nrm(lk[3], (D, D)), bo=jnp.zeros((1, D), jnp.float32),
            ln1_g=jnp.ones((1, D), jnp.float32), ln1_b=jnp.zeros((1, D), jnp.float32),
            w1=nrm(lk[4], (D, FF)), b1=jnp.zeros((1, FF), jnp.float32),
            w2=nrm(lk[5], (FF, D)), b2=jnp.zeros((1, D), jnp.float32),
            ln2_g=jnp.ones((1, D), jnp.float32), ln2_b=jnp.zeros((1, D), jnp.float32),
        ))
    params["layers"] = layers
    return params


def prep_fused_params(params):
    """Stack per-layer weights and fold the attention scale into wq/bq (done once)."""
    scale = 1.0 / math.sqrt(DH)
    stack = lambda name: jnp.stack([lp[name] for lp in params["layers"]], axis=0)
    return dict(
        wq=stack("wq") * scale, bq=stack("bq") * scale,
        wk=stack("wk"), bk=stack("bk"),
        wv=stack("wv"), bv=stack("bv"),
        wo=stack("wo"), bo=stack("bo"),
        ln1_g=stack("ln1_g"), ln1_b=stack("ln1_b"),
        w1=stack("w1"), b1=stack("b1"),
        w2=stack("w2"), b2=stack("b2"),
        ln2_g=stack("ln2_g"), ln2_b=stack("ln2_b"),
    )


# =================================================================
# Model.forward (labels=None path -> returns softmax probabilities)
# =================================================================
def model_forward(params, fused,
                  inputs_ids_1, position_idx_1, attn_mask_1,
                  inputs_ids_2, position_idx_2, attn_mask_2):
    bs, l = inputs_ids_1.shape

    inputs_ids = jnp.concatenate(
        [inputs_ids_1[:, None, :], inputs_ids_2[:, None, :]], 1).reshape(bs * 2, l)
    position_idx = jnp.concatenate(
        [position_idx_1[:, None, :], position_idx_2[:, None, :]], 1).reshape(bs * 2, l)
    attn_mask = jnp.concatenate(
        [attn_mask_1[:, None, :, :], attn_mask_2[:, None, :, :]], 1).reshape(bs * 2, l, l)

    nm = (position_idx == 0).astype(jnp.float32).reshape(bs * 2, l, 1)
    tm = (position_idx >= 2).astype(jnp.float32).reshape(bs * 2, 1, l)
    am = attn_mask.astype(jnp.float32)

    # embedding gathers (glue; no clean Pallas equivalent for table lookups)
    we = params["word_emb"][inputs_ids]        # (B, L, D)
    pe = params["pos_emb"][position_idx]       # (B, L, D)
    te = params["type_emb"]                    # (1, D)

    prob = pl.pallas_call(
        fused_forward_kernel,
        out_shape=jax.ShapeDtypeStruct((bs, 2), jnp.float32),
    )(we, pe, te, nm, tm, am,
      params["emb_ln_g"].reshape(1, D), params["emb_ln_b"].reshape(1, D),
      fused["wq"], fused["bq"], fused["wk"], fused["bk"],
      fused["wv"], fused["bv"], fused["wo"], fused["bo"],
      fused["ln1_g"], fused["ln1_b"],
      fused["w1"], fused["b1"], fused["w2"], fused["b2"],
      fused["ln2_g"], fused["ln2_b"],
      params["cls_dense_w"], params["cls_dense_b"],
      params["cls_out_w"], params["cls_out_b"])
    return prob


# =================================================================
if __name__ == "__main__":
    root = jax.random.PRNGKey(0)
    k_params, k_ids1, k_ids2 = jax.random.split(root, 3)
    params = init_params(k_params)
    fused = prep_fused_params(params)

    inputs_ids_1 = jax.random.randint(k_ids1, (BS, L), 0, VOCAB, dtype=jnp.int32)
    inputs_ids_2 = jax.random.randint(k_ids2, (BS, L), 0, VOCAB, dtype=jnp.int32)

    # GraphCodeBERT convention: tokens have position >= 2, DFG nodes position 0,
    # padding position 1.
    base_pos = jnp.array([2, 3, 4, 5, 6, 0, 0, 1], dtype=jnp.int32)
    position_idx_1 = jnp.tile(base_pos, (BS, 1))
    position_idx_2 = jnp.tile(base_pos, (BS, 1))

    nonpad = (base_pos != 1)
    am = (nonpad[:, None] & nonpad[None, :])
    attn_mask_1 = jnp.tile(am[None], (BS, 1, 1))
    attn_mask_2 = jnp.tile(am[None], (BS, 1, 1))

    fwd = jax.jit(model_forward)
    prob = fwd(params, fused,
               inputs_ids_1, position_idx_1, attn_mask_1,
               inputs_ids_2, position_idx_2, attn_mask_2)
    prob = jax.block_until_ready(prob)

    assert prob.shape == (BS, 2)
    assert bool(jnp.all(jnp.isfinite(prob)))
    assert bool(jnp.allclose(jnp.sum(prob, axis=-1), 1.0, atol=1e-5))
    print("KERNEL_OK")
</pallas_src>

<mosaic_0001>
module attributes {stable_mosaic.version = 11 : i64} {
  func.func @fused_forward_kernel(%arg0: memref<4x8x32xf32, #tpu.memory_space<vmem>>, %arg1: memref<4x8x32xf32, #tpu.memory_space<vmem>>, %arg2: memref<1x32xf32, #tpu.memory_space<vmem>>, %arg3: memref<4x8x1xf32, #tpu.memory_space<vmem>>, %arg4: memref<4x1x8xf32, #tpu.memory_space<vmem>>, %arg5: memref<4x8x8xf32, #tpu.memory_space<vmem>>, %arg6: memref<1x32xf32, #tpu.memory_space<vmem>>, %arg7: memref<1x32xf32, #tpu.memory_space<vmem>>, %arg8: memref<2x32x32xf32, #tpu.memory_space<vmem>>, %arg9: memref<2x1x32xf32, #tpu.memory_space<vmem>>, %arg10: memref<2x32x32xf32, #tpu.memory_space<vmem>>, %arg11: memref<2x1x32xf32, #tpu.memory_space<vmem>>, %arg12: memref<2x32x32xf32, #tpu.memory_space<vmem>>, %arg13: memref<2x1x32xf32, #tpu.memory_space<vmem>>, %arg14: memref<2x32x32xf32, #tpu.memory_space<vmem>>, %arg15: memref<2x1x32xf32, #tpu.memory_space<vmem>>, %arg16: memref<2x1x32xf32, #tpu.memory_space<vmem>>, %arg17: memref<2x1x32xf32, #tpu.memory_space<vmem>>, %arg18: memref<2x32x64xf32, #tpu.memory_space<vmem>>, %arg19: memref<2x1x64xf32, #tpu.memory_space<vmem>>, %arg20: memref<2x64x32xf32, #tpu.memory_space<vmem>>, %arg21: memref<2x1x32xf32, #tpu.memory_space<vmem>>, %arg22: memref<2x1x32xf32, #tpu.memory_space<vmem>>, %arg23: memref<2x1x32xf32, #tpu.memory_space<vmem>>, %arg24: memref<64x32xf32, #tpu.memory_space<vmem>>, %arg25: memref<1x32xf32, #tpu.memory_space<vmem>>, %arg26: memref<32x2xf32, #tpu.memory_space<vmem>>, %arg27: memref<1x2xf32, #tpu.memory_space<vmem>>, %arg28: memref<2x2xf32, #tpu.memory_space<vmem>>) attributes {dimension_semantics = [], scalar_prefetch = 0 : i64, scratch_operands = 0 : i64, tpu.core_type = #tpu.core_type<tc>} {
    %c0 = arith.constant 0 : index
    %c0_0 = arith.constant 0 : index
    %c0_1 = arith.constant 0 : index
    %0 = vector.load %arg0[%c0, %c0_0, %c0_1] : memref<4x8x32xf32, #tpu.memory_space<vmem>>, vector<4x8x32xf32>
    %c0_2 = arith.constant 0 : index
    %c0_3 = arith.constant 0 : index
    %c0_4 = arith.constant 0 : index
    %1 = vector.load %arg1[%c0_2, %c0_3, %c0_4] : memref<4x8x32xf32, #tpu.memory_space<vmem>>, vector<4x8x32xf32>
    %c0_5 = arith.constant 0 : index
    %c0_6 = arith.constant 0 : index
    %2 = vector.load %arg2[%c0_5, %c0_6] : memref<1x32xf32, #tpu.memory_space<vmem>>, vector<1x32xf32>
    %c0_7 = arith.constant 0 : index
    %c0_8 = arith.constant 0 : index
    %c0_9 = arith.constant 0 : index
    %3 = vector.load %arg3[%c0_7, %c0_8, %c0_9] : memref<4x8x1xf32, #tpu.memory_space<vmem>>, vector<4x8x1xf32>
    %c0_10 = arith.constant 0 : index
    %c0_11 = arith.constant 0 : index
    %c0_12 = arith.constant 0 : index
    %4 = vector.load %arg4[%c0_10, %c0_11, %c0_12] : memref<4x1x8xf32, #tpu.memory_space<vmem>>, vector<4x1x8xf32>
    %c0_13 = arith.constant 0 : index
    %c0_14 = arith.constant 0 : index
    %c0_15 = arith.constant 0 : index
    %5 = vector.load %arg5[%c0_13, %c0_14, %c0_15] : memref<4x8x8xf32, #tpu.memory_space<vmem>>, vector<4x8x8xf32>
    %6 = vector.broadcast %3 : vector<4x8x1xf32> to vector<4x8x8xf32>
    %7 = vector.broadcast %4 : vector<4x1x8xf32> to vector<4x8x8xf32>
    %8 = arith.mulf %6, %7 : vector<4x8x8xf32>
    %9 = arith.mulf %8, %5 : vector<4x8x8xf32>
    %cst = arith.constant dense<0.000000e+00> : vector<4x8xf32>
    %10 = vector.multi_reduction <add>, %9, %cst [2] : vector<4x8x8xf32> to vector<4x8xf32>
    %11 = vector.shape_cast %10 : vector<4x8xf32> to vector<4x8x1xf32>
    %cst_16 = arith.constant 1.000000e-10 : f32
    %12 = vector.broadcast %cst_16 : f32 to vector<4x8x1xf32>
    %13 = arith.addf %11, %12 : vector<4x8x1xf32>
    %14 = vector.broadcast %13 : vector<4x8x1xf32> to vector<4x8x8xf32>
    %15 = arith.divf %9, %14 : vector<4x8x8xf32>
    "tpu.trace_start"() <{level = 10 : i32, message = "bqk,bkd->bqd"}> : () -> ()
    %cst_17 = arith.constant dense<0.000000e+00> : vector<4x8x32xf32>
    %16 = tpu.matmul %15, %0, %cst_17 {dimension_numbers = #tpu.dot_dimension_numbers<[2], [1], [1], [2], [0, 0, 0, 1, 1, 2], [0], [0]>} : vector<4x8x8xf32>, vector<4x8x32xf32>, vector<4x8x32xf32> -> vector<4x8x32xf32>
    "tpu.trace_stop"() : () -> ()
    %cst_18 = arith.constant 1.000000e+00 : f32
    %17 = vector.broadcast %cst_18 : f32 to vector<4x8x1xf32>
    %18 = arith.subf %17, %3 : vector<4x8x1xf32>
    %19 = vector.broadcast %18 : vector<4x8x1xf32> to vector<4x8x32xf32>
    %20 = arith.mulf %0, %19 : vector<4x8x32xf32>
    %21 = vector.broadcast %3 : vector<4x8x1xf32> to vector<4x8x32xf32>
    %22 = arith.mulf %16, %21 : vector<4x8x32xf32>
    %23 = arith.addf %20, %22 : vector<4x8x32xf32>
    %24 = arith.addf %23, %1 : vector<4x8x32xf32>
    %25 = vector.shape_cast %2 : vector<1x32xf32> to vector<1x1x32xf32>
    %26 = vector.broadcast %25 : vector<1x1x32xf32> to vector<4x8x32xf32>
    %27 = arith.addf %24, %26 : vector<4x8x32xf32>
    %c0_19 = arith.constant 0 : index
    %c0_20 = arith.constant 0 : index
    %28 = vector.load %arg6[%c0_19, %c0_20] : memref<1x32xf32, #tpu.memory_space<vmem>>, vector<1x32xf32>
    %c0_21 = arith.constant 0 : index
    %c0_22 = arith.constant 0 : index
    %29 = vector.load %arg7[%c0_21, %c0_22] : memref<1x32xf32, #tpu.memory_space<vmem>>, vector<1x32xf32>
    %cst_23 = arith.constant dense<0.000000e+00> : vector<4x8xf32>
    %30 = vector.multi_reduction <add>, %27, %cst_23 [2] : vector<4x8x32xf32> to vector<4x8xf32>
    %31 = vector.shape_cast %30 : vector<4x8xf32> to vector<4x8x1xf32>
    %cst_24 = arith.constant 3.200000e+01 : f32
    %32 = vector.broadcast %cst_24 : f32 to vector<4x8x1xf32>
    %33 = arith.divf %31, %32 : vector<4x8x1xf32>
    %34 = vector.broadcast %33 : vector<4x8x1xf32> to vector<4x8x32xf32>
    %35 = arith.subf %27, %34 : vector<4x8x32xf32>
    %36 = arith.mulf %35, %35 : vector<4x8x32xf32>
    %cst_25 = arith.constant dense<0.000000e+00> : vector<4x8xf32>
    %37 = vector.multi_reduction <add>, %36, %cst_25 [2] : vector<4x8x32xf32> to vector<4x8xf32>
    %38 = vector.shape_cast %37 : vector<4x8xf32> to vector<4x8x1xf32>
    %cst_26 = arith.constant 3.200000e+01 : f32
    %39 = vector.broadcast %cst_26 : f32 to vector<4x8x1xf32>
    %40 = arith.divf %38, %39 : vector<4x8x1xf32>
    %41 = vector.broadcast %33 : vector<4x8x1xf32> to vector<4x8x32xf32>
    %42 = arith.subf %27, %41 : vector<4x8x32xf32>
    %cst_27 = arith.constant 9.99999974E-6 : f32
    %43 = vector.broadcast %cst_27 : f32 to vector<4x8x1xf32>
    %44 = arith.addf %40, %43 : vector<4x8x1xf32>
    %45 = math.rsqrt %44 : vector<4x8x1xf32>
    %46 = vector.broadcast %45 : vector<4x8x1xf32> to vector<4x8x32xf32>
    %47 = arith.mulf %42, %46 : vector<4x8x32xf32>
    %48 = vector.shape_cast %28 : vector<1x32xf32> to vector<1x1x32xf32>
    %49 = vector.broadcast %48 : vector<1x1x32xf32> to vector<4x8x32xf32>
    %50 = arith.mulf %47, %49 : vector<4x8x32xf32>
    %51 = vector.shape_cast %29 : vector<1x32xf32> to vector<1x1x32xf32>
    %52 = vector.broadcast %51 : vector<1x1x32xf32> to vector<4x8x32xf32>
    %53 = arith.addf %50, %52 : vector<4x8x32xf32>
    %cst_28 = arith.constant 1.000000e+00 : f32
    %54 = vector.broadcast %cst_28 : f32 to vector<4x8x8xf32>
    %55 = arith.subf %54, %5 : vector<4x8x8xf32>
    %cst_29 = arith.constant -1.000000e+09 : f32
    %56 = vector.broadcast %cst_29 : f32 to vector<4x8x8xf32>
    %57 = arith.mulf %55, %56 : vector<4x8x8xf32>
    %c0_30 = arith.constant 0 : index
    %c0_31 = arith.constant 0 : index
    %c0_32 = arith.constant 0 : index
    %58 = vector.load %arg8[%c0_30, %c0_31, %c0_32] : memref<2x32x32xf32, #tpu.memory_space<vmem>>, vector<1x32x32xf32>
    %59 = vector.shape_cast %58 : vector<1x32x32xf32> to vector<32x32xf32>
    %c0_33 = arith.constant 0 : index
    %c0_34 = arith.constant 0 : index
    %c0_35 = arith.constant 0 : index
    %60 = vector.load %arg9[%c0_33, %c0_34, %c0_35] : memref<2x1x32xf32, #tpu.memory_space<vmem>>, vector<1x1x32xf32>
    %61 = vector.shape_cast %60 : vector<1x1x32xf32> to vector<1x32xf32>
    %c0_36 = arith.constant 0 : index
    %c0_37 = arith.constant 0 : index
    %c0_38 = arith.constant 0 : index
    %62 = vector.load %arg10[%c0_36, %c0_37, %c0_38] : memref<2x32x32xf32, #tpu.memory_space<vmem>>, vector<1x32x32xf32>
    %63 = vector.shape_cast %62 : vector<1x32x32xf32> to vector<32x32xf32>
    %c0_39 = arith.constant 0 : index
    %c0_40 = arith.constant 0 : index
    %c0_41 = arith.constant 0 : index
    %64 = vector.load %arg11[%c0_39, %c0_40, %c0_41] : memref<2x1x32xf32, #tpu.memory_space<vmem>>, vector<1x1x32xf32>
    %65 = vector.shape_cast %64 : vector<1x1x32xf32> to vector<1x32xf32>
    %c0_42 = arith.constant 0 : index
    %c0_43 = arith.constant 0 : index
    %c0_44 = arith.constant 0 : index
    %66 = vector.load %arg12[%c0_42, %c0_43, %c0_44] : memref<2x32x32xf32, #tpu.memory_space<vmem>>, vector<1x32x32xf32>
    %67 = vector.shape_cast %66 : vector<1x32x32xf32> to vector<32x32xf32>
    %c0_45 = arith.constant 0 : index
    %c0_46 = arith.constant 0 : index
    %c0_47 = arith.constant 0 : index
    %68 = vector.load %arg13[%c0_45, %c0_46, %c0_47] : memref<2x1x32xf32, #tpu.memory_space<vmem>>, vector<1x1x32xf32>
    %69 = vector.shape_cast %68 : vector<1x1x32xf32> to vector<1x32xf32>
    %c0_48 = arith.constant 0 : index
    %c0_49 = arith.constant 0 : index
    %c0_50 = arith.constant 0 : index
    %70 = vector.load %arg14[%c0_48, %c0_49, %c0_50] : memref<2x32x32xf32, #tpu.memory_space<vmem>>, vector<1x32x32xf32>
    %71 = vector.shape_cast %70 : vector<1x32x32xf32> to vector<32x32xf32>
    %c0_51 = arith.constant 0 : index
    %c0_52 = arith.constant 0 : index
    %c0_53 = arith.constant 0 : index
    %72 = vector.load %arg15[%c0_51, %c0_52, %c0_53] : memref<2x1x32xf32, #tpu.memory_space<vmem>>, vector<1x1x32xf32>
    %73 = vector.shape_cast %72 : vector<1x1x32xf32> to vector<1x32xf32>
    %c0_54 = arith.constant 0 : index
    %c0_55 = arith.constant 0 : index
    %c0_56 = arith.constant 0 : index
    %74 = vector.load %arg16[%c0_54, %c0_55, %c0_56] : memref<2x1x32xf32, #tpu.memory_space<vmem>>, vector<1x1x32xf32>
    %75 = vector.shape_cast %74 : vector<1x1x32xf32> to vector<1x32xf32>
    %c0_57 = arith.constant 0 : index
    %c0_58 = arith.constant 0 : index
    %c0_59 = arith.constant 0 : index
    %76 = vector.load %arg17[%c0_57, %c0_58, %c0_59] : memref<2x1x32xf32, #tpu.memory_space<vmem>>, vector<1x1x32xf32>
    %77 = vector.shape_cast %76 : vector<1x1x32xf32> to vector<1x32xf32>
    %c0_60 = arith.constant 0 : index
    %c0_61 = arith.constant 0 : index
    %c0_62 = arith.constant 0 : index
    %78 = vector.load %arg18[%c0_60, %c0_61, %c0_62] : memref<2x32x64xf32, #tpu.memory_space<vmem>>, vector<1x32x64xf32>
    %79 = vector.shape_cast %78 : vector<1x32x64xf32> to vector<32x64xf32>
    %c0_63 = arith.constant 0 : index
    %c0_64 = arith.constant 0 : index
    %c0_65 = arith.constant 0 : index
    %80 = vector.load %arg19[%c0_63, %c0_64, %c0_65] : memref<2x1x64xf32, #tpu.memory_space<vmem>>, vector<1x1x64xf32>
    %81 = vector.shape_cast %80 : vector<1x1x64xf32> to vector<1x64xf32>
    %c0_66 = arith.constant 0 : index
    %c0_67 = arith.constant 0 : index
    %c0_68 = arith.constant 0 : index
    %82 = vector.load %arg20[%c0_66, %c0_67, %c0_68] : memref<2x64x32xf32, #tpu.memory_space<vmem>>, vector<1x64x32xf32>
    %83 = vector.shape_cast %82 : vector<1x64x32xf32> to vector<64x32xf32>
    %c0_69 = arith.constant 0 : index
    %c0_70 = arith.constant 0 : index
    %c0_71 = arith.constant 0 : index
    %84 = vector.load %arg21[%c0_69, %c0_70, %c0_71] : memref<2x1x32xf32, #tpu.memory_space<vmem>>, vector<1x1x32xf32>
    %85 = vector.shape_cast %84 : vector<1x1x32xf32> to vector<1x32xf32>
    %c0_72 = arith.constant 0 : index
    %c0_73 = arith.constant 0 : index
    %c0_74 = arith.constant 0 : index
    %86 = vector.load %arg22[%c0_72, %c0_73, %c0_74] : memref<2x1x32xf32, #tpu.memory_space<vmem>>, vector<1x1x32xf32>
    %87 = vector.shape_cast %86 : vector<1x1x32xf32> to vector<1x32xf32>
    %c0_75 = arith.constant 0 : index
    %c0_76 = arith.constant 0 : index
    %c0_77 = arith.constant 0 : index
    %88 = vector.load %arg23[%c0_75, %c0_76, %c0_77] : memref<2x1x32xf32, #tpu.memory_space<vmem>>, vector<1x1x32xf32>
    %89 = vector.shape_cast %88 : vector<1x1x32xf32> to vector<1x32xf32>
    %90 = vector.shape_cast %53 : vector<4x8x32xf32> to vector<32x32xf32>
    %cst_78 = arith.constant dense<0.000000e+00> : vector<32x32xf32>
    %91 = tpu.matmul %90, %59, %cst_78 {dimension_numbers = #tpu.dot_dimension_numbers<[1], [0], [0], [1], [0, 0, 1, 1], [], []>} : vector<32x32xf32>, vector<32x32xf32>, vector<32x32xf32> -> vector<32x32xf32>
    %92 = vector.broadcast %61 : vector<1x32xf32> to vector<32x32xf32>
    %93 = arith.addf %91, %92 : vector<32x32xf32>
    %94 = vector.shape_cast %93 : vector<32x32xf32> to vector<4x8x32xf32>
    %cst_79 = arith.constant dense<0.000000e+00> : vector<32x32xf32>
    %95 = tpu.matmul %90, %63, %cst_79 {dimension_numbers = #tpu.dot_dimension_numbers<[1], [0], [0], [1], [0, 0, 1, 1], [], []>} : vector<32x32xf32>, vector<32x32xf32>, vector<32x32xf32> -> vector<32x32xf32>
    %96 = vector.broadcast %65 : vector<1x32xf32> to vector<32x32xf32>
    %97 = arith.addf %95, %96 : vector<32x32xf32>
    %98 = vector.shape_cast %97 : vector<32x32xf32> to vector<4x8x32xf32>
    %cst_80 = arith.constant dense<0.000000e+00> : vector<32x32xf32>
    %99 = tpu.matmul %90, %67, %cst_80 {dimension_numbers = #tpu.dot_dimension_numbers<[1], [0], [0], [1], [0, 0, 1, 1], [], []>} : vector<32x32xf32>, vector<32x32xf32>, vector<32x32xf32> -> vector<32x32xf32>
    %100 = vector.broadcast %69 : vector<1x32xf32> to vector<32x32xf32>
    %101 = arith.addf %99, %100 : vector<32x32xf32>
    %102 = vector.shape_cast %101 : vector<32x32xf32> to vector<4x8x32xf32>
    %103 = vector.extract_strided_slice %94 {offsets = [0, 0, 0], sizes = [4, 8, 8], strides = [1, 1, 1]} : vector<4x8x32xf32> to vector<4x8x8xf32>
    %104 = vector.extract_strided_slice %98 {offsets = [0, 0, 0], sizes = [4, 8, 8], strides = [1, 1, 1]} : vector<4x8x32xf32> to vector<4x8x8xf32>
    %105 = vector.extract_strided_slice %102 {offsets = [0, 0, 0], sizes = [4, 8, 8], strides = [1, 1, 1]} : vector<4x8x32xf32> to vector<4x8x8xf32>
    "tpu.trace_start"() <{level = 10 : i32, message = "bqd,bkd->bqk"}> : () -> ()
    %cst_81 = arith.constant dense<0.000000e+00> : vector<4x8x8xf32>
    %106 = tpu.matmul %103, %104, %cst_81 {dimension_numbers = #tpu.dot_dimension_numbers<[2], [2], [1], [1], [0, 0, 0, 1, 1, 1], [0], [0]>} : vector<4x8x8xf32>, vector<4x8x8xf32>, vector<4x8x8xf32> -> vector<4x8x8xf32>
    "tpu.trace_stop"() : () -> ()
    %107 = arith.addf %106, %57 : vector<4x8x8xf32>
    %cst_82 = arith.constant dense<0xFF800000> : vector<4x8xf32>
    %108 = vector.multi_reduction <maximumf>, %107, %cst_82 [2] : vector<4x8x8xf32> to vector<4x8xf32>
    %109 = vector.shape_cast %108 : vector<4x8xf32> to vector<4x8x1xf32>
    %110 = vector.broadcast %109 : vector<4x8x1xf32> to vector<4x8x8xf32>
    %111 = arith.subf %107, %110 : vector<4x8x8xf32>
    %112 = math.exp %111 : vector<4x8x8xf32>
    %cst_83 = arith.constant dense<0.000000e+00> : vector<4x8xf32>
    %113 = vector.multi_reduction <add>, %112, %cst_83 [2] : vector<4x8x8xf32> to vector<4x8xf32>
    %114 = vector.shape_cast %113 : vector<4x8xf32> to vector<4x8x1xf32>
    %115 = tpu.reciprocal %114 {approx = true} : vector<4x8x1xf32> -> vector<4x8x1xf32>
    %116 = vector.broadcast %115 : vector<4x8x1xf32> to vector<4x8x8xf32>
    %117 = arith.mulf %112, %116 : vector<4x8x8xf32>
    "tpu.trace_start"() <{level = 10 : i32, message = "bqk,bkd->bqd"}> : () -> ()
    %cst_84 = arith.constant dense<0.000000e+00> : vector<4x8x8xf32>
    %118 = tpu.matmul %117, %105, %cst_84 {dimension_numbers = #tpu.dot_dimension_numbers<[2], [1], [1], [2], [0, 0, 0, 1, 1, 2], [0], [0]>} : vector<4x8x8xf32>, vector<4x8x8xf32>, vector<4x8x8xf32> -> vector<4x8x8xf32>
    "tpu.trace_stop"() : () -> ()
    %119 = vector.shape_cast %118 : vector<4x8x8xf32> to vector<32x8xf32>
    %120 = vector.extract_strided_slice %71 {offsets = [0, 0], sizes = [8, 32], strides = [1, 1]} : vector<32x32xf32> to vector<8x32xf32>
    %cst_85 = arith.constant dense<0.000000e+00> : vector<32x32xf32>
    %121 = tpu.matmul %119, %120, %cst_85 {dimension_numbers = #tpu.dot_dimension_numbers<[1], [0], [0], [1], [0, 0, 1, 1], [], []>} : vector<32x8xf32>, vector<8x32xf32>, vector<32x32xf32> -> vector<32x32xf32>
    %122 = vector.extract_strided_slice %94 {offsets = [0, 0, 8], sizes = [4, 8, 8], strides = [1, 1, 1]} : vector<4x8x32xf32> to vector<4x8x8xf32>
    %123 = vector.extract_strided_slice %98 {offsets = [0, 0, 8], sizes = [4, 8, 8], strides = [1, 1, 1]} : vector<4x8x32xf32> to vector<4x8x8xf32>
    %124 = vector.extract_strided_slice %102 {offsets = [0, 0, 8], sizes = [4, 8, 8], strides = [1, 1, 1]} : vector<4x8x32xf32> to vector<4x8x8xf32>
    "tpu.trace_start"() <{level = 10 : i32, message = "bqd,bkd->bqk"}> : () -> ()
    %cst_86 = arith.constant dense<0.000000e+00> : vector<4x8x8xf32>
    %125 = tpu.matmul %122, %123, %cst_86 {dimension_numbers = #tpu.dot_dimension_numbers<[2], [2], [1], [1], [0, 0, 0, 1, 1, 1], [0], [0]>} : vector<4x8x8xf32>, vector<4x8x8xf32>, vector<4x8x8xf32> -> vector<4x8x8xf32>
    "tpu.trace_stop"() : () -> ()
    %126 = arith.addf %125, %57 : vector<4x8x8xf32>
    %cst_87 = arith.constant dense<0xFF800000> : vector<4x8xf32>
    %127 = vector.multi_reduction <maximumf>, %126, %cst_87 [2] : vector<4x8x8xf32> to vector<4x8xf32>
    %128 = vector.shape_cast %127 : vector<4x8xf32> to vector<4x8x1xf32>
    %129 = vector.broadcast %128 : vector<4x8x1xf32> to vector<4x8x8xf32>
    %130 = arith.subf %126, %129 : vector<4x8x8xf32>
    %131 = math.exp %130 : vector<4x8x8xf32>
    %cst_88 = arith.constant dense<0.000000e+00> : vector<4x8xf32>
    %132 = vector.multi_reduction <add>, %131, %cst_88 [2] : vector<4x8x8xf32> to vector<4x8xf32>
    %133 = vector.shape_cast %132 : vector<4x8xf32> to vector<4x8x1xf32>
    %134 = tpu.reciprocal %133 {approx = true} : vector<4x8x1xf32> -> vector<4x8x1xf32>
    %135 = vector.broadcast %134 : vector<4x8x1xf32> to vector<4x8x8xf32>
    %136 = arith.mulf %131, %135 : vector<4x8x8xf32>
    "tpu.trace_start"() <{level = 10 : i32, message = "bqk,bkd->bqd"}> : () -> ()
    %cst_89 = arith.constant dense<0.000000e+00> : vector<4x8x8xf32>
    %137 = tpu.matmul %136, %124, %cst_89 {dimension_numbers = #tpu.dot_dimension_numbers<[2], [1], [1], [2], [0, 0, 0, 1, 1, 2], [0], [0]>} : vector<4x8x8xf32>, vector<4x8x8xf32>, vector<4x8x8xf32> -> vector<4x8x8xf32>
    "tpu.trace_stop"() : () -> ()
    %138 = vector.shape_cast %137 : vector<4x8x8xf32> to vector<32x8xf32>
    %139 = vector.extract_strided_slice %71 {offsets = [8, 0], sizes = [8, 32], strides = [1, 1]} : vector<32x32xf32> to vector<8x32xf32>
    %cst_90 = arith.constant dense<0.000000e+00> : vector<32x32xf32>
    %140 = tpu.matmul %138, %139, %cst_90 {dimension_numbers = #tpu.dot_dimension_numbers<[1], [0], [0], [1], [0, 0, 1, 1], [], []>} : vector<32x8xf32>, vector<8x32xf32>, vector<32x32xf32> -> vector<32x32xf32>
    %141 = arith.addf %121, %140 : vector<32x32xf32>
    %142 = vector.extract_strided_slice %94 {offsets = [0, 0, 16], sizes = [4, 8, 8], strides = [1, 1, 1]} : vector<4x8x32xf32> to vector<4x8x8xf32>
    %143 = vector.extract_strided_slice %98 {offsets = [0, 0, 16], sizes = [4, 8, 8], strides = [1, 1, 1]} : vector<4x8x32xf32> to vector<4x8x8xf32>
    %144 = vector.extract_strided_slice %102 {offsets = [0, 0, 16], sizes = [4, 8, 8], strides = [1, 1, 1]} : vector<4x8x32xf32> to vector<4x8x8xf32>
    "tpu.trace_start"() <{level = 10 : i32, message = "bqd,bkd->bqk"}> : () -> ()
    %cst_91 = arith.constant dense<0.000000e+00> : vector<4x8x8xf32>
    %145 = tpu.matmul %142, %143, %cst_91 {dimension_numbers = #tpu.dot_dimension_numbers<[2], [2], [1], [1], [0, 0, 0, 1, 1, 1], [0], [0]>} : vector<4x8x8xf32>, vector<4x8x8xf32>, vector<4x8x8xf32> -> vector<4x8x8xf32>
    "tpu.trace_stop"() : () -> ()
    %146 = arith.addf %145, %57 : vector<4x8x8xf32>
    %cst_92 = arith.constant dense<0xFF800000> : vector<4x8xf32>
    %147 = vector.multi_reduction <maximumf>, %146, %cst_92 [2] : vector<4x8x8xf32> to vector<4x8xf32>
    %148 = vector.shape_cast %147 : vector<4x8xf32> to vector<4x8x1xf32>
    %149 = vector.broadcast %148 : vector<4x8x1xf32> to vector<4x8x8xf32>
    %150 = arith.subf %146, %149 : vector<4x8x8xf32>
    %151 = math.exp %150 : vector<4x8x8xf32>
    %cst_93 = arith.constant dense<0.000000e+00> : vector<4x8xf32>
    %152 = vector.multi_reduction <add>, %151, %cst_93 [2] : vector<4x8x8xf32> to vector<4x8xf32>
    %153 = vector.shape_cast %152 : vector<4x8xf32> to vector<4x8x1xf32>
    %154 = tpu.reciprocal %153 {approx = true} : vector<4x8x1xf32> -> vector<4x8x1xf32>
    %155 = vector.broadcast %154 : vector<4x8x1xf32> to vector<4x8x8xf32>
    %156 = arith.mulf %151, %155 : vector<4x8x8xf32>
    "tpu.trace_start"() <{level = 10 : i32, message = "bqk,bkd->bqd"}> : () -> ()
    %cst_94 = arith.constant dense<0.000000e+00> : vector<4x8x8xf32>
    %157 = tpu.matmul %156, %144, %cst_94 {dimension_numbers = #tpu.dot_dimension_numbers<[2], [1], [1], [2], [0, 0, 0, 1, 1, 2], [0], [0]>} : vector<4x8x8xf32>, vector<4x8x8xf32>, vector<4x8x8xf32> -> vector<4x8x8xf32>
    "tpu.trace_stop"() : () -> ()
    %158 = vector.shape_cast %157 : vector<4x8x8xf32> to vector<32x8xf32>
    %159 = vector.extract_strided_slice %71 {offsets = [16, 0], sizes = [8, 32], strides = [1, 1]} : vector<32x32xf32> to vector<8x32xf32>
    %cst_95 = arith.constant dense<0.000000e+00> : vector<32x32xf32>
    %160 = tpu.matmul %158, %159, %cst_95 {dimension_numbers = #tpu.dot_dimension_numbers<[1], [0], [0], [1], [0, 0, 1, 1], [], []>} : vector<32x8xf32>, vector<8x32xf32>, vector<32x32xf32> -> vector<32x32xf32>
    %161 = arith.addf %141, %160 : vector<32x32xf32>
    %162 = vector.extract_strided_slice %94 {offsets = [0, 0, 24], sizes = [4, 8, 8], strides = [1, 1, 1]} : vector<4x8x32xf32> to vector<4x8x8xf32>
    %163 = vector.extract_strided_slice %98 {offsets = [0, 0, 24], sizes = [4, 8, 8], strides = [1, 1, 1]} : vector<4x8x32xf32> to vector<4x8x8xf32>
    %164 = vector.extract_strided_slice %102 {offsets = [0, 0, 24], sizes = [4, 8, 8], strides = [1, 1, 1]} : vector<4x8x32xf32> to vector<4x8x8xf32>
    "tpu.trace_start"() <{level = 10 : i32, message = "bqd,bkd->bqk"}> : () -> ()
    %cst_96 = arith.constant dense<0.000000e+00> : vector<4x8x8xf32>
    %165 = tpu.matmul %162, %163, %cst_96 {dimension_numbers = #tpu.dot_dimension_numbers<[2], [2], [1], [1], [0, 0, 0, 1, 1, 1], [0], [0]>} : vector<4x8x8xf32>, vector<4x8x8xf32>, vector<4x8x8xf32> -> vector<4x8x8xf32>
    "tpu.trace_stop"() : () -> ()
    %166 = arith.addf %165, %57 : vector<4x8x8xf32>
    %cst_97 = arith.constant dense<0xFF800000> : vector<4x8xf32>
    %167 = vector.multi_reduction <maximumf>, %166, %cst_97 [2] : vector<4x8x8xf32> to vector<4x8xf32>
    %168 = vector.shape_cast %167 : vector<4x8xf32> to vector<4x8x1xf32>
    %169 = vector.broadcast %168 : vector<4x8x1xf32> to vector<4x8x8xf32>
    %170 = arith.subf %166, %169 : vector<4x8x8xf32>
    %171 = math.exp %170 : vector<4x8x8xf32>
    %cst_98 = arith.constant dense<0.000000e+00> : vector<4x8xf32>
    %172 = vector.multi_reduction <add>, %171, %cst_98 [2] : vector<4x8x8xf32> to vector<4x8xf32>
    %173 = vector.shape_cast %172 : vector<4x8xf32> to vector<4x8x1xf32>
    %174 = tpu.reciprocal %173 {approx = true} : vector<4x8x1xf32> -> vector<4x8x1xf32>
    %175 = vector.broadcast %174 : vector<4x8x1xf32> to vector<4x8x8xf32>
    %176 = arith.mulf %171, %175 : vector<4x8x8xf32>
    "tpu.trace_start"() <{level = 10 : i32, message = "bqk,bkd->bqd"}> : () -> ()
    %cst_99 = arith.constant dense<0.000000e+00> : vector<4x8x8xf32>
    %177 = tpu.matmul %176, %164, %cst_99 {dimension_numbers = #tpu.dot_dimension_numbers<[2], [1], [1], [2], [0, 0, 0, 1, 1, 2], [0], [0]>} : vector<4x8x8xf32>, vector<4x8x8xf32>, vector<4x8x8xf32> -> vector<4x8x8xf32>
    "tpu.trace_stop"() : () -> ()
    %178 = vector.shape_cast %177 : vector<4x8x8xf32> to vector<32x8xf32>
    %179 = vector.extract_strided_slice %71 {offsets = [24, 0], sizes = [8, 32], strides = [1, 1]} : vector<32x32xf32> to vector<8x32xf32>
    %cst_100 = arith.constant dense<0.000000e+00> : vector<32x32xf32>
    %180 = tpu.matmul %178, %179, %cst_100 {dimension_numbers = #tpu.dot_dimension_numbers<[1], [0], [0], [1], [0, 0, 1, 1], [], []>} : vector<32x8xf32>, vector<8x32xf32>, vector<32x32xf32> -> vector<32x32xf32>
    %181 = arith.addf %161, %180 : vector<32x32xf32>
    %182 = vector.broadcast %73 : vector<1x32xf32> to vector<32x32xf32>
    %183 = arith.addf %181, %182 : vector<32x32xf32>
    %184 = arith.addf %90, %183 : vector<32x32xf32>
    %cst_101 = arith.constant dense<0.000000e+00> : vector<32xf32>
    %185 = vector.multi_reduction <add>, %184, %cst_101 [1] : vector<32x32xf32> to vector<32xf32>
    %186 = vector.shape_cast %185 : vector<32xf32> to vector<32x1xf32>
    %cst_102 = arith.constant 3.200000e+01 : f32
    %187 = vector.broadcast %cst_102 : f32 to vector<32x1xf32>
    %188 = arith.divf %186, %187 : vector<32x1xf32>
    %189 = vector.broadcast %188 : vector<32x1xf32> to vector<32x32xf32>
    %190 = arith.subf %184, %189 : vector<32x32xf32>
    %191 = arith.mulf %190, %190 : vector<32x32xf32>
    %cst_103 = arith.constant dense<0.000000e+00> : vector<32xf32>
    %192 = vector.multi_reduction <add>, %191, %cst_103 [1] : vector<32x32xf32> to vector<32xf32>
    %193 = vector.shape_cast %192 : vector<32xf32> to vector<32x1xf32>
    %cst_104 = arith.constant 3.200000e+01 : f32
    %194 = vector.broadcast %cst_104 : f32 to vector<32x1xf32>
    %195 = arith.divf %193, %194 : vector<32x1xf32>
    %196 = vector.broadcast %188 : vector<32x1xf32> to vector<32x32xf32>
    %197 = arith.subf %184, %196 : vector<32x32xf32>
    %cst_105 = arith.constant 9.99999974E-6 : f32
    %198 = vector.broadcast %cst_105 : f32 to vector<32x1xf32>
    %199 = arith.addf %195, %198 : vector<32x1xf32>
    %200 = math.rsqrt %199 : vector<32x1xf32>
    %201 = vector.broadcast %200 : vector<32x1xf32> to vector<32x32xf32>
    %202 = arith.mulf %197, %201 : vector<32x32xf32>
    %203 = vector.broadcast %75 : vector<1x32xf32> to vector<32x32xf32>
    %204 = arith.mulf %202, %203 : vector<32x32xf32>
    %205 = vector.broadcast %77 : vector<1x32xf32> to vector<32x32xf32>
    %206 = arith.addf %204, %205 : vector<32x32xf32>
    %cst_106 = arith.constant dense<0.000000e+00> : vector<32x64xf32>
    %207 = tpu.matmul %206, %79, %cst_106 {dimension_numbers = #tpu.dot_dimension_numbers<[1], [0], [0], [1], [0, 0, 1, 1], [], []>} : vector<32x32xf32>, vector<32x64xf32>, vector<32x64xf32> -> vector<32x64xf32>
    %208 = vector.broadcast %81 : vector<1x64xf32> to vector<32x64xf32>
    %209 = arith.addf %207, %208 : vector<32x64xf32>
    %210 = arith.mulf %209, %209 : vector<32x64xf32>
    %211 = arith.mulf %209, %210 : vector<32x64xf32>
    %cst_107 = arith.constant 4.471500e-02 : f32
    %212 = vector.broadcast %cst_107 : f32 to vector<32x64xf32>
    %213 = arith.mulf %212, %211 : vector<32x64xf32>
    %214 = arith.addf %209, %213 : vector<32x64xf32>
    %cst_108 = arith.constant 0.797884583 : f32
    %215 = vector.broadcast %cst_108 : f32 to vector<32x64xf32>
    %216 = arith.mulf %215, %214 : vector<32x64xf32>
    %217 = math.tanh %216 : vector<32x64xf32>
    %cst_109 = arith.constant 1.000000e+00 : f32
    %218 = vector.broadcast %cst_109 : f32 to vector<32x64xf32>
    %219 = arith.addf %218, %217 : vector<32x64xf32>
    %cst_110 = arith.constant 5.000000e-01 : f32
    %220 = vector.broadcast %cst_110 : f32 to vector<32x64xf32>
    %221 = arith.mulf %220, %219 : vector<32x64xf32>
    %222 = arith.mulf %209, %221 : vector<32x64xf32>
    %cst_111 = arith.constant dense<0.000000e+00> : vector<32x32xf32>
    %223 = tpu.matmul %222, %83, %cst_111 {dimension_numbers = #tpu.dot_dimension_numbers<[1], [0], [0], [1], [0, 0, 1, 1], [], []>} : vector<32x64xf32>, vector<64x32xf32>, vector<32x32xf32> -> vector<32x32xf32>
    %224 = vector.broadcast %85 : vector<1x32xf32> to vector<32x32xf32>
    %225 = arith.addf %223, %224 : vector<32x32xf32>
    %226 = arith.addf %206, %225 : vector<32x32xf32>
    %cst_112 = arith.constant dense<0.000000e+00> : vector<32xf32>
    %227 = vector.multi_reduction <add>, %226, %cst_112 [1] : vector<32x32xf32> to vector<32xf32>
    %228 = vector.shape_cast %227 : vector<32xf32> to vector<32x1xf32>
    %cst_113 = arith.constant 3.200000e+01 : f32
    %229 = vector.broadcast %cst_113 : f32 to vector<32x1xf32>
    %230 = arith.divf %228, %229 : vector<32x1xf32>
    %231 = vector.broadcast %230 : vector<32x1xf32> to vector<32x32xf32>
    %232 = arith.subf %226, %231 : vector<32x32xf32>
    %233 = arith.mulf %232, %232 : vector<32x32xf32>
    %cst_114 = arith.constant dense<0.000000e+00> : vector<32xf32>
    %234 = vector.multi_reduction <add>, %233, %cst_114 [1] : vector<32x32xf32> to vector<32xf32>
    %235 = vector.shape_cast %234 : vector<32xf32> to vector<32x1xf32>
    %cst_115 = arith.constant 3.200000e+01 : f32
    %236 = vector.broadcast %cst_115 : f32 to vector<32x1xf32>
    %237 = arith.divf %235, %236 : vector<32x1xf32>
    %238 = vector.broadcast %230 : vector<32x1xf32> to vector<32x32xf32>
    %239 = arith.subf %226, %238 : vector<32x32xf32>
    %cst_116 = arith.constant 9.99999974E-6 : f32
    %240 = vector.broadcast %cst_116 : f32 to vector<32x1xf32>
    %241 = arith.addf %237, %240 : vector<32x1xf32>
    %242 = math.rsqrt %241 : vector<32x1xf32>
    %243 = vector.broadcast %242 : vector<32x1xf32> to vector<32x32xf32>
    %244 = arith.mulf %239, %243 : vector<32x32xf32>
    %245 = vector.broadcast %87 : vector<1x32xf32> to vector<32x32xf32>
    %246 = arith.mulf %244, %245 : vector<32x32xf32>
    %247 = vector.broadcast %89 : vector<1x32xf32> to vector<32x32xf32>
    %248 = arith.addf %246, %247 : vector<32x32xf32>
    %249 = vector.shape_cast %248 : vector<32x32xf32> to vector<4x8x32xf32>
    %c1 = arith.constant 1 : index
    %c0_117 = arith.constant 0 : index
    %c0_118 = arith.constant 0 : index
    %250 = vector.load %arg8[%c1, %c0_117, %c0_118] : memref<2x32x32xf32, #tpu.memory_space<vmem>>, vector<1x32x32xf32>
    %251 = vector.shape_cast %250 : vector<1x32x32xf32> to vector<32x32xf32>
    %c1_119 = arith.constant 1 : index
    %c0_120 = arith.constant 0 : index
    %c0_121 = arith.constant 0 : index
    %252 = vector.load %arg9[%c1_119, %c0_120, %c0_121] : memref<2x1x32xf32, #tpu.memory_space<vmem>>, vector<1x1x32xf32>
    %253 = vector.shape_cast %252 : vector<1x1x32xf32> to vector<1x32xf32>
    %c1_122 = arith.constant 1 : index
    %c0_123 = arith.constant 0 : index
    %c0_124 = arith.constant 0 : index
    %254 = vector.load %arg10[%c1_122, %c0_123, %c0_124] : memref<2x32x32xf32, #tpu.memory_space<vmem>>, vector<1x32x32xf32>
    %255 = vector.shape_cast %254 : vector<1x32x32xf32> to vector<32x32xf32>
    %c1_125 = arith.constant 1 : index
    %c0_126 = arith.constant 0 : index
    %c0_127 = arith.constant 0 : index
    %256 = vector.load %arg11[%c1_125, %c0_126, %c0_127] : memref<2x1x32xf32, #tpu.memory_space<vmem>>, vector<1x1x32xf32>
    %257 = vector.shape_cast %256 : vector<1x1x32xf32> to vector<1x32xf32>
    %c1_128 = arith.constant 1 : index
    %c0_129 = arith.constant 0 : index
    %c0_130 = arith.constant 0 : index
    %258 = vector.load %arg12[%c1_128, %c0_129, %c0_130] : memref<2x32x32xf32, #tpu.memory_space<vmem>>, vector<1x32x32xf32>
    %259 = vector.shape_cast %258 : vector<1x32x32xf32> to vector<32x32xf32>
    %c1_131 = arith.constant 1 : index
    %c0_132 = arith.constant 0 : index
    %c0_133 = arith.constant 0 : index
    %260 = vector.load %arg13[%c1_131, %c0_132, %c0_133] : memref<2x1x32xf32, #tpu.memory_space<vmem>>, vector<1x1x32xf32>
    %261 = vector.shape_cast %260 : vector<1x1x32xf32> to vector<1x32xf32>
    %c1_134 = arith.constant 1 : index
    %c0_135 = arith.constant 0 : index
    %c0_136 = arith.constant 0 : index
    %262 = vector.load %arg14[%c1_134, %c0_135, %c0_136] : memref<2x32x32xf32, #tpu.memory_space<vmem>>, vector<1x32x32xf32>
    %263 = vector.shape_cast %262 : vector<1x32x32xf32> to vector<32x32xf32>
    %c1_137 = arith.constant 1 : index
    %c0_138 = arith.constant 0 : index
    %c0_139 = arith.constant 0 : index
    %264 = vector.load %arg15[%c1_137, %c0_138, %c0_139] : memref<2x1x32xf32, #tpu.memory_space<vmem>>, vector<1x1x32xf32>
    %265 = vector.shape_cast %264 : vector<1x1x32xf32> to vector<1x32xf32>
    %c1_140 = arith.constant 1 : index
    %c0_141 = arith.constant 0 : index
    %c0_142 = arith.constant 0 : index
    %266 = vector.load %arg16[%c1_140, %c0_141, %c0_142] : memref<2x1x32xf32, #tpu.memory_space<vmem>>, vector<1x1x32xf32>
    %267 = vector.shape_cast %266 : vector<1x1x32xf32> to vector<1x32xf32>
    %c1_143 = arith.constant 1 : index
    %c0_144 = arith.constant 0 : index
    %c0_145 = arith.constant 0 : index
    %268 = vector.load %arg17[%c1_143, %c0_144, %c0_145] : memref<2x1x32xf32, #tpu.memory_space<vmem>>, vector<1x1x32xf32>
    %269 = vector.shape_cast %268 : vector<1x1x32xf32> to vector<1x32xf32>
    %c1_146 = arith.constant 1 : index
    %c0_147 = arith.constant 0 : index
    %c0_148 = arith.constant 0 : index
    %270 = vector.load %arg18[%c1_146, %c0_147, %c0_148] : memref<2x32x64xf32, #tpu.memory_space<vmem>>, vector<1x32x64xf32>
    %271 = vector.shape_cast %270 : vector<1x32x64xf32> to vector<32x64xf32>
    %c1_149 = arith.constant 1 : index
    %c0_150 = arith.constant 0 : index
    %c0_151 = arith.constant 0 : index
    %272 = vector.load %arg19[%c1_149, %c0_150, %c0_151] : memref<2x1x64xf32, #tpu.memory_space<vmem>>, vector<1x1x64xf32>
    %273 = vector.shape_cast %272 : vector<1x1x64xf32> to vector<1x64xf32>
    %c1_152 = arith.constant 1 : index
    %c0_153 = arith.constant 0 : index
    %c0_154 = arith.constant 0 : index
    %274 = vector.load %arg20[%c1_152, %c0_153, %c0_154] : memref<2x64x32xf32, #tpu.memory_space<vmem>>, vector<1x64x32xf32>
    %275 = vector.shape_cast %274 : vector<1x64x32xf32> to vector<64x32xf32>
    %c1_155 = arith.constant 1 : index
    %c0_156 = arith.constant 0 : index
    %c0_157 = arith.constant 0 : index
    %276 = vector.load %arg21[%c1_155, %c0_156, %c0_157] : memref<2x1x32xf32, #tpu.memory_space<vmem>>, vector<1x1x32xf32>
    %277 = vector.shape_cast %276 : vector<1x1x32xf32> to vector<1x32xf32>
    %c1_158 = arith.constant 1 : index
    %c0_159 = arith.constant 0 : index
    %c0_160 = arith.constant 0 : index
    %278 = vector.load %arg22[%c1_158, %c0_159, %c0_160] : memref<2x1x32xf32, #tpu.memory_space<vmem>>, vector<1x1x32xf32>
    %279 = vector.shape_cast %278 : vector<1x1x32xf32> to vector<1x32xf32>
    %c1_161 = arith.constant 1 : index
    %c0_162 = arith.constant 0 : index
    %c0_163 = arith.constant 0 : index
    %280 = vector.load %arg23[%c1_161, %c0_162, %c0_163] : memref<2x1x32xf32, #tpu.memory_space<vmem>>, vector<1x1x32xf32>
    %281 = vector.shape_cast %280 : vector<1x1x32xf32> to vector<1x32xf32>
    %282 = vector.shape_cast %249 : vector<4x8x32xf32> to vector<32x32xf32>
    %cst_164 = arith.constant dense<0.000000e+00> : vector<32x32xf32>
    %283 = tpu.matmul %282, %251, %cst_164 {dimension_numbers = #tpu.dot_dimension_numbers<[1], [0], [0], [1], [0, 0, 1, 1], [], []>} : vector<32x32xf32>, vector<32x32xf32>, vector<32x32xf32> -> vector<32x32xf32>
    %284 = vector.broadcast %253 : vector<1x32xf32> to vector<32x32xf32>
    %285 = arith.addf %283, %284 : vector<32x32xf32>
    %286 = vector.shape_cast %285 : vector<32x32xf32> to vector<4x8x32xf32>
    %cst_165 = arith.constant dense<0.000000e+00> : vector<32x32xf32>
    %287 = tpu.matmul %282, %255, %cst_165 {dimension_numbers = #tpu.dot_dimension_numbers<[1], [0], [0], [1], [0, 0, 1, 1], [], []>} : vector<32x32xf32>, vector<32x32xf32>, vector<32x32xf32> -> vector<32x32xf32>
    %288 = vector.broadcast %257 : vector<1x32xf32> to vector<32x32xf32>
    %289 = arith.addf %287, %288 : vector<32x32xf32>
    %290 = vector.shape_cast %289 : vector<32x32xf32> to vector<4x8x32xf32>
    %cst_166 = arith.constant dense<0.000000e+00> : vector<32x32xf32>
    %291 = tpu.matmul %282, %259, %cst_166 {dimension_numbers = #tpu.dot_dimension_numbers<[1], [0], [0], [1], [0, 0, 1, 1], [], []>} : vector<32x32xf32>, vector<32x32xf32>, vector<32x32xf32> -> vector<32x32xf32>
    %292 = vector.broadcast %261 : vector<1x32xf32> to vector<32x32xf32>
    %293 = arith.addf %291, %292 : vector<32x32xf32>
    %294 = vector.shape_cast %293 : vector<32x32xf32> to vector<4x8x32xf32>
    %295 = vector.extract_strided_slice %286 {offsets = [0, 0, 0], sizes = [4, 8, 8], strides = [1, 1, 1]} : vector<4x8x32xf32> to vector<4x8x8xf32>
    %296 = vector.extract_strided_slice %290 {offsets = [0, 0, 0], sizes = [4, 8, 8], strides = [1, 1, 1]} : vector<4x8x32xf32> to vector<4x8x8xf32>
    %297 = vector.extract_strided_slice %294 {offsets = [0, 0, 0], sizes = [4, 8, 8], strides = [1, 1, 1]} : vector<4x8x32xf32> to vector<4x8x8xf32>
    "tpu.trace_start"() <{level = 10 : i32, message = "bqd,bkd->bqk"}> : () -> ()
    %cst_167 = arith.constant dense<0.000000e+00> : vector<4x8x8xf32>
    %298 = tpu.matmul %295, %296, %cst_167 {dimension_numbers = #tpu.dot_dimension_numbers<[2], [2], [1], [1], [0, 0, 0, 1, 1, 1], [0], [0]>} : vector<4x8x8xf32>, vector<4x8x8xf32>, vector<4x8x8xf32> -> vector<4x8x8xf32>
    "tpu.trace_stop"() : () -> ()
    %299 = arith.addf %298, %57 : vector<4x8x8xf32>
    %cst_168 = arith.constant dense<0xFF800000> : vector<4x8xf32>
    %300 = vector.multi_reduction <maximumf>, %299, %cst_168 [2] : vector<4x8x8xf32> to vector<4x8xf32>
    %301 = vector.shape_cast %300 : vector<4x8xf32> to vector<4x8x1xf32>
    %302 = vector.broadcast %301 : vector<4x8x1xf32> to vector<4x8x8xf32>
    %303 = arith.subf %299, %302 : vector<4x8x8xf32>
    %304 = math.exp %303 : vector<4x8x8xf32>
    %cst_169 = arith.constant dense<0.000000e+00> : vector<4x8xf32>
    %305 = vector.multi_reduction <add>, %304, %cst_169 [2] : vector<4x8x8xf32> to vector<4x8xf32>
    %306 = vector.shape_cast %305 : vector<4x8xf32> to vector<4x8x1xf32>
    %307 = tpu.reciprocal %306 {approx = true} : vector<4x8x1xf32> -> vector<4x8x1xf32>
    %308 = vector.broadcast %307 : vector<4x8x1xf32> to vector<4x8x8xf32>
    %309 = arith.mulf %304, %308 : vector<4x8x8xf32>
    "tpu.trace_start"() <{level = 10 : i32, message = "bqk,bkd->bqd"}> : () -> ()
    %cst_170 = arith.constant dense<0.000000e+00> : vector<4x8x8xf32>
    %310 = tpu.matmul %309, %297, %cst_170 {dimension_numbers = #tpu.dot_dimension_numbers<[2], [1], [1], [2], [0, 0, 0, 1, 1, 2], [0], [0]>} : vector<4x8x8xf32>, vector<4x8x8xf32>, vector<4x8x8xf32> -> vector<4x8x8xf32>
    "tpu.trace_stop"() : () -> ()
    %311 = vector.shape_cast %310 : vector<4x8x8xf32> to vector<32x8xf32>
    %312 = vector.extract_strided_slice %263 {offsets = [0, 0], sizes = [8, 32], strides = [1, 1]} : vector<32x32xf32> to vector<8x32xf32>
    %cst_171 = arith.constant dense<0.000000e+00> : vector<32x32xf32>
    %313 = tpu.matmul %311, %312, %cst_171 {dimension_numbers = #tpu.dot_dimension_numbers<[1], [0], [0], [1], [0, 0, 1, 1], [], []>} : vector<32x8xf32>, vector<8x32xf32>, vector<32x32xf32> -> vector<32x32xf32>
    %314 = vector.extract_strided_slice %286 {offsets = [0, 0, 8], sizes = [4, 8, 8], strides = [1, 1, 1]} : vector<4x8x32xf32> to vector<4x8x8xf32>
    %315 = vector.extract_strided_slice %290 {offsets = [0, 0, 8], sizes = [4, 8, 8], strides = [1, 1, 1]} : vector<4x8x32xf32> to vector<4x8x8xf32>
    %316 = vector.extract_strided_slice %294 {offsets = [0, 0, 8], sizes = [4, 8, 8], strides = [1, 1, 1]} : vector<4x8x32xf32> to vector<4x8x8xf32>
    "tpu.trace_start"() <{level = 10 : i32, message = "bqd,bkd->bqk"}> : () -> ()
    %cst_172 = arith.constant dense<0.000000e+00> : vector<4x8x8xf32>
    %317 = tpu.matmul %314, %315, %cst_172 {dimension_numbers = #tpu.dot_dimension_numbers<[2], [2], [1], [1], [0, 0, 0, 1, 1, 1], [0], [0]>} : vector<4x8x8xf32>, vector<4x8x8xf32>, vector<4x8x8xf32> -> vector<4x8x8xf32>
    "tpu.trace_stop"() : () -> ()
    %318 = arith.addf %317, %57 : vector<4x8x8xf32>
    %cst_173 = arith.constant dense<0xFF800000> : vector<4x8xf32>
    %319 = vector.multi_reduction <maximumf>, %318, %cst_173 [2] : vector<4x8x8xf32> to vector<4x8xf32>
    %320 = vector.shape_cast %319 : vector<4x8xf32> to vector<4x8x1xf32>
    %321 = vector.broadcast %320 : vector<4x8x1xf32> to vector<4x8x8xf32>
    %322 = arith.subf %318, %321 : vector<4x8x8xf32>
    %323 = math.exp %322 : vector<4x8x8xf32>
    %cst_174 = arith.constant dense<0.000000e+00> : vector<4x8xf32>
    %324 = vector.multi_reduction <add>, %323, %cst_174 [2] : vector<4x8x8xf32> to vector<4x8xf32>
    %325 = vector.shape_cast %324 : vector<4x8xf32> to vector<4x8x1xf32>
    %326 = tpu.reciprocal %325 {approx = true} : vector<4x8x1xf32> -> vector<4x8x1xf32>
    %327 = vector.broadcast %326 : vector<4x8x1xf32> to vector<4x8x8xf32>
    %328 = arith.mulf %323, %327 : vector<4x8x8xf32>
    "tpu.trace_start"() <{level = 10 : i32, message = "bqk,bkd->bqd"}> : () -> ()
    %cst_175 = arith.constant dense<0.000000e+00> : vector<4x8x8xf32>
    %329 = tpu.matmul %328, %316, %cst_175 {dimension_numbers = #tpu.dot_dimension_numbers<[2], [1], [1], [2], [0, 0, 0, 1, 1, 2], [0], [0]>} : vector<4x8x8xf32>, vector<4x8x8xf32>, vector<4x8x8xf32> -> vector<4x8x8xf32>
    "tpu.trace_stop"() : () -> ()
    %330 = vector.shape_cast %329 : vector<4x8x8xf32> to vector<32x8xf32>
    %331 = vector.extract_strided_slice %263 {offsets = [8, 0], sizes = [8, 32], strides = [1, 1]} : vector<32x32xf32> to vector<8x32xf32>
    %cst_176 = arith.constant dense<0.000000e+00> : vector<32x32xf32>
    %332 = tpu.matmul %330, %331, %cst_176 {dimension_numbers = #tpu.dot_dimension_numbers<[1], [0], [0], [1], [0, 0, 1, 1], [], []>} : vector<32x8xf32>, vector<8x32xf32>, vector<32x32xf32> -> vector<32x32xf32>
    %333 = arith.addf %313, %332 : vector<32x32xf32>
    %334 = vector.extract_strided_slice %286 {offsets = [0, 0, 16], sizes = [4, 8, 8], strides = [1, 1, 1]} : vector<4x8x32xf32> to vector<4x8x8xf32>
    %335 = vector.extract_strided_slice %290 {offsets = [0, 0, 16], sizes = [4, 8, 8], strides = [1, 1, 1]} : vector<4x8x32xf32> to vector<4x8x8xf32>
    %336 = vector.extract_strided_slice %294 {offsets = [0, 0, 16], sizes = [4, 8, 8], strides = [1, 1, 1]} : vector<4x8x32xf32> to vector<4x8x8xf32>
    "tpu.trace_start"() <{level = 10 : i32, message = "bqd,bkd->bqk"}> : () -> ()
    %cst_177 = arith.constant dense<0.000000e+00> : vector<4x8x8xf32>
    %337 = tpu.matmul %334, %335, %cst_177 {dimension_numbers = #tpu.dot_dimension_numbers<[2], [2], [1], [1], [0, 0, 0, 1, 1, 1], [0], [0]>} : vector<4x8x8xf32>, vector<4x8x8xf32>, vector<4x8x8xf32> -> vector<4x8x8xf32>
    "tpu.trace_stop"() : () -> ()
    %338 = arith.addf %337, %57 : vector<4x8x8xf32>
    %cst_178 = arith.constant dense<0xFF800000> : vector<4x8xf32>
    %339 = vector.multi_reduction <maximumf>, %338, %cst_178 [2] : vector<4x8x8xf32> to vector<4x8xf32>
    %340 = vector.shape_cast %339 : vector<4x8xf32> to vector<4x8x1xf32>
    %341 = vector.broadcast %340 : vector<4x8x1xf32> to vector<4x8x8xf32>
    %342 = arith.subf %338, %341 : vector<4x8x8xf32>
    %343 = math.exp %342 : vector<4x8x8xf32>
    %cst_179 = arith.constant dense<0.000000e+00> : vector<4x8xf32>
    %344 = vector.multi_reduction <add>, %343, %cst_179 [2] : vector<4x8x8xf32> to vector<4x8xf32>
    %345 = vector.shape_cast %344 : vector<4x8xf32> to vector<4x8x1xf32>
    %346 = tpu.reciprocal %345 {approx = true} : vector<4x8x1xf32> -> vector<4x8x1xf32>
    %347 = vector.broadcast %346 : vector<4x8x1xf32> to vector<4x8x8xf32>
    %348 = arith.mulf %343, %347 : vector<4x8x8xf32>
    "tpu.trace_start"() <{level = 10 : i32, message = "bqk,bkd->bqd"}> : () -> ()
    %cst_180 = arith.constant dense<0.000000e+00> : vector<4x8x8xf32>
    %349 = tpu.matmul %348, %336, %cst_180 {dimension_numbers = #tpu.dot_dimension_numbers<[2], [1], [1], [2], [0, 0, 0, 1, 1, 2], [0], [0]>} : vector<4x8x8xf32>, vector<4x8x8xf32>, vector<4x8x8xf32> -> vector<4x8x8xf32>
    "tpu.trace_stop"() : () -> ()
    %350 = vector.shape_cast %349 : vector<4x8x8xf32> to vector<32x8xf32>
    %351 = vector.extract_strided_slice %263 {offsets = [16, 0], sizes = [8, 32], strides = [1, 1]} : vector<32x32xf32> to vector<8x32xf32>
    %cst_181 = arith.constant dense<0.000000e+00> : vector<32x32xf32>
    %352 = tpu.matmul %350, %351, %cst_181 {dimension_numbers = #tpu.dot_dimension_numbers<[1], [0], [0], [1], [0, 0, 1, 1], [], []>} : vector<32x8xf32>, vector<8x32xf32>, vector<32x32xf32> -> vector<32x32xf32>
    %353 = arith.addf %333, %352 : vector<32x32xf32>
    %354 = vector.extract_strided_slice %286 {offsets = [0, 0, 24], sizes = [4, 8, 8], strides = [1, 1, 1]} : vector<4x8x32xf32> to vector<4x8x8xf32>
    %355 = vector.extract_strided_slice %290 {offsets = [0, 0, 24], sizes = [4, 8, 8], strides = [1, 1, 1]} : vector<4x8x32xf32> to vector<4x8x8xf32>
    %356 = vector.extract_strided_slice %294 {offsets = [0, 0, 24], sizes = [4, 8, 8], strides = [1, 1, 1]} : vector<4x8x32xf32> to vector<4x8x8xf32>
    "tpu.trace_start"() <{level = 10 : i32, message = "bqd,bkd->bqk"}> : () -> ()
    %cst_182 = arith.constant dense<0.000000e+00> : vector<4x8x8xf32>
    %357 = tpu.matmul %354, %355, %cst_182 {dimension_numbers = #tpu.dot_dimension_numbers<[2], [2], [1], [1], [0, 0, 0, 1, 1, 1], [0], [0]>} : vector<4x8x8xf32>, vector<4x8x8xf32>, vector<4x8x8xf32> -> vector<4x8x8xf32>
    "tpu.trace_stop"() : () -> ()
    %358 = arith.addf %357, %57 : vector<4x8x8xf32>
    %cst_183 = arith.constant dense<0xFF800000> : vector<4x8xf32>
    %359 = vector.multi_reduction <maximumf>, %358, %cst_183 [2] : vector<4x8x8xf32> to vector<4x8xf32>
    %360 = vector.shape_cast %359 : vector<4x8xf32> to vector<4x8x1xf32>
    %361 = vector.broadcast %360 : vector<4x8x1xf32> to vector<4x8x8xf32>
    %362 = arith.subf %358, %361 : vector<4x8x8xf32>
    %363 = math.exp %362 : vector<4x8x8xf32>
    %cst_184 = arith.constant dense<0.000000e+00> : vector<4x8xf32>
    %364 = vector.multi_reduction <add>, %363, %cst_184 [2] : vector<4x8x8xf32> to vector<4x8xf32>
    %365 = vector.shape_cast %364 : vector<4x8xf32> to vector<4x8x1xf32>
    %366 = tpu.reciprocal %365 {approx = true} : vector<4x8x1xf32> -> vector<4x8x1xf32>
    %367 = vector.broadcast %366 : vector<4x8x1xf32> to vector<4x8x8xf32>
    %368 = arith.mulf %363, %367 : vector<4x8x8xf32>
    "tpu.trace_start"() <{level = 10 : i32, message = "bqk,bkd->bqd"}> : () -> ()
    %cst_185 = arith.constant dense<0.000000e+00> : vector<4x8x8xf32>
    %369 = tpu.matmul %368, %356, %cst_185 {dimension_numbers = #tpu.dot_dimension_numbers<[2], [1], [1], [2], [0, 0, 0, 1, 1, 2], [0], [0]>} : vector<4x8x8xf32>, vector<4x8x8xf32>, vector<4x8x8xf32> -> vector<4x8x8xf32>
    "tpu.trace_stop"() : () -> ()
    %370 = vector.shape_cast %369 : vector<4x8x8xf32> to vector<32x8xf32>
    %371 = vector.extract_strided_slice %263 {offsets = [24, 0], sizes = [8, 32], strides = [1, 1]} : vector<32x32xf32> to vector<8x32xf32>
    %cst_186 = arith.constant dense<0.000000e+00> : vector<32x32xf32>
    %372 = tpu.matmul %370, %371, %cst_186 {dimension_numbers = #tpu.dot_dimension_numbers<[1], [0], [0], [1], [0, 0, 1, 1], [], []>} : vector<32x8xf32>, vector<8x32xf32>, vector<32x32xf32> -> vector<32x32xf32>
    %373 = arith.addf %353, %372 : vector<32x32xf32>
    %374 = vector.broadcast %265 : vector<1x32xf32> to vector<32x32xf32>
    %375 = arith.addf %373, %374 : vector<32x32xf32>
    %376 = arith.addf %282, %375 : vector<32x32xf32>
    %cst_187 = arith.constant dense<0.000000e+00> : vector<32xf32>
    %377 = vector.multi_reduction <add>, %376, %cst_187 [1] : vector<32x32xf32> to vector<32xf32>
    %378 = vector.shape_cast %377 : vector<32xf32> to vector<32x1xf32>
    %cst_188 = arith.constant 3.200000e+01 : f32
    %379 = vector.broadcast %cst_188 : f32 to vector<32x1xf32>
    %380 = arith.divf %378, %379 : vector<32x1xf32>
    %381 = vector.broadcast %380 : vector<32x1xf32> to vector<32x32xf32>
    %382 = arith.subf %376, %381 : vector<32x32xf32>
    %383 = arith.mulf %382, %382 : vector<32x32xf32>
    %cst_189 = arith.constant dense<0.000000e+00> : vector<32xf32>
    %384 = vector.multi_reduction <add>, %383, %cst_189 [1] : vector<32x32xf32> to vector<32xf32>
    %385 = vector.shape_cast %384 : vector<32xf32> to vector<32x1xf32>
    %cst_190 = arith.constant 3.200000e+01 : f32
    %386 = vector.broadcast %cst_190 : f32 to vector<32x1xf32>
    %387 = arith.divf %385, %386 : vector<32x1xf32>
    %388 = vector.broadcast %380 : vector<32x1xf32> to vector<32x32xf32>
    %389 = arith.subf %376, %388 : vector<32x32xf32>
    %cst_191 = arith.constant 9.99999974E-6 : f32
    %390 = vector.broadcast %cst_191 : f32 to vector<32x1xf32>
    %391 = arith.addf %387, %390 : vector<32x1xf32>
    %392 = math.rsqrt %391 : vector<32x1xf32>
    %393 = vector.broadcast %392 : vector<32x1xf32> to vector<32x32xf32>
    %394 = arith.mulf %389, %393 : vector<32x32xf32>
    %395 = vector.broadcast %267 : vector<1x32xf32> to vector<32x32xf32>
    %396 = arith.mulf %394, %395 : vector<32x32xf32>
    %397 = vector.broadcast %269 : vector<1x32xf32> to vector<32x32xf32>
    %398 = arith.addf %396, %397 : vector<32x32xf32>
    %cst_192 = arith.constant dense<0.000000e+00> : vector<32x64xf32>
    %399 = tpu.matmul %398, %271, %cst_192 {dimension_numbers = #tpu.dot_dimension_numbers<[1], [0], [0], [1], [0, 0, 1, 1], [], []>} : vector<32x32xf32>, vector<32x64xf32>, vector<32x64xf32> -> vector<32x64xf32>
    %400 = vector.broadcast %273 : vector<1x64xf32> to vector<32x64xf32>
    %401 = arith.addf %399, %400 : vector<32x64xf32>
    %402 = arith.mulf %401, %401 : vector<32x64xf32>
    %403 = arith.mulf %401, %402 : vector<32x64xf32>
    %cst_193 = arith.constant 4.471500e-02 : f32
    %404 = vector.broadcast %cst_193 : f32 to vector<32x64xf32>
    %405 = arith.mulf %404, %403 : vector<32x64xf32>
    %406 = arith.addf %401, %405 : vector<32x64xf32>
    %cst_194 = arith.constant 0.797884583 : f32
    %407 = vector.broadcast %cst_194 : f32 to vector<32x64xf32>
    %408 = arith.mulf %407, %406 : vector<32x64xf32>
    %409 = math.tanh %408 : vector<32x64xf32>
    %cst_195 = arith.constant 1.000000e+00 : f32
    %410 = vector.broadcast %cst_195 : f32 to vector<32x64xf32>
    %411 = arith.addf %410, %409 : vector<32x64xf32>
    %cst_196 = arith.constant 5.000000e-01 : f32
    %412 = vector.broadcast %cst_196 : f32 to vector<32x64xf32>
    %413 = arith.mulf %412, %411 : vector<32x64xf32>
    %414 = arith.mulf %401, %413 : vector<32x64xf32>
    %cst_197 = arith.constant dense<0.000000e+00> : vector<32x32xf32>
    %415 = tpu.matmul %414, %275, %cst_197 {dimension_numbers = #tpu.dot_dimension_numbers<[1], [0], [0], [1], [0, 0, 1, 1], [], []>} : vector<32x64xf32>, vector<64x32xf32>, vector<32x32xf32> -> vector<32x32xf32>
    %416 = vector.broadcast %277 : vector<1x32xf32> to vector<32x32xf32>
    %417 = arith.addf %415, %416 : vector<32x32xf32>
    %418 = arith.addf %398, %417 : vector<32x32xf32>
    %cst_198 = arith.constant dense<0.000000e+00> : vector<32xf32>
    %419 = vector.multi_reduction <add>, %418, %cst_198 [1] : vector<32x32xf32> to vector<32xf32>
    %420 = vector.shape_cast %419 : vector<32xf32> to vector<32x1xf32>
    %cst_199 = arith.constant 3.200000e+01 : f32
    %421 = vector.broadcast %cst_199 : f32 to vector<32x1xf32>
    %422 = arith.divf %420, %421 : vector<32x1xf32>
    %423 = vector.broadcast %422 : vector<32x1xf32> to vector<32x32xf32>
    %424 = arith.subf %418, %423 : vector<32x32xf32>
    %425 = arith.mulf %424, %424 : vector<32x32xf32>
    %cst_200 = arith.constant dense<0.000000e+00> : vector<32xf32>
    %426 = vector.multi_reduction <add>, %425, %cst_200 [1] : vector<32x32xf32> to vector<32xf32>
    %427 = vector.shape_cast %426 : vector<32xf32> to vector<32x1xf32>
    %cst_201 = arith.constant 3.200000e+01 : f32
    %428 = vector.broadcast %cst_201 : f32 to vector<32x1xf32>
    %429 = arith.divf %427, %428 : vector<32x1xf32>
    %430 = vector.broadcast %422 : vector<32x1xf32> to vector<32x32xf32>
    %431 = arith.subf %418, %430 : vector<32x32xf32>
    %cst_202 = arith.constant 9.99999974E-6 : f32
    %432 = vector.broadcast %cst_202 : f32 to vector<32x1xf32>
    %433 = arith.addf %429, %432 : vector<32x1xf32>
    %434 = math.rsqrt %433 : vector<32x1xf32>
    %435 = vector.broadcast %434 : vector<32x1xf32> to vector<32x32xf32>
    %436 = arith.mulf %431, %435 : vector<32x32xf32>
    %437 = vector.broadcast %279 : vector<1x32xf32> to vector<32x32xf32>
    %438 = arith.mulf %436, %437 : vector<32x32xf32>
    %439 = vector.broadcast %281 : vector<1x32xf32> to vector<32x32xf32>
    %440 = arith.addf %438, %439 : vector<32x32xf32>
    %441 = vector.shape_cast %440 : vector<32x32xf32> to vector<4x8x32xf32>
    %c0_203 = arith.constant 0 : index
    %c0_204 = arith.constant 0 : index
    %442 = vector.load %arg24[%c0_203, %c0_204] : memref<64x32xf32, #tpu.memory_space<vmem>>, vector<64x32xf32>
    %443 = vector.extract_strided_slice %441 {offsets = [0, 0, 0], sizes = [1, 1, 32], strides = [1, 1, 1]} : vector<4x8x32xf32> to vector<1x1x32xf32>
    %444 = vector.shape_cast %443 : vector<1x1x32xf32> to vector<1x32xf32>
    %445 = vector.extract_strided_slice %441 {offsets = [2, 0, 0], sizes = [1, 1, 32], strides = [1, 1, 1]} : vector<4x8x32xf32> to vector<1x1x32xf32>
    %446 = vector.shape_cast %445 : vector<1x1x32xf32> to vector<1x32xf32>
    %447 = tpu.concatenate %444, %446 in 0 : vector<1x32xf32>, vector<1x32xf32> -> vector<2x32xf32>
    %448 = vector.extract_strided_slice %441 {offsets = [1, 0, 0], sizes = [1, 1, 32], strides = [1, 1, 1]} : vector<4x8x32xf32> to vector<1x1x32xf32>
    %449 = vector.shape_cast %448 : vector<1x1x32xf32> to vector<1x32xf32>
    %450 = vector.extract_strided_slice %441 {offsets = [3, 0, 0], sizes = [1, 1, 32], strides = [1, 1, 1]} : vector<4x8x32xf32> to vector<1x1x32xf32>
    %451 = vector.shape_cast %450 : vector<1x1x32xf32> to vector<1x32xf32>
    %452 = tpu.concatenate %449, %451 in 0 : vector<1x32xf32>, vector<1x32xf32> -> vector<2x32xf32>
    %453 = vector.extract_strided_slice %442 {offsets = [0, 0], sizes = [32, 32], strides = [1, 1]} : vector<64x32xf32> to vector<32x32xf32>
    %cst_205 = arith.constant dense<0.000000e+00> : vector<2x32xf32>
    %454 = tpu.matmul %447, %453, %cst_205 {dimension_numbers = #tpu.dot_dimension_numbers<[1], [0], [0], [1], [0, 0, 1, 1], [], []>} : vector<2x32xf32>, vector<32x32xf32>, vector<2x32xf32> -> vector<2x32xf32>
    %455 = vector.extract_strided_slice %442 {offsets = [32, 0], sizes = [32, 32], strides = [1, 1]} : vector<64x32xf32> to vector<32x32xf32>
    %cst_206 = arith.constant dense<0.000000e+00> : vector<2x32xf32>
    %456 = tpu.matmul %452, %455, %cst_206 {dimension_numbers = #tpu.dot_dimension_numbers<[1], [0], [0], [1], [0, 0, 1, 1], [], []>} : vector<2x32xf32>, vector<32x32xf32>, vector<2x32xf32> -> vector<2x32xf32>
    %457 = arith.addf %454, %456 : vector<2x32xf32>
    %c0_207 = arith.constant 0 : index
    %c0_208 = arith.constant 0 : index
    %458 = vector.load %arg25[%c0_207, %c0_208] : memref<1x32xf32, #tpu.memory_space<vmem>>, vector<1x32xf32>
    %459 = vector.broadcast %458 : vector<1x32xf32> to vector<2x32xf32>
    %460 = arith.addf %457, %459 : vector<2x32xf32>
    %461 = math.tanh %460 : vector<2x32xf32>
    %c0_209 = arith.constant 0 : index
    %c0_210 = arith.constant 0 : index
    %462 = vector.load %arg26[%c0_209, %c0_210] : memref<32x2xf32, #tpu.memory_space<vmem>>, vector<32x2xf32>
    %cst_211 = arith.constant dense<0.000000e+00> : vector<2x2xf32>
    %463 = tpu.matmul %461, %462, %cst_211 {dimension_numbers = #tpu.dot_dimension_numbers<[1], [0], [0], [1], [0, 0, 1, 1], [], []>} : vector<2x32xf32>, vector<32x2xf32>, vector<2x2xf32> -> vector<2x2xf32>
    %c0_212 = arith.constant 0 : index
    %c0_213 = arith.constant 0 : index
    %464 = vector.load %arg27[%c0_212, %c0_213] : memref<1x2xf32, #tpu.memory_space<vmem>>, vector<1x2xf32>
    %465 = vector.broadcast %464 : vector<1x2xf32> to vector<2x2xf32>
    %466 = arith.addf %463, %465 : vector<2x2xf32>
    %cst_214 = arith.constant dense<0xFF800000> : vector<2xf32>
    %467 = vector.multi_reduction <maximumf>, %466, %cst_214 [1] : vector<2x2xf32> to vector<2xf32>
    %468 = vector.shape_cast %467 : vector<2xf32> to vector<2x1xf32>
    %469 = vector.broadcast %468 : vector<2x1xf32> to vector<2x2xf32>
    %470 = arith.subf %466, %469 : vector<2x2xf32>
    %471 = math.exp %470 : vector<2x2xf32>
    %cst_215 = arith.constant dense<0.000000e+00> : vector<2xf32>
    %472 = vector.multi_reduction <add>, %471, %cst_215 [1] : vector<2x2xf32> to vector<2xf32>
    %473 = vector.shape_cast %472 : vector<2xf32> to vector<2x1xf32>
    %474 = vector.broadcast %473 : vector<2x1xf32> to vector<2x2xf32>
    %475 = arith.divf %471, %474 : vector<2x2xf32>
    %c0_216 = arith.constant 0 : index
    %c0_217 = arith.constant 0 : index
    %476 = vector.load %arg28[%c0_216, %c0_217] : memref<2x2xf32, #tpu.memory_space<vmem>>, vector<2x2xf32>
    tpu.vector_store %arg28[%c0_216, %c0_217], %475 {strides = array<i32>} : memref<2x2xf32, #tpu.memory_space<vmem>>, vector<2x2xf32>,
    return
  }
}

</mosaic_0001>

<llo_original>
// kernel: model_forward.1
$region0: #{model_forward.1}
  #allocation0 [shape = 'u32[]', space=smem, size = 0x4, offset = 0x4, fixed_abs, tag = 'smem constant byte address 0x4 - core index']
  #allocation1 [shape = 'u32[144,128]{1,0:T(1,128)}', space=vmem, size = 0x12000, scoped, tag = 'internal scratch']
  %s0 = inlined_call_operand.vmem [shape: f32[4,8,32], index: 0, kind: input, shape index: {}]
  %s1 = inlined_call_operand.vmem [shape: f32[4,8,32], index: 1, kind: input, shape index: {}]
  %s2 = inlined_call_operand.vmem [shape: f32[1,32], index: 2, kind: input, shape index: {}]
  %s3 = inlined_call_operand.vmem [shape: f32[4,8,1], index: 3, kind: input, shape index: {}]
  %s4 = inlined_call_operand.vmem [shape: f32[4,1,8], index: 4, kind: input, shape index: {}]
  %s5 = inlined_call_operand.vmem [shape: f32[4,8,8], index: 5, kind: input, shape index: {}]
  %s6 = inlined_call_operand.vmem [shape: f32[1,32], index: 6, kind: input, shape index: {}]
  %s7 = inlined_call_operand.vmem [shape: f32[1,32], index: 7, kind: input, shape index: {}]
  %s8 = inlined_call_operand.vmem [shape: f32[2,32,32], index: 8, kind: input, shape index: {}]
  %s9 = inlined_call_operand.vmem [shape: f32[2,1,32], index: 9, kind: input, shape index: {}]
  %s10 = inlined_call_operand.vmem [shape: f32[2,32,32], index: 10, kind: input, shape index: {}]
  %s11 = inlined_call_operand.vmem [shape: f32[2,1,32], index: 11, kind: input, shape index: {}]
  %s12 = inlined_call_operand.vmem [shape: f32[2,32,32], index: 12, kind: input, shape index: {}]
  %s13 = inlined_call_operand.vmem [shape: f32[2,1,32], index: 13, kind: input, shape index: {}]
  %s14 = inlined_call_operand.vmem [shape: f32[2,32,32], index: 14, kind: input, shape index: {}]
  %s15 = inlined_call_operand.vmem [shape: f32[2,1,32], index: 15, kind: input, shape index: {}]
  %s16 = inlined_call_operand.vmem [shape: f32[2,1,32], index: 16, kind: input, shape index: {}]
  %s17 = inlined_call_operand.vmem [shape: f32[2,1,32], index: 17, kind: input, shape index: {}]
  %s18 = inlined_call_operand.vmem [shape: f32[2,32,64], index: 18, kind: input, shape index: {}]
  %s19 = inlined_call_operand.vmem [shape: f32[2,1,64], index: 19, kind: input, shape index: {}]
  %s20 = inlined_call_operand.vmem [shape: f32[2,64,32], index: 20, kind: input, shape index: {}]
  %s21 = inlined_call_operand.vmem [shape: f32[2,1,32], index: 21, kind: input, shape index: {}]
  %s22 = inlined_call_operand.vmem [shape: f32[2,1,32], index: 22, kind: input, shape index: {}]
  %s23 = inlined_call_operand.vmem [shape: f32[2,1,32], index: 23, kind: input, shape index: {}]
  %s24 = inlined_call_operand.vmem [shape: f32[64,32], index: 24, kind: input, shape index: {}]
  %s25 = inlined_call_operand.vmem [shape: f32[1,32], index: 25, kind: input, shape index: {}]
  %s26 = inlined_call_operand.vmem [shape: f32[32,2], index: 26, kind: input, shape index: {}]
  %s27 = inlined_call_operand.vmem [shape: f32[1,2], index: 27, kind: input, shape index: {}]
  %s28 = inlined_call_operand.hbm [shape: f32[2,2], index: 28, kind: output, shape index: {}]
  %s29 = sld [smem:[#allocation0]]
  $region122: #{model_forward.1} parent=0
    _
  %s31 = ssub.s32 1, %s29
  %s32 = scalar_select 0, %s31, %s29
  $region1: #{model_forward.1} parent=0
    #allocation2 [shape = 'u8[1024]{0}', space=vmem, size = 0x400, scoped, tag = 'output window, operand 0, single buffered']
    #allocation3 [shape = 's32[1]{0}', space=sflag, size = 0x4, scoped, tag = 'scoped memory for model_forward.1']
    %33 = vsyncpa [#allocation3], 0
    // Predicated region
    $region2: #{model_forward.1} parent=1 // pred_check
      _
    $region3: #{model_forward.1} parent=1 // pred_check_branch
      %35 = sbr.rel (0) target = $region5
    $region4: #{model_forward.1} parent=1 // pred_region
      _
    $region5: #{model_forward.1} parent=1 // pred_fallthru
      _
    // Predicated region
    $region6: #{model_forward.1} parent=1 // pred_check
      _
    $region7: #{model_forward.1} parent=1 // pred_check_branch
      %37 = sbr.rel (0) target = $region9
    $region8: #{model_forward.1} parent=1 // pred_region
      _
    $region9: #{model_forward.1} parent=1 // pred_fallthru
      _
    // Predicated region
    $region10: #{model_forward.1} parent=1 // pred_check
      _
    $region11: #{model_forward.1} parent=1 // pred_check_branch
      %39 = sbr.rel (0) target = $region13
    $region12: #{model_forward.1} parent=1 // pred_region
      _
    $region13: #{model_forward.1} parent=1 // pred_fallthru
      _
    // Predicated region
    $region14: #{model_forward.1} parent=1 // pred_check
      _
    $region15: #{model_forward.1} parent=1 // pred_check_branch
      %41 = sbr.rel (0) target = $region17
    $region16: #{model_forward.1} parent=1 // pred_region
      _
    $region17: #{model_forward.1} parent=1 // pred_fallthru
      _
    // Predicated region
    $region18: #{model_forward.1} parent=1 // pred_check
      _
    $region19: #{model_forward.1} parent=1 // pred_check_branch
      %43 = sbr.rel (0) target = $region21
    $region20: #{model_forward.1} parent=1 // pred_region
      _
    $region21: #{model_forward.1} parent=1 // pred_fallthru
      _
    // Predicated region
    $region22: #{model_forward.1} parent=1 // pred_check
      _
    $region23: #{model_forward.1} parent=1 // pred_check_branch
      %45 = sbr.rel (0) target = $region25
    $region24: #{model_forward.1} parent=1 // pred_region
      _
    $region25: #{model_forward.1} parent=1 // pred_fallthru
      _
    // Predicated region
    $region26: #{model_forward.1} parent=1 // pred_check
      _
    $region27: #{model_forward.1} parent=1 // pred_check_branch
      %47 = sbr.rel (0) target = $region29
    $region28: #{model_forward.1} parent=1 // pred_region
      _
    $region29: #{model_forward.1} parent=1 // pred_fallthru
      _
    // Predicated region
    $region30: #{model_forward.1} parent=1 // pred_check
      _
    $region31: #{model_forward.1} parent=1 // pred_check_branch
      %49 = sbr.rel (0) target = $region33
    $region32: #{model_forward.1} parent=1 // pred_region
      _
    $region33: #{model_forward.1} parent=1 // pred_fallthru
      _
    // Predicated region
    $region34: #{model_forward.1} parent=1 // pred_check
      _
    $region35: #{model_forward.1} parent=1 // pred_check_branch
      %51 = sbr.rel (0) target = $region37
    $region36: #{model_forward.1} parent=1 // pred_region
      _
    $region37: #{model_forward.1} parent=1 // pred_fallthru
      _
    // Predicated region
    $region38: #{model_forward.1} parent=1 // pred_check
      _
    $region39: #{model_forward.1} parent=1 // pred_check_branch
      %53 = sbr.rel (0) target = $region41
    $region40: #{model_forward.1} parent=1 // pred_region
      _
    $region41: #{model_forward.1} parent=1 // pred_fallthru
      _
    // Predicated region
    $region42: #{model_forward.1} parent=1 // pred_check
      _
    $region43: #{model_forward.1} parent=1 // pred_check_branch
      %55 = sbr.rel (0) target = $region45
    $region44: #{model_forward.1} parent=1 // pred_region
      _
    $region45: #{model_forward.1} parent=1 // pred_fallthru
      _
    // Predicated region
    $region46: #{model_forward.1} parent=1 // pred_check
      _
    $region47: #{model_forward.1} parent=1 // pred_check_branch
      %57 = sbr.rel (0) target = $region49
    $region48: #{model_forward.1} parent=1 // pred_region
      _
    $region49: #{model_forward.1} parent=1 // pred_fallthru
      _
    // Predicated region
    $region50: #{model_forward.1} parent=1 // pred_check
      _
    $region51: #{model_forward.1} parent=1 // pred_check_branch
      %59 = sbr.rel (0) target = $region53
    $region52: #{model_forward.1} parent=1 // pred_region
      _
    $region53: #{model_forward.1} parent=1 // pred_fallthru
      _
    // Predicated region
    $region54: #{model_forward.1} parent=1 // pred_check
      _
    $region55: #{model_forward.1} parent=1 // pred_check_branch
      %61 = sbr.rel (0) target = $region57
    $region56: #{model_forward.1} parent=1 // pred_region
      _
    $region57: #{model_forward.1} parent=1 // pred_fallthru
      _
    // Predicated region
    $region58: #{model_forward.1} parent=1 // pred_check
      _
    $region59: #{model_forward.1} parent=1 // pred_check_branch
      %63 = sbr.rel (0) target = $region61
    $region60: #{model_forward.1} parent=1 // pred_region
      _
    $region61: #{model_forward.1} parent=1 // pred_fallthru
      _
    // Predicated region
    $region62: #{model_forward.1} parent=1 // pred_check
      _
    $region63: #{model_forward.1} parent=1 // pred_check_branch
      %65 = sbr.rel (0) target = $region65
    $region64: #{model_forward.1} parent=1 // pred_region
      _
    $region65: #{model_forward.1} parent=1 // pred_fallthru
      _
    // Predicated region
    $region66: #{model_forward.1} parent=1 // pred_check
      _
    $region67: #{model_forward.1} parent=1 // pred_check_branch
      %67 = sbr.rel (0) target = $region69
    $region68: #{model_forward.1} parent=1 // pred_region
      _
    $region69: #{model_forward.1} parent=1 // pred_fallthru
      _
    // Predicated region
    $region70: #{model_forward.1} parent=1 // pred_check
      _
    $region71: #{model_forward.1} parent=1 // pred_check_branch
      %69 = sbr.rel (0) target = $region73
    $region72: #{model_forward.1} parent=1 // pred_region
      _
    $region73: #{model_forward.1} parent=1 // pred_fallthru
      _
    // Predicated region
    $region74: #{model_forward.1} parent=1 // pred_check
      _
    $region75: #{model_forward.1} parent=1 // pred_check_branch
      %71 = sbr.rel (0) target = $region77
    $region76: #{model_forward.1} parent=1 // pred_region
      _
    $region77: #{model_forward.1} parent=1 // pred_fallthru
      _
    // Predicated region
    $region78: #{model_forward.1} parent=1 // pred_check
      _
    $region79: #{model_forward.1} parent=1 // pred_check_branch
      %73 = sbr.rel (0) target = $region81
    $region80: #{model_forward.1} parent=1 // pred_region
      _
    $region81: #{model_forward.1} parent=1 // pred_fallthru
      _
    // Predicated region
    $region82: #{model_forward.1} parent=1 // pred_check
      _
    $region83: #{model_forward.1} parent=1 // pred_check_branch
      %75 = sbr.rel (0) target = $region85
    $region84: #{model_forward.1} parent=1 // pred_region
      _
    $region85: #{model_forward.1} parent=1 // pred_fallthru
      _
    // Predicated region
    $region86: #{model_forward.1} parent=1 // pred_check
      _
    $region87: #{model_forward.1} parent=1 // pred_check_branch
      %77 = sbr.rel (0) target = $region89
    $region88: #{model_forward.1} parent=1 // pred_region
      _
    $region89: #{model_forward.1} parent=1 // pred_fallthru
      _
    // Predicated region
    $region90: #{model_forward.1} parent=1 // pred_check
      _
    $region91: #{model_forward.1} parent=1 // pred_check_branch
      %79 = sbr.rel (0) target = $region93
    $region92: #{model_forward.1} parent=1 // pred_region
      _
    $region93: #{model_forward.1} parent=1 // pred_fallthru
      _
    // Predicated region
    $region94: #{model_forward.1} parent=1 // pred_check
      _
    $region95: #{model_forward.1} parent=1 // pred_check_branch
      %81 = sbr.rel (0) target = $region97
    $region96: #{model_forward.1} parent=1 // pred_region
      _
    $region97: #{model_forward.1} parent=1 // pred_fallthru
      _
    // Predicated region
    $region98: #{model_forward.1} parent=1 // pred_check
      _
    $region99: #{model_forward.1} parent=1 // pred_check_branch
      %83 = sbr.rel (0) target = $region101
    $region100: #{model_forward.1} parent=1 // pred_region
      _
    $region101: #{model_forward.1} parent=1 // pred_fallthru
      _
    // Predicated region
    $region102: #{model_forward.1} parent=1 // pred_check
      _
    $region103: #{model_forward.1} parent=1 // pred_check_branch
      %85 = sbr.rel (0) target = $region105
    $region104: #{model_forward.1} parent=1 // pred_region
      _
    $region105: #{model_forward.1} parent=1 // pred_fallthru
      _
    // Predicated region
    $region106: #{model_forward.1} parent=1 // pred_check
      _
    $region107: #{model_forward.1} parent=1 // pred_check_branch
      %87 = sbr.rel (0) target = $region109
    $region108: #{model_forward.1} parent=1 // pred_region
      _
    $region109: #{model_forward.1} parent=1 // pred_fallthru
      _
    // Predicated region
    $region110: #{model_forward.1} parent=1 // pred_check
      _
    $region111: #{model_forward.1} parent=1 // pred_check_branch
      %89 = sbr.rel (0) target = $region113
    $region112: #{model_forward.1} parent=1 // pred_region
      _
    $region113: #{model_forward.1} parent=1 // pred_fallthru
      _
    %v90 = vld [vmem:[%s0] sm:$0xff]
    %v91 = vld [vmem:[%s0 + $0x8] sm:$0xff]
    %v92 = vld [vmem:[%s0 + $0x10] sm:$0xff]
    %v93 = vld [vmem:[%s0 + $0x18] sm:$0xff]
    %v94 = vld [vmem:[%s1] sm:$0xff]
    %v95 = vld [vmem:[%s1 + $0x8] sm:$0xff]
    %v96 = vld [vmem:[%s1 + $0x10] sm:$0xff]
    %v97 = vld [vmem:[%s1 + $0x18] sm:$0xff]
    %v98 = vld [vmem:[%s2] sm:$0x1]
    %v99 = vld [vmem:[%s3] sm:$0xff]
    %v100 = vld [vmem:[%s3 + $0x8] sm:$0xff]
    %v101 = vld [vmem:[%s3 + $0x10] sm:$0xff]
    %v102 = vld [vmem:[%s3 + $0x18] sm:$0xff]
    %v103 = vld [vmem:[%s4] sm:$0x1]
    %v104 = vld [vmem:[%s4 + $0x1] sm:$0x1]
    %v105 = vld [vmem:[%s4 + $0x2] sm:$0x1]
    %v106 = vld [vmem:[%s4 + $0x3] sm:$0x1]
    %v107 = vld [vmem:[%s5] sm:$0xff]
    %v108 = vld [vmem:[%s5 + $0x8] sm:$0xff]
    %v109 = vld [vmem:[%s5 + $0x10] sm:$0xff]
    %v110 = vld [vmem:[%s5 + $0x18] sm:$0xff]
    %112 = vset.pattern.permute.xlu0 0
    %113 = vperm.xlu0 %112, %v99
    %v114 = vpop.permute.xlu0 %113
    %117 = vset.pattern.permute.xlu0 0
    %118 = vperm.xlu0 %117, %v100
    %v119 = vpop.permute.xlu0 %118
    %122 = vset.pattern.permute.xlu0 0
    %123 = vperm.xlu0 %122, %v101
    %v124 = vpop.permute.xlu0 %123
    %127 = vset.pattern.permute.xlu0 0
    %128 = vperm.xlu0 %127, %v102
    %v129 = vpop.permute.xlu0 %128
    %v135 = vlaneseq
    %v136 = vshrl.u32 %v135, 7
    %v137 = vsub.s32 0, %v136
    %v138 = vrot.slane %v103, %v137
    %v139 = vlaneseq
    %v140 = vshrl.u32 %v139, 7
    %v141 = vsub.s32 0, %v140
    %v142 = vrot.slane %v104, %v141
    %v143 = vlaneseq
    %v144 = vshrl.u32 %v143, 7
    %v145 = vsub.s32 0, %v144
    %v146 = vrot.slane %v105, %v145
    %v147 = vlaneseq
    %v148 = vshrl.u32 %v147, 7
    %v149 = vsub.s32 0, %v148
    %v150 = vrot.slane %v106, %v149
    %v155 = vmul.f32 %v114, %v138
    %v156 = vmul.f32 %v119, %v142
    %v157 = vmul.f32 %v124, %v146
    %v158 = vmul.f32 %v129, %v150
    %v159 = vmul.f32 %v155, %v107
    %v160 = vmul.f32 %v156, %v108
    %v161 = vmul.f32 %v157, %v109
    %v162 = vmul.f32 %v158, %v110
    %vm163 = vcmask 64512
    %v164 = vsel %vm163, %v159, 0.0
    %165 = vadd.xlane.f32.xlu0 %v164
    %v166 = vpop.xlane.xlu0 %165
    %v167 = vsel %vm163, %v160, 0.0
    %168 = vadd.xlane.f32.xlu0 %v167
    %v169 = vpop.xlane.xlu0 %168
    %v170 = vsel %vm163, %v161, 0.0
    %171 = vadd.xlane.f32.xlu0 %v170
    %v172 = vpop.xlane.xlu0 %171
    %v173 = vsel %vm163, %v162, 0.0
    %174 = vadd.xlane.f32.xlu0 %v173
    %v175 = vpop.xlane.xlu0 %174
    %v176 = vadd.f32 %v166, 1e-10
    %v177 = vadd.f32 %v169, 1e-10
    %v178 = vadd.f32 %v172, 1e-10
    %v179 = vadd.f32 %v175, 1e-10
    %v180 = vrcp.pop %v176
    %v181 = vmul.f32 %v159, %v180
    %v182 = vrcp.pop %v177
    %v183 = vmul.f32 %v160, %v182
    %v184 = vrcp.pop %v178
    %v185 = vmul.f32 %v161, %v184
    %v186 = vrcp.pop %v179
    %v187 = vmul.f32 %v162, %v186
    %v189 = vsel %vm163, %v181, 0
    %191 = vmatprep.subr.mxu0 0.0
    %192 = vmatpush1.msra.mxu0 0.0
    %193 = vmatprep.subr.mxu0 0.0
    %194 = vmatpush1.msra.mxu0 0.0
    %195 = vmatprep.subr.mxu0 0.0
    %196 = vmatpush1.msra.mxu0 0.0
    %197 = vmatprep.subr.mxu0 0.0
    %198 = vmatpush1.msra.mxu0 0.0
    %199 = vmatprep.subr.mxu0 0.0
    %200 = vmatpush1.msra.mxu0 0.0
    %201 = vmatprep.subr.mxu0 0.0
    %202 = vmatpush1.msra.mxu0 0.0
    %203 = vmatprep.subr.mxu0 0.0
    %204 = vmatpush1.msra.mxu0 0.0
    %205 = vmatprep.subr.mxu0 0.0
    %206 = vmatpush1.msra.mxu0 0.0
    %207 = vmatprep.subr.mxu0 0.0
    %208 = vmatpush1.msra.mxu0 0.0
    %209 = vmatprep.subr.mxu0 0.0
    %210 = vmatpush1.msra.mxu0 0.0
    %211 = vmatprep.subr.mxu0 0.0
    %212 = vmatpush1.msra.mxu0 0.0
    %213 = vmatprep.subr.mxu0 0.0
    %214 = vmatpush1.msra.mxu0 0.0
    %215 = vmatprep.subr.mxu0 0.0
    %216 = vmatpush1.msra.mxu0 0.0
    %217 = vmatprep.subr.mxu0 0.0
    %218 = vmatpush1.msra.mxu0 0.0
    %219 = vmatprep.subr.mxu0 0.0
    %220 = vmatpush1.msra.mxu0 0.0
    %221 = vmatprep.subr.mxu0 0.0
    %222 = vmatpush1.msra.mxu0 %v90
    %223 = vmatprep.subr.mxu0 0.0
    %224 = vmatpush2.msra.mxu0 0.0
    %225 = vmatprep.subr.mxu0 0.0
    %226 = vmatpush2.msra.mxu0 0.0
    %227 = vmatprep.subr.mxu0 0.0
    %228 = vmatpush2.msra.mxu0 0.0
    %229 = vmatprep.subr.mxu0 0.0
    %230 = vmatpush2.msra.mxu0 0.0
    %231 = vmatprep.subr.mxu0 0.0
    %232 = vmatpush2.msra.mxu0 0.0
    %233 = vmatprep.subr.mxu0 0.0
    %234 = vmatpush2.msra.mxu0 0.0
    %235 = vmatprep.subr.mxu0 0.0
    %236 = vmatpush2.msra.mxu0 0.0
    %237 = vmatprep.subr.mxu0 0.0
    %238 = vmatpush2.msra.mxu0 0.0
    %239 = vmatprep.subr.mxu0 0.0
    %240 = vmatpush2.msra.mxu0 0.0
    %241 = vmatprep.subr.mxu0 0.0
    %242 = vmatpush2.msra.mxu0 0.0
    %243 = vmatprep.subr.mxu0 0.0
    %244 = vmatpush2.msra.mxu0 0.0
    %245 = vmatprep.subr.mxu0 0.0
    %246 = vmatpush2.msra.mxu0 0.0
    %247 = vmatprep.subr.mxu0 0.0
    %248 = vmatpush2.msra.mxu0 0.0
    %249 = vmatprep.subr.mxu0 0.0
    %250 = vmatpush2.msra.mxu0 0.0
    %251 = vmatprep.subr.mxu0 0.0
    %252 = vmatpush2.msra.mxu0 0.0
    %253 = vmatprep.subr.mxu0 0.0
    %254 = vmatpush2.msra.mxu0 0.0
    %255 = vmatprep.mubr.f32.mxu0 0.0
    %256 = vmatmul.mubr.f32.gmra.mxu0 %v189
    %v257 = vpop.f32.mrf.mxu0
    %v258 = vadd.f32 0.0, %v257
    %v259 = vpop.f32.mrf.mxu0
    %260 = vdwg.mxu0
    %v262 = vsel %vm163, %v183, 0
    %264 = vmatprep.subr.mxu0 0.0
    %265 = vmatpush1.msra.mxu0 0.0
    %266 = vmatprep.subr.mxu0 0.0
    %267 = vmatpush1.msra.mxu0 0.0
    %268 = vmatprep.subr.mxu0 0.0
    %269 = vmatpush1.msra.mxu0 0.0
    %270 = vmatprep.subr.mxu0 0.0
    %271 = vmatpush1.msra.mxu0 0.0
    %272 = vmatprep.subr.mxu0 0.0
    %273 = vmatpush1.msra.mxu0 0.0
    %274 = vmatprep.subr.mxu0 0.0
    %275 = vmatpush1.msra.mxu0 0.0
    %276 = vmatprep.subr.mxu0 0.0
    %277 = vmatpush1.msra.mxu0 0.0
    %278 = vmatprep.subr.mxu0 0.0
    %279 = vmatpush1.msra.mxu0 0.0
    %280 = vmatprep.subr.mxu0 0.0
    %281 = vmatpush1.msra.mxu0 0.0
    %282 = vmatprep.subr.mxu0 0.0
    %283 = vmatpush1.msra.mxu0 0.0
    %284 = vmatprep.subr.mxu0 0.0
    %285 = vmatpush1.msra.mxu0 0.0
    %286 = vmatprep.subr.mxu0 0.0
    %287 = vmatpush1.msra.mxu0 0.0
    %288 = vmatprep.subr.mxu0 0.0
    %289 = vmatpush1.msra.mxu0 0.0
    %290 = vmatprep.subr.mxu0 0.0
    %291 = vmatpush1.msra.mxu0 0.0
    %292 = vmatprep.subr.mxu0 0.0
    %293 = vmatpush1.msra.mxu0 0.0
    %294 = vmatprep.subr.mxu0 0.0
    %295 = vmatpush1.msra.mxu0 %v91
    %296 = vmatprep.subr.mxu0 0.0
    %297 = vmatpush2.msra.mxu0 0.0
    %298 = vmatprep.subr.mxu0 0.0
    %299 = vmatpush2.msra.mxu0 0.0
    %300 = vmatprep.subr.mxu0 0.0
    %301 = vmatpush2.msra.mxu0 0.0
    %302 = vmatprep.subr.mxu0 0.0
    %303 = vmatpush2.msra.mxu0 0.0
    %304 = vmatprep.subr.mxu0 0.0
    %305 = vmatpush2.msra.mxu0 0.0
    %306 = vmatprep.subr.mxu0 0.0
    %307 = vmatpush2.msra.mxu0 0.0
    %308 = vmatprep.subr.mxu0 0.0
    %309 = vmatpush2.msra.mxu0 0.0
    %310 = vmatprep.subr.mxu0 0.0
    %311 = vmatpush2.msra.mxu0 0.0
    %312 = vmatprep.subr.mxu0 0.0
    %313 = vmatpush2.msra.mxu0 0.0
    %314 = vmatprep.subr.mxu0 0.0
    %315 = vmatpush2.msra.mxu0 0.0
    %316 = vmatprep.subr.mxu0 0.0
    %317 = vmatpush2.msra.mxu0 0.0
    %318 = vmatprep.subr.mxu0 0.0
    %319 = vmatpush2.msra.mxu0 0.0
    %320 = vmatprep.subr.mxu0 0.0
    %321 = vmatpush2.msra.mxu0 0.0
    %322 = vmatprep.subr.mxu0 0.0
    %323 = vmatpush2.msra.mxu0 0.0
    %324 = vmatprep.subr.mxu0 0.0
    %325 = vmatpush2.msra.mxu0 0.0
    %326 = vmatprep.subr.mxu0 0.0
    %327 = vmatpush2.msra.mxu0 0.0
    %328 = vmatprep.mubr.f32.mxu0 0.0
    %329 = vmatmul.mubr.f32.gmra.mxu0 %v262
    %v330 = vpop.f32.mrf.mxu0
    %v331 = vadd.f32 0.0, %v330
    %v332 = vpop.f32.mrf.mxu0
    %333 = vdwg.mxu0
    %v335 = vsel %vm163, %v185, 0
    %337 = vmatprep.subr.mxu0 0.0
    %338 = vmatpush1.msra.mxu0 0.0
    %339 = vmatprep.subr.mxu0 0.0
    %340 = vmatpush1.msra.mxu0 0.0
    %341 = vmatprep.subr.mxu0 0.0
    %342 = vmatpush1.msra.mxu0 0.0
    %343 = vmatprep.subr.mxu0 0.0
    %344 = vmatpush1.msra.mxu0 0.0
    %345 = vmatprep.subr.mxu0 0.0
    %346 = vmatpush1.msra.mxu0 0.0
    %347 = vmatprep.subr.mxu0 0.0
    %348 = vmatpush1.msra.mxu0 0.0
    %349 = vmatprep.subr.mxu0 0.0
    %350 = vmatpush1.msra.mxu0 0.0
    %351 = vmatprep.subr.mxu0 0.0
    %352 = vmatpush1.msra.mxu0 0.0
    %353 = vmatprep.subr.mxu0 0.0
    %354 = vmatpush1.msra.mxu0 0.0
    %355 = vmatprep.subr.mxu0 0.0
    %356 = vmatpush1.msra.mxu0 0.0
    %357 = vmatprep.subr.mxu0 0.0
    %358 = vmatpush1.msra.mxu0 0.0
    %359 = vmatprep.subr.mxu0 0.0
    %360 = vmatpush1.msra.mxu0 0.0
    %361 = vmatprep.subr.mxu0 0.0
    %362 = vmatpush1.msra.mxu0 0.0
    %363 = vmatprep.subr.mxu0 0.0
    %364 = vmatpush1.msra.mxu0 0.0
    %365 = vmatprep.subr.mxu0 0.0
    %366 = vmatpush1.msra.mxu0 0.0
    %367 = vmatprep.subr.mxu0 0.0
    %368 = vmatpush1.msra.mxu0 %v92
    %369 = vmatprep.subr.mxu0 0.0
    %370 = vmatpush2.msra.mxu0 0.0
    %371 = vmatprep.subr.mxu0 0.0
    %372 = vmatpush2.msra.mxu0 0.0
    %373 = vmatprep.subr.mxu0 0.0
    %374 = vmatpush2.msra.mxu0 0.0
    %375 = vmatprep.subr.mxu0 0.0
    %376 = vmatpush2.msra.mxu0 0.0
    %377 = vmatprep.subr.mxu0 0.0
    %378 = vmatpush2.msra.mxu0 0.0
    %379 = vmatprep.subr.mxu0 0.0
    %380 = vmatpush2.msra.mxu0 0.0
    %381 = vmatprep.subr.mxu0 0.0
    %382 = vmatpush2.msra.mxu0 0.0
    %383 = vmatprep.subr.mxu0 0.0
    %384 = vmatpush2.msra.mxu0 0.0
    %385 = vmatprep.subr.mxu0 0.0
    %386 = vmatpush2.msra.mxu0 0.0
    %387 = vmatprep.subr.mxu0 0.0
    %388 = vmatpush2.msra.mxu0 0.0
    %389 = vmatprep.subr.mxu0 0.0
    %390 = vmatpush2.msra.mxu0 0.0
    %391 = vmatprep.subr.mxu0 0.0
    %392 = vmatpush2.msra.mxu0 0.0
    %393 = vmatprep.subr.mxu0 0.0
    %394 = vmatpush2.msra.mxu0 0.0
    %395 = vmatprep.subr.mxu0 0.0
    %396 = vmatpush2.msra.mxu0 0.0
    %397 = vmatprep.subr.mxu0 0.0
    %398 = vmatpush2.msra.mxu0 0.0
    %399 = vmatprep.subr.mxu0 0.0
    %400 = vmatpush2.msra.mxu0 0.0
    %401 = vmatprep.mubr.f32.mxu0 0.0
    %402 = vmatmul.mubr.f32.gmra.mxu0 %v335
    %v403 = vpop.f32.mrf.mxu0
    %v404 = vadd.f32 0.0, %v403
    %v405 = vpop.f32.mrf.mxu0
    %406 = vdwg.mxu0
    %v408 = vsel %vm163, %v187, 0
    %410 = vmatprep.subr.mxu0 0.0
    %411 = vmatpush1.msra.mxu0 0.0
    %412 = vmatprep.subr.mxu0 0.0
    %413 = vmatpush1.msra.mxu0 0.0
    %414 = vmatprep.subr.mxu0 0.0
    %415 = vmatpush1.msra.mxu0 0.0
    %416 = vmatprep.subr.mxu0 0.0
    %417 = vmatpush1.msra.mxu0 0.0
    %418 = vmatprep.subr.mxu0 0.0
    %419 = vmatpush1.msra.mxu0 0.0
    %420 = vmatprep.subr.mxu0 0.0
    %421 = vmatpush1.msra.mxu0 0.0
    %422 = vmatprep.subr.mxu0 0.0
    %423 = vmatpush1.msra.mxu0 0.0
    %424 = vmatprep.subr.mxu0 0.0
    %425 = vmatpush1.msra.mxu0 0.0
    %426 = vmatprep.subr.mxu0 0.0
    %427 = vmatpush1.msra.mxu0 0.0
    %428 = vmatprep.subr.mxu0 0.0
    %429 = vmatpush1.msra.mxu0 0.0
    %430 = vmatprep.subr.mxu0 0.0
    %431 = vmatpush1.msra.mxu0 0.0
    %432 = vmatprep.subr.mxu0 0.0
    %433 = vmatpush1.msra.mxu0 0.0
    %434 = vmatprep.subr.mxu0 0.0
    %435 = vmatpush1.msra.mxu0 0.0
    %436 = vmatprep.subr.mxu0 0.0
    %437 = vmatpush1.msra.mxu0 0.0
    %438 = vmatprep.subr.mxu0 0.0
    %439 = vmatpush1.msra.mxu0 0.0
    %440 = vmatprep.subr.mxu0 0.0
    %441 = vmatpush1.msra.mxu0 %v93
    %442 = vmatprep.subr.mxu0 0.0
    %443 = vmatpush2.msra.mxu0 0.0
    %444 = vmatprep.subr.mxu0 0.0
    %445 = vmatpush2.msra.mxu0 0.0
    %446 = vmatprep.subr.mxu0 0.0
    %447 = vmatpush2.msra.mxu0 0.0
    %448 = vmatprep.subr.mxu0 0.0
    %449 = vmatpush2.msra.mxu0 0.0
    %450 = vmatprep.subr.mxu0 0.0
    %451 = vmatpush2.msra.mxu0 0.0
    %452 = vmatprep.subr.mxu0 0.0
    %453 = vmatpush2.msra.mxu0 0.0
    %454 = vmatprep.subr.mxu0 0.0
    %455 = vmatpush2.msra.mxu0 0.0
    %456 = vmatprep.subr.mxu0 0.0
    %457 = vmatpush2.msra.mxu0 0.0
    %458 = vmatprep.subr.mxu0 0.0
    %459 = vmatpush2.msra.mxu0 0.0
    %460 = vmatprep.subr.mxu0 0.0
    %461 = vmatpush2.msra.mxu0 0.0
    %462 = vmatprep.subr.mxu0 0.0
    %463 = vmatpush2.msra.mxu0 0.0
    %464 = vmatprep.subr.mxu0 0.0
    %465 = vmatpush2.msra.mxu0 0.0
    %466 = vmatprep.subr.mxu0 0.0
    %467 = vmatpush2.msra.mxu0 0.0
    %468 = vmatprep.subr.mxu0 0.0
    %469 = vmatpush2.msra.mxu0 0.0
    %470 = vmatprep.subr.mxu0 0.0
    %471 = vmatpush2.msra.mxu0 0.0
    %472 = vmatprep.subr.mxu0 0.0
    %473 = vmatpush2.msra.mxu0 0.0
    %474 = vmatprep.mubr.f32.mxu0 0.0
    %475 = vmatmul.mubr.f32.gmra.mxu0 %v408
    %v476 = vpop.f32.mrf.mxu0
    %v477 = vadd.f32 0.0, %v476
    %v478 = vpop.f32.mrf.mxu0
    %479 = vdwg.mxu0
    %v480 = vsub.f32 1.0, %v99
    %v481 = vsub.f32 1.0, %v100
    %v482 = vsub.f32 1.0, %v101
    %v483 = vsub.f32 1.0, %v102
    %485 = vset.pattern.permute.xlu0 0
    %486 = vperm.xlu0 %485, %v480
    %v487 = vpop.permute.xlu0 %486
    %490 = vset.pattern.permute.xlu0 0
    %491 = vperm.xlu0 %490, %v481
    %v492 = vpop.permute.xlu0 %491
    %495 = vset.pattern.permute.xlu0 0
    %496 = vperm.xlu0 %495, %v482
    %v497 = vpop.permute.xlu0 %496
    %500 = vset.pattern.permute.xlu0 0
    %501 = vperm.xlu0 %500, %v483
    %v502 = vpop.permute.xlu0 %501
    %v504 = vmul.f32 %v90, %v487
    %v505 = vmul.f32 %v91, %v492
    %v506 = vmul.f32 %v92, %v497
    %v507 = vmul.f32 %v93, %v502
    %v508 = vmul.f32 %v258, %v114
    %v509 = vmul.f32 %v331, %v119
    %v510 = vmul.f32 %v404, %v124
    %v511 = vmul.f32 %v477, %v129
    %v512 = vadd.f32 %v504, %v508
    %v513 = vadd.f32 %v505, %v509
    %v514 = vadd.f32 %v506, %v510
    %v515 = vadd.f32 %v507, %v511
    %v516 = vadd.f32 %v512, %v94
    %v517 = vadd.f32 %v513, %v95
    %v518 = vadd.f32 %v514, %v96
    %v519 = vadd.f32 %v515, %v97
    %v521 = vlaneseq
    %v522 = vshrl.u32 %v521, 7
    %v523 = vsub.s32 0, %v522
    %v524 = vrot.slane %v98, %v523
    %v526 = vadd.f32 %v516, %v524
    %v527 = vadd.f32 %v517, %v524
    %v528 = vadd.f32 %v518, %v524
    %v529 = vadd.f32 %v519, %v524
    %v530 = vld [vmem:[%s6] sm:$0x1]
    %v531 = vld [vmem:[%s7] sm:$0x1]
    %vm532 = vcmask 261120
    %v533 = vsel %vm532, %v526, 0.0
    %534 = vadd.xlane.f32.xlu0 %v533
    %v535 = vpop.xlane.xlu0 %534
    %v536 = vsel %vm532, %v527, 0.0
    %537 = vadd.xlane.f32.xlu0 %v536
    %v538 = vpop.xlane.xlu0 %537
    %v539 = vsel %vm532, %v528, 0.0
    %540 = vadd.xlane.f32.xlu0 %v539
    %v541 = vpop.xlane.xlu0 %540
    %v542 = vsel %vm532, %v529, 0.0
    %543 = vadd.xlane.f32.xlu0 %v542
    %v544 = vpop.xlane.xlu0 %543
    %v545 = vrcp.pop 32.0
    %v546 = vmul.f32 %v535, %v545
    %v547 = vmul.f32 %v538, %v545
    %v548 = vmul.f32 %v541, %v545
    %v549 = vmul.f32 %v544, %v545
    %v550 = vsub.f32 %v526, %v546
    %v551 = vsub.f32 %v527, %v547
    %v552 = vsub.f32 %v528, %v548
    %v553 = vsub.f32 %v529, %v549
    %v554 = vmul.f32 %v550, %v550
    %v555 = vmul.f32 %v551, %v551
    %v556 = vmul.f32 %v552, %v552
    %v557 = vmul.f32 %v553, %v553
    %v558 = vsel %vm532, %v554, 0.0
    %559 = vadd.xlane.f32.xlu0 %v558
    %v560 = vpop.xlane.xlu0 %559
    %v561 = vsel %vm532, %v555, 0.0
    %562 = vadd.xlane.f32.xlu0 %v561
    %v563 = vpop.xlane.xlu0 %562
    %v564 = vsel %vm532, %v556, 0.0
    %565 = vadd.xlane.f32.xlu0 %v564
    %v566 = vpop.xlane.xlu0 %565
    %v567 = vsel %vm532, %v557, 0.0
    %568 = vadd.xlane.f32.xlu0 %v567
    %v569 = vpop.xlane.xlu0 %568
    %v570 = vmul.f32 %v560, %v545
    %v571 = vmul.f32 %v563, %v545
    %v572 = vmul.f32 %v566, %v545
    %v573 = vmul.f32 %v569, %v545
    %v574 = vadd.f32 %v570, 1e-05
    %v575 = vadd.f32 %v571, 1e-05
    %v576 = vadd.f32 %v572, 1e-05
    %v577 = vadd.f32 %v573, 1e-05
    %v578 = vrsqrt.pop %v574
    %v579 = vrsqrt.pop %v575
    %v580 = vrsqrt.pop %v576
    %v581 = vrsqrt.pop %v577
    %v582 = vmul.f32 %v550, %v578
    %v583 = vmul.f32 %v551, %v579
    %v584 = vmul.f32 %v552, %v580
    %v585 = vmul.f32 %v553, %v581
    %v587 = vlaneseq
    %v588 = vshrl.u32 %v587, 7
    %v589 = vsub.s32 0, %v588
    %v590 = vrot.slane %v530, %v589
    %v592 = vmul.f32 %v582, %v590
    %v593 = vmul.f32 %v583, %v590
    %v594 = vmul.f32 %v584, %v590
    %v595 = vmul.f32 %v585, %v590
    %v597 = vlaneseq
    %v598 = vshrl.u32 %v597, 7
    %v599 = vsub.s32 0, %v598
    %v600 = vrot.slane %v531, %v599
    %v602 = vadd.f32 %v592, %v600
    %v603 = vadd.f32 %v593, %v600
    %v604 = vadd.f32 %v594, %v600
    %v605 = vadd.f32 %v595, %v600
    %v606 = vsub.f32 1.0, %v107
    %v607 = vsub.f32 1.0, %v108
    %v608 = vsub.f32 1.0, %v109
    %v609 = vsub.f32 1.0, %v110
    %v610 = vmul.f32 %v606, -1e+09
    %v611 = vmul.f32 %v607, -1e+09
    %v612 = vmul.f32 %v608, -1e+09
    %v613 = vmul.f32 %v609, -1e+09
    %v614 = vld [vmem:[%s8] sm:$0xff]
    %v615 = vld [vmem:[%s8 + $0x8] sm:$0xff]
    %v616 = vld [vmem:[%s8 + $0x10] sm:$0xff]
    %v617 = vld [vmem:[%s8 + $0x18] sm:$0xff]
    %v618 = vld [vmem:[%s9] sm:$0x1]
    %v619 = vld [vmem:[%s10] sm:$0xff]
    %v620 = vld [vmem:[%s10 + $0x8] sm:$0xff]
    %v621 = vld [vmem:[%s10 + $0x10] sm:$0xff]
    %v622 = vld [vmem:[%s10 + $0x18] sm:$0xff]
    %v623 = vld [vmem:[%s11] sm:$0x1]
    %v624 = vld [vmem:[%s12] sm:$0xff]
    %v625 = vld [vmem:[%s12 + $0x8] sm:$0xff]
    %v626 = vld [vmem:[%s12 + $0x10] sm:$0xff]
    %v627 = vld [vmem:[%s12 + $0x18] sm:$0xff]
    %v628 = vld [vmem:[%s13] sm:$0x1]
    %v629 = vld [vmem:[%s14] sm:$0xff]
    %v630 = vld [vmem:[%s14 + $0x8] sm:$0xff]
    %v631 = vld [vmem:[%s14 + $0x10] sm:$0xff]
    %v632 = vld [vmem:[%s14 + $0x18] sm:$0xff]
    %v633 = vld [vmem:[%s15] sm:$0x1]
    %v634 = vld [vmem:[%s16] sm:$0x1]
    %v635 = vld [vmem:[%s17] sm:$0x1]
    %v636 = vld [vmem:[%s18] sm:$0xff]
    %v637 = vld [vmem:[%s18 + $0x8] sm:$0xff]
    %v638 = vld [vmem:[%s18 + $0x10] sm:$0xff]
    %v639 = vld [vmem:[%s18 + $0x18] sm:$0xff]
    %v640 = vld [vmem:[%s19] sm:$0x1]
    %v641 = vld [vmem:[%s20] sm:$0xff]
    %v642 = vld [vmem:[%s20 + $0x8] sm:$0xff]
    %v643 = vld [vmem:[%s20 + $0x10] sm:$0xff]
    %v644 = vld [vmem:[%s20 + $0x18] sm:$0xff]
    %v645 = vld [vmem:[%s20 + $0x20] sm:$0xff]
    %v646 = vld [vmem:[%s20 + $0x28] sm:$0xff]
    %v647 = vld [vmem:[%s20 + $0x30] sm:$0xff]
    %v648 = vld [vmem:[%s20 + $0x38] sm:$0xff]
    %v649 = vld [vmem:[%s21] sm:$0x1]
    %v650 = vld [vmem:[%s22] sm:$0x1]
    %v651 = vld [vmem:[%s23] sm:$0x1]
    %v653 = vlaneseq
    %v654 = vshrl.u32 %v653, 7
    %v655 = vsub.s32 0, %v654
    %v656 = vrot.slane %v618, %v655
    %v659 = vsel %vm532, %v602, 0
    %v662 = vsel %vm532, %v603, 0
    %v665 = vsel %vm532, %v604, 0
    %v668 = vsel %vm532, %v605, 0
    %670 = vmatprep.subr.mxu0 0.0
    %671 = vmatpush1.msra.mxu0 0.0
    %672 = vmatprep.subr.mxu0 0.0
    %673 = vmatpush1.msra.mxu0 0.0
    %674 = vmatprep.subr.mxu0 0.0
    %675 = vmatpush1.msra.mxu0 0.0
    %676 = vmatprep.subr.mxu0 0.0
    %677 = vmatpush1.msra.mxu0 0.0
    %678 = vmatprep.subr.mxu0 0.0
    %679 = vmatpush1.msra.mxu0 0.0
    %680 = vmatprep.subr.mxu0 0.0
    %681 = vmatpush1.msra.mxu0 0.0
    %682 = vmatprep.subr.mxu0 0.0
    %683 = vmatpush1.msra.mxu0 0.0
    %684 = vmatprep.subr.mxu0 0.0
    %685 = vmatpush1.msra.mxu0 0.0
    %686 = vmatprep.subr.mxu0 0.0
    %687 = vmatpush1.msra.mxu0 0.0
    %688 = vmatprep.subr.mxu0 0.0
    %689 = vmatpush1.msra.mxu0 0.0
    %690 = vmatprep.subr.mxu0 0.0
    %691 = vmatpush1.msra.mxu0 0.0
    %692 = vmatprep.subr.mxu0 0.0
    %693 = vmatpush1.msra.mxu0 0.0
    %694 = vmatprep.subr.mxu0 0.0
    %695 = vmatpush1.msra.mxu0 %v617
    %696 = vmatprep.subr.mxu0 0.0
    %697 = vmatpush1.msra.mxu0 %v616
    %698 = vmatprep.subr.mxu0 0.0
    %699 = vmatpush1.msra.mxu0 %v615
    %700 = vmatprep.subr.mxu0 0.0
    %701 = vmatpush1.msra.mxu0 %v614
    %702 = vmatprep.subr.mxu0 0.0
    %703 = vmatpush2.msra.mxu0 0.0
    %704 = vmatprep.subr.mxu0 0.0
    %705 = vmatpush2.msra.mxu0 0.0
    %706 = vmatprep.subr.mxu0 0.0
    %707 = vmatpush2.msra.mxu0 0.0
    %708 = vmatprep.subr.mxu0 0.0
    %709 = vmatpush2.msra.mxu0 0.0
    %710 = vmatprep.subr.mxu0 0.0
    %711 = vmatpush2.msra.mxu0 0.0
    %712 = vmatprep.subr.mxu0 0.0
    %713 = vmatpush2.msra.mxu0 0.0
    %714 = vmatprep.subr.mxu0 0.0
    %715 = vmatpush2.msra.mxu0 0.0
    %716 = vmatprep.subr.mxu0 0.0
    %717 = vmatpush2.msra.mxu0 0.0
    %718 = vmatprep.subr.mxu0 0.0
    %719 = vmatpush2.msra.mxu0 0.0
    %720 = vmatprep.subr.mxu0 0.0
    %721 = vmatpush2.msra.mxu0 0.0
    %722 = vmatprep.subr.mxu0 0.0
    %723 = vmatpush2.msra.mxu0 0.0
    %724 = vmatprep.subr.mxu0 0.0
    %725 = vmatpush2.msra.mxu0 0.0
    %726 = vmatprep.subr.mxu0 0.0
    %727 = vmatpush2.msra.mxu0 0.0
    %728 = vmatprep.subr.mxu0 0.0
    %729 = vmatpush2.msra.mxu0 0.0
    %730 = vmatprep.subr.mxu0 0.0
    %731 = vmatpush2.msra.mxu0 0.0
    %732 = vmatprep.subr.mxu0 0.0
    %733 = vmatpush2.msra.mxu0 0.0
    %734 = vmatprep.mubr.f32.mxu0 0.0
    %735 = vmatmul.mubr.f32.gmra.mxu0 %v659
    %v736 = vpop.f32.mrf.mxu0
    %v737 = vadd.f32 %v656, %v736
    %v738 = vpop.f32.mrf.mxu0
    %739 = vmatprep.mubr.f32.mxu0 0.0
    %740 = vmatmul.mubr.f32.gmra.mxu0 %v662
    %v741 = vpop.f32.mrf.mxu0
    %v742 = vadd.f32 %v656, %v741
    %v743 = vpop.f32.mrf.mxu0
    %744 = vmatprep.mubr.f32.mxu0 0.0
    %745 = vmatmul.mubr.f32.gmra.mxu0 %v665
    %v746 = vpop.f32.mrf.mxu0
    %v747 = vadd.f32 %v656, %v746
    %v748 = vpop.f32.mrf.mxu0
    %749 = vmatprep.mubr.f32.mxu0 0.0
    %750 = vmatmul.mubr.f32.gmra.mxu0 %v668
    %v751 = vpop.f32.mrf.mxu0
    %v752 = vadd.f32 %v656, %v751
    %v753 = vpop.f32.mrf.mxu0
    %754 = vdwg.mxu0
    %v756 = vlaneseq
    %v757 = vshrl.u32 %v756, 7
    %v758 = vsub.s32 0, %v757
    %v759 = vrot.slane %v623, %v758
    %761 = vmatprep.subr.mxu0 0.0
    %762 = vmatpush1.msra.mxu0 0.0
    %763 = vmatprep.subr.mxu0 0.0
    %764 = vmatpush1.msra.mxu0 0.0
    %765 = vmatprep.subr.mxu0 0.0
    %766 = vmatpush1.msra.mxu0 0.0
    %767 = vmatprep.subr.mxu0 0.0
    %768 = vmatpush1.msra.mxu0 0.0
    %769 = vmatprep.subr.mxu0 0.0
    %770 = vmatpush1.msra.mxu0 0.0
    %771 = vmatprep.subr.mxu0 0.0
    %772 = vmatpush1.msra.mxu0 0.0
    %773 = vmatprep.subr.mxu0 0.0
    %774 = vmatpush1.msra.mxu0 0.0
    %775 = vmatprep.subr.mxu0 0.0
    %776 = vmatpush1.msra.mxu0 0.0
    %777 = vmatprep.subr.mxu0 0.0
    %778 = vmatpush1.msra.mxu0 0.0
    %779 = vmatprep.subr.mxu0 0.0
    %780 = vmatpush1.msra.mxu0 0.0
    %781 = vmatprep.subr.mxu0 0.0
    %782 = vmatpush1.msra.mxu0 0.0
    %783 = vmatprep.subr.mxu0 0.0
    %784 = vmatpush1.msra.mxu0 0.0
    %785 = vmatprep.subr.mxu0 0.0
    %786 = vmatpush1.msra.mxu0 %v622
    %787 = vmatprep.subr.mxu0 0.0
    %788 = vmatpush1.msra.mxu0 %v621
    %789 = vmatprep.subr.mxu0 0.0
    %790 = vmatpush1.msra.mxu0 %v620
    %791 = vmatprep.subr.mxu0 0.0
    %792 = vmatpush1.msra.mxu0 %v619
    %793 = vmatprep.subr.mxu0 0.0
    %794 = vmatpush2.msra.mxu0 0.0
    %795 = vmatprep.subr.mxu0 0.0
    %796 = vmatpush2.msra.mxu0 0.0
    %797 = vmatprep.subr.mxu0 0.0
    %798 = vmatpush2.msra.mxu0 0.0
    %799 = vmatprep.subr.mxu0 0.0
    %800 = vmatpush2.msra.mxu0 0.0
    %801 = vmatprep.subr.mxu0 0.0
    %802 = vmatpush2.msra.mxu0 0.0
    %803 = vmatprep.subr.mxu0 0.0
    %804 = vmatpush2.msra.mxu0 0.0
    %805 = vmatprep.subr.mxu0 0.0
    %806 = vmatpush2.msra.mxu0 0.0
    %807 = vmatprep.subr.mxu0 0.0
    %808 = vmatpush2.msra.mxu0 0.0
    %809 = vmatprep.subr.mxu0 0.0
    %810 = vmatpush2.msra.mxu0 0.0
    %811 = vmatprep.subr.mxu0 0.0
    %812 = vmatpush2.msra.mxu0 0.0
    %813 = vmatprep.subr.mxu0 0.0
    %814 = vmatpush2.msra.mxu0 0.0
    %815 = vmatprep.subr.mxu0 0.0
    %816 = vmatpush2.msra.mxu0 0.0
    %817 = vmatprep.subr.mxu0 0.0
    %818 = vmatpush2.msra.mxu0 0.0
    %819 = vmatprep.subr.mxu0 0.0
    %820 = vmatpush2.msra.mxu0 0.0
    %821 = vmatprep.subr.mxu0 0.0
    %822 = vmatpush2.msra.mxu0 0.0
    %823 = vmatprep.subr.mxu0 0.0
    %824 = vmatpush2.msra.mxu0 0.0
    %825 = vmatprep.mubr.f32.mxu0 0.0
    %826 = vmatmul.mubr.f32.gmra.mxu0 %v659
    %v827 = vpop.f32.mrf.mxu0
    %v828 = vadd.f32 %v759, %v827
    %v829 = vpop.f32.mrf.mxu0
    %830 = vmatprep.mubr.f32.mxu0 0.0
    %831 = vmatmul.mubr.f32.gmra.mxu0 %v662
    %v832 = vpop.f32.mrf.mxu0
    %v833 = vadd.f32 %v759, %v832
    %v834 = vpop.f32.mrf.mxu0
    %835 = vmatprep.mubr.f32.mxu0 0.0
    %836 = vmatmul.mubr.f32.gmra.mxu0 %v665
    %v837 = vpop.f32.mrf.mxu0
    %v838 = vadd.f32 %v759, %v837
    %v839 = vpop.f32.mrf.mxu0
    %840 = vmatprep.mubr.f32.mxu0 0.0
    %841 = vmatmul.mubr.f32.gmra.mxu0 %v668
    %v842 = vpop.f32.mrf.mxu0
    %v843 = vadd.f32 %v759, %v842
    %v844 = vpop.f32.mrf.mxu0
    %845 = vdwg.mxu0
    %v847 = vlaneseq
    %v848 = vshrl.u32 %v847, 7
    %v849 = vsub.s32 0, %v848
    %v850 = vrot.slane %v628, %v849
    %852 = vmatprep.subr.mxu0 0.0
    %853 = vmatpush1.msra.mxu0 0.0
    %854 = vmatprep.subr.mxu0 0.0
    %855 = vmatpush1.msra.mxu0 0.0
    %856 = vmatprep.subr.mxu0 0.0
    %857 = vmatpush1.msra.mxu0 0.0
    %858 = vmatprep.subr.mxu0 0.0
    %859 = vmatpush1.msra.mxu0 0.0
    %860 = vmatprep.subr.mxu0 0.0
    %861 = vmatpush1.msra.mxu0 0.0
    %862 = vmatprep.subr.mxu0 0.0
    %863 = vmatpush1.msra.mxu0 0.0
    %864 = vmatprep.subr.mxu0 0.0
    %865 = vmatpush1.msra.mxu0 0.0
    %866 = vmatprep.subr.mxu0 0.0
    %867 = vmatpush1.msra.mxu0 0.0
    %868 = vmatprep.subr.mxu0 0.0
    %869 = vmatpush1.msra.mxu0 0.0
    %870 = vmatprep.subr.mxu0 0.0
    %871 = vmatpush1.msra.mxu0 0.0
    %872 = vmatprep.subr.mxu0 0.0
    %873 = vmatpush1.msra.mxu0 0.0
    %874 = vmatprep.subr.mxu0 0.0
    %875 = vmatpush1.msra.mxu0 0.0
    %876 = vmatprep.subr.mxu0 0.0
    %877 = vmatpush1.msra.mxu0 %v627
    %878 = vmatprep.subr.mxu0 0.0
    %879 = vmatpush1.msra.mxu0 %v626
    %880 = vmatprep.subr.mxu0 0.0
    %881 = vmatpush1.msra.mxu0 %v625
    %882 = vmatprep.subr.mxu0 0.0
    %883 = vmatpush1.msra.mxu0 %v624
    %884 = vmatprep.subr.mxu0 0.0
    %885 = vmatpush2.msra.mxu0 0.0
    %886 = vmatprep.subr.mxu0 0.0
    %887 = vmatpush2.msra.mxu0 0.0
    %888 = vmatprep.subr.mxu0 0.0
    %889 = vmatpush2.msra.mxu0 0.0
    %890 = vmatprep.subr.mxu0 0.0
    %891 = vmatpush2.msra.mxu0 0.0
    %892 = vmatprep.subr.mxu0 0.0
    %893 = vmatpush2.msra.mxu0 0.0
    %894 = vmatprep.subr.mxu0 0.0
    %895 = vmatpush2.msra.mxu0 0.0
    %896 = vmatprep.subr.mxu0 0.0
    %897 = vmatpush2.msra.mxu0 0.0
    %898 = vmatprep.subr.mxu0 0.0
    %899 = vmatpush2.msra.mxu0 0.0
    %900 = vmatprep.subr.mxu0 0.0
    %901 = vmatpush2.msra.mxu0 0.0
    %902 = vmatprep.subr.mxu0 0.0
    %903 = vmatpush2.msra.mxu0 0.0
    %904 = vmatprep.subr.mxu0 0.0
    %905 = vmatpush2.msra.mxu0 0.0
    %906 = vmatprep.subr.mxu0 0.0
    %907 = vmatpush2.msra.mxu0 0.0
    %908 = vmatprep.subr.mxu0 0.0
    %909 = vmatpush2.msra.mxu0 0.0
    %910 = vmatprep.subr.mxu0 0.0
    %911 = vmatpush2.msra.mxu0 0.0
    %912 = vmatprep.subr.mxu0 0.0
    %913 = vmatpush2.msra.mxu0 0.0
    %914 = vmatprep.subr.mxu0 0.0
    %915 = vmatpush2.msra.mxu0 0.0
    %916 = vmatprep.mubr.f32.mxu0 0.0
    %917 = vmatmul.mubr.f32.gmra.mxu0 %v659
    %v918 = vpop.f32.mrf.mxu0
    %v919 = vadd.f32 %v850, %v918
    %v920 = vpop.f32.mrf.mxu0
    %921 = vmatprep.mubr.f32.mxu0 0.0
    %922 = vmatmul.mubr.f32.gmra.mxu0 %v662
    %v923 = vpop.f32.mrf.mxu0
    %v924 = vadd.f32 %v850, %v923
    %v925 = vpop.f32.mrf.mxu0
    %926 = vmatprep.mubr.f32.mxu0 0.0
    %927 = vmatmul.mubr.f32.gmra.mxu0 %v665
    %v928 = vpop.f32.mrf.mxu0
    %v929 = vadd.f32 %v850, %v928
    %v930 = vpop.f32.mrf.mxu0
    %931 = vmatprep.mubr.f32.mxu0 0.0
    %932 = vmatmul.mubr.f32.gmra.mxu0 %v668
    %v933 = vpop.f32.mrf.mxu0
    %v934 = vadd.f32 %v850, %v933
    %v935 = vpop.f32.mrf.mxu0
    %936 = vdwg.mxu0
    %v938 = vsel %vm163, %v737, 0
    %v941 = vsel %vm163, %v828, 0
    %943 = vmatprep.subr.mxu0 0.0
    %944 = vmatpush1.xpose.msra.mxu0 0.0
    %945 = vmatprep.subr.mxu0 0.0
    %946 = vmatpush1.xpose.msra.mxu0 0.0
    %947 = vmatprep.subr.mxu0 0.0
    %948 = vmatpush1.xpose.msra.mxu0 0.0
    %949 = vmatprep.subr.mxu0 0.0
    %950 = vmatpush1.xpose.msra.mxu0 0.0
    %951 = vmatprep.subr.mxu0 0.0
    %952 = vmatpush1.xpose.msra.mxu0 0.0
    %953 = vmatprep.subr.mxu0 0.0
    %954 = vmatpush1.xpose.msra.mxu0 0.0
    %955 = vmatprep.subr.mxu0 0.0
    %956 = vmatpush1.xpose.msra.mxu0 0.0
    %957 = vmatprep.subr.mxu0 0.0
    %958 = vmatpush1.xpose.msra.mxu0 0.0
    %959 = vmatprep.subr.mxu0 0.0
    %960 = vmatpush1.xpose.msra.mxu0 0.0
    %961 = vmatprep.subr.mxu0 0.0
    %962 = vmatpush1.xpose.msra.mxu0 0.0
    %963 = vmatprep.subr.mxu0 0.0
    %964 = vmatpush1.xpose.msra.mxu0 0.0
    %965 = vmatprep.subr.mxu0 0.0
    %966 = vmatpush1.xpose.msra.mxu0 0.0
    %967 = vmatprep.subr.mxu0 0.0
    %968 = vmatpush1.xpose.msra.mxu0 0.0
    %969 = vmatprep.subr.mxu0 0.0
    %970 = vmatpush1.xpose.msra.mxu0 0.0
    %971 = vmatprep.subr.mxu0 0.0
    %972 = vmatpush1.xpose.msra.mxu0 0.0
    %973 = vmatprep.subr.mxu0 0.0
    %974 = vmatpush1.xpose.msra.mxu0 %v941
    %975 = vmatprep.subr.mxu0 0.0
    %976 = vmatpush2.xpose.msra.mxu0 0.0
    %977 = vmatprep.subr.mxu0 0.0
    %978 = vmatpush2.xpose.msra.mxu0 0.0
    %979 = vmatprep.subr.mxu0 0.0
    %980 = vmatpush2.xpose.msra.mxu0 0.0
    %981 = vmatprep.subr.mxu0 0.0
    %982 = vmatpush2.xpose.msra.mxu0 0.0
    %983 = vmatprep.subr.mxu0 0.0
    %984 = vmatpush2.xpose.msra.mxu0 0.0
    %985 = vmatprep.subr.mxu0 0.0
    %986 = vmatpush2.xpose.msra.mxu0 0.0
    %987 = vmatprep.subr.mxu0 0.0
    %988 = vmatpush2.xpose.msra.mxu0 0.0
    %989 = vmatprep.subr.mxu0 0.0
    %990 = vmatpush2.xpose.msra.mxu0 0.0
    %991 = vmatprep.subr.mxu0 0.0
    %992 = vmatpush2.xpose.msra.mxu0 0.0
    %993 = vmatprep.subr.mxu0 0.0
    %994 = vmatpush2.xpose.msra.mxu0 0.0
    %995 = vmatprep.subr.mxu0 0.0
    %996 = vmatpush2.xpose.msra.mxu0 0.0
    %997 = vmatprep.subr.mxu0 0.0
    %998 = vmatpush2.xpose.msra.mxu0 0.0
    %999 = vmatprep.subr.mxu0 0.0
    %1000 = vmatpush2.xpose.msra.mxu0 0.0
    %1001 = vmatprep.subr.mxu0 0.0
    %1002 = vmatpush2.xpose.msra.mxu0 0.0
    %1003 = vmatprep.subr.mxu0 0.0
    %1004 = vmatpush2.xpose.msra.mxu0 0.0
    %1005 = vmatprep.subr.mxu0 0.0
    %1006 = vmatpush2.xpose.msra.mxu0 0.0
    %1007 = vmatprep.mubr.f32.mxu0 0.0
    %1008 = vmatmul.mubr.f32.gmra.mxu0 %v938
    %v1009 = vpop.f32.mrf.mxu0
    %v1010 = vadd.f32 %v610, %v1009
    %v1011 = vpop.f32.mrf.mxu0
    %1012 = vdwg.mxu0
    %v1014 = vsel %vm163, %v742, 0
    %v1017 = vsel %vm163, %v833, 0
    %1019 = vmatprep.subr.mxu0 0.0
    %1020 = vmatpush1.xpose.msra.mxu0 0.0
    %1021 = vmatprep.subr.mxu0 0.0
    %1022 = vmatpush1.xpose.msra.mxu0 0.0
    %1023 = vmatprep.subr.mxu0 0.0
    %1024 = vmatpush1.xpose.msra.mxu0 0.0
    %1025 = vmatprep.subr.mxu0 0.0
    %1026 = vmatpush1.xpose.msra.mxu0 0.0
    %1027 = vmatprep.subr.mxu0 0.0
    %1028 = vmatpush1.xpose.msra.mxu0 0.0
    %1029 = vmatprep.subr.mxu0 0.0
    %1030 = vmatpush1.xpose.msra.mxu0 0.0
    %1031 = vmatprep.subr.mxu0 0.0
    %1032 = vmatpush1.xpose.msra.mxu0 0.0
    %1033 = vmatprep.subr.mxu0 0.0
    %1034 = vmatpush1.xpose.msra.mxu0 0.0
    %1035 = vmatprep.subr.mxu0 0.0
    %1036 = vmatpush1.xpose.msra.mxu0 0.0
    %1037 = vmatprep.subr.mxu0 0.0
    %1038 = vmatpush1.xpose.msra.mxu0 0.0
    %1039 = vmatprep.subr.mxu0 0.0
    %1040 = vmatpush1.xpose.msra.mxu0 0.0
    %1041 = vmatprep.subr.mxu0 0.0
    %1042 = vmatpush1.xpose.msra.mxu0 0.0
    %1043 = vmatprep.subr.mxu0 0.0
    %1044 = vmatpush1.xpose.msra.mxu0 0.0
    %1045 = vmatprep.subr.mxu0 0.0
    %1046 = vmatpush1.xpose.msra.mxu0 0.0
    %1047 = vmatprep.subr.mxu0 0.0
    %1048 = vmatpush1.xpose.msra.mxu0 0.0
    %1049 = vmatprep.subr.mxu0 0.0
    %1050 = vmatpush1.xpose.msra.mxu0 %v1017
    %1051 = vmatprep.subr.mxu0 0.0
    %1052 = vmatpush2.xpose.msra.mxu0 0.0
    %1053 = vmatprep.subr.mxu0 0.0
    %1054 = vmatpush2.xpose.msra.mxu0 0.0
    %1055 = vmatprep.subr.mxu0 0.0
    %1056 = vmatpush2.xpose.msra.mxu0 0.0
    %1057 = vmatprep.subr.mxu0 0.0
    %1058 = vmatpush2.xpose.msra.mxu0 0.0
    %1059 = vmatprep.subr.mxu0 0.0
    %1060 = vmatpush2.xpose.msra.mxu0 0.0
    %1061 = vmatprep.subr.mxu0 0.0
    %1062 = vmatpush2.xpose.msra.mxu0 0.0
    %1063 = vmatprep.subr.mxu0 0.0
    %1064 = vmatpush2.xpose.msra.mxu0 0.0
    %1065 = vmatprep.subr.mxu0 0.0
    %1066 = vmatpush2.xpose.msra.mxu0 0.0
    %1067 = vmatprep.subr.mxu0 0.0
    %1068 = vmatpush2.xpose.msra.mxu0 0.0
    %1069 = vmatprep.subr.mxu0 0.0
    %1070 = vmatpush2.xpose.msra.mxu0 0.0
    %1071 = vmatprep.subr.mxu0 0.0
    %1072 = vmatpush2.xpose.msra.mxu0 0.0
    %1073 = vmatprep.subr.mxu0 0.0
    %1074 = vmatpush2.xpose.msra.mxu0 0.0
    %1075 = vmatprep.subr.mxu0 0.0
    %1076 = vmatpush2.xpose.msra.mxu0 0.0
    %1077 = vmatprep.subr.mxu0 0.0
    %1078 = vmatpush2.xpose.msra.mxu0 0.0
    %1079 = vmatprep.subr.mxu0 0.0
    %1080 = vmatpush2.xpose.msra.mxu0 0.0
    %1081 = vmatprep.subr.mxu0 0.0
    %1082 = vmatpush2.xpose.msra.mxu0 0.0
    %1083 = vmatprep.mubr.f32.mxu0 0.0
    %1084 = vmatmul.mubr.f32.gmra.mxu0 %v1014
    %v1085 = vpop.f32.mrf.mxu0
    %v1086 = vadd.f32 %v611, %v1085
    %v1087 = vpop.f32.mrf.mxu0
    %1088 = vdwg.mxu0
    %v1090 = vsel %vm163, %v747, 0
    %v1093 = vsel %vm163, %v838, 0
    %1095 = vmatprep.subr.mxu0 0.0
    %1096 = vmatpush1.xpose.msra.mxu0 0.0
    %1097 = vmatprep.subr.mxu0 0.0
    %1098 = vmatpush1.xpose.msra.mxu0 0.0
    %1099 = vmatprep.subr.mxu0 0.0
    %1100 = vmatpush1.xpose.msra.mxu0 0.0
    %1101 = vmatprep.subr.mxu0 0.0
    %1102 = vmatpush1.xpose.msra.mxu0 0.0
    %1103 = vmatprep.subr.mxu0 0.0
    %1104 = vmatpush1.xpose.msra.mxu0 0.0
    %1105 = vmatprep.subr.mxu0 0.0
    %1106 = vmatpush1.xpose.msra.mxu0 0.0
    %1107 = vmatprep.subr.mxu0 0.0
    %1108 = vmatpush1.xpose.msra.mxu0 0.0
    %1109 = vmatprep.subr.mxu0 0.0
    %1110 = vmatpush1.xpose.msra.mxu0 0.0
    %1111 = vmatprep.subr.mxu0 0.0
    %1112 = vmatpush1.xpose.msra.mxu0 0.0
    %1113 = vmatprep.subr.mxu0 0.0
    %1114 = vmatpush1.xpose.msra.mxu0 0.0
    %1115 = vmatprep.subr.mxu0 0.0
    %1116 = vmatpush1.xpose.msra.mxu0 0.0
    %1117 = vmatprep.subr.mxu0 0.0
    %1118 = vmatpush1.xpose.msra.mxu0 0.0
    %1119 = vmatprep.subr.mxu0 0.0
    %1120 = vmatpush1.xpose.msra.mxu0 0.0
    %1121 = vmatprep.subr.mxu0 0.0
    %1122 = vmatpush1.xpose.msra.mxu0 0.0
    %1123 = vmatprep.subr.mxu0 0.0
    %1124 = vmatpush1.xpose.msra.mxu0 0.0
    %1125 = vmatprep.subr.mxu0 0.0
    %1126 = vmatpush1.xpose.msra.mxu0 %v1093
    %1127 = vmatprep.subr.mxu0 0.0
    %1128 = vmatpush2.xpose.msra.mxu0 0.0
    %1129 = vmatprep.subr.mxu0 0.0
    %1130 = vmatpush2.xpose.msra.mxu0 0.0
    %1131 = vmatprep.subr.mxu0 0.0
    %1132 = vmatpush2.xpose.msra.mxu0 0.0
    %1133 = vmatprep.subr.mxu0 0.0
    %1134 = vmatpush2.xpose.msra.mxu0 0.0
    %1135 = vmatprep.subr.mxu0 0.0
    %1136 = vmatpush2.xpose.msra.mxu0 0.0
    %1137 = vmatprep.subr.mxu0 0.0
    %1138 = vmatpush2.xpose.msra.mxu0 0.0
    %1139 = vmatprep.subr.mxu0 0.0
    %1140 = vmatpush2.xpose.msra.mxu0 0.0
    %1141 = vmatprep.subr.mxu0 0.0
    %1142 = vmatpush2.xpose.msra.mxu0 0.0
    %1143 = vmatprep.subr.mxu0 0.0
    %1144 = vmatpush2.xpose.msra.mxu0 0.0
    %1145 = vmatprep.subr.mxu0 0.0
    %1146 = vmatpush2.xpose.msra.mxu0 0.0
    %1147 = vmatprep.subr.mxu0 0.0
    %1148 = vmatpush2.xpose.msra.mxu0 0.0
    %1149 = vmatprep.subr.mxu0 0.0
    %1150 = vmatpush2.xpose.msra.mxu0 0.0
    %1151 = vmatprep.subr.mxu0 0.0
    %1152 = vmatpush2.xpose.msra.mxu0 0.0
    %1153 = vmatprep.subr.mxu0 0.0
    %1154 = vmatpush2.xpose.msra.mxu0 0.0
    %1155 = vmatprep.subr.mxu0 0.0
    %1156 = vmatpush2.xpose.msra.mxu0 0.0
    %1157 = vmatprep.subr.mxu0 0.0
    %1158 = vmatpush2.xpose.msra.mxu0 0.0
    %1159 = vmatprep.mubr.f32.mxu0 0.0
    %1160 = vmatmul.mubr.f32.gmra.mxu0 %v1090
    %v1161 = vpop.f32.mrf.mxu0
    %v1162 = vadd.f32 %v612, %v1161
    %v1163 = vpop.f32.mrf.mxu0
    %1164 = vdwg.mxu0
    %v1166 = vsel %vm163, %v752, 0
    %v1169 = vsel %vm163, %v843, 0
    %1171 = vmatprep.subr.mxu0 0.0
    %1172 = vmatpush1.xpose.msra.mxu0 0.0
    %1173 = vmatprep.subr.mxu0 0.0
    %1174 = vmatpush1.xpose.msra.mxu0 0.0
    %1175 = vmatprep.subr.mxu0 0.0
    %1176 = vmatpush1.xpose.msra.mxu0 0.0
    %1177 = vmatprep.subr.mxu0 0.0
    %1178 = vmatpush1.xpose.msra.mxu0 0.0
    %1179 = vmatprep.subr.mxu0 0.0
    %1180 = vmatpush1.xpose.msra.mxu0 0.0
    %1181 = vmatprep.subr.mxu0 0.0
    %1182 = vmatpush1.xpose.msra.mxu0 0.0
    %1183 = vmatprep.subr.mxu0 0.0
    %1184 = vmatpush1.xpose.msra.mxu0 0.0
    %1185 = vmatprep.subr.mxu0 0.0
    %1186 = vmatpush1.xpose.msra.mxu0 0.0
    %1187 = vmatprep.subr.mxu0 0.0
    %1188 = vmatpush1.xpose.msra.mxu0 0.0
    %1189 = vmatprep.subr.mxu0 0.0
    %1190 = vmatpush1.xpose.msra.mxu0 0.0
    %1191 = vmatprep.subr.mxu0 0.0
    %1192 = vmatpush1.xpose.msra.mxu0 0.0
    %1193 = vmatprep.subr.mxu0 0.0
    %1194 = vmatpush1.xpose.msra.mxu0 0.0
    %1195 = vmatprep.subr.mxu0 0.0
    %1196 = vmatpush1.xpose.msra.mxu0 0.0
    %1197 = vmatprep.subr.mxu0 0.0
    %1198 = vmatpush1.xpose.msra.mxu0 0.0
    %1199 = vmatprep.subr.mxu0 0.0
    %1200 = vmatpush1.xpose.msra.mxu0 0.0
    %1201 = vmatprep.subr.mxu0 0.0
    %1202 = vmatpush1.xpose.msra.mxu0 %v1169
    %1203 = vmatprep.subr.mxu0 0.0
    %1204 = vmatpush2.xpose.msra.mxu0 0.0
    %1205 = vmatprep.subr.mxu0 0.0
    %1206 = vmatpush2.xpose.msra.mxu0 0.0
    %1207 = vmatprep.subr.mxu0 0.0
    %1208 = vmatpush2.xpose.msra.mxu0 0.0
    %1209 = vmatprep.subr.mxu0 0.0
    %1210 = vmatpush2.xpose.msra.mxu0 0.0
    %1211 = vmatprep.subr.mxu0 0.0
    %1212 = vmatpush2.xpose.msra.mxu0 0.0
    %1213 = vmatprep.subr.mxu0 0.0
    %1214 = vmatpush2.xpose.msra.mxu0 0.0
    %1215 = vmatprep.subr.mxu0 0.0
    %1216 = vmatpush2.xpose.msra.mxu0 0.0
    %1217 = vmatprep.subr.mxu0 0.0
    %1218 = vmatpush2.xpose.msra.mxu0 0.0
    %1219 = vmatprep.subr.mxu0 0.0
    %1220 = vmatpush2.xpose.msra.mxu0 0.0
    %1221 = vmatprep.subr.mxu0 0.0
    %1222 = vmatpush2.xpose.msra.mxu0 0.0
    %1223 = vmatprep.subr.mxu0 0.0
    %1224 = vmatpush2.xpose.msra.mxu0 0.0
    %1225 = vmatprep.subr.mxu0 0.0
    %1226 = vmatpush2.xpose.msra.mxu0 0.0
    %1227 = vmatprep.subr.mxu0 0.0
    %1228 = vmatpush2.xpose.msra.mxu0 0.0
    %1229 = vmatprep.subr.mxu0 0.0
    %1230 = vmatpush2.xpose.msra.mxu0 0.0
    %1231 = vmatprep.subr.mxu0 0.0
    %1232 = vmatpush2.xpose.msra.mxu0 0.0
    %1233 = vmatprep.subr.mxu0 0.0
    %1234 = vmatpush2.xpose.msra.mxu0 0.0
    %1235 = vmatprep.mubr.f32.mxu0 0.0
    %1236 = vmatmul.mubr.f32.gmra.mxu0 %v1166
    %v1237 = vpop.f32.mrf.mxu0
    %v1238 = vadd.f32 %v613, %v1237
    %v1239 = vpop.f32.mrf.mxu0
    %1240 = vdwg.mxu0
    %v1241 = vsel %vm163, %v1010, -inf
    %1242 = vmax.xlane.f32.xlu0 %v1241
    %v1243 = vpop.xlane.xlu0 %1242
    %v1244 = vsel %vm163, %v1086, -inf
    %1245 = vmax.xlane.f32.xlu0 %v1244
    %v1246 = vpop.xlane.xlu0 %1245
    %v1247 = vsel %vm163, %v1162, -inf
    %1248 = vmax.xlane.f32.xlu0 %v1247
    %v1249 = vpop.xlane.xlu0 %1248
    %v1250 = vsel %vm163, %v1238, -inf
    %1251 = vmax.xlane.f32.xlu0 %v1250
    %v1252 = vpop.xlane.xlu0 %1251
    %v1253 = vsub.f32 %v1010, %v1243
    %v1254 = vsub.f32 %v1086, %v1246
    %v1255 = vsub.f32 %v1162, %v1249
    %v1256 = vsub.f32 %v1238, %v1252
    %v1257 = vmul.f32 %v1253, 1.442695
    %v1258 = vpow.pop %v1257
    %v1259 = vmul.f32 %v1254, 1.442695
    %v1260 = vpow.pop %v1259
    %v1261 = vmul.f32 %v1255, 1.442695
    %v1262 = vpow.pop %v1261
    %v1263 = vmul.f32 %v1256, 1.442695
    %v1264 = vpow.pop %v1263
    %v1265 = vsel %vm163, %v1258, 0.0
    %1266 = vadd.xlane.f32.xlu0 %v1265
    %v1267 = vpop.xlane.xlu0 %1266
    %v1268 = vsel %vm163, %v1260, 0.0
    %1269 = vadd.xlane.f32.xlu0 %v1268
    %v1270 = vpop.xlane.xlu0 %1269
    %v1271 = vsel %vm163, %v1262, 0.0
    %1272 = vadd.xlane.f32.xlu0 %v1271
    %v1273 = vpop.xlane.xlu0 %1272
    %v1274 = vsel %vm163, %v1264, 0.0
    %1275 = vadd.xlane.f32.xlu0 %v1274
    %v1276 = vpop.xlane.xlu0 %1275
    %v1277 = vrcp.pop %v1267
    %v1278 = vrcp.pop %v1270
    %v1279 = vrcp.pop %v1273
    %v1280 = vrcp.pop %v1276
    %v1281 = vmul.f32 %v1258, %v1277
    %v1282 = vmul.f32 %v1260, %v1278
    %v1283 = vmul.f32 %v1262, %v1279
    %v1284 = vmul.f32 %v1264, %v1280
    %v1286 = vsel %vm163, %v1281, 0
    %1288 = vmatprep.subr.mxu0 0.0
    %1289 = vmatpush1.msra.mxu0 0.0
    %1290 = vmatprep.subr.mxu0 0.0
    %1291 = vmatpush1.msra.mxu0 0.0
    %1292 = vmatprep.subr.mxu0 0.0
    %1293 = vmatpush1.msra.mxu0 0.0
    %1294 = vmatprep.subr.mxu0 0.0
    %1295 = vmatpush1.msra.mxu0 0.0
    %1296 = vmatprep.subr.mxu0 0.0
    %1297 = vmatpush1.msra.mxu0 0.0
    %1298 = vmatprep.subr.mxu0 0.0
    %1299 = vmatpush1.msra.mxu0 0.0
    %1300 = vmatprep.subr.mxu0 0.0
    %1301 = vmatpush1.msra.mxu0 0.0
    %1302 = vmatprep.subr.mxu0 0.0
    %1303 = vmatpush1.msra.mxu0 0.0
    %1304 = vmatprep.subr.mxu0 0.0
    %1305 = vmatpush1.msra.mxu0 0.0
    %1306 = vmatprep.subr.mxu0 0.0
    %1307 = vmatpush1.msra.mxu0 0.0
    %1308 = vmatprep.subr.mxu0 0.0
    %1309 = vmatpush1.msra.mxu0 0.0
    %1310 = vmatprep.subr.mxu0 0.0
    %1311 = vmatpush1.msra.mxu0 0.0
    %1312 = vmatprep.subr.mxu0 0.0
    %1313 = vmatpush1.msra.mxu0 0.0
    %1314 = vmatprep.subr.mxu0 0.0
    %1315 = vmatpush1.msra.mxu0 0.0
    %1316 = vmatprep.subr.mxu0 0.0
    %1317 = vmatpush1.msra.mxu0 0.0
    %1318 = vmatprep.subr.mxu0 0.0
    %1319 = vmatpush1.msra.mxu0 %v919
    %1320 = vmatprep.subr.mxu0 0.0
    %1321 = vmatpush2.msra.mxu0 0.0
    %1322 = vmatprep.subr.mxu0 0.0
    %1323 = vmatpush2.msra.mxu0 0.0
    %1324 = vmatprep.subr.mxu0 0.0
    %1325 = vmatpush2.msra.mxu0 0.0
    %1326 = vmatprep.subr.mxu0 0.0
    %1327 = vmatpush2.msra.mxu0 0.0
    %1328 = vmatprep.subr.mxu0 0.0
    %1329 = vmatpush2.msra.mxu0 0.0
    %1330 = vmatprep.subr.mxu0 0.0
    %1331 = vmatpush2.msra.mxu0 0.0
    %1332 = vmatprep.subr.mxu0 0.0
    %1333 = vmatpush2.msra.mxu0 0.0
    %1334 = vmatprep.subr.mxu0 0.0
    %1335 = vmatpush2.msra.mxu0 0.0
    %1336 = vmatprep.subr.mxu0 0.0
    %1337 = vmatpush2.msra.mxu0 0.0
    %1338 = vmatprep.subr.mxu0 0.0
    %1339 = vmatpush2.msra.mxu0 0.0
    %1340 = vmatprep.subr.mxu0 0.0
    %1341 = vmatpush2.msra.mxu0 0.0
    %1342 = vmatprep.subr.mxu0 0.0
    %1343 = vmatpush2.msra.mxu0 0.0
    %1344 = vmatprep.subr.mxu0 0.0
    %1345 = vmatpush2.msra.mxu0 0.0
    %1346 = vmatprep.subr.mxu0 0.0
    %1347 = vmatpush2.msra.mxu0 0.0
    %1348 = vmatprep.subr.mxu0 0.0
    %1349 = vmatpush2.msra.mxu0 0.0
    %1350 = vmatprep.subr.mxu0 0.0
    %1351 = vmatpush2.msra.mxu0 0.0
    %1352 = vmatprep.mubr.f32.mxu0 0.0
    %1353 = vmatmul.mubr.f32.gmra.mxu0 %v1286
    %v1354 = vpop.f32.mrf.mxu0
    %v1355 = vadd.f32 0.0, %v1354
    %v1356 = vpop.f32.mrf.mxu0
    %1357 = vdwg.mxu0
    %v1359 = vsel %vm163, %v1282, 0
    %1361 = vmatprep.subr.mxu0 0.0
    %1362 = vmatpush1.msra.mxu0 0.0
    %1363 = vmatprep.subr.mxu0 0.0
    %1364 = vmatpush1.msra.mxu0 0.0
    %1365 = vmatprep.subr.mxu0 0.0
    %1366 = vmatpush1.msra.mxu0 0.0
    %1367 = vmatprep.subr.mxu0 0.0
    %1368 = vmatpush1.msra.mxu0 0.0
    %1369 = vmatprep.subr.mxu0 0.0
    %1370 = vmatpush1.msra.mxu0 0.0
    %1371 = vmatprep.subr.mxu0 0.0
    %1372 = vmatpush1.msra.mxu0 0.0
    %1373 = vmatprep.subr.mxu0 0.0
    %1374 = vmatpush1.msra.mxu0 0.0
    %1375 = vmatprep.subr.mxu0 0.0
    %1376 = vmatpush1.msra.mxu0 0.0
    %1377 = vmatprep.subr.mxu0 0.0
    %1378 = vmatpush1.msra.mxu0 0.0
    %1379 = vmatprep.subr.mxu0 0.0
    %1380 = vmatpush1.msra.mxu0 0.0
    %1381 = vmatprep.subr.mxu0 0.0
    %1382 = vmatpush1.msra.mxu0 0.0
    %1383 = vmatprep.subr.mxu0 0.0
    %1384 = vmatpush1.msra.mxu0 0.0
    %1385 = vmatprep.subr.mxu0 0.0
    %1386 = vmatpush1.msra.mxu0 0.0
    %1387 = vmatprep.subr.mxu0 0.0
    %1388 = vmatpush1.msra.mxu0 0.0
    %1389 = vmatprep.subr.mxu0 0.0
    %1390 = vmatpush1.msra.mxu0 0.0
    %1391 = vmatprep.subr.mxu0 0.0
    %1392 = vmatpush1.msra.mxu0 %v924
    %1393 = vmatprep.subr.mxu0 0.0
    %1394 = vmatpush2.msra.mxu0 0.0
    %1395 = vmatprep.subr.mxu0 0.0
    %1396 = vmatpush2.msra.mxu0 0.0
    %1397 = vmatprep.subr.mxu0 0.0
    %1398 = vmatpush2.msra.mxu0 0.0
    %1399 = vmatprep.subr.mxu0 0.0
    %1400 = vmatpush2.msra.mxu0 0.0
    %1401 = vmatprep.subr.mxu0 0.0
    %1402 = vmatpush2.msra.mxu0 0.0
    %1403 = vmatprep.subr.mxu0 0.0
    %1404 = vmatpush2.msra.mxu0 0.0
    %1405 = vmatprep.subr.mxu0 0.0
    %1406 = vmatpush2.msra.mxu0 0.0
    %1407 = vmatprep.subr.mxu0 0.0
    %1408 = vmatpush2.msra.mxu0 0.0
    %1409 = vmatprep.subr.mxu0 0.0
    %1410 = vmatpush2.msra.mxu0 0.0
    %1411 = vmatprep.subr.mxu0 0.0
    %1412 = vmatpush2.msra.mxu0 0.0
    %1413 = vmatprep.subr.mxu0 0.0
    %1414 = vmatpush2.msra.mxu0 0.0
    %1415 = vmatprep.subr.mxu0 0.0
    %1416 = vmatpush2.msra.mxu0 0.0
    %1417 = vmatprep.subr.mxu0 0.0
    %1418 = vmatpush2.msra.mxu0 0.0
    %1419 = vmatprep.subr.mxu0 0.0
    %1420 = vmatpush2.msra.mxu0 0.0
    %1421 = vmatprep.subr.mxu0 0.0
    %1422 = vmatpush2.msra.mxu0 0.0
    %1423 = vmatprep.subr.mxu0 0.0
    %1424 = vmatpush2.msra.mxu0 0.0
    %1425 = vmatprep.mubr.f32.mxu0 0.0
    %1426 = vmatmul.mubr.f32.gmra.mxu0 %v1359
    %v1427 = vpop.f32.mrf.mxu0
    %v1428 = vadd.f32 0.0, %v1427
    %v1429 = vpop.f32.mrf.mxu0
    %1430 = vdwg.mxu0
    %v1432 = vsel %vm163, %v1283, 0
    %1434 = vmatprep.subr.mxu0 0.0
    %1435 = vmatpush1.msra.mxu0 0.0
    %1436 = vmatprep.subr.mxu0 0.0
    %1437 = vmatpush1.msra.mxu0 0.0
    %1438 = vmatprep.subr.mxu0 0.0
    %1439 = vmatpush1.msra.mxu0 0.0
    %1440 = vmatprep.subr.mxu0 0.0
    %1441 = vmatpush1.msra.mxu0 0.0
    %1442 = vmatprep.subr.mxu0 0.0
    %1443 = vmatpush1.msra.mxu0 0.0
    %1444 = vmatprep.subr.mxu0 0.0
    %1445 = vmatpush1.msra.mxu0 0.0
    %1446 = vmatprep.subr.mxu0 0.0
    %1447 = vmatpush1.msra.mxu0 0.0
    %1448 = vmatprep.subr.mxu0 0.0
    %1449 = vmatpush1.msra.mxu0 0.0
    %1450 = vmatprep.subr.mxu0 0.0
    %1451 = vmatpush1.msra.mxu0 0.0
    %1452 = vmatprep.subr.mxu0 0.0
    %1453 = vmatpush1.msra.mxu0 0.0
    %1454 = vmatprep.subr.mxu0 0.0
    %1455 = vmatpush1.msra.mxu0 0.0
    %1456 = vmatprep.subr.mxu0 0.0
    %1457 = vmatpush1.msra.mxu0 0.0
    %1458 = vmatprep.subr.mxu0 0.0
    %1459 = vmatpush1.msra.mxu0 0.0
    %1460 = vmatprep.subr.mxu0 0.0
    %1461 = vmatpush1.msra.mxu0 0.0
    %1462 = vmatprep.subr.mxu0 0.0
    %1463 = vmatpush1.msra.mxu0 0.0
    %1464 = vmatprep.subr.mxu0 0.0
    %1465 = vmatpush1.msra.mxu0 %v929
    %1466 = vmatprep.subr.mxu0 0.0
    %1467 = vmatpush2.msra.mxu0 0.0
    %1468 = vmatprep.subr.mxu0 0.0
    %1469 = vmatpush2.msra.mxu0 0.0
    %1470 = vmatprep.subr.mxu0 0.0
    %1471 = vmatpush2.msra.mxu0 0.0
    %1472 = vmatprep.subr.mxu0 0.0
    %1473 = vmatpush2.msra.mxu0 0.0
    %1474 = vmatprep.subr.mxu0 0.0
    %1475 = vmatpush2.msra.mxu0 0.0
    %1476 = vmatprep.subr.mxu0 0.0
    %1477 = vmatpush2.msra.mxu0 0.0
    %1478 = vmatprep.subr.mxu0 0.0
    %1479 = vmatpush2.msra.mxu0 0.0
    %1480 = vmatprep.subr.mxu0 0.0
    %1481 = vmatpush2.msra.mxu0 0.0
    %1482 = vmatprep.subr.mxu0 0.0
    %1483 = vmatpush2.msra.mxu0 0.0
    %1484 = vmatprep.subr.mxu0 0.0
    %1485 = vmatpush2.msra.mxu0 0.0
    %1486 = vmatprep.subr.mxu0 0.0
    %1487 = vmatpush2.msra.mxu0 0.0
    %1488 = vmatprep.subr.mxu0 0.0
    %1489 = vmatpush2.msra.mxu0 0.0
    %1490 = vmatprep.subr.mxu0 0.0
    %1491 = vmatpush2.msra.mxu0 0.0
    %1492 = vmatprep.subr.mxu0 0.0
    %1493 = vmatpush2.msra.mxu0 0.0
    %1494 = vmatprep.subr.mxu0 0.0
    %1495 = vmatpush2.msra.mxu0 0.0
    %1496 = vmatprep.subr.mxu0 0.0
    %1497 = vmatpush2.msra.mxu0 0.0
    %1498 = vmatprep.mubr.f32.mxu0 0.0
    %1499 = vmatmul.mubr.f32.gmra.mxu0 %v1432
    %v1500 = vpop.f32.mrf.mxu0
    %v1501 = vadd.f32 0.0, %v1500
    %v1502 = vpop.f32.mrf.mxu0
    %1503 = vdwg.mxu0
    %v1505 = vsel %vm163, %v1284, 0
    %1507 = vmatprep.subr.mxu0 0.0
    %1508 = vmatpush1.msra.mxu0 0.0
    %1509 = vmatprep.subr.mxu0 0.0
    %1510 = vmatpush1.msra.mxu0 0.0
    %1511 = vmatprep.subr.mxu0 0.0
    %1512 = vmatpush1.msra.mxu0 0.0
    %1513 = vmatprep.subr.mxu0 0.0
    %1514 = vmatpush1.msra.mxu0 0.0
    %1515 = vmatprep.subr.mxu0 0.0
    %1516 = vmatpush1.msra.mxu0 0.0
    %1517 = vmatprep.subr.mxu0 0.0
    %1518 = vmatpush1.msra.mxu0 0.0
    %1519 = vmatprep.subr.mxu0 0.0
    %1520 = vmatpush1.msra.mxu0 0.0
    %1521 = vmatprep.subr.mxu0 0.0
    %1522 = vmatpush1.msra.mxu0 0.0
    %1523 = vmatprep.subr.mxu0 0.0
    %1524 = vmatpush1.msra.mxu0 0.0
    %1525 = vmatprep.subr.mxu0 0.0
    %1526 = vmatpush1.msra.mxu0 0.0
    %1527 = vmatprep.subr.mxu0 0.0
    %1528 = vmatpush1.msra.mxu0 0.0
    %1529 = vmatprep.subr.mxu0 0.0
    %1530 = vmatpush1.msra.mxu0 0.0
    %1531 = vmatprep.subr.mxu0 0.0
    %1532 = vmatpush1.msra.mxu0 0.0
    %1533 = vmatprep.subr.mxu0 0.0
    %1534 = vmatpush1.msra.mxu0 0.0
    %1535 = vmatprep.subr.mxu0 0.0
    %1536 = vmatpush1.msra.mxu0 0.0
    %1537 = vmatprep.subr.mxu0 0.0
    %1538 = vmatpush1.msra.mxu0 %v934
    %1539 = vmatprep.subr.mxu0 0.0
    %1540 = vmatpush2.msra.mxu0 0.0
    %1541 = vmatprep.subr.mxu0 0.0
    %1542 = vmatpush2.msra.mxu0 0.0
    %1543 = vmatprep.subr.mxu0 0.0
    %1544 = vmatpush2.msra.mxu0 0.0
    %1545 = vmatprep.subr.mxu0 0.0
    %1546 = vmatpush2.msra.mxu0 0.0
    %1547 = vmatprep.subr.mxu0 0.0
    %1548 = vmatpush2.msra.mxu0 0.0
    %1549 = vmatprep.subr.mxu0 0.0
    %1550 = vmatpush2.msra.mxu0 0.0
    %1551 = vmatprep.subr.mxu0 0.0
    %1552 = vmatpush2.msra.mxu0 0.0
    %1553 = vmatprep.subr.mxu0 0.0
    %1554 = vmatpush2.msra.mxu0 0.0
    %1555 = vmatprep.subr.mxu0 0.0
    %1556 = vmatpush2.msra.mxu0 0.0
    %1557 = vmatprep.subr.mxu0 0.0
    %1558 = vmatpush2.msra.mxu0 0.0
    %1559 = vmatprep.subr.mxu0 0.0
    %1560 = vmatpush2.msra.mxu0 0.0
    %1561 = vmatprep.subr.mxu0 0.0
    %1562 = vmatpush2.msra.mxu0 0.0
    %1563 = vmatprep.subr.mxu0 0.0
    %1564 = vmatpush2.msra.mxu0 0.0
    %1565 = vmatprep.subr.mxu0 0.0
    %1566 = vmatpush2.msra.mxu0 0.0
    %1567 = vmatprep.subr.mxu0 0.0
    %1568 = vmatpush2.msra.mxu0 0.0
    %1569 = vmatprep.subr.mxu0 0.0
    %1570 = vmatpush2.msra.mxu0 0.0
    %1571 = vmatprep.mubr.f32.mxu0 0.0
    %1572 = vmatmul.mubr.f32.gmra.mxu0 %v1505
    %v1573 = vpop.f32.mrf.mxu0
    %v1574 = vadd.f32 0.0, %v1573
    %v1575 = vpop.f32.mrf.mxu0
    %1576 = vdwg.mxu0
    %1577 = vrot.lane.b32.xlu0 %v737, 120
    %v1578 = vpop.permute.xlu0 %1577
    %1579 = vrot.lane.b32.xlu0 %v828, 120
    %v1580 = vpop.permute.xlu0 %1579
    %v1581 = vsel %vm163, %v1578, 0
    %v1583 = vsel %vm163, %v1580, 0
    %1585 = vmatprep.subr.mxu0 0.0
    %1586 = vmatpush1.xpose.msra.mxu0 0.0
    %1587 = vmatprep.subr.mxu0 0.0
    %1588 = vmatpush1.xpose.msra.mxu0 0.0
    %1589 = vmatprep.subr.mxu0 0.0
    %1590 = vmatpush1.xpose.msra.mxu0 0.0
    %1591 = vmatprep.subr.mxu0 0.0
    %1592 = vmatpush1.xpose.msra.mxu0 0.0
    %1593 = vmatprep.subr.mxu0 0.0
    %1594 = vmatpush1.xpose.msra.mxu0 0.0
    %1595 = vmatprep.subr.mxu0 0.0
    %1596 = vmatpush1.xpose.msra.mxu0 0.0
    %1597 = vmatprep.subr.mxu0 0.0
    %1598 = vmatpush1.xpose.msra.mxu0 0.0
    %1599 = vmatprep.subr.mxu0 0.0
    %1600 = vmatpush1.xpose.msra.mxu0 0.0
    %1601 = vmatprep.subr.mxu0 0.0
    %1602 = vmatpush1.xpose.msra.mxu0 0.0
    %1603 = vmatprep.subr.mxu0 0.0
    %1604 = vmatpush1.xpose.msra.mxu0 0.0
    %1605 = vmatprep.subr.mxu0 0.0
    %1606 = vmatpush1.xpose.msra.mxu0 0.0
    %1607 = vmatprep.subr.mxu0 0.0
    %1608 = vmatpush1.xpose.msra.mxu0 0.0
    %1609 = vmatprep.subr.mxu0 0.0
    %1610 = vmatpush1.xpose.msra.mxu0 0.0
    %1611 = vmatprep.subr.mxu0 0.0
    %1612 = vmatpush1.xpose.msra.mxu0 0.0
    %1613 = vmatprep.subr.mxu0 0.0
    %1614 = vmatpush1.xpose.msra.mxu0 0.0
    %1615 = vmatprep.subr.mxu0 0.0
    %1616 = vmatpush1.xpose.msra.mxu0 %v1583
    %1617 = vmatprep.subr.mxu0 0.0
    %1618 = vmatpush2.xpose.msra.mxu0 0.0
    %1619 = vmatprep.subr.mxu0 0.0
    %1620 = vmatpush2.xpose.msra.mxu0 0.0
    %1621 = vmatprep.subr.mxu0 0.0
    %1622 = vmatpush2.xpose.msra.mxu0 0.0
    %1623 = vmatprep.subr.mxu0 0.0
    %1624 = vmatpush2.xpose.msra.mxu0 0.0
    %1625 = vmatprep.subr.mxu0 0.0
    %1626 = vmatpush2.xpose.msra.mxu0 0.0
    %1627 = vmatprep.subr.mxu0 0.0
    %1628 = vmatpush2.xpose.msra.mxu0 0.0
    %1629 = vmatprep.subr.mxu0 0.0
    %1630 = vmatpush2.xpose.msra.mxu0 0.0
    %1631 = vmatprep.subr.mxu0 0.0
    %1632 = vmatpush2.xpose.msra.mxu0 0.0
    %1633 = vmatprep.subr.mxu0 0.0
    %1634 = vmatpush2.xpose.msra.mxu0 0.0
    %1635 = vmatprep.subr.mxu0 0.0
    %1636 = vmatpush2.xpose.msra.mxu0 0.0
    %1637 = vmatprep.subr.mxu0 0.0
    %1638 = vmatpush2.xpose.msra.mxu0 0.0
    %1639 = vmatprep.subr.mxu0 0.0
    %1640 = vmatpush2.xpose.msra.mxu0 0.0
    %1641 = vmatprep.subr.mxu0 0.0
    %1642 = vmatpush2.xpose.msra.mxu0 0.0
    %1643 = vmatprep.subr.mxu0 0.0
    %1644 = vmatpush2.xpose.msra.mxu0 0.0
    %1645 = vmatprep.subr.mxu0 0.0
    %1646 = vmatpush2.xpose.msra.mxu0 0.0
    %1647 = vmatprep.subr.mxu0 0.0
    %1648 = vmatpush2.xpose.msra.mxu0 0.0
    %1649 = vmatprep.mubr.f32.mxu0 0.0
    %1650 = vmatmul.mubr.f32.gmra.mxu0 %v1581
    %v1651 = vpop.f32.mrf.mxu0
    %v1652 = vadd.f32 %v610, %v1651
    %v1653 = vpop.f32.mrf.mxu0
    %1654 = vdwg.mxu0
    %1655 = vrot.lane.b32.xlu0 %v742, 120
    %v1656 = vpop.permute.xlu0 %1655
    %1657 = vrot.lane.b32.xlu0 %v833, 120
    %v1658 = vpop.permute.xlu0 %1657
    %v1659 = vsel %vm163, %v1656, 0
    %v1661 = vsel %vm163, %v1658, 0
    %1663 = vmatprep.subr.mxu0 0.0
    %1664 = vmatpush1.xpose.msra.mxu0 0.0
    %1665 = vmatprep.subr.mxu0 0.0
    %1666 = vmatpush1.xpose.msra.mxu0 0.0
    %1667 = vmatprep.subr.mxu0 0.0
    %1668 = vmatpush1.xpose.msra.mxu0 0.0
    %1669 = vmatprep.subr.mxu0 0.0
    %1670 = vmatpush1.xpose.msra.mxu0 0.0
    %1671 = vmatprep.subr.mxu0 0.0
    %1672 = vmatpush1.xpose.msra.mxu0 0.0
    %1673 = vmatprep.subr.mxu0 0.0
    %1674 = vmatpush1.xpose.msra.mxu0 0.0
    %1675 = vmatprep.subr.mxu0 0.0
    %1676 = vmatpush1.xpose.msra.mxu0 0.0
    %1677 = vmatprep.subr.mxu0 0.0
    %1678 = vmatpush1.xpose.msra.mxu0 0.0
    %1679 = vmatprep.subr.mxu0 0.0
    %1680 = vmatpush1.xpose.msra.mxu0 0.0
    %1681 = vmatprep.subr.mxu0 0.0
    %1682 = vmatpush1.xpose.msra.mxu0 0.0
    %1683 = vmatprep.subr.mxu0 0.0
    %1684 = vmatpush1.xpose.msra.mxu0 0.0
    %1685 = vmatprep.subr.mxu0 0.0
    %1686 = vmatpush1.xpose.msra.mxu0 0.0
    %1687 = vmatprep.subr.mxu0 0.0
    %1688 = vmatpush1.xpose.msra.mxu0 0.0
    %1689 = vmatprep.subr.mxu0 0.0
    %1690 = vmatpush1.xpose.msra.mxu0 0.0
    %1691 = vmatprep.subr.mxu0 0.0
    %1692 = vmatpush1.xpose.msra.mxu0 0.0
    %1693 = vmatprep.subr.mxu0 0.0
    %1694 = vmatpush1.xpose.msra.mxu0 %v1661
    %1695 = vmatprep.subr.mxu0 0.0
    %1696 = vmatpush2.xpose.msra.mxu0 0.0
    %1697 = vmatprep.subr.mxu0 0.0
    %1698 = vmatpush2.xpose.msra.mxu0 0.0
    %1699 = vmatprep.subr.mxu0 0.0
    %1700 = vmatpush2.xpose.msra.mxu0 0.0
    %1701 = vmatprep.subr.mxu0 0.0
    %1702 = vmatpush2.xpose.msra.mxu0 0.0
    %1703 = vmatprep.subr.mxu0 0.0
    %1704 = vmatpush2.xpose.msra.mxu0 0.0
    %1705 = vmatprep.subr.mxu0 0.0
    %1706 = vmatpush2.xpose.msra.mxu0 0.0
    %1707 = vmatprep.subr.mxu0 0.0
    %1708 = vmatpush2.xpose.msra.mxu0 0.0
    %1709 = vmatprep.subr.mxu0 0.0
    %1710 = vmatpush2.xpose.msra.mxu0 0.0
    %1711 = vmatprep.subr.mxu0 0.0
    %1712 = vmatpush2.xpose.msra.mxu0 0.0
    %1713 = vmatprep.subr.mxu0 0.0
    %1714 = vmatpush2.xpose.msra.mxu0 0.0
    %1715 = vmatprep.subr.mxu0 0.0
    %1716 = vmatpush2.xpose.msra.mxu0 0.0
    %1717 = vmatprep.subr.mxu0 0.0
    %1718 = vmatpush2.xpose.msra.mxu0 0.0
    %1719 = vmatprep.subr.mxu0 0.0
    %1720 = vmatpush2.xpose.msra.mxu0 0.0
    %1721 = vmatprep.subr.mxu0 0.0
    %1722 = vmatpush2.xpose.msra.mxu0 0.0
    %1723 = vmatprep.subr.mxu0 0.0
    %1724 = vmatpush2.xpose.msra.mxu0 0.0
    %1725 = vmatprep.subr.mxu0 0.0
    %1726 = vmatpush2.xpose.msra.mxu0 0.0
    %1727 = vmatprep.mubr.f32.mxu0 0.0
    %1728 = vmatmul.mubr.f32.gmra.mxu0 %v1659
    %v1729 = vpop.f32.mrf.mxu0
    %v1730 = vadd.f32 %v611, %v1729
    %v1731 = vpop.f32.mrf.mxu0
    %1732 = vdwg.mxu0
    %1733 = vrot.lane.b32.xlu0 %v747, 120
    %v1734 = vpop.permute.xlu0 %1733
    %1735 = vrot.lane.b32.xlu0 %v838, 120
    %v1736 = vpop.permute.xlu0 %1735
    %v1737 = vsel %vm163, %v1734, 0
    %v1739 = vsel %vm163, %v1736, 0
    %1741 = vmatprep.subr.mxu0 0.0
    %1742 = vmatpush1.xpose.msra.mxu0 0.0
    %1743 = vmatprep.subr.mxu0 0.0
    %1744 = vmatpush1.xpose.msra.mxu0 0.0
    %1745 = vmatprep.subr.mxu0 0.0
    %1746 = vmatpush1.xpose.msra.mxu0 0.0
    %1747 = vmatprep.subr.mxu0 0.0
    %1748 = vmatpush1.xpose.msra.mxu0 0.0
    %1749 = vmatprep.subr.mxu0 0.0
    %1750 = vmatpush1.xpose.msra.mxu0 0.0
    %1751 = vmatprep.subr.mxu0 0.0
    %1752 = vmatpush1.xpose.msra.mxu0 0.0
    %1753 = vmatprep.subr.mxu0 0.0
    %1754 = vmatpush1.xpose.msra.mxu0 0.0
    %1755 = vmatprep.subr.mxu0 0.0
    %1756 = vmatpush1.xpose.msra.mxu0 0.0
    %1757 = vmatprep.subr.mxu0 0.0
    %1758 = vmatpush1.xpose.msra.mxu0 0.0
    %1759 = vmatprep.subr.mxu0 0.0
    %1760 = vmatpush1.xpose.msra.mxu0 0.0
    %1761 = vmatprep.subr.mxu0 0.0
    %1762 = vmatpush1.xpose.msra.mxu0 0.0
    %1763 = vmatprep.subr.mxu0 0.0
    %1764 = vmatpush1.xpose.msra.mxu0 0.0
    %1765 = vmatprep.subr.mxu0 0.0
    %1766 = vmatpush1.xpose.msra.mxu0 0.0
    %1767 = vmatprep.subr.mxu0 0.0
    %1768 = vmatpush1.xpose.msra.mxu0 0.0
    %1769 = vmatprep.subr.mxu0 0.0
    %1770 = vmatpush1.xpose.msra.mxu0 0.0
    %1771 = vmatprep.subr.mxu0 0.0
    %1772 = vmatpush1.xpose.msra.mxu0 %v1739
    %1773 = vmatprep.subr.mxu0 0.0
    %1774 = vmatpush2.xpose.msra.mxu0 0.0
    %1775 = vmatprep.subr.mxu0 0.0
    %1776 = vmatpush2.xpose.msra.mxu0 0.0
    %1777 = vmatprep.subr.mxu0 0.0
    %1778 = vmatpush2.xpose.msra.mxu0 0.0
    %1779 = vmatprep.subr.mxu0 0.0
    %1780 = vmatpush2.xpose.msra.mxu0 0.0
    %1781 = vmatprep.subr.mxu0 0.0
    %1782 = vmatpush2.xpose.msra.mxu0 0.0
    %1783 = vmatprep.subr.mxu0 0.0
    %1784 = vmatpush2.xpose.msra.mxu0 0.0
    %1785 = vmatprep.subr.mxu0 0.0
    %1786 = vmatpush2.xpose.msra.mxu0 0.0
    %1787 = vmatprep.subr.mxu0 0.0
    %1788 = vmatpush2.xpose.msra.mxu0 0.0
    %1789 = vmatprep.subr.mxu0 0.0
    %1790 = vmatpush2.xpose.msra.mxu0 0.0
    %1791 = vmatprep.subr.mxu0 0.0
    %1792 = vmatpush2.xpose.msra.mxu0 0.0
    %1793 = vmatprep.subr.mxu0 0.0
    %1794 = vmatpush2.xpose.msra.mxu0 0.0
    %1795 = vmatprep.subr.mxu0 0.0
    %1796 = vmatpush2.xpose.msra.mxu0 0.0
    %1797 = vmatprep.subr.mxu0 0.0
    %1798 = vmatpush2.xpose.msra.mxu0 0.0
    %1799 = vmatprep.subr.mxu0 0.0
    %1800 = vmatpush2.xpose.msra.mxu0 0.0
    %1801 = vmatprep.subr.mxu0 0.0
    %1802 = vmatpush2.xpose.msra.mxu0 0.0
    %1803 = vmatprep.subr.mxu0 0.0
    %1804 = vmatpush2.xpose.msra.mxu0 0.0
    %1805 = vmatprep.mubr.f32.mxu0 0.0
    %1806 = vmatmul.mubr.f32.gmra.mxu0 %v1737
    %v1807 = vpop.f32.mrf.mxu0
    %v1808 = vadd.f32 %v612, %v1807
    %v1809 = vpop.f32.mrf.mxu0
    %1810 = vdwg.mxu0
    %1811 = vrot.lane.b32.xlu0 %v752, 120
    %v1812 = vpop.permute.xlu0 %1811
    %1813 = vrot.lane.b32.xlu0 %v843, 120
    %v1814 = vpop.permute.xlu0 %1813
    %v1815 = vsel %vm163, %v1812, 0
    %v1817 = vsel %vm163, %v1814, 0
    %1819 = vmatprep.subr.mxu0 0.0
    %1820 = vmatpush1.xpose.msra.mxu0 0.0
    %1821 = vmatprep.subr.mxu0 0.0
    %1822 = vmatpush1.xpose.msra.mxu0 0.0
    %1823 = vmatprep.subr.mxu0 0.0
    %1824 = vmatpush1.xpose.msra.mxu0 0.0
    %1825 = vmatprep.subr.mxu0 0.0
    %1826 = vmatpush1.xpose.msra.mxu0 0.0
    %1827 = vmatprep.subr.mxu0 0.0
    %1828 = vmatpush1.xpose.msra.mxu0 0.0
    %1829 = vmatprep.subr.mxu0 0.0
    %1830 = vmatpush1.xpose.msra.mxu0 0.0
    %1831 = vmatprep.subr.mxu0 0.0
    %1832 = vmatpush1.xpose.msra.mxu0 0.0
    %1833 = vmatprep.subr.mxu0 0.0
    %1834 = vmatpush1.xpose.msra.mxu0 0.0
    %1835 = vmatprep.subr.mxu0 0.0
    %1836 = vmatpush1.xpose.msra.mxu0 0.0
    %1837 = vmatprep.subr.mxu0 0.0
    %1838 = vmatpush1.xpose.msra.mxu0 0.0
    %1839 = vmatprep.subr.mxu0 0.0
    %1840 = vmatpush1.xpose.msra.mxu0 0.0
    %1841 = vmatprep.subr.mxu0 0.0
    %1842 = vmatpush1.xpose.msra.mxu0 0.0
    %1843 = vmatprep.subr.mxu0 0.0
    %1844 = vmatpush1.xpose.msra.mxu0 0.0
    %1845 = vmatprep.subr.mxu0 0.0
    %1846 = vmatpush1.xpose.msra.mxu0 0.0
    %1847 = vmatprep.subr.mxu0 0.0
    %1848 = vmatpush1.xpose.msra.mxu0 0.0
    %1849 = vmatprep.subr.mxu0 0.0
    %1850 = vmatpush1.xpose.msra.mxu0 %v1817
    %1851 = vmatprep.subr.mxu0 0.0
    %1852 = vmatpush2.xpose.msra.mxu0 0.0
    %1853 = vmatprep.subr.mxu0 0.0
    %1854 = vmatpush2.xpose.msra.mxu0 0.0
    %1855 = vmatprep.subr.mxu0 0.0
    %1856 = vmatpush2.xpose.msra.mxu0 0.0
    %1857 = vmatprep.subr.mxu0 0.0
    %1858 = vmatpush2.xpose.msra.mxu0 0.0
    %1859 = vmatprep.subr.mxu0 0.0
    %1860 = vmatpush2.xpose.msra.mxu0 0.0
    %1861 = vmatprep.subr.mxu0 0.0
    %1862 = vmatpush2.xpose.msra.mxu0 0.0
    %1863 = vmatprep.subr.mxu0 0.0
    %1864 = vmatpush2.xpose.msra.mxu0 0.0
    %1865 = vmatprep.subr.mxu0 0.0
    %1866 = vmatpush2.xpose.msra.mxu0 0.0
    %1867 = vmatprep.subr.mxu0 0.0
    %1868 = vmatpush2.xpose.msra.mxu0 0.0
    %1869 = vmatprep.subr.mxu0 0.0
    %1870 = vmatpush2.xpose.msra.mxu0 0.0
    %1871 = vmatprep.subr.mxu0 0.0
    %1872 = vmatpush2.xpose.msra.mxu0 0.0
    %1873 = vmatprep.subr.mxu0 0.0
    %1874 = vmatpush2.xpose.msra.mxu0 0.0
    %1875 = vmatprep.subr.mxu0 0.0
    %1876 = vmatpush2.xpose.msra.mxu0 0.0
    %1877 = vmatprep.subr.mxu0 0.0
    %1878 = vmatpush2.xpose.msra.mxu0 0.0
    %1879 = vmatprep.subr.mxu0 0.0
    %1880 = vmatpush2.xpose.msra.mxu0 0.0
    %1881 = vmatprep.subr.mxu0 0.0
    %1882 = vmatpush2.xpose.msra.mxu0 0.0
    %1883 = vmatprep.mubr.f32.mxu0 0.0
    %1884 = vmatmul.mubr.f32.gmra.mxu0 %v1815
    %v1885 = vpop.f32.mrf.mxu0
    %v1886 = vadd.f32 %v613, %v1885
    %v1887 = vpop.f32.mrf.mxu0
    %1888 = vdwg.mxu0
    %v1889 = vsel %vm163, %v1652, -inf
    %1890 = vmax.xlane.f32.xlu0 %v1889
    %v1891 = vpop.xlane.xlu0 %1890
    %v1892 = vsel %vm163, %v1730, -inf
    %1893 = vmax.xlane.f32.xlu0 %v1892
    %v1894 = vpop.xlane.xlu0 %1893
    %v1895 = vsel %vm163, %v1808, -inf
    %1896 = vmax.xlane.f32.xlu0 %v1895
    %v1897 = vpop.xlane.xlu0 %1896
    %v1898 = vsel %vm163, %v1886, -inf
    %1899 = vmax.xlane.f32.xlu0 %v1898
    %v1900 = vpop.xlane.xlu0 %1899
    %v1901 = vsub.f32 %v1652, %v1891
    %v1902 = vsub.f32 %v1730, %v1894
    %v1903 = vsub.f32 %v1808, %v1897
    %v1904 = vsub.f32 %v1886, %v1900
    %v1905 = vmul.f32 %v1901, 1.442695
    %v1906 = vpow.pop %v1905
    %v1907 = vmul.f32 %v1902, 1.442695
    %v1908 = vpow.pop %v1907
    %v1909 = vmul.f32 %v1903, 1.442695
    %v1910 = vpow.pop %v1909
    %v1911 = vmul.f32 %v1904, 1.442695
    %v1912 = vpow.pop %v1911
    %v1913 = vsel %vm163, %v1906, 0.0
    %1914 = vadd.xlane.f32.xlu0 %v1913
    %v1915 = vpop.xlane.xlu0 %1914
    %v1916 = vsel %vm163, %v1908, 0.0
    %1917 = vadd.xlane.f32.xlu0 %v1916
    %v1918 = vpop.xlane.xlu0 %1917
    %v1919 = vsel %vm163, %v1910, 0.0
    %1920 = vadd.xlane.f32.xlu0 %v1919
    %v1921 = vpop.xlane.xlu0 %1920
    %v1922 = vsel %vm163, %v1912, 0.0
    %1923 = vadd.xlane.f32.xlu0 %v1922
    %v1924 = vpop.xlane.xlu0 %1923
    %v1925 = vrcp.pop %v1915
    %v1926 = vrcp.pop %v1918
    %v1927 = vrcp.pop %v1921
    %v1928 = vrcp.pop %v1924
    %v1929 = vmul.f32 %v1906, %v1925
    %v1930 = vmul.f32 %v1908, %v1926
    %v1931 = vmul.f32 %v1910, %v1927
    %v1932 = vmul.f32 %v1912, %v1928
    %1934 = vrot.lane.b32.xlu0 %v919, 120
    %v1935 = vpop.permute.xlu0 %1934
    %v1938 = vsel %vm163, %v1929, 0
    %1940 = vmatprep.subr.mxu0 0.0
    %1941 = vmatpush1.msra.mxu0 0.0
    %1942 = vmatprep.subr.mxu0 0.0
    %1943 = vmatpush1.msra.mxu0 0.0
    %1944 = vmatprep.subr.mxu0 0.0
    %1945 = vmatpush1.msra.mxu0 0.0
    %1946 = vmatprep.subr.mxu0 0.0
    %1947 = vmatpush1.msra.mxu0 0.0
    %1948 = vmatprep.subr.mxu0 0.0
    %1949 = vmatpush1.msra.mxu0 0.0
    %1950 = vmatprep.subr.mxu0 0.0
    %1951 = vmatpush1.msra.mxu0 0.0
    %1952 = vmatprep.subr.mxu0 0.0
    %1953 = vmatpush1.msra.mxu0 0.0
    %1954 = vmatprep.subr.mxu0 0.0
    %1955 = vmatpush1.msra.mxu0 0.0
    %1956 = vmatprep.subr.mxu0 0.0
    %1957 = vmatpush1.msra.mxu0 0.0
    %1958 = vmatprep.subr.mxu0 0.0
    %1959 = vmatpush1.msra.mxu0 0.0
    %1960 = vmatprep.subr.mxu0 0.0
    %1961 = vmatpush1.msra.mxu0 0.0
    %1962 = vmatprep.subr.mxu0 0.0
    %1963 = vmatpush1.msra.mxu0 0.0
    %1964 = vmatprep.subr.mxu0 0.0
    %1965 = vmatpush1.msra.mxu0 0.0
    %1966 = vmatprep.subr.mxu0 0.0
    %1967 = vmatpush1.msra.mxu0 0.0
    %1968 = vmatprep.subr.mxu0 0.0
    %1969 = vmatpush1.msra.mxu0 0.0
    %1970 = vmatprep.subr.mxu0 0.0
    %1971 = vmatpush1.msra.mxu0 %v1935
    %1972 = vmatprep.subr.mxu0 0.0
    %1973 = vmatpush2.msra.mxu0 0.0
    %1974 = vmatprep.subr.mxu0 0.0
    %1975 = vmatpush2.msra.mxu0 0.0
    %1976 = vmatprep.subr.mxu0 0.0
    %1977 = vmatpush2.msra.mxu0 0.0
    %1978 = vmatprep.subr.mxu0 0.0
    %1979 = vmatpush2.msra.mxu0 0.0
    %1980 = vmatprep.subr.mxu0 0.0
    %1981 = vmatpush2.msra.mxu0 0.0
    %1982 = vmatprep.subr.mxu0 0.0
    %1983 = vmatpush2.msra.mxu0 0.0
    %1984 = vmatprep.subr.mxu0 0.0
    %1985 = vmatpush2.msra.mxu0 0.0
    %1986 = vmatprep.subr.mxu0 0.0
    %1987 = vmatpush2.msra.mxu0 0.0
    %1988 = vmatprep.subr.mxu0 0.0
    %1989 = vmatpush2.msra.mxu0 0.0
    %1990 = vmatprep.subr.mxu0 0.0
    %1991 = vmatpush2.msra.mxu0 0.0
    %1992 = vmatprep.subr.mxu0 0.0
    %1993 = vmatpush2.msra.mxu0 0.0
    %1994 = vmatprep.subr.mxu0 0.0
    %1995 = vmatpush2.msra.mxu0 0.0
    %1996 = vmatprep.subr.mxu0 0.0
    %1997 = vmatpush2.msra.mxu0 0.0
    %1998 = vmatprep.subr.mxu0 0.0
    %1999 = vmatpush2.msra.mxu0 0.0
    %2000 = vmatprep.subr.mxu0 0.0
    %2001 = vmatpush2.msra.mxu0 0.0
    %2002 = vmatprep.subr.mxu0 0.0
    %2003 = vmatpush2.msra.mxu0 0.0
    %2004 = vmatprep.mubr.f32.mxu0 0.0
    %2005 = vmatmul.mubr.f32.gmra.mxu0 %v1938
    %v2006 = vpop.f32.mrf.mxu0
    %v2007 = vadd.f32 0.0, %v2006
    %v2008 = vpop.f32.mrf.mxu0
    %2009 = vdwg.mxu0
    %2011 = vrot.lane.b32.xlu0 %v924, 120
    %v2012 = vpop.permute.xlu0 %2011
    %v2015 = vsel %vm163, %v1930, 0
    %2017 = vmatprep.subr.mxu0 0.0
    %2018 = vmatpush1.msra.mxu0 0.0
    %2019 = vmatprep.subr.mxu0 0.0
    %2020 = vmatpush1.msra.mxu0 0.0
    %2021 = vmatprep.subr.mxu0 0.0
    %2022 = vmatpush1.msra.mxu0 0.0
    %2023 = vmatprep.subr.mxu0 0.0
    %2024 = vmatpush1.msra.mxu0 0.0
    %2025 = vmatprep.subr.mxu0 0.0
    %2026 = vmatpush1.msra.mxu0 0.0
    %2027 = vmatprep.subr.mxu0 0.0
    %2028 = vmatpush1.msra.mxu0 0.0
    %2029 = vmatprep.subr.mxu0 0.0
    %2030 = vmatpush1.msra.mxu0 0.0
    %2031 = vmatprep.subr.mxu0 0.0
    %2032 = vmatpush1.msra.mxu0 0.0
    %2033 = vmatprep.subr.mxu0 0.0
    %2034 = vmatpush1.msra.mxu0 0.0
    %2035 = vmatprep.subr.mxu0 0.0
    %2036 = vmatpush1.msra.mxu0 0.0
    %2037 = vmatprep.subr.mxu0 0.0
    %2038 = vmatpush1.msra.mxu0 0.0
    %2039 = vmatprep.subr.mxu0 0.0
    %2040 = vmatpush1.msra.mxu0 0.0
    %2041 = vmatprep.subr.mxu0 0.0
    %2042 = vmatpush1.msra.mxu0 0.0
    %2043 = vmatprep.subr.mxu0 0.0
    %2044 = vmatpush1.msra.mxu0 0.0
    %2045 = vmatprep.subr.mxu0 0.0
    %2046 = vmatpush1.msra.mxu0 0.0
    %2047 = vmatprep.subr.mxu0 0.0
    %2048 = vmatpush1.msra.mxu0 %v2012
    %2049 = vmatprep.subr.mxu0 0.0
    %2050 = vmatpush2.msra.mxu0 0.0
    %2051 = vmatprep.subr.mxu0 0.0
    %2052 = vmatpush2.msra.mxu0 0.0
    %2053 = vmatprep.subr.mxu0 0.0
    %2054 = vmatpush2.msra.mxu0 0.0
    %2055 = vmatprep.subr.mxu0 0.0
    %2056 = vmatpush2.msra.mxu0 0.0
    %2057 = vmatprep.subr.mxu0 0.0
    %2058 = vmatpush2.msra.mxu0 0.0
    %2059 = vmatprep.subr.mxu0 0.0
    %2060 = vmatpush2.msra.mxu0 0.0
    %2061 = vmatprep.subr.mxu0 0.0
    %2062 = vmatpush2.msra.mxu0 0.0
    %2063 = vmatprep.subr.mxu0 0.0
    %2064 = vmatpush2.msra.mxu0 0.0
    %2065 = vmatprep.subr.mxu0 0.0
    %2066 = vmatpush2.msra.mxu0 0.0
    %2067 = vmatprep.subr.mxu0 0.0
    %2068 = vmatpush2.msra.mxu0 0.0
    %2069 = vmatprep.subr.mxu0 0.0
    %2070 = vmatpush2.msra.mxu0 0.0
    %2071 = vmatprep.subr.mxu0 0.0
    %2072 = vmatpush2.msra.mxu0 0.0
    %2073 = vmatprep.subr.mxu0 0.0
    %2074 = vmatpush2.msra.mxu0 0.0
    %2075 = vmatprep.subr.mxu0 0.0
    %2076 = vmatpush2.msra.mxu0 0.0
    %2077 = vmatprep.subr.mxu0 0.0
    %2078 = vmatpush2.msra.mxu0 0.0
    %2079 = vmatprep.subr.mxu0 0.0
    %2080 = vmatpush2.msra.mxu0 0.0
    %2081 = vmatprep.mubr.f32.mxu0 0.0
    %2082 = vmatmul.mubr.f32.gmra.mxu0 %v2015
    %v2083 = vpop.f32.mrf.mxu0
    %v2084 = vadd.f32 0.0, %v2083
    %v2085 = vpop.f32.mrf.mxu0
    %2086 = vdwg.mxu0
    %2088 = vrot.lane.b32.xlu0 %v929, 120
    %v2089 = vpop.permute.xlu0 %2088
    %v2092 = vsel %vm163, %v1931, 0
    %2094 = vmatprep.subr.mxu0 0.0
    %2095 = vmatpush1.msra.mxu0 0.0
    %2096 = vmatprep.subr.mxu0 0.0
    %2097 = vmatpush1.msra.mxu0 0.0
    %2098 = vmatprep.subr.mxu0 0.0
    %2099 = vmatpush1.msra.mxu0 0.0
    %2100 = vmatprep.subr.mxu0 0.0
    %2101 = vmatpush1.msra.mxu0 0.0
    %2102 = vmatprep.subr.mxu0 0.0
    %2103 = vmatpush1.msra.mxu0 0.0
    %2104 = vmatprep.subr.mxu0 0.0
    %2105 = vmatpush1.msra.mxu0 0.0
    %2106 = vmatprep.subr.mxu0 0.0
    %2107 = vmatpush1.msra.mxu0 0.0
    %2108 = vmatprep.subr.mxu0 0.0
    %2109 = vmatpush1.msra.mxu0 0.0
    %2110 = vmatprep.subr.mxu0 0.0
    %2111 = vmatpush1.msra.mxu0 0.0
    %2112 = vmatprep.subr.mxu0 0.0
    %2113 = vmatpush1.msra.mxu0 0.0
    %2114 = vmatprep.subr.mxu0 0.0
    %2115 = vmatpush1.msra.mxu0 0.0
    %2116 = vmatprep.subr.mxu0 0.0
    %2117 = vmatpush1.msra.mxu0 0.0
    %2118 = vmatprep.subr.mxu0 0.0
    %2119 = vmatpush1.msra.mxu0 0.0
    %2120 = vmatprep.subr.mxu0 0.0
    %2121 = vmatpush1.msra.mxu0 0.0
    %2122 = vmatprep.subr.mxu0 0.0
    %2123 = vmatpush1.msra.mxu0 0.0
    %2124 = vmatprep.subr.mxu0 0.0
    %2125 = vmatpush1.msra.mxu0 %v2089
    %2126 = vmatprep.subr.mxu0 0.0
    %2127 = vmatpush2.msra.mxu0 0.0
    %2128 = vmatprep.subr.mxu0 0.0
    %2129 = vmatpush2.msra.mxu0 0.0
    %2130 = vmatprep.subr.mxu0 0.0
    %2131 = vmatpush2.msra.mxu0 0.0
    %2132 = vmatprep.subr.mxu0 0.0
    %2133 = vmatpush2.msra.mxu0 0.0
    %2134 = vmatprep.subr.mxu0 0.0
    %2135 = vmatpush2.msra.mxu0 0.0
    %2136 = vmatprep.subr.mxu0 0.0
    %2137 = vmatpush2.msra.mxu0 0.0
    %2138 = vmatprep.subr.mxu0 0.0
    %2139 = vmatpush2.msra.mxu0 0.0
    %2140 = vmatprep.subr.mxu0 0.0
    %2141 = vmatpush2.msra.mxu0 0.0
    %2142 = vmatprep.subr.mxu0 0.0
    %2143 = vmatpush2.msra.mxu0 0.0
    %2144 = vmatprep.subr.mxu0 0.0
    %2145 = vmatpush2.msra.mxu0 0.0
    %2146 = vmatprep.subr.mxu0 0.0
    %2147 = vmatpush2.msra.mxu0 0.0
    %2148 = vmatprep.subr.mxu0 0.0
    %2149 = vmatpush2.msra.mxu0 0.0
    %2150 = vmatprep.subr.mxu0 0.0
    %2151 = vmatpush2.msra.mxu0 0.0
    %2152 = vmatprep.subr.mxu0 0.0
    %2153 = vmatpush2.msra.mxu0 0.0
    %2154 = vmatprep.subr.mxu0 0.0
    %2155 = vmatpush2.msra.mxu0 0.0
    %2156 = vmatprep.subr.mxu0 0.0
    %2157 = vmatpush2.msra.mxu0 0.0
    %2158 = vmatprep.mubr.f32.mxu0 0.0
    %2159 = vmatmul.mubr.f32.gmra.mxu0 %v2092
    %v2160 = vpop.f32.mrf.mxu0
    %v2161 = vadd.f32 0.0, %v2160
    %v2162 = vpop.f32.mrf.mxu0
    %2163 = vdwg.mxu0
    %2165 = vrot.lane.b32.xlu0 %v934, 120
    %v2166 = vpop.permute.xlu0 %2165
    %v2169 = vsel %vm163, %v1932, 0
    %2171 = vmatprep.subr.mxu0 0.0
    %2172 = vmatpush1.msra.mxu0 0.0
    %2173 = vmatprep.subr.mxu0 0.0
    %2174 = vmatpush1.msra.mxu0 0.0
    %2175 = vmatprep.subr.mxu0 0.0
    %2176 = vmatpush1.msra.mxu0 0.0
    %2177 = vmatprep.subr.mxu0 0.0
    %2178 = vmatpush1.msra.mxu0 0.0
    %2179 = vmatprep.subr.mxu0 0.0
    %2180 = vmatpush1.msra.mxu0 0.0
    %2181 = vmatprep.subr.mxu0 0.0
    %2182 = vmatpush1.msra.mxu0 0.0
    %2183 = vmatprep.subr.mxu0 0.0
    %2184 = vmatpush1.msra.mxu0 0.0
    %2185 = vmatprep.subr.mxu0 0.0
    %2186 = vmatpush1.msra.mxu0 0.0
    %2187 = vmatprep.subr.mxu0 0.0
    %2188 = vmatpush1.msra.mxu0 0.0
    %2189 = vmatprep.subr.mxu0 0.0
    %2190 = vmatpush1.msra.mxu0 0.0
    %2191 = vmatprep.subr.mxu0 0.0
    %2192 = vmatpush1.msra.mxu0 0.0
    %2193 = vmatprep.subr.mxu0 0.0
    %2194 = vmatpush1.msra.mxu0 0.0
    %2195 = vmatprep.subr.mxu0 0.0
    %2196 = vmatpush1.msra.mxu0 0.0
    %2197 = vmatprep.subr.mxu0 0.0
    %2198 = vmatpush1.msra.mxu0 0.0
    %2199 = vmatprep.subr.mxu0 0.0
    %2200 = vmatpush1.msra.mxu0 0.0
    %2201 = vmatprep.subr.mxu0 0.0
    %2202 = vmatpush1.msra.mxu0 %v2166
    %2203 = vmatprep.subr.mxu0 0.0
    %2204 = vmatpush2.msra.mxu0 0.0
    %2205 = vmatprep.subr.mxu0 0.0
    %2206 = vmatpush2.msra.mxu0 0.0
    %2207 = vmatprep.subr.mxu0 0.0
    %2208 = vmatpush2.msra.mxu0 0.0
    %2209 = vmatprep.subr.mxu0 0.0
    %2210 = vmatpush2.msra.mxu0 0.0
    %2211 = vmatprep.subr.mxu0 0.0
    %2212 = vmatpush2.msra.mxu0 0.0
    %2213 = vmatprep.subr.mxu0 0.0
    %2214 = vmatpush2.msra.mxu0 0.0
    %2215 = vmatprep.subr.mxu0 0.0
    %2216 = vmatpush2.msra.mxu0 0.0
    %2217 = vmatprep.subr.mxu0 0.0
    %2218 = vmatpush2.msra.mxu0 0.0
    %2219 = vmatprep.subr.mxu0 0.0
    %2220 = vmatpush2.msra.mxu0 0.0
    %2221 = vmatprep.subr.mxu0 0.0
    %2222 = vmatpush2.msra.mxu0 0.0
    %2223 = vmatprep.subr.mxu0 0.0
    %2224 = vmatpush2.msra.mxu0 0.0
    %2225 = vmatprep.subr.mxu0 0.0
    %2226 = vmatpush2.msra.mxu0 0.0
    %2227 = vmatprep.subr.mxu0 0.0
    %2228 = vmatpush2.msra.mxu0 0.0
    %2229 = vmatprep.subr.mxu0 0.0
    %2230 = vmatpush2.msra.mxu0 0.0
    %2231 = vmatprep.subr.mxu0 0.0
    %2232 = vmatpush2.msra.mxu0 0.0
    %2233 = vmatprep.subr.mxu0 0.0
    %2234 = vmatpush2.msra.mxu0 0.0
    %2235 = vmatprep.mubr.f32.mxu0 0.0
    %2236 = vmatmul.mubr.f32.gmra.mxu0 %v2169
    %v2237 = vpop.f32.mrf.mxu0
    %v2238 = vadd.f32 0.0, %v2237
    %v2239 = vpop.f32.mrf.mxu0
    %2240 = vdwg.mxu0
    %v2242 = vsel %vm163, %v2007, 0
    %v2245 = vsel %vm163, %v2084, 0
    %v2248 = vsel %vm163, %v2161, 0
    %v2251 = vsel %vm163, %v2238, 0
    %2253 = vmatprep.subr.mxu0 0.0
    %2254 = vmatpush1.msra.mxu0 0.0
    %2255 = vmatprep.subr.mxu0 0.0
    %2256 = vmatpush1.msra.mxu0 0.0
    %2257 = vmatprep.subr.mxu0 0.0
    %2258 = vmatpush1.msra.mxu0 0.0
    %2259 = vmatprep.subr.mxu0 0.0
    %2260 = vmatpush1.msra.mxu0 0.0
    %2261 = vmatprep.subr.mxu0 0.0
    %2262 = vmatpush1.msra.mxu0 0.0
    %2263 = vmatprep.subr.mxu0 0.0
    %2264 = vmatpush1.msra.mxu0 0.0
    %2265 = vmatprep.subr.mxu0 0.0
    %2266 = vmatpush1.msra.mxu0 0.0
    %2267 = vmatprep.subr.mxu0 0.0
    %2268 = vmatpush1.msra.mxu0 0.0
    %2269 = vmatprep.subr.mxu0 0.0
    %2270 = vmatpush1.msra.mxu0 0.0
    %2271 = vmatprep.subr.mxu0 0.0
    %2272 = vmatpush1.msra.mxu0 0.0
    %2273 = vmatprep.subr.mxu0 0.0
    %2274 = vmatpush1.msra.mxu0 0.0
    %2275 = vmatprep.subr.mxu0 0.0
    %2276 = vmatpush1.msra.mxu0 0.0
    %2277 = vmatprep.subr.mxu0 0.0
    %2278 = vmatpush1.msra.mxu0 0.0
    %2279 = vmatprep.subr.mxu0 0.0
    %2280 = vmatpush1.msra.mxu0 0.0
    %2281 = vmatprep.subr.mxu0 0.0
    %2282 = vmatpush1.msra.mxu0 0.0
    %2283 = vmatprep.subr.mxu0 0.0
    %2284 = vmatpush1.msra.mxu0 %v630
    %2285 = vmatprep.subr.mxu0 0.0
    %2286 = vmatpush2.msra.mxu0 0.0
    %2287 = vmatprep.subr.mxu0 0.0
    %2288 = vmatpush2.msra.mxu0 0.0
    %2289 = vmatprep.subr.mxu0 0.0
    %2290 = vmatpush2.msra.mxu0 0.0
    %2291 = vmatprep.subr.mxu0 0.0
    %2292 = vmatpush2.msra.mxu0 0.0
    %2293 = vmatprep.subr.mxu0 0.0
    %2294 = vmatpush2.msra.mxu0 0.0
    %2295 = vmatprep.subr.mxu0 0.0
    %2296 = vmatpush2.msra.mxu0 0.0
    %2297 = vmatprep.subr.mxu0 0.0
    %2298 = vmatpush2.msra.mxu0 0.0
    %2299 = vmatprep.subr.mxu0 0.0
    %2300 = vmatpush2.msra.mxu0 0.0
    %2301 = vmatprep.subr.mxu0 0.0
    %2302 = vmatpush2.msra.mxu0 0.0
    %2303 = vmatprep.subr.mxu0 0.0
    %2304 = vmatpush2.msra.mxu0 0.0
    %2305 = vmatprep.subr.mxu0 0.0
    %2306 = vmatpush2.msra.mxu0 0.0
    %2307 = vmatprep.subr.mxu0 0.0
    %2308 = vmatpush2.msra.mxu0 0.0
    %2309 = vmatprep.subr.mxu0 0.0
    %2310 = vmatpush2.msra.mxu0 0.0
    %2311 = vmatprep.subr.mxu0 0.0
    %2312 = vmatpush2.msra.mxu0 0.0
    %2313 = vmatprep.subr.mxu0 0.0
    %2314 = vmatpush2.msra.mxu0 0.0
    %2315 = vmatprep.subr.mxu0 0.0
    %2316 = vmatpush2.msra.mxu0 0.0
    %2317 = vmatprep.mubr.f32.mxu0 0.0
    %2318 = vmatmul.mubr.f32.gmra.mxu0 %v2242
    %v2319 = vpop.f32.mrf.mxu0
    %v2320 = vadd.f32 0.0, %v2319
    %v2321 = vpop.f32.mrf.mxu0
    %2322 = vmatprep.mubr.f32.mxu0 0.0
    %2323 = vmatmul.mubr.f32.gmra.mxu0 %v2245
    %v2324 = vpop.f32.mrf.mxu0
    %v2325 = vadd.f32 0.0, %v2324
    %v2326 = vpop.f32.mrf.mxu0
    %2327 = vmatprep.mubr.f32.mxu0 0.0
    %2328 = vmatmul.mubr.f32.gmra.mxu0 %v2248
    %v2329 = vpop.f32.mrf.mxu0
    %v2330 = vadd.f32 0.0, %v2329
    %v2331 = vpop.f32.mrf.mxu0
    %2332 = vmatprep.mubr.f32.mxu0 0.0
    %2333 = vmatmul.mubr.f32.gmra.mxu0 %v2251
    %v2334 = vpop.f32.mrf.mxu0
    %v2335 = vadd.f32 0.0, %v2334
    %v2336 = vpop.f32.mrf.mxu0
    %2337 = vdwg.mxu0
    %v2339 = vsel %vm163, %v1355, 0
    %v2342 = vsel %vm163, %v1428, 0
    %v2345 = vsel %vm163, %v1501, 0
    %v2348 = vsel %vm163, %v1574, 0
    %2350 = vmatprep.subr.mxu0 0.0
    %2351 = vmatpush1.msra.mxu0 0.0
    %2352 = vmatprep.subr.mxu0 0.0
    %2353 = vmatpush1.msra.mxu0 0.0
    %2354 = vmatprep.subr.mxu0 0.0
    %2355 = vmatpush1.msra.mxu0 0.0
    %2356 = vmatprep.subr.mxu0 0.0
    %2357 = vmatpush1.msra.mxu0 0.0
    %2358 = vmatprep.subr.mxu0 0.0
    %2359 = vmatpush1.msra.mxu0 0.0
    %2360 = vmatprep.subr.mxu0 0.0
    %2361 = vmatpush1.msra.mxu0 0.0
    %2362 = vmatprep.subr.mxu0 0.0
    %2363 = vmatpush1.msra.mxu0 0.0
    %2364 = vmatprep.subr.mxu0 0.0
    %2365 = vmatpush1.msra.mxu0 0.0
    %2366 = vmatprep.subr.mxu0 0.0
    %2367 = vmatpush1.msra.mxu0 0.0
    %2368 = vmatprep.subr.mxu0 0.0
    %2369 = vmatpush1.msra.mxu0 0.0
    %2370 = vmatprep.subr.mxu0 0.0
    %2371 = vmatpush1.msra.mxu0 0.0
    %2372 = vmatprep.subr.mxu0 0.0
    %2373 = vmatpush1.msra.mxu0 0.0
    %2374 = vmatprep.subr.mxu0 0.0
    %2375 = vmatpush1.msra.mxu0 0.0
    %2376 = vmatprep.subr.mxu0 0.0
    %2377 = vmatpush1.msra.mxu0 0.0
    %2378 = vmatprep.subr.mxu0 0.0
    %2379 = vmatpush1.msra.mxu0 0.0
    %2380 = vmatprep.subr.mxu0 0.0
    %2381 = vmatpush1.msra.mxu0 %v629
    %2382 = vmatprep.subr.mxu0 0.0
    %2383 = vmatpush2.msra.mxu0 0.0
    %2384 = vmatprep.subr.mxu0 0.0
    %2385 = vmatpush2.msra.mxu0 0.0
    %2386 = vmatprep.subr.mxu0 0.0
    %2387 = vmatpush2.msra.mxu0 0.0
    %2388 = vmatprep.subr.mxu0 0.0
    %2389 = vmatpush2.msra.mxu0 0.0
    %2390 = vmatprep.subr.mxu0 0.0
    %2391 = vmatpush2.msra.mxu0 0.0
    %2392 = vmatprep.subr.mxu0 0.0
    %2393 = vmatpush2.msra.mxu0 0.0
    %2394 = vmatprep.subr.mxu0 0.0
    %2395 = vmatpush2.msra.mxu0 0.0
    %2396 = vmatprep.subr.mxu0 0.0
    %2397 = vmatpush2.msra.mxu0 0.0
    %2398 = vmatprep.subr.mxu0 0.0
    %2399 = vmatpush2.msra.mxu0 0.0
    %2400 = vmatprep.subr.mxu0 0.0
    %2401 = vmatpush2.msra.mxu0 0.0
    %2402 = vmatprep.subr.mxu0 0.0
    %2403 = vmatpush2.msra.mxu0 0.0
    %2404 = vmatprep.subr.mxu0 0.0
    %2405 = vmatpush2.msra.mxu0 0.0
    %2406 = vmatprep.subr.mxu0 0.0
    %2407 = vmatpush2.msra.mxu0 0.0
    %2408 = vmatprep.subr.mxu0 0.0
    %2409 = vmatpush2.msra.mxu0 0.0
    %2410 = vmatprep.subr.mxu0 0.0
    %2411 = vmatpush2.msra.mxu0 0.0
    %2412 = vmatprep.subr.mxu0 0.0
    %2413 = vmatpush2.msra.mxu0 0.0
    %2414 = vmatprep.mubr.f32.mxu0 0.0
    %2415 = vmatmul.mubr.f32.gmra.mxu0 %v2339
    %v2416 = vpop.f32.mrf.mxu0
    %v2417 = vadd.f32 %v2320, %v2416
    %v2418 = vpop.f32.mrf.mxu0
    %2419 = vmatprep.mubr.f32.mxu0 0.0
    %2420 = vmatmul.mubr.f32.gmra.mxu0 %v2342
    %v2421 = vpop.f32.mrf.mxu0
    %v2422 = vadd.f32 %v2325, %v2421
    %v2423 = vpop.f32.mrf.mxu0
    %2424 = vmatprep.mubr.f32.mxu0 0.0
    %2425 = vmatmul.mubr.f32.gmra.mxu0 %v2345
    %v2426 = vpop.f32.mrf.mxu0
    %v2427 = vadd.f32 %v2330, %v2426
    %v2428 = vpop.f32.mrf.mxu0
    %2429 = vmatprep.mubr.f32.mxu0 0.0
    %2430 = vmatmul.mubr.f32.gmra.mxu0 %v2348
    %v2431 = vpop.f32.mrf.mxu0
    %v2432 = vadd.f32 %v2335, %v2431
    %v2433 = vpop.f32.mrf.mxu0
    %2434 = vdwg.mxu0
    %2435 = vrot.lane.b32.xlu0 %v737, 112
    %v2436 = vpop.permute.xlu0 %2435
    %2437 = vrot.lane.b32.xlu0 %v828, 112
    %v2438 = vpop.permute.xlu0 %2437
    %v2439 = vsel %vm163, %v2436, 0
    %v2441 = vsel %vm163, %v2438, 0
    %2443 = vmatprep.subr.mxu0 0.0
    %2444 = vmatpush1.xpose.msra.mxu0 0.0
    %2445 = vmatprep.subr.mxu0 0.0
    %2446 = vmatpush1.xpose.msra.mxu0 0.0
    %2447 = vmatprep.subr.mxu0 0.0
    %2448 = vmatpush1.xpose.msra.mxu0 0.0
    %2449 = vmatprep.subr.mxu0 0.0
    %2450 = vmatpush1.xpose.msra.mxu0 0.0
    %2451 = vmatprep.subr.mxu0 0.0
    %2452 = vmatpush1.xpose.msra.mxu0 0.0
    %2453 = vmatprep.subr.mxu0 0.0
    %2454 = vmatpush1.xpose.msra.mxu0 0.0
    %2455 = vmatprep.subr.mxu0 0.0
    %2456 = vmatpush1.xpose.msra.mxu0 0.0
    %2457 = vmatprep.subr.mxu0 0.0
    %2458 = vmatpush1.xpose.msra.mxu0 0.0
    %2459 = vmatprep.subr.mxu0 0.0
    %2460 = vmatpush1.xpose.msra.mxu0 0.0
    %2461 = vmatprep.subr.mxu0 0.0
    %2462 = vmatpush1.xpose.msra.mxu0 0.0
    %2463 = vmatprep.subr.mxu0 0.0
    %2464 = vmatpush1.xpose.msra.mxu0 0.0
    %2465 = vmatprep.subr.mxu0 0.0
    %2466 = vmatpush1.xpose.msra.mxu0 0.0
    %2467 = vmatprep.subr.mxu0 0.0
    %2468 = vmatpush1.xpose.msra.mxu0 0.0
    %2469 = vmatprep.subr.mxu0 0.0
    %2470 = vmatpush1.xpose.msra.mxu0 0.0
    %2471 = vmatprep.subr.mxu0 0.0
    %2472 = vmatpush1.xpose.msra.mxu0 0.0
    %2473 = vmatprep.subr.mxu0 0.0
    %2474 = vmatpush1.xpose.msra.mxu0 %v2441
    %2475 = vmatprep.subr.mxu0 0.0
    %2476 = vmatpush2.xpose.msra.mxu0 0.0
    %2477 = vmatprep.subr.mxu0 0.0
    %2478 = vmatpush2.xpose.msra.mxu0 0.0
    %2479 = vmatprep.subr.mxu0 0.0
    %2480 = vmatpush2.xpose.msra.mxu0 0.0
    %2481 = vmatprep.subr.mxu0 0.0
    %2482 = vmatpush2.xpose.msra.mxu0 0.0
    %2483 = vmatprep.subr.mxu0 0.0
    %2484 = vmatpush2.xpose.msra.mxu0 0.0
    %2485 = vmatprep.subr.mxu0 0.0
    %2486 = vmatpush2.xpose.msra.mxu0 0.0
    %2487 = vmatprep.subr.mxu0 0.0
    %2488 = vmatpush2.xpose.msra.mxu0 0.0
    %2489 = vmatprep.subr.mxu0 0.0
    %2490 = vmatpush2.xpose.msra.mxu0 0.0
    %2491 = vmatprep.subr.mxu0 0.0
    %2492 = vmatpush2.xpose.msra.mxu0 0.0
    %2493 = vmatprep.subr.mxu0 0.0
    %2494 = vmatpush2.xpose.msra.mxu0 0.0
    %2495 = vmatprep.subr.mxu0 0.0
    %2496 = vmatpush2.xpose.msra.mxu0 0.0
    %2497 = vmatprep.subr.mxu0 0.0
    %2498 = vmatpush2.xpose.msra.mxu0 0.0
    %2499 = vmatprep.subr.mxu0 0.0
    %2500 = vmatpush2.xpose.msra.mxu0 0.0
    %2501 = vmatprep.subr.mxu0 0.0
    %2502 = vmatpush2.xpose.msra.mxu0 0.0
    %2503 = vmatprep.subr.mxu0 0.0
    %2504 = vmatpush2.xpose.msra.mxu0 0.0
    %2505 = vmatprep.subr.mxu0 0.0
    %2506 = vmatpush2.xpose.msra.mxu0 0.0
    %2507 = vmatprep.mubr.f32.mxu0 0.0
    %2508 = vmatmul.mubr.f32.gmra.mxu0 %v2439
    %v2509 = vpop.f32.mrf.mxu0
    %v2510 = vadd.f32 %v610, %v2509
    %v2511 = vpop.f32.mrf.mxu0
    %2512 = vdwg.mxu0
    %2513 = vrot.lane.b32.xlu0 %v742, 112
    %v2514 = vpop.permute.xlu0 %2513
    %2515 = vrot.lane.b32.xlu0 %v833, 112
    %v2516 = vpop.permute.xlu0 %2515
    %v2517 = vsel %vm163, %v2514, 0
    %v2519 = vsel %vm163, %v2516, 0
    %2521 = vmatprep.subr.mxu0 0.0
    %2522 = vmatpush1.xpose.msra.mxu0 0.0
    %2523 = vmatprep.subr.mxu0 0.0
    %2524 = vmatpush1.xpose.msra.mxu0 0.0
    %2525 = vmatprep.subr.mxu0 0.0
    %2526 = vmatpush1.xpose.msra.mxu0 0.0
    %2527 = vmatprep.subr.mxu0 0.0
    %2528 = vmatpush1.xpose.msra.mxu0 0.0
    %2529 = vmatprep.subr.mxu0 0.0
    %2530 = vmatpush1.xpose.msra.mxu0 0.0
    %2531 = vmatprep.subr.mxu0 0.0
    %2532 = vmatpush1.xpose.msra.mxu0 0.0
    %2533 = vmatprep.subr.mxu0 0.0
    %2534 = vmatpush1.xpose.msra.mxu0 0.0
    %2535 = vmatprep.subr.mxu0 0.0
    %2536 = vmatpush1.xpose.msra.mxu0 0.0
    %2537 = vmatprep.subr.mxu0 0.0
    %2538 = vmatpush1.xpose.msra.mxu0 0.0
    %2539 = vmatprep.subr.mxu0 0.0
    %2540 = vmatpush1.xpose.msra.mxu0 0.0
    %2541 = vmatprep.subr.mxu0 0.0
    %2542 = vmatpush1.xpose.msra.mxu0 0.0
    %2543 = vmatprep.subr.mxu0 0.0
    %2544 = vmatpush1.xpose.msra.mxu0 0.0
    %2545 = vmatprep.subr.mxu0 0.0
    %2546 = vmatpush1.xpose.msra.mxu0 0.0
    %2547 = vmatprep.subr.mxu0 0.0
    %2548 = vmatpush1.xpose.msra.mxu0 0.0
    %2549 = vmatprep.subr.mxu0 0.0
    %2550 = vmatpush1.xpose.msra.mxu0 0.0
    %2551 = vmatprep.subr.mxu0 0.0
    %2552 = vmatpush1.xpose.msra.mxu0 %v2519
    %2553 = vmatprep.subr.mxu0 0.0
    %2554 = vmatpush2.xpose.msra.mxu0 0.0
    %2555 = vmatprep.subr.mxu0 0.0
    %2556 = vmatpush2.xpose.msra.mxu0 0.0
    %2557 = vmatprep.subr.mxu0 0.0
    %2558 = vmatpush2.xpose.msra.mxu0 0.0
    %2559 = vmatprep.subr.mxu0 0.0
    %2560 = vmatpush2.xpose.msra.mxu0 0.0
    %2561 = vmatprep.subr.mxu0 0.0
    %2562 = vmatpush2.xpose.msra.mxu0 0.0
    %2563 = vmatprep.subr.mxu0 0.0
    %2564 = vmatpush2.xpose.msra.mxu0 0.0
    %2565 = vmatprep.subr.mxu0 0.0
    %2566 = vmatpush2.xpose.msra.mxu0 0.0
    %2567 = vmatprep.subr.mxu0 0.0
    %2568 = vmatpush2.xpose.msra.mxu0 0.0
    %2569 = vmatprep.subr.mxu0 0.0
    %2570 = vmatpush2.xpose.msra.mxu0 0.0
    %2571 = vmatprep.subr.mxu0 0.0
    %2572 = vmatpush2.xpose.msra.mxu0 0.0
    %2573 = vmatprep.subr.mxu0 0.0
    %2574 = vmatpush2.xpose.msra.mxu0 0.0
    %2575 = vmatprep.subr.mxu0 0.0
    %2576 = vmatpush2.xpose.msra.mxu0 0.0
    %2577 = vmatprep.subr.mxu0 0.0
    %2578 = vmatpush2.xpose.msra.mxu0 0.0
    %2579 = vmatprep.subr.mxu0 0.0
    %2580 = vmatpush2.xpose.msra.mxu0 0.0
    %2581 = vmatprep.subr.mxu0 0.0
    %2582 = vmatpush2.xpose.msra.mxu0 0.0
    %2583 = vmatprep.subr.mxu0 0.0
    %2584 = vmatpush2.xpose.msra.mxu0 0.0
    %2585 = vmatprep.mubr.f32.mxu0 0.0
    %2586 = vmatmul.mubr.f32.gmra.mxu0 %v2517
    %v2587 = vpop.f32.mrf.mxu0
    %v2588 = vadd.f32 %v611, %v2587
    %v2589 = vpop.f32.mrf.mxu0
    %2590 = vdwg.mxu0
    %2591 = vrot.lane.b32.xlu0 %v747, 112
    %v2592 = vpop.permute.xlu0 %2591
    %2593 = vrot.lane.b32.xlu0 %v838, 112
    %v2594 = vpop.permute.xlu0 %2593
    %v2595 = vsel %vm163, %v2592, 0
    %v2597 = vsel %vm163, %v2594, 0
    %2599 = vmatprep.subr.mxu0 0.0
    %2600 = vmatpush1.xpose.msra.mxu0 0.0
    %2601 = vmatprep.subr.mxu0 0.0
    %2602 = vmatpush1.xpose.msra.mxu0 0.0
    %2603 = vmatprep.subr.mxu0 0.0
    %2604 = vmatpush1.xpose.msra.mxu0 0.0
    %2605 = vmatprep.subr.mxu0 0.0
    %2606 = vmatpush1.xpose.msra.mxu0 0.0
    %2607 = vmatprep.subr.mxu0 0.0
    %2608 = vmatpush1.xpose.msra.mxu0 0.0
    %2609 = vmatprep.subr.mxu0 0.0
    %2610 = vmatpush1.xpose.msra.mxu0 0.0
    %2611 = vmatprep.subr.mxu0 0.0
    %2612 = vmatpush1.xpose.msra.mxu0 0.0
    %2613 = vmatprep.subr.mxu0 0.0
    %2614 = vmatpush1.xpose.msra.mxu0 0.0
    %2615 = vmatprep.subr.mxu0 0.0
    %2616 = vmatpush1.xpose.msra.mxu0 0.0
    %2617 = vmatprep.subr.mxu0 0.0
    %2618 = vmatpush1.xpose.msra.mxu0 0.0
    %2619 = vmatprep.subr.mxu0 0.0
    %2620 = vmatpush1.xpose.msra.mxu0 0.0
    %2621 = vmatprep.subr.mxu0 0.0
    %2622 = vmatpush1.xpose.msra.mxu0 0.0
    %2623 = vmatprep.subr.mxu0 0.0
    %2624 = vmatpush1.xpose.msra.mxu0 0.0
    %2625 = vmatprep.subr.mxu0 0.0
    %2626 = vmatpush1.xpose.msra.mxu0 0.0
    %2627 = vmatprep.subr.mxu0 0.0
    %2628 = vmatpush1.xpose.msra.mxu0 0.0
    %2629 = vmatprep.subr.mxu0 0.0
    %2630 = vmatpush1.xpose.msra.mxu0 %v2597
    %2631 = vmatprep.subr.mxu0 0.0
    %2632 = vmatpush2.xpose.msra.mxu0 0.0
    %2633 = vmatprep.subr.mxu0 0.0
    %2634 = vmatpush2.xpose.msra.mxu0 0.0
    %2635 = vmatprep.subr.mxu0 0.0
    %2636 = vmatpush2.xpose.msra.mxu0 0.0
    %2637 = vmatprep.subr.mxu0 0.0
    %2638 = vmatpush2.xpose.msra.mxu0 0.0
    %2639 = vmatprep.subr.mxu0 0.0
    %2640 = vmatpush2.xpose.msra.mxu0 0.0
    %2641 = vmatprep.subr.mxu0 0.0
    %2642 = vmatpush2.xpose.msra.mxu0 0.0
    %2643 = vmatprep.subr.mxu0 0.0
    %2644 = vmatpush2.xpose.msra.mxu0 0.0
    %2645 = vmatprep.subr.mxu0 0.0
    %2646 = vmatpush2.xpose.msra.mxu0 0.0
    %2647 = vmatprep.subr.mxu0 0.0
    %2648 = vmatpush2.xpose.msra.mxu0 0.0
    %2649 = vmatprep.subr.mxu0 0.0
    %2650 = vmatpush2.xpose.msra.mxu0 0.0
    %2651 = vmatprep.subr.mxu0 0.0
    %2652 = vmatpush2.xpose.msra.mxu0 0.0
    %2653 = vmatprep.subr.mxu0 0.0
    %2654 = vmatpush2.xpose.msra.mxu0 0.0
    %2655 = vmatprep.subr.mxu0 0.0
    %2656 = vmatpush2.xpose.msra.mxu0 0.0
    %2657 = vmatprep.subr.mxu0 0.0
    %2658 = vmatpush2.xpose.msra.mxu0 0.0
    %2659 = vmatprep.subr.mxu0 0.0
    %2660 = vmatpush2.xpose.msra.mxu0 0.0
    %2661 = vmatprep.subr.mxu0 0.0
    %2662 = vmatpush2.xpose.msra.mxu0 0.0
    %2663 = vmatprep.mubr.f32.mxu0 0.0
    %2664 = vmatmul.mubr.f32.gmra.mxu0 %v2595
    %v2665 = vpop.f32.mrf.mxu0
    %v2666 = vadd.f32 %v612, %v2665
    %v2667 = vpop.f32.mrf.mxu0
    %2668 = vdwg.mxu0
    %2669 = vrot.lane.b32.xlu0 %v752, 112
    %v2670 = vpop.permute.xlu0 %2669
    %2671 = vrot.lane.b32.xlu0 %v843, 112
    %v2672 = vpop.permute.xlu0 %2671
    %v2673 = vsel %vm163, %v2670, 0
    %v2675 = vsel %vm163, %v2672, 0
    %2677 = vmatprep.subr.mxu0 0.0
    %2678 = vmatpush1.xpose.msra.mxu0 0.0
    %2679 = vmatprep.subr.mxu0 0.0
    %2680 = vmatpush1.xpose.msra.mxu0 0.0
    %2681 = vmatprep.subr.mxu0 0.0
    %2682 = vmatpush1.xpose.msra.mxu0 0.0
    %2683 = vmatprep.subr.mxu0 0.0
    %2684 = vmatpush1.xpose.msra.mxu0 0.0
    %2685 = vmatprep.subr.mxu0 0.0
    %2686 = vmatpush1.xpose.msra.mxu0 0.0
    %2687 = vmatprep.subr.mxu0 0.0
    %2688 = vmatpush1.xpose.msra.mxu0 0.0
    %2689 = vmatprep.subr.mxu0 0.0
    %2690 = vmatpush1.xpose.msra.mxu0 0.0
    %2691 = vmatprep.subr.mxu0 0.0
    %2692 = vmatpush1.xpose.msra.mxu0 0.0
    %2693 = vmatprep.subr.mxu0 0.0
    %2694 = vmatpush1.xpose.msra.mxu0 0.0
    %2695 = vmatprep.subr.mxu0 0.0
    %2696 = vmatpush1.xpose.msra.mxu0 0.0
    %2697 = vmatprep.subr.mxu0 0.0
    %2698 = vmatpush1.xpose.msra.mxu0 0.0
    %2699 = vmatprep.subr.mxu0 0.0
    %2700 = vmatpush1.xpose.msra.mxu0 0.0
    %2701 = vmatprep.subr.mxu0 0.0
    %2702 = vmatpush1.xpose.msra.mxu0 0.0
    %2703 = vmatprep.subr.mxu0 0.0
    %2704 = vmatpush1.xpose.msra.mxu0 0.0
    %2705 = vmatprep.subr.mxu0 0.0
    %2706 = vmatpush1.xpose.msra.mxu0 0.0
    %2707 = vmatprep.subr.mxu0 0.0
    %2708 = vmatpush1.xpose.msra.mxu0 %v2675
    %2709 = vmatprep.subr.mxu0 0.0
    %2710 = vmatpush2.xpose.msra.mxu0 0.0
    %2711 = vmatprep.subr.mxu0 0.0
    %2712 = vmatpush2.xpose.msra.mxu0 0.0
    %2713 = vmatprep.subr.mxu0 0.0
    %2714 = vmatpush2.xpose.msra.mxu0 0.0
    %2715 = vmatprep.subr.mxu0 0.0
    %2716 = vmatpush2.xpose.msra.mxu0 0.0
    %2717 = vmatprep.subr.mxu0 0.0
    %2718 = vmatpush2.xpose.msra.mxu0 0.0
    %2719 = vmatprep.subr.mxu0 0.0
    %2720 = vmatpush2.xpose.msra.mxu0 0.0
    %2721 = vmatprep.subr.mxu0 0.0
    %2722 = vmatpush2.xpose.msra.mxu0 0.0
    %2723 = vmatprep.subr.mxu0 0.0
    %2724 = vmatpush2.xpose.msra.mxu0 0.0
    %2725 = vmatprep.subr.mxu0 0.0
    %2726 = vmatpush2.xpose.msra.mxu0 0.0
    %2727 = vmatprep.subr.mxu0 0.0
    %2728 = vmatpush2.xpose.msra.mxu0 0.0
    %2729 = vmatprep.subr.mxu0 0.0
    %2730 = vmatpush2.xpose.msra.mxu0 0.0
    %2731 = vmatprep.subr.mxu0 0.0
    %2732 = vmatpush2.xpose.msra.mxu0 0.0
    %2733 = vmatprep.subr.mxu0 0.0
    %2734 = vmatpush2.xpose.msra.mxu0 0.0
    %2735 = vmatprep.subr.mxu0 0.0
    %2736 = vmatpush2.xpose.msra.mxu0 0.0
    %2737 = vmatprep.subr.mxu0 0.0
    %2738 = vmatpush2.xpose.msra.mxu0 0.0
    %2739 = vmatprep.subr.mxu0 0.0
    %2740 = vmatpush2.xpose.msra.mxu0 0.0
    %2741 = vmatprep.mubr.f32.mxu0 0.0
    %2742 = vmatmul.mubr.f32.gmra.mxu0 %v2673
    %v2743 = vpop.f32.mrf.mxu0
    %v2744 = vadd.f32 %v613, %v2743
    %v2745 = vpop.f32.mrf.mxu0
    %2746 = vdwg.mxu0
    %v2747 = vsel %vm163, %v2510, -inf
    %2748 = vmax.xlane.f32.xlu0 %v2747
    %v2749 = vpop.xlane.xlu0 %2748
    %v2750 = vsel %vm163, %v2588, -inf
    %2751 = vmax.xlane.f32.xlu0 %v2750
    %v2752 = vpop.xlane.xlu0 %2751
    %v2753 = vsel %vm163, %v2666, -inf
    %2754 = vmax.xlane.f32.xlu0 %v2753
    %v2755 = vpop.xlane.xlu0 %2754
    %v2756 = vsel %vm163, %v2744, -inf
    %2757 = vmax.xlane.f32.xlu0 %v2756
    %v2758 = vpop.xlane.xlu0 %2757
    %v2759 = vsub.f32 %v2510, %v2749
    %v2760 = vsub.f32 %v2588, %v2752
    %v2761 = vsub.f32 %v2666, %v2755
    %v2762 = vsub.f32 %v2744, %v2758
    %v2763 = vmul.f32 %v2759, 1.442695
    %v2764 = vpow.pop %v2763
    %v2765 = vmul.f32 %v2760, 1.442695
    %v2766 = vpow.pop %v2765
    %v2767 = vmul.f32 %v2761, 1.442695
    %v2768 = vpow.pop %v2767
    %v2769 = vmul.f32 %v2762, 1.442695
    %v2770 = vpow.pop %v2769
    %v2771 = vsel %vm163, %v2764, 0.0
    %2772 = vadd.xlane.f32.xlu0 %v2771
    %v2773 = vpop.xlane.xlu0 %2772
    %v2774 = vsel %vm163, %v2766, 0.0
    %2775 = vadd.xlane.f32.xlu0 %v2774
    %v2776 = vpop.xlane.xlu0 %2775
    %v2777 = vsel %vm163, %v2768, 0.0
    %2778 = vadd.xlane.f32.xlu0 %v2777
    %v2779 = vpop.xlane.xlu0 %2778
    %v2780 = vsel %vm163, %v2770, 0.0
    %2781 = vadd.xlane.f32.xlu0 %v2780
    %v2782 = vpop.xlane.xlu0 %2781
    %v2783 = vrcp.pop %v2773
    %v2784 = vrcp.pop %v2776
    %v2785 = vrcp.pop %v2779
    %v2786 = vrcp.pop %v2782
    %v2787 = vmul.f32 %v2764, %v2783
    %v2788 = vmul.f32 %v2766, %v2784
    %v2789 = vmul.f32 %v2768, %v2785
    %v2790 = vmul.f32 %v2770, %v2786
    %2791 = vrot.lane.b32.xlu0 %v919, 112
    %v2792 = vpop.permute.xlu0 %2791
    %v2795 = vsel %vm163, %v2787, 0
    %2797 = vmatprep.subr.mxu0 0.0
    %2798 = vmatpush1.msra.mxu0 0.0
    %2799 = vmatprep.subr.mxu0 0.0
    %2800 = vmatpush1.msra.mxu0 0.0
    %2801 = vmatprep.subr.mxu0 0.0
    %2802 = vmatpush1.msra.mxu0 0.0
    %2803 = vmatprep.subr.mxu0 0.0
    %2804 = vmatpush1.msra.mxu0 0.0
    %2805 = vmatprep.subr.mxu0 0.0
    %2806 = vmatpush1.msra.mxu0 0.0
    %2807 = vmatprep.subr.mxu0 0.0
    %2808 = vmatpush1.msra.mxu0 0.0
    %2809 = vmatprep.subr.mxu0 0.0
    %2810 = vmatpush1.msra.mxu0 0.0
    %2811 = vmatprep.subr.mxu0 0.0
    %2812 = vmatpush1.msra.mxu0 0.0
    %2813 = vmatprep.subr.mxu0 0.0
    %2814 = vmatpush1.msra.mxu0 0.0
    %2815 = vmatprep.subr.mxu0 0.0
    %2816 = vmatpush1.msra.mxu0 0.0
    %2817 = vmatprep.subr.mxu0 0.0
    %2818 = vmatpush1.msra.mxu0 0.0
    %2819 = vmatprep.subr.mxu0 0.0
    %2820 = vmatpush1.msra.mxu0 0.0
    %2821 = vmatprep.subr.mxu0 0.0
    %2822 = vmatpush1.msra.mxu0 0.0
    %2823 = vmatprep.subr.mxu0 0.0
    %2824 = vmatpush1.msra.mxu0 0.0
    %2825 = vmatprep.subr.mxu0 0.0
    %2826 = vmatpush1.msra.mxu0 0.0
    %2827 = vmatprep.subr.mxu0 0.0
    %2828 = vmatpush1.msra.mxu0 %v2792
    %2829 = vmatprep.subr.mxu0 0.0
    %2830 = vmatpush2.msra.mxu0 0.0
    %2831 = vmatprep.subr.mxu0 0.0
    %2832 = vmatpush2.msra.mxu0 0.0
    %2833 = vmatprep.subr.mxu0 0.0
    %2834 = vmatpush2.msra.mxu0 0.0
    %2835 = vmatprep.subr.mxu0 0.0
    %2836 = vmatpush2.msra.mxu0 0.0
    %2837 = vmatprep.subr.mxu0 0.0
    %2838 = vmatpush2.msra.mxu0 0.0
    %2839 = vmatprep.subr.mxu0 0.0
    %2840 = vmatpush2.msra.mxu0 0.0
    %2841 = vmatprep.subr.mxu0 0.0
    %2842 = vmatpush2.msra.mxu0 0.0
    %2843 = vmatprep.subr.mxu0 0.0
    %2844 = vmatpush2.msra.mxu0 0.0
    %2845 = vmatprep.subr.mxu0 0.0
    %2846 = vmatpush2.msra.mxu0 0.0
    %2847 = vmatprep.subr.mxu0 0.0
    %2848 = vmatpush2.msra.mxu0 0.0
    %2849 = vmatprep.subr.mxu0 0.0
    %2850 = vmatpush2.msra.mxu0 0.0
    %2851 = vmatprep.subr.mxu0 0.0
    %2852 = vmatpush2.msra.mxu0 0.0
    %2853 = vmatprep.subr.mxu0 0.0
    %2854 = vmatpush2.msra.mxu0 0.0
    %2855 = vmatprep.subr.mxu0 0.0
    %2856 = vmatpush2.msra.mxu0 0.0
    %2857 = vmatprep.subr.mxu0 0.0
    %2858 = vmatpush2.msra.mxu0 0.0
    %2859 = vmatprep.subr.mxu0 0.0
    %2860 = vmatpush2.msra.mxu0 0.0
    %2861 = vmatprep.mubr.f32.mxu0 0.0
    %2862 = vmatmul.mubr.f32.gmra.mxu0 %v2795
    %v2863 = vpop.f32.mrf.mxu0
    %v2864 = vadd.f32 0.0, %v2863
    %v2865 = vpop.f32.mrf.mxu0
    %2866 = vdwg.mxu0
    %2867 = vrot.lane.b32.xlu0 %v924, 112
    %v2868 = vpop.permute.xlu0 %2867
    %v2871 = vsel %vm163, %v2788, 0
    %2873 = vmatprep.subr.mxu0 0.0
    %2874 = vmatpush1.msra.mxu0 0.0
    %2875 = vmatprep.subr.mxu0 0.0
    %2876 = vmatpush1.msra.mxu0 0.0
    %2877 = vmatprep.subr.mxu0 0.0
    %2878 = vmatpush1.msra.mxu0 0.0
    %2879 = vmatprep.subr.mxu0 0.0
    %2880 = vmatpush1.msra.mxu0 0.0
    %2881 = vmatprep.subr.mxu0 0.0
    %2882 = vmatpush1.msra.mxu0 0.0
    %2883 = vmatprep.subr.mxu0 0.0
    %2884 = vmatpush1.msra.mxu0 0.0
    %2885 = vmatprep.subr.mxu0 0.0
    %2886 = vmatpush1.msra.mxu0 0.0
    %2887 = vmatprep.subr.mxu0 0.0
    %2888 = vmatpush1.msra.mxu0 0.0
    %2889 = vmatprep.subr.mxu0 0.0
    %2890 = vmatpush1.msra.mxu0 0.0
    %2891 = vmatprep.subr.mxu0 0.0
    %2892 = vmatpush1.msra.mxu0 0.0
    %2893 = vmatprep.subr.mxu0 0.0
    %2894 = vmatpush1.msra.mxu0 0.0
    %2895 = vmatprep.subr.mxu0 0.0
    %2896 = vmatpush1.msra.mxu0 0.0
    %2897 = vmatprep.subr.mxu0 0.0
    %2898 = vmatpush1.msra.mxu0 0.0
    %2899 = vmatprep.subr.mxu0 0.0
    %2900 = vmatpush1.msra.mxu0 0.0
    %2901 = vmatprep.subr.mxu0 0.0
    %2902 = vmatpush1.msra.mxu0 0.0
    %2903 = vmatprep.subr.mxu0 0.0
    %2904 = vmatpush1.msra.mxu0 %v2868
    %2905 = vmatprep.subr.mxu0 0.0
    %2906 = vmatpush2.msra.mxu0 0.0
    %2907 = vmatprep.subr.mxu0 0.0
    %2908 = vmatpush2.msra.mxu0 0.0
    %2909 = vmatprep.subr.mxu0 0.0
    %2910 = vmatpush2.msra.mxu0 0.0
    %2911 = vmatprep.subr.mxu0 0.0
    %2912 = vmatpush2.msra.mxu0 0.0
    %2913 = vmatprep.subr.mxu0 0.0
    %2914 = vmatpush2.msra.mxu0 0.0
    %2915 = vmatprep.subr.mxu0 0.0
    %2916 = vmatpush2.msra.mxu0 0.0
    %2917 = vmatprep.subr.mxu0 0.0
    %2918 = vmatpush2.msra.mxu0 0.0
    %2919 = vmatprep.subr.mxu0 0.0
    %2920 = vmatpush2.msra.mxu0 0.0
    %2921 = vmatprep.subr.mxu0 0.0
    %2922 = vmatpush2.msra.mxu0 0.0
    %2923 = vmatprep.subr.mxu0 0.0
    %2924 = vmatpush2.msra.mxu0 0.0
    %2925 = vmatprep.subr.mxu0 0.0
    %2926 = vmatpush2.msra.mxu0 0.0
    %2927 = vmatprep.subr.mxu0 0.0
    %2928 = vmatpush2.msra.mxu0 0.0
    %2929 = vmatprep.subr.mxu0 0.0
    %2930 = vmatpush2.msra.mxu0 0.0
    %2931 = vmatprep.subr.mxu0 0.0
    %2932 = vmatpush2.msra.mxu0 0.0
    %2933 = vmatprep.subr.mxu0 0.0
    %2934 = vmatpush2.msra.mxu0 0.0
    %2935 = vmatprep.subr.mxu0 0.0
    %2936 = vmatpush2.msra.mxu0 0.0
    %2937 = vmatprep.mubr.f32.mxu0 0.0
    %2938 = vmatmul.mubr.f32.gmra.mxu0 %v2871
    %v2939 = vpop.f32.mrf.mxu0
    %v2940 = vadd.f32 0.0, %v2939
    %v2941 = vpop.f32.mrf.mxu0
    %2942 = vdwg.mxu0
    %2943 = vrot.lane.b32.xlu0 %v929, 112
    %v2944 = vpop.permute.xlu0 %2943
    %v2947 = vsel %vm163, %v2789, 0
    %2949 = vmatprep.subr.mxu0 0.0
    %2950 = vmatpush1.msra.mxu0 0.0
    %2951 = vmatprep.subr.mxu0 0.0
    %2952 = vmatpush1.msra.mxu0 0.0
    %2953 = vmatprep.subr.mxu0 0.0
    %2954 = vmatpush1.msra.mxu0 0.0
    %2955 = vmatprep.subr.mxu0 0.0
    %2956 = vmatpush1.msra.mxu0 0.0
    %2957 = vmatprep.subr.mxu0 0.0
    %2958 = vmatpush1.msra.mxu0 0.0
    %2959 = vmatprep.subr.mxu0 0.0
    %2960 = vmatpush1.msra.mxu0 0.0
    %2961 = vmatprep.subr.mxu0 0.0
    %2962 = vmatpush1.msra.mxu0 0.0
    %2963 = vmatprep.subr.mxu0 0.0
    %2964 = vmatpush1.msra.mxu0 0.0
    %2965 = vmatprep.subr.mxu0 0.0
    %2966 = vmatpush1.msra.mxu0 0.0
    %2967 = vmatprep.subr.mxu0 0.0
    %2968 = vmatpush1.msra.mxu0 0.0
    %2969 = vmatprep.subr.mxu0 0.0
    %2970 = vmatpush1.msra.mxu0 0.0
    %2971 = vmatprep.subr.mxu0 0.0
    %2972 = vmatpush1.msra.mxu0 0.0
    %2973 = vmatprep.subr.mxu0 0.0
    %2974 = vmatpush1.msra.mxu0 0.0
    %2975 = vmatprep.subr.mxu0 0.0
    %2976 = vmatpush1.msra.mxu0 0.0
    %2977 = vmatprep.subr.mxu0 0.0
    %2978 = vmatpush1.msra.mxu0 0.0
    %2979 = vmatprep.subr.mxu0 0.0
    %2980 = vmatpush1.msra.mxu0 %v2944
    %2981 = vmatprep.subr.mxu0 0.0
    %2982 = vmatpush2.msra.mxu0 0.0
    %2983 = vmatprep.subr.mxu0 0.0
    %2984 = vmatpush2.msra.mxu0 0.0
    %2985 = vmatprep.subr.mxu0 0.0
    %2986 = vmatpush2.msra.mxu0 0.0
    %2987 = vmatprep.subr.mxu0 0.0
    %2988 = vmatpush2.msra.mxu0 0.0
    %2989 = vmatprep.subr.mxu0 0.0
    %2990 = vmatpush2.msra.mxu0 0.0
    %2991 = vmatprep.subr.mxu0 0.0
    %2992 = vmatpush2.msra.mxu0 0.0
    %2993 = vmatprep.subr.mxu0 0.0
    %2994 = vmatpush2.msra.mxu0 0.0
    %2995 = vmatprep.subr.mxu0 0.0
    %2996 = vmatpush2.msra.mxu0 0.0
    %2997 = vmatprep.subr.mxu0 0.0
    %2998 = vmatpush2.msra.mxu0 0.0
    %2999 = vmatprep.subr.mxu0 0.0
    %3000 = vmatpush2.msra.mxu0 0.0
    %3001 = vmatprep.subr.mxu0 0.0
    %3002 = vmatpush2.msra.mxu0 0.0
    %3003 = vmatprep.subr.mxu0 0.0
    %3004 = vmatpush2.msra.mxu0 0.0
    %3005 = vmatprep.subr.mxu0 0.0
    %3006 = vmatpush2.msra.mxu0 0.0
    %3007 = vmatprep.subr.mxu0 0.0
    %3008 = vmatpush2.msra.mxu0 0.0
    %3009 = vmatprep.subr.mxu0 0.0
    %3010 = vmatpush2.msra.mxu0 0.0
    %3011 = vmatprep.subr.mxu0 0.0
    %3012 = vmatpush2.msra.mxu0 0.0
    %3013 = vmatprep.mubr.f32.mxu0 0.0
    %3014 = vmatmul.mubr.f32.gmra.mxu0 %v2947
    %v3015 = vpop.f32.mrf.mxu0
    %v3016 = vadd.f32 0.0, %v3015
    %v3017 = vpop.f32.mrf.mxu0
    %3018 = vdwg.mxu0
    %3019 = vrot.lane.b32.xlu0 %v934, 112
    %v3020 = vpop.permute.xlu0 %3019
    %v3023 = vsel %vm163, %v2790, 0
    %3025 = vmatprep.subr.mxu0 0.0
    %3026 = vmatpush1.msra.mxu0 0.0
    %3027 = vmatprep.subr.mxu0 0.0
    %3028 = vmatpush1.msra.mxu0 0.0
    %3029 = vmatprep.subr.mxu0 0.0
    %3030 = vmatpush1.msra.mxu0 0.0
    %3031 = vmatprep.subr.mxu0 0.0
    %3032 = vmatpush1.msra.mxu0 0.0
    %3033 = vmatprep.subr.mxu0 0.0
    %3034 = vmatpush1.msra.mxu0 0.0
    %3035 = vmatprep.subr.mxu0 0.0
    %3036 = vmatpush1.msra.mxu0 0.0
    %3037 = vmatprep.subr.mxu0 0.0
    %3038 = vmatpush1.msra.mxu0 0.0
    %3039 = vmatprep.subr.mxu0 0.0
    %3040 = vmatpush1.msra.mxu0 0.0
    %3041 = vmatprep.subr.mxu0 0.0
    %3042 = vmatpush1.msra.mxu0 0.0
    %3043 = vmatprep.subr.mxu0 0.0
    %3044 = vmatpush1.msra.mxu0 0.0
    %3045 = vmatprep.subr.mxu0 0.0
    %3046 = vmatpush1.msra.mxu0 0.0
    %3047 = vmatprep.subr.mxu0 0.0
    %3048 = vmatpush1.msra.mxu0 0.0
    %3049 = vmatprep.subr.mxu0 0.0
    %3050 = vmatpush1.msra.mxu0 0.0
    %3051 = vmatprep.subr.mxu0 0.0
    %3052 = vmatpush1.msra.mxu0 0.0
    %3053 = vmatprep.subr.mxu0 0.0
    %3054 = vmatpush1.msra.mxu0 0.0
    %3055 = vmatprep.subr.mxu0 0.0
    %3056 = vmatpush1.msra.mxu0 %v3020
    %3057 = vmatprep.subr.mxu0 0.0
    %3058 = vmatpush2.msra.mxu0 0.0
    %3059 = vmatprep.subr.mxu0 0.0
    %3060 = vmatpush2.msra.mxu0 0.0
    %3061 = vmatprep.subr.mxu0 0.0
    %3062 = vmatpush2.msra.mxu0 0.0
    %3063 = vmatprep.subr.mxu0 0.0
    %3064 = vmatpush2.msra.mxu0 0.0
    %3065 = vmatprep.subr.mxu0 0.0
    %3066 = vmatpush2.msra.mxu0 0.0
    %3067 = vmatprep.subr.mxu0 0.0
    %3068 = vmatpush2.msra.mxu0 0.0
    %3069 = vmatprep.subr.mxu0 0.0
    %3070 = vmatpush2.msra.mxu0 0.0
    %3071 = vmatprep.subr.mxu0 0.0
    %3072 = vmatpush2.msra.mxu0 0.0
    %3073 = vmatprep.subr.mxu0 0.0
    %3074 = vmatpush2.msra.mxu0 0.0
    %3075 = vmatprep.subr.mxu0 0.0
    %3076 = vmatpush2.msra.mxu0 0.0
    %3077 = vmatprep.subr.mxu0 0.0
    %3078 = vmatpush2.msra.mxu0 0.0
    %3079 = vmatprep.subr.mxu0 0.0
    %3080 = vmatpush2.msra.mxu0 0.0
    %3081 = vmatprep.subr.mxu0 0.0
    %3082 = vmatpush2.msra.mxu0 0.0
    %3083 = vmatprep.subr.mxu0 0.0
    %3084 = vmatpush2.msra.mxu0 0.0
    %3085 = vmatprep.subr.mxu0 0.0
    %3086 = vmatpush2.msra.mxu0 0.0
    %3087 = vmatprep.subr.mxu0 0.0
    %3088 = vmatpush2.msra.mxu0 0.0
    %3089 = vmatprep.mubr.f32.mxu0 0.0
    %3090 = vmatmul.mubr.f32.gmra.mxu0 %v3023
    %v3091 = vpop.f32.mrf.mxu0
    %v3092 = vadd.f32 0.0, %v3091
    %v3093 = vpop.f32.mrf.mxu0
    %3094 = vdwg.mxu0
    %v3096 = vsel %vm163, %v2864, 0
    %v3099 = vsel %vm163, %v2940, 0
    %v3102 = vsel %vm163, %v3016, 0
    %v3105 = vsel %vm163, %v3092, 0
    %3107 = vmatprep.subr.mxu0 0.0
    %3108 = vmatpush1.msra.mxu0 0.0
    %3109 = vmatprep.subr.mxu0 0.0
    %3110 = vmatpush1.msra.mxu0 0.0
    %3111 = vmatprep.subr.mxu0 0.0
    %3112 = vmatpush1.msra.mxu0 0.0
    %3113 = vmatprep.subr.mxu0 0.0
    %3114 = vmatpush1.msra.mxu0 0.0
    %3115 = vmatprep.subr.mxu0 0.0
    %3116 = vmatpush1.msra.mxu0 0.0
    %3117 = vmatprep.subr.mxu0 0.0
    %3118 = vmatpush1.msra.mxu0 0.0
    %3119 = vmatprep.subr.mxu0 0.0
    %3120 = vmatpush1.msra.mxu0 0.0
    %3121 = vmatprep.subr.mxu0 0.0
    %3122 = vmatpush1.msra.mxu0 0.0
    %3123 = vmatprep.subr.mxu0 0.0
    %3124 = vmatpush1.msra.mxu0 0.0
    %3125 = vmatprep.subr.mxu0 0.0
    %3126 = vmatpush1.msra.mxu0 0.0
    %3127 = vmatprep.subr.mxu0 0.0
    %3128 = vmatpush1.msra.mxu0 0.0
    %3129 = vmatprep.subr.mxu0 0.0
    %3130 = vmatpush1.msra.mxu0 0.0
    %3131 = vmatprep.subr.mxu0 0.0
    %3132 = vmatpush1.msra.mxu0 0.0
    %3133 = vmatprep.subr.mxu0 0.0
    %3134 = vmatpush1.msra.mxu0 0.0
    %3135 = vmatprep.subr.mxu0 0.0
    %3136 = vmatpush1.msra.mxu0 0.0
    %3137 = vmatprep.subr.mxu0 0.0
    %3138 = vmatpush1.msra.mxu0 %v631
    %3139 = vmatprep.subr.mxu0 0.0
    %3140 = vmatpush2.msra.mxu0 0.0
    %3141 = vmatprep.subr.mxu0 0.0
    %3142 = vmatpush2.msra.mxu0 0.0
    %3143 = vmatprep.subr.mxu0 0.0
    %3144 = vmatpush2.msra.mxu0 0.0
    %3145 = vmatprep.subr.mxu0 0.0
    %3146 = vmatpush2.msra.mxu0 0.0
    %3147 = vmatprep.subr.mxu0 0.0
    %3148 = vmatpush2.msra.mxu0 0.0
    %3149 = vmatprep.subr.mxu0 0.0
    %3150 = vmatpush2.msra.mxu0 0.0
    %3151 = vmatprep.subr.mxu0 0.0
    %3152 = vmatpush2.msra.mxu0 0.0
    %3153 = vmatprep.subr.mxu0 0.0
    %3154 = vmatpush2.msra.mxu0 0.0
    %3155 = vmatprep.subr.mxu0 0.0
    %3156 = vmatpush2.msra.mxu0 0.0
    %3157 = vmatprep.subr.mxu0 0.0
    %3158 = vmatpush2.msra.mxu0 0.0
    %3159 = vmatprep.subr.mxu0 0.0
    %3160 = vmatpush2.msra.mxu0 0.0
    %3161 = vmatprep.subr.mxu0 0.0
    %3162 = vmatpush2.msra.mxu0 0.0
    %3163 = vmatprep.subr.mxu0 0.0
    %3164 = vmatpush2.msra.mxu0 0.0
    %3165 = vmatprep.subr.mxu0 0.0
    %3166 = vmatpush2.msra.mxu0 0.0
    %3167 = vmatprep.subr.mxu0 0.0
    %3168 = vmatpush2.msra.mxu0 0.0
    %3169 = vmatprep.subr.mxu0 0.0
    %3170 = vmatpush2.msra.mxu0 0.0
    %3171 = vmatprep.mubr.f32.mxu0 0.0
    %3172 = vmatmul.mubr.f32.gmra.mxu0 %v3096
    %v3173 = vpop.f32.mrf.mxu0
    %v3174 = vadd.f32 0.0, %v3173
    %v3175 = vpop.f32.mrf.mxu0
    %3176 = vmatprep.mubr.f32.mxu0 0.0
    %3177 = vmatmul.mubr.f32.gmra.mxu0 %v3099
    %v3178 = vpop.f32.mrf.mxu0
    %v3179 = vadd.f32 0.0, %v3178
    %v3180 = vpop.f32.mrf.mxu0
    %3181 = vmatprep.mubr.f32.mxu0 0.0
    %3182 = vmatmul.mubr.f32.gmra.mxu0 %v3102
    %v3183 = vpop.f32.mrf.mxu0
    %v3184 = vadd.f32 0.0, %v3183
    %v3185 = vpop.f32.mrf.mxu0
    %3186 = vmatprep.mubr.f32.mxu0 0.0
    %3187 = vmatmul.mubr.f32.gmra.mxu0 %v3105
    %v3188 = vpop.f32.mrf.mxu0
    %v3189 = vadd.f32 0.0, %v3188
    %v3190 = vpop.f32.mrf.mxu0
    %3191 = vdwg.mxu0
    %v3192 = vadd.f32 %v2417, %v3174
    %v3193 = vadd.f32 %v2422, %v3179
    %v3194 = vadd.f32 %v2427, %v3184
    %v3195 = vadd.f32 %v2432, %v3189
    %3196 = vrot.lane.b32.xlu0 %v737, 104
    %v3197 = vpop.permute.xlu0 %3196
    %3198 = vrot.lane.b32.xlu0 %v828, 104
    %v3199 = vpop.permute.xlu0 %3198
    %v3200 = vsel %vm163, %v3197, 0
    %v3202 = vsel %vm163, %v3199, 0
    %3204 = vmatprep.subr.mxu0 0.0
    %3205 = vmatpush1.xpose.msra.mxu0 0.0
    %3206 = vmatprep.subr.mxu0 0.0
    %3207 = vmatpush1.xpose.msra.mxu0 0.0
    %3208 = vmatprep.subr.mxu0 0.0
    %3209 = vmatpush1.xpose.msra.mxu0 0.0
    %3210 = vmatprep.subr.mxu0 0.0
    %3211 = vmatpush1.xpose.msra.mxu0 0.0
    %3212 = vmatprep.subr.mxu0 0.0
    %3213 = vmatpush1.xpose.msra.mxu0 0.0
    %3214 = vmatprep.subr.mxu0 0.0
    %3215 = vmatpush1.xpose.msra.mxu0 0.0
    %3216 = vmatprep.subr.mxu0 0.0
    %3217 = vmatpush1.xpose.msra.mxu0 0.0
    %3218 = vmatprep.subr.mxu0 0.0
    %3219 = vmatpush1.xpose.msra.mxu0 0.0
    %3220 = vmatprep.subr.mxu0 0.0
    %3221 = vmatpush1.xpose.msra.mxu0 0.0
    %3222 = vmatprep.subr.mxu0 0.0
    %3223 = vmatpush1.xpose.msra.mxu0 0.0
    %3224 = vmatprep.subr.mxu0 0.0
    %3225 = vmatpush1.xpose.msra.mxu0 0.0
    %3226 = vmatprep.subr.mxu0 0.0
    %3227 = vmatpush1.xpose.msra.mxu0 0.0
    %3228 = vmatprep.subr.mxu0 0.0
    %3229 = vmatpush1.xpose.msra.mxu0 0.0
    %3230 = vmatprep.subr.mxu0 0.0
    %3231 = vmatpush1.xpose.msra.mxu0 0.0
    %3232 = vmatprep.subr.mxu0 0.0
    %3233 = vmatpush1.xpose.msra.mxu0 0.0
    %3234 = vmatprep.subr.mxu0 0.0
    %3235 = vmatpush1.xpose.msra.mxu0 %v3202
    %3236 = vmatprep.subr.mxu0 0.0
    %3237 = vmatpush2.xpose.msra.mxu0 0.0
    %3238 = vmatprep.subr.mxu0 0.0
    %3239 = vmatpush2.xpose.msra.mxu0 0.0
    %3240 = vmatprep.subr.mxu0 0.0
    %3241 = vmatpush2.xpose.msra.mxu0 0.0
    %3242 = vmatprep.subr.mxu0 0.0
    %3243 = vmatpush2.xpose.msra.mxu0 0.0
    %3244 = vmatprep.subr.mxu0 0.0
    %3245 = vmatpush2.xpose.msra.mxu0 0.0
    %3246 = vmatprep.subr.mxu0 0.0
    %3247 = vmatpush2.xpose.msra.mxu0 0.0
    %3248 = vmatprep.subr.mxu0 0.0
    %3249 = vmatpush2.xpose.msra.mxu0 0.0
    %3250 = vmatprep.subr.mxu0 0.0
    %3251 = vmatpush2.xpose.msra.mxu0 0.0
    %3252 = vmatprep.subr.mxu0 0.0
    %3253 = vmatpush2.xpose.msra.mxu0 0.0
    %3254 = vmatprep.subr.mxu0 0.0
    %3255 = vmatpush2.xpose.msra.mxu0 0.0
    %3256 = vmatprep.subr.mxu0 0.0
    %3257 = vmatpush2.xpose.msra.mxu0 0.0
    %3258 = vmatprep.subr.mxu0 0.0
    %3259 = vmatpush2.xpose.msra.mxu0 0.0
    %3260 = vmatprep.subr.mxu0 0.0
    %3261 = vmatpush2.xpose.msra.mxu0 0.0
    %3262 = vmatprep.subr.mxu0 0.0
    %3263 = vmatpush2.xpose.msra.mxu0 0.0
    %3264 = vmatprep.subr.mxu0 0.0
    %3265 = vmatpush2.xpose.msra.mxu0 0.0
    %3266 = vmatprep.subr.mxu0 0.0
    %3267 = vmatpush2.xpose.msra.mxu0 0.0
    %3268 = vmatprep.mubr.f32.mxu0 0.0
    %3269 = vmatmul.mubr.f32.gmra.mxu0 %v3200
    %v3270 = vpop.f32.mrf.mxu0
    %v3271 = vadd.f32 %v610, %v3270
    %v3272 = vpop.f32.mrf.mxu0
    %3273 = vdwg.mxu0
    %3274 = vrot.lane.b32.xlu0 %v742, 104
    %v3275 = vpop.permute.xlu0 %3274
    %3276 = vrot.lane.b32.xlu0 %v833, 104
    %v3277 = vpop.permute.xlu0 %3276
    %v3278 = vsel %vm163, %v3275, 0
    %v3280 = vsel %vm163, %v3277, 0
    %3282 = vmatprep.subr.mxu0 0.0
    %3283 = vmatpush1.xpose.msra.mxu0 0.0
    %3284 = vmatprep.subr.mxu0 0.0
    %3285 = vmatpush1.xpose.msra.mxu0 0.0
    %3286 = vmatprep.subr.mxu0 0.0
    %3287 = vmatpush1.xpose.msra.mxu0 0.0
    %3288 = vmatprep.subr.mxu0 0.0
    %3289 = vmatpush1.xpose.msra.mxu0 0.0
    %3290 = vmatprep.subr.mxu0 0.0
    %3291 = vmatpush1.xpose.msra.mxu0 0.0
    %3292 = vmatprep.subr.mxu0 0.0
    %3293 = vmatpush1.xpose.msra.mxu0 0.0
    %3294 = vmatprep.subr.mxu0 0.0
    %3295 = vmatpush1.xpose.msra.mxu0 0.0
    %3296 = vmatprep.subr.mxu0 0.0
    %3297 = vmatpush1.xpose.msra.mxu0 0.0
    %3298 = vmatprep.subr.mxu0 0.0
    %3299 = vmatpush1.xpose.msra.mxu0 0.0
    %3300 = vmatprep.subr.mxu0 0.0
    %3301 = vmatpush1.xpose.msra.mxu0 0.0
    %3302 = vmatprep.subr.mxu0 0.0
    %3303 = vmatpush1.xpose.msra.mxu0 0.0
    %3304 = vmatprep.subr.mxu0 0.0
    %3305 = vmatpush1.xpose.msra.mxu0 0.0
    %3306 = vmatprep.subr.mxu0 0.0
    %3307 = vmatpush1.xpose.msra.mxu0 0.0
    %3308 = vmatprep.subr.mxu0 0.0
    %3309 = vmatpush1.xpose.msra.mxu0 0.0
    %3310 = vmatprep.subr.mxu0 0.0
    %3311 = vmatpush1.xpose.msra.mxu0 0.0
    %3312 = vmatprep.subr.mxu0 0.0
    %3313 = vmatpush1.xpose.msra.mxu0 %v3280
    %3314 = vmatprep.subr.mxu0 0.0
    %3315 = vmatpush2.xpose.msra.mxu0 0.0
    %3316 = vmatprep.subr.mxu0 0.0
    %3317 = vmatpush2.xpose.msra.mxu0 0.0
    %3318 = vmatprep.subr.mxu0 0.0
    %3319 = vmatpush2.xpose.msra.mxu0 0.0
    %3320 = vmatprep.subr.mxu0 0.0
    %3321 = vmatpush2.xpose.msra.mxu0 0.0
    %3322 = vmatprep.subr.mxu0 0.0
    %3323 = vmatpush2.xpose.msra.mxu0 0.0
    %3324 = vmatprep.subr.mxu0 0.0
    %3325 = vmatpush2.xpose.msra.mxu0 0.0
    %3326 = vmatprep.subr.mxu0 0.0
    %3327 = vmatpush2.xpose.msra.mxu0 0.0
    %3328 = vmatprep.subr.mxu0 0.0
    %3329 = vmatpush2.xpose.msra.mxu0 0.0
    %3330 = vmatprep.subr.mxu0 0.0
    %3331 = vmatpush2.xpose.msra.mxu0 0.0
    %3332 = vmatprep.subr.mxu0 0.0
    %3333 = vmatpush2.xpose.msra.mxu0 0.0
    %3334 = vmatprep.subr.mxu0 0.0
    %3335 = vmatpush2.xpose.msra.mxu0 0.0
    %3336 = vmatprep.subr.mxu0 0.0
    %3337 = vmatpush2.xpose.msra.mxu0 0.0
    %3338 = vmatprep.subr.mxu0 0.0
    %3339 = vmatpush2.xpose.msra.mxu0 0.0
    %3340 = vmatprep.subr.mxu0 0.0
    %3341 = vmatpush2.xpose.msra.mxu0 0.0
    %3342 = vmatprep.subr.mxu0 0.0
    %3343 = vmatpush2.xpose.msra.mxu0 0.0
    %3344 = vmatprep.subr.mxu0 0.0
    %3345 = vmatpush2.xpose.msra.mxu0 0.0
    %3346 = vmatprep.mubr.f32.mxu0 0.0
    %3347 = vmatmul.mubr.f32.gmra.mxu0 %v3278
    %v3348 = vpop.f32.mrf.mxu0
    %v3349 = vadd.f32 %v611, %v3348
    %v3350 = vpop.f32.mrf.mxu0
    %3351 = vdwg.mxu0
    %3352 = vrot.lane.b32.xlu0 %v747, 104
    %v3353 = vpop.permute.xlu0 %3352
    %3354 = vrot.lane.b32.xlu0 %v838, 104
    %v3355 = vpop.permute.xlu0 %3354
    %v3356 = vsel %vm163, %v3353, 0
    %v3358 = vsel %vm163, %v3355, 0
    %3360 = vmatprep.subr.mxu0 0.0
    %3361 = vmatpush1.xpose.msra.mxu0 0.0
    %3362 = vmatprep.subr.mxu0 0.0
    %3363 = vmatpush1.xpose.msra.mxu0 0.0
    %3364 = vmatprep.subr.mxu0 0.0
    %3365 = vmatpush1.xpose.msra.mxu0 0.0
    %3366 = vmatprep.subr.mxu0 0.0
    %3367 = vmatpush1.xpose.msra.mxu0 0.0
    %3368 = vmatprep.subr.mxu0 0.0
    %3369 = vmatpush1.xpose.msra.mxu0 0.0
    %3370 = vmatprep.subr.mxu0 0.0
    %3371 = vmatpush1.xpose.msra.mxu0 0.0
    %3372 = vmatprep.subr.mxu0 0.0
    %3373 = vmatpush1.xpose.msra.mxu0 0.0
    %3374 = vmatprep.subr.mxu0 0.0
    %3375 = vmatpush1.xpose.msra.mxu0 0.0
    %3376 = vmatprep.subr.mxu0 0.0
    %3377 = vmatpush1.xpose.msra.mxu0 0.0
    %3378 = vmatprep.subr.mxu0 0.0
    %3379 = vmatpush1.xpose.msra.mxu0 0.0
    %3380 = vmatprep.subr.mxu0 0.0
    %3381 = vmatpush1.xpose.msra.mxu0 0.0
    %3382 = vmatprep.subr.mxu0 0.0
    %3383 = vmatpush1.xpose.msra.mxu0 0.0
    %3384 = vmatprep.subr.mxu0 0.0
    %3385 = vmatpush1.xpose.msra.mxu0 0.0
    %3386 = vmatprep.subr.mxu0 0.0
    %3387 = vmatpush1.xpose.msra.mxu0 0.0
    %3388 = vmatprep.subr.mxu0 0.0
    %3389 = vmatpush1.xpose.msra.mxu0 0.0
    %3390 = vmatprep.subr.mxu0 0.0
    %3391 = vmatpush1.xpose.msra.mxu0 %v3358
    %3392 = vmatprep.subr.mxu0 0.0
    %3393 = vmatpush2.xpose.msra.mxu0 0.0
    %3394 = vmatprep.subr.mxu0 0.0
    %3395 = vmatpush2.xpose.msra.mxu0 0.0
    %3396 = vmatprep.subr.mxu0 0.0
    %3397 = vmatpush2.xpose.msra.mxu0 0.0
    %3398 = vmatprep.subr.mxu0 0.0
    %3399 = vmatpush2.xpose.msra.mxu0 0.0
    %3400 = vmatprep.subr.mxu0 0.0
    %3401 = vmatpush2.xpose.msra.mxu0 0.0
    %3402 = vmatprep.subr.mxu0 0.0
    %3403 = vmatpush2.xpose.msra.mxu0 0.0
    %3404 = vmatprep.subr.mxu0 0.0
    %3405 = vmatpush2.xpose.msra.mxu0 0.0
    %3406 = vmatprep.subr.mxu0 0.0
    %3407 = vmatpush2.xpose.msra.mxu0 0.0
    %3408 = vmatprep.subr.mxu0 0.0
    %3409 = vmatpush2.xpose.msra.mxu0 0.0
    %3410 = vmatprep.subr.mxu0 0.0
    %3411 = vmatpush2.xpose.msra.mxu0 0.0
    %3412 = vmatprep.subr.mxu0 0.0
    %3413 = vmatpush2.xpose.msra.mxu0 0.0
    %3414 = vmatprep.subr.mxu0 0.0
    %3415 = vmatpush2.xpose.msra.mxu0 0.0
    %3416 = vmatprep.subr.mxu0 0.0
    %3417 = vmatpush2.xpose.msra.mxu0 0.0
    %3418 = vmatprep.subr.mxu0 0.0
    %3419 = vmatpush2.xpose.msra.mxu0 0.0
    %3420 = vmatprep.subr.mxu0 0.0
    %3421 = vmatpush2.xpose.msra.mxu0 0.0
    %3422 = vmatprep.subr.mxu0 0.0
    %3423 = vmatpush2.xpose.msra.mxu0 0.0
    %3424 = vmatprep.mubr.f32.mxu0 0.0
    %3425 = vmatmul.mubr.f32.gmra.mxu0 %v3356
    %v3426 = vpop.f32.mrf.mxu0
    %v3427 = vadd.f32 %v612, %v3426
    %v3428 = vpop.f32.mrf.mxu0
    %3429 = vdwg.mxu0
    %3430 = vrot.lane.b32.xlu0 %v752, 104
    %v3431 = vpop.permute.xlu0 %3430
    %3432 = vrot.lane.b32.xlu0 %v843, 104
    %v3433 = vpop.permute.xlu0 %3432
    %v3434 = vsel %vm163, %v3431, 0
    %v3436 = vsel %vm163, %v3433, 0
    %3438 = vmatprep.subr.mxu0 0.0
    %3439 = vmatpush1.xpose.msra.mxu0 0.0
    %3440 = vmatprep.subr.mxu0 0.0
    %3441 = vmatpush1.xpose.msra.mxu0 0.0
    %3442 = vmatprep.subr.mxu0 0.0
    %3443 = vmatpush1.xpose.msra.mxu0 0.0
    %3444 = vmatprep.subr.mxu0 0.0
    %3445 = vmatpush1.xpose.msra.mxu0 0.0
    %3446 = vmatprep.subr.mxu0 0.0
    %3447 = vmatpush1.xpose.msra.mxu0 0.0
    %3448 = vmatprep.subr.mxu0 0.0
    %3449 = vmatpush1.xpose.msra.mxu0 0.0
    %3450 = vmatprep.subr.mxu0 0.0
    %3451 = vmatpush1.xpose.msra.mxu0 0.0
    %3452 = vmatprep.subr.mxu0 0.0
    %3453 = vmatpush1.xpose.msra.mxu0 0.0
    %3454 = vmatprep.subr.mxu0 0.0
    %3455 = vmatpush1.xpose.msra.mxu0 0.0
    %3456 = vmatprep.subr.mxu0 0.0
    %3457 = vmatpush1.xpose.msra.mxu0 0.0
    %3458 = vmatprep.subr.mxu0 0.0
    %3459 = vmatpush1.xpose.msra.mxu0 0.0
    %3460 = vmatprep.subr.mxu0 0.0
    %3461 = vmatpush1.xpose.msra.mxu0 0.0
    %3462 = vmatprep.subr.mxu0 0.0
    %3463 = vmatpush1.xpose.msra.mxu0 0.0
    %3464 = vmatprep.subr.mxu0 0.0
    %3465 = vmatpush1.xpose.msra.mxu0 0.0
    %3466 = vmatprep.subr.mxu0 0.0
    %3467 = vmatpush1.xpose.msra.mxu0 0.0
    %3468 = vmatprep.subr.mxu0 0.0
    %3469 = vmatpush1.xpose.msra.mxu0 %v3436
    %3470 = vmatprep.subr.mxu0 0.0
    %3471 = vmatpush2.xpose.msra.mxu0 0.0
    %3472 = vmatprep.subr.mxu0 0.0
    %3473 = vmatpush2.xpose.msra.mxu0 0.0
    %3474 = vmatprep.subr.mxu0 0.0
    %3475 = vmatpush2.xpose.msra.mxu0 0.0
    %3476 = vmatprep.subr.mxu0 0.0
    %3477 = vmatpush2.xpose.msra.mxu0 0.0
    %3478 = vmatprep.subr.mxu0 0.0
    %3479 = vmatpush2.xpose.msra.mxu0 0.0
    %3480 = vmatprep.subr.mxu0 0.0
    %3481 = vmatpush2.xpose.msra.mxu0 0.0
    %3482 = vmatprep.subr.mxu0 0.0
    %3483 = vmatpush2.xpose.msra.mxu0 0.0
    %3484 = vmatprep.subr.mxu0 0.0
    %3485 = vmatpush2.xpose.msra.mxu0 0.0
    %3486 = vmatprep.subr.mxu0 0.0
    %3487 = vmatpush2.xpose.msra.mxu0 0.0
    %3488 = vmatprep.subr.mxu0 0.0
    %3489 = vmatpush2.xpose.msra.mxu0 0.0
    %3490 = vmatprep.subr.mxu0 0.0
    %3491 = vmatpush2.xpose.msra.mxu0 0.0
    %3492 = vmatprep.subr.mxu0 0.0
    %3493 = vmatpush2.xpose.msra.mxu0 0.0
    %3494 = vmatprep.subr.mxu0 0.0
    %3495 = vmatpush2.xpose.msra.mxu0 0.0
    %3496 = vmatprep.subr.mxu0 0.0
    %3497 = vmatpush2.xpose.msra.mxu0 0.0
    %3498 = vmatprep.subr.mxu0 0.0
    %3499 = vmatpush2.xpose.msra.mxu0 0.0
    %3500 = vmatprep.subr.mxu0 0.0
    %3501 = vmatpush2.xpose.msra.mxu0 0.0
    %3502 = vmatprep.mubr.f32.mxu0 0.0
    %3503 = vmatmul.mubr.f32.gmra.mxu0 %v3434
    %v3504 = vpop.f32.mrf.mxu0
    %v3505 = vadd.f32 %v613, %v3504
    %v3506 = vpop.f32.mrf.mxu0
    %3507 = vdwg.mxu0
    %v3508 = vsel %vm163, %v3271, -inf
    %3509 = vmax.xlane.f32.xlu0 %v3508
    %v3510 = vpop.xlane.xlu0 %3509
    %v3511 = vsel %vm163, %v3349, -inf
    %3512 = vmax.xlane.f32.xlu0 %v3511
    %v3513 = vpop.xlane.xlu0 %3512
    %v3514 = vsel %vm163, %v3427, -inf
    %3515 = vmax.xlane.f32.xlu0 %v3514
    %v3516 = vpop.xlane.xlu0 %3515
    %v3517 = vsel %vm163, %v3505, -inf
    %3518 = vmax.xlane.f32.xlu0 %v3517
    %v3519 = vpop.xlane.xlu0 %3518
    %v3520 = vsub.f32 %v3271, %v3510
    %v3521 = vsub.f32 %v3349, %v3513
    %v3522 = vsub.f32 %v3427, %v3516
    %v3523 = vsub.f32 %v3505, %v3519
    %v3524 = vmul.f32 %v3520, 1.442695
    %v3525 = vpow.pop %v3524
    %v3526 = vmul.f32 %v3521, 1.442695
    %v3527 = vpow.pop %v3526
    %v3528 = vmul.f32 %v3522, 1.442695
    %v3529 = vpow.pop %v3528
    %v3530 = vmul.f32 %v3523, 1.442695
    %v3531 = vpow.pop %v3530
    %v3532 = vsel %vm163, %v3525, 0.0
    %3533 = vadd.xlane.f32.xlu0 %v3532
    %v3534 = vpop.xlane.xlu0 %3533
    %v3535 = vsel %vm163, %v3527, 0.0
    %3536 = vadd.xlane.f32.xlu0 %v3535
    %v3537 = vpop.xlane.xlu0 %3536
    %v3538 = vsel %vm163, %v3529, 0.0
    %3539 = vadd.xlane.f32.xlu0 %v3538
    %v3540 = vpop.xlane.xlu0 %3539
    %v3541 = vsel %vm163, %v3531, 0.0
    %3542 = vadd.xlane.f32.xlu0 %v3541
    %v3543 = vpop.xlane.xlu0 %3542
    %v3544 = vrcp.pop %v3534
    %v3545 = vrcp.pop %v3537
    %v3546 = vrcp.pop %v3540
    %v3547 = vrcp.pop %v3543
    %v3548 = vmul.f32 %v3525, %v3544
    %v3549 = vmul.f32 %v3527, %v3545
    %v3550 = vmul.f32 %v3529, %v3546
    %v3551 = vmul.f32 %v3531, %v3547
    %3552 = vrot.lane.b32.xlu0 %v919, 104
    %v3553 = vpop.permute.xlu0 %3552
    %v3556 = vsel %vm163, %v3548, 0
    %3558 = vmatprep.subr.mxu0 0.0
    %3559 = vmatpush1.msra.mxu0 0.0
    %3560 = vmatprep.subr.mxu0 0.0
    %3561 = vmatpush1.msra.mxu0 0.0
    %3562 = vmatprep.subr.mxu0 0.0
    %3563 = vmatpush1.msra.mxu0 0.0
    %3564 = vmatprep.subr.mxu0 0.0
    %3565 = vmatpush1.msra.mxu0 0.0
    %3566 = vmatprep.subr.mxu0 0.0
    %3567 = vmatpush1.msra.mxu0 0.0
    %3568 = vmatprep.subr.mxu0 0.0
    %3569 = vmatpush1.msra.mxu0 0.0
    %3570 = vmatprep.subr.mxu0 0.0
    %3571 = vmatpush1.msra.mxu0 0.0
    %3572 = vmatprep.subr.mxu0 0.0
    %3573 = vmatpush1.msra.mxu0 0.0
    %3574 = vmatprep.subr.mxu0 0.0
    %3575 = vmatpush1.msra.mxu0 0.0
    %3576 = vmatprep.subr.mxu0 0.0
    %3577 = vmatpush1.msra.mxu0 0.0
    %3578 = vmatprep.subr.mxu0 0.0
    %3579 = vmatpush1.msra.mxu0 0.0
    %3580 = vmatprep.subr.mxu0 0.0
    %3581 = vmatpush1.msra.mxu0 0.0
    %3582 = vmatprep.subr.mxu0 0.0
    %3583 = vmatpush1.msra.mxu0 0.0
    %3584 = vmatprep.subr.mxu0 0.0
    %3585 = vmatpush1.msra.mxu0 0.0
    %3586 = vmatprep.subr.mxu0 0.0
    %3587 = vmatpush1.msra.mxu0 0.0
    %3588 = vmatprep.subr.mxu0 0.0
    %3589 = vmatpush1.msra.mxu0 %v3553
    %3590 = vmatprep.subr.mxu0 0.0
    %3591 = vmatpush2.msra.mxu0 0.0
    %3592 = vmatprep.subr.mxu0 0.0
    %3593 = vmatpush2.msra.mxu0 0.0
    %3594 = vmatprep.subr.mxu0 0.0
    %3595 = vmatpush2.msra.mxu0 0.0
    %3596 = vmatprep.subr.mxu0 0.0
    %3597 = vmatpush2.msra.mxu0 0.0
    %3598 = vmatprep.subr.mxu0 0.0
    %3599 = vmatpush2.msra.mxu0 0.0
    %3600 = vmatprep.subr.mxu0 0.0
    %3601 = vmatpush2.msra.mxu0 0.0
    %3602 = vmatprep.subr.mxu0 0.0
    %3603 = vmatpush2.msra.mxu0 0.0
    %3604 = vmatprep.subr.mxu0 0.0
    %3605 = vmatpush2.msra.mxu0 0.0
    %3606 = vmatprep.subr.mxu0 0.0
    %3607 = vmatpush2.msra.mxu0 0.0
    %3608 = vmatprep.subr.mxu0 0.0
    %3609 = vmatpush2.msra.mxu0 0.0
    %3610 = vmatprep.subr.mxu0 0.0
    %3611 = vmatpush2.msra.mxu0 0.0
    %3612 = vmatprep.subr.mxu0 0.0
    %3613 = vmatpush2.msra.mxu0 0.0
    %3614 = vmatprep.subr.mxu0 0.0
    %3615 = vmatpush2.msra.mxu0 0.0
    %3616 = vmatprep.subr.mxu0 0.0
    %3617 = vmatpush2.msra.mxu0 0.0
    %3618 = vmatprep.subr.mxu0 0.0
    %3619 = vmatpush2.msra.mxu0 0.0
    %3620 = vmatprep.subr.mxu0 0.0
    %3621 = vmatpush2.msra.mxu0 0.0
    %3622 = vmatprep.mubr.f32.mxu0 0.0
    %3623 = vmatmul.mubr.f32.gmra.mxu0 %v3556
    %v3624 = vpop.f32.mrf.mxu0
    %v3625 = vadd.f32 0.0, %v3624
    %v3626 = vpop.f32.mrf.mxu0
    %3627 = vdwg.mxu0
    %3628 = vrot.lane.b32.xlu0 %v924, 104
    %v3629 = vpop.permute.xlu0 %3628
    %v3632 = vsel %vm163, %v3549, 0
    %3634 = vmatprep.subr.mxu0 0.0
    %3635 = vmatpush1.msra.mxu0 0.0
    %3636 = vmatprep.subr.mxu0 0.0
    %3637 = vmatpush1.msra.mxu0 0.0
    %3638 = vmatprep.subr.mxu0 0.0
    %3639 = vmatpush1.msra.mxu0 0.0
    %3640 = vmatprep.subr.mxu0 0.0
    %3641 = vmatpush1.msra.mxu0 0.0
    %3642 = vmatprep.subr.mxu0 0.0
    %3643 = vmatpush1.msra.mxu0 0.0
    %3644 = vmatprep.subr.mxu0 0.0
    %3645 = vmatpush1.msra.mxu0 0.0
    %3646 = vmatprep.subr.mxu0 0.0
    %3647 = vmatpush1.msra.mxu0 0.0
    %3648 = vmatprep.subr.mxu0 0.0
    %3649 = vmatpush1.msra.mxu0 0.0
    %3650 = vmatprep.subr.mxu0 0.0
    %3651 = vmatpush1.msra.mxu0 0.0
    %3652 = vmatprep.subr.mxu0 0.0
    %3653 = vmatpush1.msra.mxu0 0.0
    %3654 = vmatprep.subr.mxu0 0.0
    %3655 = vmatpush1.msra.mxu0 0.0
    %3656 = vmatprep.subr.mxu0 0.0
    %3657 = vmatpush1.msra.mxu0 0.0
    %3658 = vmatprep.subr.mxu0 0.0
    %3659 = vmatpush1.msra.mxu0 0.0
    %3660 = vmatprep.subr.mxu0 0.0
    %3661 = vmatpush1.msra.mxu0 0.0
    %3662 = vmatprep.subr.mxu0 0.0
    %3663 = vmatpush1.msra.mxu0 0.0
    %3664 = vmatprep.subr.mxu0 0.0
    %3665 = vmatpush1.msra.mxu0 %v3629
    %3666 = vmatprep.subr.mxu0 0.0
    %3667 = vmatpush2.msra.mxu0 0.0
    %3668 = vmatprep.subr.mxu0 0.0
    %3669 = vmatpush2.msra.mxu0 0.0
    %3670 = vmatprep.subr.mxu0 0.0
    %3671 = vmatpush2.msra.mxu0 0.0
    %3672 = vmatprep.subr.mxu0 0.0
    %3673 = vmatpush2.msra.mxu0 0.0
    %3674 = vmatprep.subr.mxu0 0.0
    %3675 = vmatpush2.msra.mxu0 0.0
    %3676 = vmatprep.subr.mxu0 0.0
    %3677 = vmatpush2.msra.mxu0 0.0
    %3678 = vmatprep.subr.mxu0 0.0
    %3679 = vmatpush2.msra.mxu0 0.0
    %3680 = vmatprep.subr.mxu0 0.0
    %3681 = vmatpush2.msra.mxu0 0.0
    %3682 = vmatprep.subr.mxu0 0.0
    %3683 = vmatpush2.msra.mxu0 0.0
    %3684 = vmatprep.subr.mxu0 0.0
    %3685 = vmatpush2.msra.mxu0 0.0
    %3686 = vmatprep.subr.mxu0 0.0
    %3687 = vmatpush2.msra.mxu0 0.0
    %3688 = vmatprep.subr.mxu0 0.0
    %3689 = vmatpush2.msra.mxu0 0.0
    %3690 = vmatprep.subr.mxu0 0.0
    %3691 = vmatpush2.msra.mxu0 0.0
    %3692 = vmatprep.subr.mxu0 0.0
    %3693 = vmatpush2.msra.mxu0 0.0
    %3694 = vmatprep.subr.mxu0 0.0
    %3695 = vmatpush2.msra.mxu0 0.0
    %3696 = vmatprep.subr.mxu0 0.0
    %3697 = vmatpush2.msra.mxu0 0.0
    %3698 = vmatprep.mubr.f32.mxu0 0.0
    %3699 = vmatmul.mubr.f32.gmra.mxu0 %v3632
    %v3700 = vpop.f32.mrf.mxu0
    %v3701 = vadd.f32 0.0, %v3700
    %v3702 = vpop.f32.mrf.mxu0
    %3703 = vdwg.mxu0
    %3704 = vrot.lane.b32.xlu0 %v929, 104
    %v3705 = vpop.permute.xlu0 %3704
    %v3708 = vsel %vm163, %v3550, 0
    %3710 = vmatprep.subr.mxu0 0.0
    %3711 = vmatpush1.msra.mxu0 0.0
    %3712 = vmatprep.subr.mxu0 0.0
    %3713 = vmatpush1.msra.mxu0 0.0
    %3714 = vmatprep.subr.mxu0 0.0
    %3715 = vmatpush1.msra.mxu0 0.0
    %3716 = vmatprep.subr.mxu0 0.0
    %3717 = vmatpush1.msra.mxu0 0.0
    %3718 = vmatprep.subr.mxu0 0.0
    %3719 = vmatpush1.msra.mxu0 0.0
    %3720 = vmatprep.subr.mxu0 0.0
    %3721 = vmatpush1.msra.mxu0 0.0
    %3722 = vmatprep.subr.mxu0 0.0
    %3723 = vmatpush1.msra.mxu0 0.0
    %3724 = vmatprep.subr.mxu0 0.0
    %3725 = vmatpush1.msra.mxu0 0.0
    %3726 = vmatprep.subr.mxu0 0.0
    %3727 = vmatpush1.msra.mxu0 0.0
    %3728 = vmatprep.subr.mxu0 0.0
    %3729 = vmatpush1.msra.mxu0 0.0
    %3730 = vmatprep.subr.mxu0 0.0
    %3731 = vmatpush1.msra.mxu0 0.0
    %3732 = vmatprep.subr.mxu0 0.0
    %3733 = vmatpush1.msra.mxu0 0.0
    %3734 = vmatprep.subr.mxu0 0.0
    %3735 = vmatpush1.msra.mxu0 0.0
    %3736 = vmatprep.subr.mxu0 0.0
    %3737 = vmatpush1.msra.mxu0 0.0
    %3738 = vmatprep.subr.mxu0 0.0
    %3739 = vmatpush1.msra.mxu0 0.0
    %3740 = vmatprep.subr.mxu0 0.0
    %3741 = vmatpush1.msra.mxu0 %v3705
    %3742 = vmatprep.subr.mxu0 0.0
    %3743 = vmatpush2.msra.mxu0 0.0
    %3744 = vmatprep.subr.mxu0 0.0
    %3745 = vmatpush2.msra.mxu0 0.0
    %3746 = vmatprep.subr.mxu0 0.0
    %3747 = vmatpush2.msra.mxu0 0.0
    %3748 = vmatprep.subr.mxu0 0.0
    %3749 = vmatpush2.msra.mxu0 0.0
    %3750 = vmatprep.subr.mxu0 0.0
    %3751 = vmatpush2.msra.mxu0 0.0
    %3752 = vmatprep.subr.mxu0 0.0
    %3753 = vmatpush2.msra.mxu0 0.0
    %3754 = vmatprep.subr.mxu0 0.0
    %3755 = vmatpush2.msra.mxu0 0.0
    %3756 = vmatprep.subr.mxu0 0.0
    %3757 = vmatpush2.msra.mxu0 0.0
    %3758 = vmatprep.subr.mxu0 0.0
    %3759 = vmatpush2.msra.mxu0 0.0
    %3760 = vmatprep.subr.mxu0 0.0
    %3761 = vmatpush2.msra.mxu0 0.0
    %3762 = vmatprep.subr.mxu0 0.0
    %3763 = vmatpush2.msra.mxu0 0.0
    %3764 = vmatprep.subr.mxu0 0.0
    %3765 = vmatpush2.msra.mxu0 0.0
    %3766 = vmatprep.subr.mxu0 0.0
    %3767 = vmatpush2.msra.mxu0 0.0
    %3768 = vmatprep.subr.mxu0 0.0
    %3769 = vmatpush2.msra.mxu0 0.0
    %3770 = vmatprep.subr.mxu0 0.0
    %3771 = vmatpush2.msra.mxu0 0.0
    %3772 = vmatprep.subr.mxu0 0.0
    %3773 = vmatpush2.msra.mxu0 0.0
    %3774 = vmatprep.mubr.f32.mxu0 0.0
    %3775 = vmatmul.mubr.f32.gmra.mxu0 %v3708
    %v3776 = vpop.f32.mrf.mxu0
    %v3777 = vadd.f32 0.0, %v3776
    %v3778 = vpop.f32.mrf.mxu0
    %3779 = vdwg.mxu0
    %3780 = vrot.lane.b32.xlu0 %v934, 104
    %v3781 = vpop.permute.xlu0 %3780
    %v3784 = vsel %vm163, %v3551, 0
    %3786 = vmatprep.subr.mxu0 0.0
    %3787 = vmatpush1.msra.mxu0 0.0
    %3788 = vmatprep.subr.mxu0 0.0
    %3789 = vmatpush1.msra.mxu0 0.0
    %3790 = vmatprep.subr.mxu0 0.0
    %3791 = vmatpush1.msra.mxu0 0.0
    %3792 = vmatprep.subr.mxu0 0.0
    %3793 = vmatpush1.msra.mxu0 0.0
    %3794 = vmatprep.subr.mxu0 0.0
    %3795 = vmatpush1.msra.mxu0 0.0
    %3796 = vmatprep.subr.mxu0 0.0
    %3797 = vmatpush1.msra.mxu0 0.0
    %3798 = vmatprep.subr.mxu0 0.0
    %3799 = vmatpush1.msra.mxu0 0.0
    %3800 = vmatprep.subr.mxu0 0.0
    %3801 = vmatpush1.msra.mxu0 0.0
    %3802 = vmatprep.subr.mxu0 0.0
    %3803 = vmatpush1.msra.mxu0 0.0
    %3804 = vmatprep.subr.mxu0 0.0
    %3805 = vmatpush1.msra.mxu0 0.0
    %3806 = vmatprep.subr.mxu0 0.0
    %3807 = vmatpush1.msra.mxu0 0.0
    %3808 = vmatprep.subr.mxu0 0.0
    %3809 = vmatpush1.msra.mxu0 0.0
    %3810 = vmatprep.subr.mxu0 0.0
    %3811 = vmatpush1.msra.mxu0 0.0
    %3812 = vmatprep.subr.mxu0 0.0
    %3813 = vmatpush1.msra.mxu0 0.0
    %3814 = vmatprep.subr.mxu0 0.0
    %3815 = vmatpush1.msra.mxu0 0.0
    %3816 = vmatprep.subr.mxu0 0.0
    %3817 = vmatpush1.msra.mxu0 %v3781
    %3818 = vmatprep.subr.mxu0 0.0
    %3819 = vmatpush2.msra.mxu0 0.0
    %3820 = vmatprep.subr.mxu0 0.0
    %3821 = vmatpush2.msra.mxu0 0.0
    %3822 = vmatprep.subr.mxu0 0.0
    %3823 = vmatpush2.msra.mxu0 0.0
    %3824 = vmatprep.subr.mxu0 0.0
    %3825 = vmatpush2.msra.mxu0 0.0
    %3826 = vmatprep.subr.mxu0 0.0
    %3827 = vmatpush2.msra.mxu0 0.0
    %3828 = vmatprep.subr.mxu0 0.0
    %3829 = vmatpush2.msra.mxu0 0.0
    %3830 = vmatprep.subr.mxu0 0.0
    %3831 = vmatpush2.msra.mxu0 0.0
    %3832 = vmatprep.subr.mxu0 0.0
    %3833 = vmatpush2.msra.mxu0 0.0
    %3834 = vmatprep.subr.mxu0 0.0
    %3835 = vmatpush2.msra.mxu0 0.0
    %3836 = vmatprep.subr.mxu0 0.0
    %3837 = vmatpush2.msra.mxu0 0.0
    %3838 = vmatprep.subr.mxu0 0.0
    %3839 = vmatpush2.msra.mxu0 0.0
    %3840 = vmatprep.subr.mxu0 0.0
    %3841 = vmatpush2.msra.mxu0 0.0
    %3842 = vmatprep.subr.mxu0 0.0
    %3843 = vmatpush2.msra.mxu0 0.0
    %3844 = vmatprep.subr.mxu0 0.0
    %3845 = vmatpush2.msra.mxu0 0.0
    %3846 = vmatprep.subr.mxu0 0.0
    %3847 = vmatpush2.msra.mxu0 0.0
    %3848 = vmatprep.subr.mxu0 0.0
    %3849 = vmatpush2.msra.mxu0 0.0
    %3850 = vmatprep.mubr.f32.mxu0 0.0
    %3851 = vmatmul.mubr.f32.gmra.mxu0 %v3784
    %v3852 = vpop.f32.mrf.mxu0
    %v3853 = vadd.f32 0.0, %v3852
    %v3854 = vpop.f32.mrf.mxu0
    %3855 = vdwg.mxu0
    %v3857 = vsel %vm163, %v3625, 0
    %v3860 = vsel %vm163, %v3701, 0
    %v3863 = vsel %vm163, %v3777, 0
    %v3866 = vsel %vm163, %v3853, 0
    %3868 = vmatprep.subr.mxu0 0.0
    %3869 = vmatpush1.msra.mxu0 0.0
    %3870 = vmatprep.subr.mxu0 0.0
    %3871 = vmatpush1.msra.mxu0 0.0
    %3872 = vmatprep.subr.mxu0 0.0
    %3873 = vmatpush1.msra.mxu0 0.0
    %3874 = vmatprep.subr.mxu0 0.0
    %3875 = vmatpush1.msra.mxu0 0.0
    %3876 = vmatprep.subr.mxu0 0.0
    %3877 = vmatpush1.msra.mxu0 0.0
    %3878 = vmatprep.subr.mxu0 0.0
    %3879 = vmatpush1.msra.mxu0 0.0
    %3880 = vmatprep.subr.mxu0 0.0
    %3881 = vmatpush1.msra.mxu0 0.0
    %3882 = vmatprep.subr.mxu0 0.0
    %3883 = vmatpush1.msra.mxu0 0.0
    %3884 = vmatprep.subr.mxu0 0.0
    %3885 = vmatpush1.msra.mxu0 0.0
    %3886 = vmatprep.subr.mxu0 0.0
    %3887 = vmatpush1.msra.mxu0 0.0
    %3888 = vmatprep.subr.mxu0 0.0
    %3889 = vmatpush1.msra.mxu0 0.0
    %3890 = vmatprep.subr.mxu0 0.0
    %3891 = vmatpush1.msra.mxu0 0.0
    %3892 = vmatprep.subr.mxu0 0.0
    %3893 = vmatpush1.msra.mxu0 0.0
    %3894 = vmatprep.subr.mxu0 0.0
    %3895 = vmatpush1.msra.mxu0 0.0
    %3896 = vmatprep.subr.mxu0 0.0
    %3897 = vmatpush1.msra.mxu0 0.0
    %3898 = vmatprep.subr.mxu0 0.0
    %3899 = vmatpush1.msra.mxu0 %v632
    %3900 = vmatprep.subr.mxu0 0.0
    %3901 = vmatpush2.msra.mxu0 0.0
    %3902 = vmatprep.subr.mxu0 0.0
    %3903 = vmatpush2.msra.mxu0 0.0
    %3904 = vmatprep.subr.mxu0 0.0
    %3905 = vmatpush2.msra.mxu0 0.0
    %3906 = vmatprep.subr.mxu0 0.0
    %3907 = vmatpush2.msra.mxu0 0.0
    %3908 = vmatprep.subr.mxu0 0.0
    %3909 = vmatpush2.msra.mxu0 0.0
    %3910 = vmatprep.subr.mxu0 0.0
    %3911 = vmatpush2.msra.mxu0 0.0
    %3912 = vmatprep.subr.mxu0 0.0
    %3913 = vmatpush2.msra.mxu0 0.0
    %3914 = vmatprep.subr.mxu0 0.0
    %3915 = vmatpush2.msra.mxu0 0.0
    %3916 = vmatprep.subr.mxu0 0.0
    %3917 = vmatpush2.msra.mxu0 0.0
    %3918 = vmatprep.subr.mxu0 0.0
    %3919 = vmatpush2.msra.mxu0 0.0
    %3920 = vmatprep.subr.mxu0 0.0
    %3921 = vmatpush2.msra.mxu0 0.0
    %3922 = vmatprep.subr.mxu0 0.0
    %3923 = vmatpush2.msra.mxu0 0.0
    %3924 = vmatprep.subr.mxu0 0.0
    %3925 = vmatpush2.msra.mxu0 0.0
    %3926 = vmatprep.subr.mxu0 0.0
    %3927 = vmatpush2.msra.mxu0 0.0
    %3928 = vmatprep.subr.mxu0 0.0
    %3929 = vmatpush2.msra.mxu0 0.0
    %3930 = vmatprep.subr.mxu0 0.0
    %3931 = vmatpush2.msra.mxu0 0.0
    %3932 = vmatprep.mubr.f32.mxu0 0.0
    %3933 = vmatmul.mubr.f32.gmra.mxu0 %v3857
    %v3934 = vpop.f32.mrf.mxu0
    %v3935 = vadd.f32 0.0, %v3934
    %v3936 = vpop.f32.mrf.mxu0
    %3937 = vmatprep.mubr.f32.mxu0 0.0
    %3938 = vmatmul.mubr.f32.gmra.mxu0 %v3860
    %v3939 = vpop.f32.mrf.mxu0
    %v3940 = vadd.f32 0.0, %v3939
    %v3941 = vpop.f32.mrf.mxu0
    %3942 = vmatprep.mubr.f32.mxu0 0.0
    %3943 = vmatmul.mubr.f32.gmra.mxu0 %v3863
    %v3944 = vpop.f32.mrf.mxu0
    %v3945 = vadd.f32 0.0, %v3944
    %v3946 = vpop.f32.mrf.mxu0
    %3947 = vmatprep.mubr.f32.mxu0 0.0
    %3948 = vmatmul.mubr.f32.gmra.mxu0 %v3866
    %v3949 = vpop.f32.mrf.mxu0
    %v3950 = vadd.f32 0.0, %v3949
    %v3951 = vpop.f32.mrf.mxu0
    %3952 = vdwg.mxu0
    %v3953 = vadd.f32 %v3192, %v3935
    %v3954 = vadd.f32 %v3193, %v3940
    %v3955 = vadd.f32 %v3194, %v3945
    %v3956 = vadd.f32 %v3195, %v3950
    %v3958 = vlaneseq
    %v3959 = vshrl.u32 %v3958, 7
    %v3960 = vsub.s32 0, %v3959
    %v3961 = vrot.slane %v633, %v3960
    %v3963 = vadd.f32 %v3953, %v3961
    %v3964 = vadd.f32 %v3954, %v3961
    %v3965 = vadd.f32 %v3955, %v3961
    %v3966 = vadd.f32 %v3956, %v3961
    %v3967 = vadd.f32 %v602, %v3963
    %v3968 = vadd.f32 %v603, %v3964
    %v3969 = vadd.f32 %v604, %v3965
    %v3970 = vadd.f32 %v605, %v3966
    %v3971 = vsel %vm532, %v3967, 0.0
    %3972 = vadd.xlane.f32.xlu0 %v3971
    %v3973 = vpop.xlane.xlu0 %3972
    %v3974 = vsel %vm532, %v3968, 0.0
    %3975 = vadd.xlane.f32.xlu0 %v3974
    %v3976 = vpop.xlane.xlu0 %3975
    %v3977 = vsel %vm532, %v3969, 0.0
    %3978 = vadd.xlane.f32.xlu0 %v3977
    %v3979 = vpop.xlane.xlu0 %3978
    %v3980 = vsel %vm532, %v3970, 0.0
    %3981 = vadd.xlane.f32.xlu0 %v3980
    %v3982 = vpop.xlane.xlu0 %3981
    %v3983 = vmul.f32 %v3973, %v545
    %v3984 = vmul.f32 %v3976, %v545
    %v3985 = vmul.f32 %v3979, %v545
    %v3986 = vmul.f32 %v3982, %v545
    %v3987 = vsub.f32 %v3967, %v3983
    %v3988 = vsub.f32 %v3968, %v3984
    %v3989 = vsub.f32 %v3969, %v3985
    %v3990 = vsub.f32 %v3970, %v3986
    %v3991 = vmul.f32 %v3987, %v3987
    %v3992 = vmul.f32 %v3988, %v3988
    %v3993 = vmul.f32 %v3989, %v3989
    %v3994 = vmul.f32 %v3990, %v3990
    %v3995 = vsel %vm532, %v3991, 0.0
    %3996 = vadd.xlane.f32.xlu0 %v3995
    %v3997 = vpop.xlane.xlu0 %3996
    %v3998 = vsel %vm532, %v3992, 0.0
    %3999 = vadd.xlane.f32.xlu0 %v3998
    %v4000 = vpop.xlane.xlu0 %3999
    %v4001 = vsel %vm532, %v3993, 0.0
    %4002 = vadd.xlane.f32.xlu0 %v4001
    %v4003 = vpop.xlane.xlu0 %4002
    %v4004 = vsel %vm532, %v3994, 0.0
    %4005 = vadd.xlane.f32.xlu0 %v4004
    %v4006 = vpop.xlane.xlu0 %4005
    %v4007 = vmul.f32 %v3997, %v545
    %v4008 = vmul.f32 %v4000, %v545
    %v4009 = vmul.f32 %v4003, %v545
    %v4010 = vmul.f32 %v4006, %v545
    %v4011 = vadd.f32 %v4007, 1e-05
    %v4012 = vadd.f32 %v4008, 1e-05
    %v4013 = vadd.f32 %v4009, 1e-05
    %v4014 = vadd.f32 %v4010, 1e-05
    %v4015 = vrsqrt.pop %v4011
    %v4016 = vrsqrt.pop %v4012
    %v4017 = vrsqrt.pop %v4013
    %v4018 = vrsqrt.pop %v4014
    %v4019 = vmul.f32 %v3987, %v4015
    %v4020 = vmul.f32 %v3988, %v4016
    %v4021 = vmul.f32 %v3989, %v4017
    %v4022 = vmul.f32 %v3990, %v4018
    %v4024 = vlaneseq
    %v4025 = vshrl.u32 %v4024, 7
    %v4026 = vsub.s32 0, %v4025
    %v4027 = vrot.slane %v634, %v4026
    %v4029 = vmul.f32 %v4019, %v4027
    %v4030 = vmul.f32 %v4020, %v4027
    %v4031 = vmul.f32 %v4021, %v4027
    %v4032 = vmul.f32 %v4022, %v4027
    %v4034 = vlaneseq
    %v4035 = vshrl.u32 %v4034, 7
    %v4036 = vsub.s32 0, %v4035
    %v4037 = vrot.slane %v635, %v4036
    %v4039 = vadd.f32 %v4029, %v4037
    %v4040 = vadd.f32 %v4030, %v4037
    %v4041 = vadd.f32 %v4031, %v4037
    %v4042 = vadd.f32 %v4032, %v4037
    %v4044 = vlaneseq
    %v4045 = vshrl.u32 %v4044, 7
    %v4046 = vsub.s32 0, %v4045
    %v4047 = vrot.slane %v640, %v4046
    %v4050 = vsel %vm532, %v4039, 0
    %v4053 = vsel %vm532, %v4040, 0
    %v4056 = vsel %vm532, %v4041, 0
    %v4059 = vsel %vm532, %v4042, 0
    %4061 = vmatprep.subr.mxu0 0.0
    %4062 = vmatpush1.msra.mxu0 0.0
    %4063 = vmatprep.subr.mxu0 0.0
    %4064 = vmatpush1.msra.mxu0 0.0
    %4065 = vmatprep.subr.mxu0 0.0
    %4066 = vmatpush1.msra.mxu0 0.0
    %4067 = vmatprep.subr.mxu0 0.0
    %4068 = vmatpush1.msra.mxu0 0.0
    %4069 = vmatprep.subr.mxu0 0.0
    %4070 = vmatpush1.msra.mxu0 0.0
    %4071 = vmatprep.subr.mxu0 0.0
    %4072 = vmatpush1.msra.mxu0 0.0
    %4073 = vmatprep.subr.mxu0 0.0
    %4074 = vmatpush1.msra.mxu0 0.0
    %4075 = vmatprep.subr.mxu0 0.0
    %4076 = vmatpush1.msra.mxu0 0.0
    %4077 = vmatprep.subr.mxu0 0.0
    %4078 = vmatpush1.msra.mxu0 0.0
    %4079 = vmatprep.subr.mxu0 0.0
    %4080 = vmatpush1.msra.mxu0 0.0
    %4081 = vmatprep.subr.mxu0 0.0
    %4082 = vmatpush1.msra.mxu0 0.0
    %4083 = vmatprep.subr.mxu0 0.0
    %4084 = vmatpush1.msra.mxu0 0.0
    %4085 = vmatprep.subr.mxu0 0.0
    %4086 = vmatpush1.msra.mxu0 %v639
    %4087 = vmatprep.subr.mxu0 0.0
    %4088 = vmatpush1.msra.mxu0 %v638
    %4089 = vmatprep.subr.mxu0 0.0
    %4090 = vmatpush1.msra.mxu0 %v637
    %4091 = vmatprep.subr.mxu0 0.0
    %4092 = vmatpush1.msra.mxu0 %v636
    %4093 = vmatprep.subr.mxu0 0.0
    %4094 = vmatpush2.msra.mxu0 0.0
    %4095 = vmatprep.subr.mxu0 0.0
    %4096 = vmatpush2.msra.mxu0 0.0
    %4097 = vmatprep.subr.mxu0 0.0
    %4098 = vmatpush2.msra.mxu0 0.0
    %4099 = vmatprep.subr.mxu0 0.0
    %4100 = vmatpush2.msra.mxu0 0.0
    %4101 = vmatprep.subr.mxu0 0.0
    %4102 = vmatpush2.msra.mxu0 0.0
    %4103 = vmatprep.subr.mxu0 0.0
    %4104 = vmatpush2.msra.mxu0 0.0
    %4105 = vmatprep.subr.mxu0 0.0
    %4106 = vmatpush2.msra.mxu0 0.0
    %4107 = vmatprep.subr.mxu0 0.0
    %4108 = vmatpush2.msra.mxu0 0.0
    %4109 = vmatprep.subr.mxu0 0.0
    %4110 = vmatpush2.msra.mxu0 0.0
    %4111 = vmatprep.subr.mxu0 0.0
    %4112 = vmatpush2.msra.mxu0 0.0
    %4113 = vmatprep.subr.mxu0 0.0
    %4114 = vmatpush2.msra.mxu0 0.0
    %4115 = vmatprep.subr.mxu0 0.0
    %4116 = vmatpush2.msra.mxu0 0.0
    %4117 = vmatprep.subr.mxu0 0.0
    %4118 = vmatpush2.msra.mxu0 0.0
    %4119 = vmatprep.subr.mxu0 0.0
    %4120 = vmatpush2.msra.mxu0 0.0
    %4121 = vmatprep.subr.mxu0 0.0
    %4122 = vmatpush2.msra.mxu0 0.0
    %4123 = vmatprep.subr.mxu0 0.0
    %4124 = vmatpush2.msra.mxu0 0.0
    %4125 = vmatprep.mubr.f32.mxu0 0.0
    %4126 = vmatmul.mubr.f32.gmra.mxu0 %v4050
    %v4127 = vpop.f32.mrf.mxu0
    %v4128 = vadd.f32 %v4047, %v4127
    %v4129 = vpop.f32.mrf.mxu0
    %4130 = vmatprep.mubr.f32.mxu0 0.0
    %4131 = vmatmul.mubr.f32.gmra.mxu0 %v4053
    %v4132 = vpop.f32.mrf.mxu0
    %v4133 = vadd.f32 %v4047, %v4132
    %v4134 = vpop.f32.mrf.mxu0
    %4135 = vmatprep.mubr.f32.mxu0 0.0
    %4136 = vmatmul.mubr.f32.gmra.mxu0 %v4056
    %v4137 = vpop.f32.mrf.mxu0
    %v4138 = vadd.f32 %v4047, %v4137
    %v4139 = vpop.f32.mrf.mxu0
    %4140 = vmatprep.mubr.f32.mxu0 0.0
    %4141 = vmatmul.mubr.f32.gmra.mxu0 %v4059
    %v4142 = vpop.f32.mrf.mxu0
    %v4143 = vadd.f32 %v4047, %v4142
    %v4144 = vpop.f32.mrf.mxu0
    %4145 = vdwg.mxu0
    %v4146 = vmul.f32 %v4128, %v4128
    %v4147 = vmul.f32 %v4133, %v4133
    %v4148 = vmul.f32 %v4138, %v4138
    %v4149 = vmul.f32 %v4143, %v4143
    %v4150 = vmul.f32 %v4128, %v4146
    %v4151 = vmul.f32 %v4133, %v4147
    %v4152 = vmul.f32 %v4138, %v4148
    %v4153 = vmul.f32 %v4143, %v4149
    %v4154 = vmul.f32 %v4150, 0.044715
    %v4155 = vmul.f32 %v4151, 0.044715
    %v4156 = vmul.f32 %v4152, 0.044715
    %v4157 = vmul.f32 %v4153, 0.044715
    %v4158 = vadd.f32 %v4128, %v4154
    %v4159 = vadd.f32 %v4133, %v4155
    %v4160 = vadd.f32 %v4138, %v4156
    %v4161 = vadd.f32 %v4143, %v4157
    %v4162 = vmul.f32 %v4158, 0.7978846
    %v4163 = vmul.f32 %v4159, 0.7978846
    %v4164 = vmul.f32 %v4160, 0.7978846
    %v4165 = vmul.f32 %v4161, 0.7978846
    %v4166 = vtanh.pop %v4162
    %v4167 = vtanh.pop %v4163
    %v4168 = vtanh.pop %v4164
    %v4169 = vtanh.pop %v4165
    %v4170 = vadd.f32 %v4166, 1.0
    %v4171 = vadd.f32 %v4167, 1.0
    %v4172 = vadd.f32 %v4168, 1.0
    %v4173 = vadd.f32 %v4169, 1.0
    %v4174 = vmul.f32 %v4170, 0.5
    %v4175 = vmul.f32 %v4171, 0.5
    %v4176 = vmul.f32 %v4172, 0.5
    %v4177 = vmul.f32 %v4173, 0.5
    %v4178 = vmul.f32 %v4128, %v4174
    %v4179 = vmul.f32 %v4133, %v4175
    %v4180 = vmul.f32 %v4138, %v4176
    %v4181 = vmul.f32 %v4143, %v4177
    %v4183 = vlaneseq
    %v4184 = vshrl.u32 %v4183, 7
    %v4185 = vsub.s32 0, %v4184
    %v4186 = vrot.slane %v649, %v4185
    %vm4188 = vcmask 523264
    %v4190 = vsel %vm4188, %v4178, 0
    %v4193 = vsel %vm4188, %v4179, 0
    %v4196 = vsel %vm4188, %v4180, 0
    %v4199 = vsel %vm4188, %v4181, 0
    %4201 = vmatprep.subr.mxu0 0.0
    %4202 = vmatpush1.msra.mxu0 0.0
    %4203 = vmatprep.subr.mxu0 0.0
    %4204 = vmatpush1.msra.mxu0 0.0
    %4205 = vmatprep.subr.mxu0 0.0
    %4206 = vmatpush1.msra.mxu0 0.0
    %4207 = vmatprep.subr.mxu0 0.0
    %4208 = vmatpush1.msra.mxu0 0.0
    %4209 = vmatprep.subr.mxu0 0.0
    %4210 = vmatpush1.msra.mxu0 0.0
    %4211 = vmatprep.subr.mxu0 0.0
    %4212 = vmatpush1.msra.mxu0 0.0
    %4213 = vmatprep.subr.mxu0 0.0
    %4214 = vmatpush1.msra.mxu0 0.0
    %4215 = vmatprep.subr.mxu0 0.0
    %4216 = vmatpush1.msra.mxu0 0.0
    %4217 = vmatprep.subr.mxu0 0.0
    %4218 = vmatpush1.msra.mxu0 %v648
    %4219 = vmatprep.subr.mxu0 0.0
    %4220 = vmatpush1.msra.mxu0 %v647
    %4221 = vmatprep.subr.mxu0 0.0
    %4222 = vmatpush1.msra.mxu0 %v646
    %4223 = vmatprep.subr.mxu0 0.0
    %4224 = vmatpush1.msra.mxu0 %v645
    %4225 = vmatprep.subr.mxu0 0.0
    %4226 = vmatpush1.msra.mxu0 %v644
    %4227 = vmatprep.subr.mxu0 0.0
    %4228 = vmatpush1.msra.mxu0 %v643
    %4229 = vmatprep.subr.mxu0 0.0
    %4230 = vmatpush1.msra.mxu0 %v642
    %4231 = vmatprep.subr.mxu0 0.0
    %4232 = vmatpush1.msra.mxu0 %v641
    %4233 = vmatprep.subr.mxu0 0.0
    %4234 = vmatpush2.msra.mxu0 0.0
    %4235 = vmatprep.subr.mxu0 0.0
    %4236 = vmatpush2.msra.mxu0 0.0
    %4237 = vmatprep.subr.mxu0 0.0
    %4238 = vmatpush2.msra.mxu0 0.0
    %4239 = vmatprep.subr.mxu0 0.0
    %4240 = vmatpush2.msra.mxu0 0.0
    %4241 = vmatprep.subr.mxu0 0.0
    %4242 = vmatpush2.msra.mxu0 0.0
    %4243 = vmatprep.subr.mxu0 0.0
    %4244 = vmatpush2.msra.mxu0 0.0
    %4245 = vmatprep.subr.mxu0 0.0
    %4246 = vmatpush2.msra.mxu0 0.0
    %4247 = vmatprep.subr.mxu0 0.0
    %4248 = vmatpush2.msra.mxu0 0.0
    %4249 = vmatprep.subr.mxu0 0.0
    %4250 = vmatpush2.msra.mxu0 0.0
    %4251 = vmatprep.subr.mxu0 0.0
    %4252 = vmatpush2.msra.mxu0 0.0
    %4253 = vmatprep.subr.mxu0 0.0
    %4254 = vmatpush2.msra.mxu0 0.0
    %4255 = vmatprep.subr.mxu0 0.0
    %4256 = vmatpush2.msra.mxu0 0.0
    %4257 = vmatprep.subr.mxu0 0.0
    %4258 = vmatpush2.msra.mxu0 0.0
    %4259 = vmatprep.subr.mxu0 0.0
    %4260 = vmatpush2.msra.mxu0 0.0
    %4261 = vmatprep.subr.mxu0 0.0
    %4262 = vmatpush2.msra.mxu0 0.0
    %4263 = vmatprep.subr.mxu0 0.0
    %4264 = vmatpush2.msra.mxu0 0.0
    %4265 = vmatprep.mubr.f32.mxu0 0.0
    %4266 = vmatmul.mubr.f32.gmra.mxu0 %v4190
    %v4267 = vpop.f32.mrf.mxu0
    %v4268 = vadd.f32 %v4186, %v4267
    %v4269 = vpop.f32.mrf.mxu0
    %4270 = vmatprep.mubr.f32.mxu0 0.0
    %4271 = vmatmul.mubr.f32.gmra.mxu0 %v4193
    %v4272 = vpop.f32.mrf.mxu0
    %v4273 = vadd.f32 %v4186, %v4272
    %v4274 = vpop.f32.mrf.mxu0
    %4275 = vmatprep.mubr.f32.mxu0 0.0
    %4276 = vmatmul.mubr.f32.gmra.mxu0 %v4196
    %v4277 = vpop.f32.mrf.mxu0
    %v4278 = vadd.f32 %v4186, %v4277
    %v4279 = vpop.f32.mrf.mxu0
    %4280 = vmatprep.mubr.f32.mxu0 0.0
    %4281 = vmatmul.mubr.f32.gmra.mxu0 %v4199
    %v4282 = vpop.f32.mrf.mxu0
    %v4283 = vadd.f32 %v4186, %v4282
    %v4284 = vpop.f32.mrf.mxu0
    %4285 = vdwg.mxu0
    %v4286 = vadd.f32 %v4039, %v4268
    %v4287 = vadd.f32 %v4040, %v4273
    %v4288 = vadd.f32 %v4041, %v4278
    %v4289 = vadd.f32 %v4042, %v4283
    %v4290 = vsel %vm532, %v4286, 0.0
    %4291 = vadd.xlane.f32.xlu0 %v4290
    %v4292 = vpop.xlane.xlu0 %4291
    %v4293 = vsel %vm532, %v4287, 0.0
    %4294 = vadd.xlane.f32.xlu0 %v4293
    %v4295 = vpop.xlane.xlu0 %4294
    %v4296 = vsel %vm532, %v4288, 0.0
    %4297 = vadd.xlane.f32.xlu0 %v4296
    %v4298 = vpop.xlane.xlu0 %4297
    %v4299 = vsel %vm532, %v4289, 0.0
    %4300 = vadd.xlane.f32.xlu0 %v4299
    %v4301 = vpop.xlane.xlu0 %4300
    %v4302 = vmul.f32 %v4292, %v545
    %v4303 = vmul.f32 %v4295, %v545
    %v4304 = vmul.f32 %v4298, %v545
    %v4305 = vmul.f32 %v4301, %v545
    %v4306 = vsub.f32 %v4286, %v4302
    %v4307 = vsub.f32 %v4287, %v4303
    %v4308 = vsub.f32 %v4288, %v4304
    %v4309 = vsub.f32 %v4289, %v4305
    %v4310 = vmul.f32 %v4306, %v4306
    %v4311 = vmul.f32 %v4307, %v4307
    %v4312 = vmul.f32 %v4308, %v4308
    %v4313 = vmul.f32 %v4309, %v4309
    %v4314 = vsel %vm532, %v4310, 0.0
    %4315 = vadd.xlane.f32.xlu0 %v4314
    %v4316 = vpop.xlane.xlu0 %4315
    %v4317 = vsel %vm532, %v4311, 0.0
    %4318 = vadd.xlane.f32.xlu0 %v4317
    %v4319 = vpop.xlane.xlu0 %4318
    %v4320 = vsel %vm532, %v4312, 0.0
    %4321 = vadd.xlane.f32.xlu0 %v4320
    %v4322 = vpop.xlane.xlu0 %4321
    %v4323 = vsel %vm532, %v4313, 0.0
    %4324 = vadd.xlane.f32.xlu0 %v4323
    %v4325 = vpop.xlane.xlu0 %4324
    %v4326 = vmul.f32 %v4316, %v545
    %v4327 = vmul.f32 %v4319, %v545
    %v4328 = vmul.f32 %v4322, %v545
    %v4329 = vmul.f32 %v4325, %v545
    %v4330 = vadd.f32 %v4326, 1e-05
    %v4331 = vadd.f32 %v4327, 1e-05
    %v4332 = vadd.f32 %v4328, 1e-05
    %v4333 = vadd.f32 %v4329, 1e-05
    %v4334 = vrsqrt.pop %v4330
    %v4335 = vrsqrt.pop %v4331
    %v4336 = vrsqrt.pop %v4332
    %v4337 = vrsqrt.pop %v4333
    %v4338 = vmul.f32 %v4306, %v4334
    %v4339 = vmul.f32 %v4307, %v4335
    %v4340 = vmul.f32 %v4308, %v4336
    %v4341 = vmul.f32 %v4309, %v4337
    %v4343 = vlaneseq
    %v4344 = vshrl.u32 %v4343, 7
    %v4345 = vsub.s32 0, %v4344
    %v4346 = vrot.slane %v650, %v4345
    %v4348 = vmul.f32 %v4338, %v4346
    %v4349 = vmul.f32 %v4339, %v4346
    %v4350 = vmul.f32 %v4340, %v4346
    %v4351 = vmul.f32 %v4341, %v4346
    %v4353 = vlaneseq
    %v4354 = vshrl.u32 %v4353, 7
    %v4355 = vsub.s32 0, %v4354
    %v4356 = vrot.slane %v651, %v4355
    %v4358 = vadd.f32 %v4348, %v4356
    %v4359 = vadd.f32 %v4349, %v4356
    %v4360 = vadd.f32 %v4350, %v4356
    %v4361 = vadd.f32 %v4351, %v4356
    %s4362 = scalar_lea.vmem %s8, 32
    %v4363 = vld [vmem:[%s4362] sm:$0xff]
    %v4364 = vld [vmem:[%s4362 + $0x8] sm:$0xff]
    %v4365 = vld [vmem:[%s4362 + $0x10] sm:$0xff]
    %v4366 = vld [vmem:[%s4362 + $0x18] sm:$0xff]
    %s4367 = scalar_lea.vmem %s9, 1
    %v4368 = vld [vmem:[%s4367] sm:$0x1]
    %s4369 = scalar_lea.vmem %s10, 32
    %v4370 = vld [vmem:[%s4369] sm:$0xff]
    %v4371 = vld [vmem:[%s4369 + $0x8] sm:$0xff]
    %v4372 = vld [vmem:[%s4369 + $0x10] sm:$0xff]
    %v4373 = vld [vmem:[%s4369 + $0x18] sm:$0xff]
    %s4374 = scalar_lea.vmem %s11, 1
    %v4375 = vld [vmem:[%s4374] sm:$0x1]
    %s4376 = scalar_lea.vmem %s12, 32
    %v4377 = vld [vmem:[%s4376] sm:$0xff]
    %v4378 = vld [vmem:[%s4376 + $0x8] sm:$0xff]
    %v4379 = vld [vmem:[%s4376 + $0x10] sm:$0xff]
    %v4380 = vld [vmem:[%s4376 + $0x18] sm:$0xff]
    %s4381 = scalar_lea.vmem %s13, 1
    %v4382 = vld [vmem:[%s4381] sm:$0x1]
    %s4383 = scalar_lea.vmem %s14, 32
    %v4384 = vld [vmem:[%s4383] sm:$0xff]
    %v4385 = vld [vmem:[%s4383 + $0x8] sm:$0xff]
    %v4386 = vld [vmem:[%s4383 + $0x10] sm:$0xff]
    %v4387 = vld [vmem:[%s4383 + $0x18] sm:$0xff]
    %s4388 = scalar_lea.vmem %s15, 1
    %v4389 = vld [vmem:[%s4388] sm:$0x1]
    %s4390 = scalar_lea.vmem %s16, 1
    %v4391 = vld [vmem:[%s4390] sm:$0x1]
    %s4392 = scalar_lea.vmem %s17, 1
    %v4393 = vld [vmem:[%s4392] sm:$0x1]
    %s4394 = scalar_lea.vmem %s18, 32
    %v4395 = vld [vmem:[%s4394] sm:$0xff]
    %v4396 = vld [vmem:[%s4394 + $0x8] sm:$0xff]
    %v4397 = vld [vmem:[%s4394 + $0x10] sm:$0xff]
    %v4398 = vld [vmem:[%s4394 + $0x18] sm:$0xff]
    %s4399 = scalar_lea.vmem %s19, 1
    %v4400 = vld [vmem:[%s4399] sm:$0x1]
    %s4401 = scalar_lea.vmem %s20, 64
    %v4402 = vld [vmem:[%s4401] sm:$0xff]
    %v4403 = vld [vmem:[%s4401 + $0x8] sm:$0xff]
    %v4404 = vld [vmem:[%s4401 + $0x10] sm:$0xff]
    %v4405 = vld [vmem:[%s4401 + $0x18] sm:$0xff]
    %v4406 = vld [vmem:[%s4401 + $0x20] sm:$0xff]
    %v4407 = vld [vmem:[%s4401 + $0x28] sm:$0xff]
    %v4408 = vld [vmem:[%s4401 + $0x30] sm:$0xff]
    %v4409 = vld [vmem:[%s4401 + $0x38] sm:$0xff]
    %s4410 = scalar_lea.vmem %s21, 1
    %v4411 = vld [vmem:[%s4410] sm:$0x1]
    %s4412 = scalar_lea.vmem %s22, 1
    %v4413 = vld [vmem:[%s4412] sm:$0x1]
    %s4414 = scalar_lea.vmem %s23, 1
    %v4415 = vld [vmem:[%s4414] sm:$0x1]
    %v4417 = vlaneseq
    %v4418 = vshrl.u32 %v4417, 7
    %v4419 = vsub.s32 0, %v4418
    %v4420 = vrot.slane %v4368, %v4419
    %v4423 = vsel %vm532, %v4358, 0
    %v4426 = vsel %vm532, %v4359, 0
    %v4429 = vsel %vm532, %v4360, 0
    %v4432 = vsel %vm532, %v4361, 0
    %4434 = vmatprep.subr.mxu0 0.0
    %4435 = vmatpush1.msra.mxu0 0.0
    %4436 = vmatprep.subr.mxu0 0.0
    %4437 = vmatpush1.msra.mxu0 0.0
    %4438 = vmatprep.subr.mxu0 0.0
    %4439 = vmatpush1.msra.mxu0 0.0
    %4440 = vmatprep.subr.mxu0 0.0
    %4441 = vmatpush1.msra.mxu0 0.0
    %4442 = vmatprep.subr.mxu0 0.0
    %4443 = vmatpush1.msra.mxu0 0.0
    %4444 = vmatprep.subr.mxu0 0.0
    %4445 = vmatpush1.msra.mxu0 0.0
    %4446 = vmatprep.subr.mxu0 0.0
    %4447 = vmatpush1.msra.mxu0 0.0
    %4448 = vmatprep.subr.mxu0 0.0
    %4449 = vmatpush1.msra.mxu0 0.0
    %4450 = vmatprep.subr.mxu0 0.0
    %4451 = vmatpush1.msra.mxu0 0.0
    %4452 = vmatprep.subr.mxu0 0.0
    %4453 = vmatpush1.msra.mxu0 0.0
    %4454 = vmatprep.subr.mxu0 0.0
    %4455 = vmatpush1.msra.mxu0 0.0
    %4456 = vmatprep.subr.mxu0 0.0
    %4457 = vmatpush1.msra.mxu0 0.0
    %4458 = vmatprep.subr.mxu0 0.0
    %4459 = vmatpush1.msra.mxu0 %v4366
    %4460 = vmatprep.subr.mxu0 0.0
    %4461 = vmatpush1.msra.mxu0 %v4365
    %4462 = vmatprep.subr.mxu0 0.0
    %4463 = vmatpush1.msra.mxu0 %v4364
    %4464 = vmatprep.subr.mxu0 0.0
    %4465 = vmatpush1.msra.mxu0 %v4363
    %4466 = vmatprep.subr.mxu0 0.0
    %4467 = vmatpush2.msra.mxu0 0.0
    %4468 = vmatprep.subr.mxu0 0.0
    %4469 = vmatpush2.msra.mxu0 0.0
    %4470 = vmatprep.subr.mxu0 0.0
    %4471 = vmatpush2.msra.mxu0 0.0
    %4472 = vmatprep.subr.mxu0 0.0
    %4473 = vmatpush2.msra.mxu0 0.0
    %4474 = vmatprep.subr.mxu0 0.0
    %4475 = vmatpush2.msra.mxu0 0.0
    %4476 = vmatprep.subr.mxu0 0.0
    %4477 = vmatpush2.msra.mxu0 0.0
    %4478 = vmatprep.subr.mxu0 0.0
    %4479 = vmatpush2.msra.mxu0 0.0
    %4480 = vmatprep.subr.mxu0 0.0
    %4481 = vmatpush2.msra.mxu0 0.0
    %4482 = vmatprep.subr.mxu0 0.0
    %4483 = vmatpush2.msra.mxu0 0.0
    %4484 = vmatprep.subr.mxu0 0.0
    %4485 = vmatpush2.msra.mxu0 0.0
    %4486 = vmatprep.subr.mxu0 0.0
    %4487 = vmatpush2.msra.mxu0 0.0
    %4488 = vmatprep.subr.mxu0 0.0
    %4489 = vmatpush2.msra.mxu0 0.0
    %4490 = vmatprep.subr.mxu0 0.0
    %4491 = vmatpush2.msra.mxu0 0.0
    %4492 = vmatprep.subr.mxu0 0.0
    %4493 = vmatpush2.msra.mxu0 0.0
    %4494 = vmatprep.subr.mxu0 0.0
    %4495 = vmatpush2.msra.mxu0 0.0
    %4496 = vmatprep.subr.mxu0 0.0
    %4497 = vmatpush2.msra.mxu0 0.0
    %4498 = vmatprep.mubr.f32.mxu0 0.0
    %4499 = vmatmul.mubr.f32.gmra.mxu0 %v4423
    %v4500 = vpop.f32.mrf.mxu0
    %v4501 = vadd.f32 %v4420, %v4500
    %v4502 = vpop.f32.mrf.mxu0
    %4503 = vmatprep.mubr.f32.mxu0 0.0
    %4504 = vmatmul.mubr.f32.gmra.mxu0 %v4426
    %v4505 = vpop.f32.mrf.mxu0
    %v4506 = vadd.f32 %v4420, %v4505
    %v4507 = vpop.f32.mrf.mxu0
    %4508 = vmatprep.mubr.f32.mxu0 0.0
    %4509 = vmatmul.mubr.f32.gmra.mxu0 %v4429
    %v4510 = vpop.f32.mrf.mxu0
    %v4511 = vadd.f32 %v4420, %v4510
    %v4512 = vpop.f32.mrf.mxu0
    %4513 = vmatprep.mubr.f32.mxu0 0.0
    %4514 = vmatmul.mubr.f32.gmra.mxu0 %v4432
    %v4515 = vpop.f32.mrf.mxu0
    %v4516 = vadd.f32 %v4420, %v4515
    %v4517 = vpop.f32.mrf.mxu0
    %4518 = vdwg.mxu0
    %v4520 = vlaneseq
    %v4521 = vshrl.u32 %v4520, 7
    %v4522 = vsub.s32 0, %v4521
    %v4523 = vrot.slane %v4375, %v4522
    %4525 = vmatprep.subr.mxu0 0.0
    %4526 = vmatpush1.msra.mxu0 0.0
    %4527 = vmatprep.subr.mxu0 0.0
    %4528 = vmatpush1.msra.mxu0 0.0
    %4529 = vmatprep.subr.mxu0 0.0
    %4530 = vmatpush1.msra.mxu0 0.0
    %4531 = vmatprep.subr.mxu0 0.0
    %4532 = vmatpush1.msra.mxu0 0.0
    %4533 = vmatprep.subr.mxu0 0.0
    %4534 = vmatpush1.msra.mxu0 0.0
    %4535 = vmatprep.subr.mxu0 0.0
    %4536 = vmatpush1.msra.mxu0 0.0
    %4537 = vmatprep.subr.mxu0 0.0
    %4538 = vmatpush1.msra.mxu0 0.0
    %4539 = vmatprep.subr.mxu0 0.0
    %4540 = vmatpush1.msra.mxu0 0.0
    %4541 = vmatprep.subr.mxu0 0.0
    %4542 = vmatpush1.msra.mxu0 0.0
    %4543 = vmatprep.subr.mxu0 0.0
    %4544 = vmatpush1.msra.mxu0 0.0
    %4545 = vmatprep.subr.mxu0 0.0
    %4546 = vmatpush1.msra.mxu0 0.0
    %4547 = vmatprep.subr.mxu0 0.0
    %4548 = vmatpush1.msra.mxu0 0.0
    %4549 = vmatprep.subr.mxu0 0.0
    %4550 = vmatpush1.msra.mxu0 %v4373
    %4551 = vmatprep.subr.mxu0 0.0
    %4552 = vmatpush1.msra.mxu0 %v4372
    %4553 = vmatprep.subr.mxu0 0.0
    %4554 = vmatpush1.msra.mxu0 %v4371
    %4555 = vmatprep.subr.mxu0 0.0
    %4556 = vmatpush1.msra.mxu0 %v4370
    %4557 = vmatprep.subr.mxu0 0.0
    %4558 = vmatpush2.msra.mxu0 0.0
    %4559 = vmatprep.subr.mxu0 0.0
    %4560 = vmatpush2.msra.mxu0 0.0
    %4561 = vmatprep.subr.mxu0 0.0
    %4562 = vmatpush2.msra.mxu0 0.0
    %4563 = vmatprep.subr.mxu0 0.0
    %4564 = vmatpush2.msra.mxu0 0.0
    %4565 = vmatprep.subr.mxu0 0.0
    %4566 = vmatpush2.msra.mxu0 0.0
    %4567 = vmatprep.subr.mxu0 0.0
    %4568 = vmatpush2.msra.mxu0 0.0
    %4569 = vmatprep.subr.mxu0 0.0
    %4570 = vmatpush2.msra.mxu0 0.0
    %4571 = vmatprep.subr.mxu0 0.0
    %4572 = vmatpush2.msra.mxu0 0.0
    %4573 = vmatprep.subr.mxu0 0.0
    %4574 = vmatpush2.msra.mxu0 0.0
    %4575 = vmatprep.subr.mxu0 0.0
    %4576 = vmatpush2.msra.mxu0 0.0
    %4577 = vmatprep.subr.mxu0 0.0
    %4578 = vmatpush2.msra.mxu0 0.0
    %4579 = vmatprep.subr.mxu0 0.0
    %4580 = vmatpush2.msra.mxu0 0.0
    %4581 = vmatprep.subr.mxu0 0.0
    %4582 = vmatpush2.msra.mxu0 0.0
    %4583 = vmatprep.subr.mxu0 0.0
    %4584 = vmatpush2.msra.mxu0 0.0
    %4585 = vmatprep.subr.mxu0 0.0
    %4586 = vmatpush2.msra.mxu0 0.0
    %4587 = vmatprep.subr.mxu0 0.0
    %4588 = vmatpush2.msra.mxu0 0.0
    %4589 = vmatprep.mubr.f32.mxu0 0.0
    %4590 = vmatmul.mubr.f32.gmra.mxu0 %v4423
    %v4591 = vpop.f32.mrf.mxu0
    %v4592 = vadd.f32 %v4523, %v4591
    %v4593 = vpop.f32.mrf.mxu0
    %4594 = vmatprep.mubr.f32.mxu0 0.0
    %4595 = vmatmul.mubr.f32.gmra.mxu0 %v4426
    %v4596 = vpop.f32.mrf.mxu0
    %v4597 = vadd.f32 %v4523, %v4596
    %v4598 = vpop.f32.mrf.mxu0
    %4599 = vmatprep.mubr.f32.mxu0 0.0
    %4600 = vmatmul.mubr.f32.gmra.mxu0 %v4429
    %v4601 = vpop.f32.mrf.mxu0
    %v4602 = vadd.f32 %v4523, %v4601
    %v4603 = vpop.f32.mrf.mxu0
    %4604 = vmatprep.mubr.f32.mxu0 0.0
    %4605 = vmatmul.mubr.f32.gmra.mxu0 %v4432
    %v4606 = vpop.f32.mrf.mxu0
    %v4607 = vadd.f32 %v4523, %v4606
    %v4608 = vpop.f32.mrf.mxu0
    %4609 = vdwg.mxu0
    %v4611 = vlaneseq
    %v4612 = vshrl.u32 %v4611, 7
    %v4613 = vsub.s32 0, %v4612
    %v4614 = vrot.slane %v4382, %v4613
    %4616 = vmatprep.subr.mxu0 0.0
    %4617 = vmatpush1.msra.mxu0 0.0
    %4618 = vmatprep.subr.mxu0 0.0
    %4619 = vmatpush1.msra.mxu0 0.0
    %4620 = vmatprep.subr.mxu0 0.0
    %4621 = vmatpush1.msra.mxu0 0.0
    %4622 = vmatprep.subr.mxu0 0.0
    %4623 = vmatpush1.msra.mxu0 0.0
    %4624 = vmatprep.subr.mxu0 0.0
    %4625 = vmatpush1.msra.mxu0 0.0
    %4626 = vmatprep.subr.mxu0 0.0
    %4627 = vmatpush1.msra.mxu0 0.0
    %4628 = vmatprep.subr.mxu0 0.0
    %4629 = vmatpush1.msra.mxu0 0.0
    %4630 = vmatprep.subr.mxu0 0.0
    %4631 = vmatpush1.msra.mxu0 0.0
    %4632 = vmatprep.subr.mxu0 0.0
    %4633 = vmatpush1.msra.mxu0 0.0
    %4634 = vmatprep.subr.mxu0 0.0
    %4635 = vmatpush1.msra.mxu0 0.0
    %4636 = vmatprep.subr.mxu0 0.0
    %4637 = vmatpush1.msra.mxu0 0.0
    %4638 = vmatprep.subr.mxu0 0.0
    %4639 = vmatpush1.msra.mxu0 0.0
    %4640 = vmatprep.subr.mxu0 0.0
    %4641 = vmatpush1.msra.mxu0 %v4380
    %4642 = vmatprep.subr.mxu0 0.0
    %4643 = vmatpush1.msra.mxu0 %v4379
    %4644 = vmatprep.subr.mxu0 0.0
    %4645 = vmatpush1.msra.mxu0 %v4378
    %4646 = vmatprep.subr.mxu0 0.0
    %4647 = vmatpush1.msra.mxu0 %v4377
    %4648 = vmatprep.subr.mxu0 0.0
    %4649 = vmatpush2.msra.mxu0 0.0
    %4650 = vmatprep.subr.mxu0 0.0
    %4651 = vmatpush2.msra.mxu0 0.0
    %4652 = vmatprep.subr.mxu0 0.0
    %4653 = vmatpush2.msra.mxu0 0.0
    %4654 = vmatprep.subr.mxu0 0.0
    %4655 = vmatpush2.msra.mxu0 0.0
    %4656 = vmatprep.subr.mxu0 0.0
    %4657 = vmatpush2.msra.mxu0 0.0
    %4658 = vmatprep.subr.mxu0 0.0
    %4659 = vmatpush2.msra.mxu0 0.0
    %4660 = vmatprep.subr.mxu0 0.0
    %4661 = vmatpush2.msra.mxu0 0.0
    %4662 = vmatprep.subr.mxu0 0.0
    %4663 = vmatpush2.msra.mxu0 0.0
    %4664 = vmatprep.subr.mxu0 0.0
    %4665 = vmatpush2.msra.mxu0 0.0
    %4666 = vmatprep.subr.mxu0 0.0
    %4667 = vmatpush2.msra.mxu0 0.0
    %4668 = vmatprep.subr.mxu0 0.0
    %4669 = vmatpush2.msra.mxu0 0.0
    %4670 = vmatprep.subr.mxu0 0.0
    %4671 = vmatpush2.msra.mxu0 0.0
    %4672 = vmatprep.subr.mxu0 0.0
    %4673 = vmatpush2.msra.mxu0 0.0
    %4674 = vmatprep.subr.mxu0 0.0
    %4675 = vmatpush2.msra.mxu0 0.0
    %4676 = vmatprep.subr.mxu0 0.0
    %4677 = vmatpush2.msra.mxu0 0.0
    %4678 = vmatprep.subr.mxu0 0.0
    %4679 = vmatpush2.msra.mxu0 0.0
    %4680 = vmatprep.mubr.f32.mxu0 0.0
    %4681 = vmatmul.mubr.f32.gmra.mxu0 %v4423
    %v4682 = vpop.f32.mrf.mxu0
    %v4683 = vadd.f32 %v4614, %v4682
    %v4684 = vpop.f32.mrf.mxu0
    %4685 = vmatprep.mubr.f32.mxu0 0.0
    %4686 = vmatmul.mubr.f32.gmra.mxu0 %v4426
    %v4687 = vpop.f32.mrf.mxu0
    %v4688 = vadd.f32 %v4614, %v4687
    %v4689 = vpop.f32.mrf.mxu0
    %4690 = vmatprep.mubr.f32.mxu0 0.0
    %4691 = vmatmul.mubr.f32.gmra.mxu0 %v4429
    %v4692 = vpop.f32.mrf.mxu0
    %v4693 = vadd.f32 %v4614, %v4692
    %v4694 = vpop.f32.mrf.mxu0
    %4695 = vmatprep.mubr.f32.mxu0 0.0
    %4696 = vmatmul.mubr.f32.gmra.mxu0 %v4432
    %v4697 = vpop.f32.mrf.mxu0
    %v4698 = vadd.f32 %v4614, %v4697
    %v4699 = vpop.f32.mrf.mxu0
    %4700 = vdwg.mxu0
    %v4702 = vsel %vm163, %v4501, 0
    %v4705 = vsel %vm163, %v4592, 0
    %4707 = vmatprep.subr.mxu0 0.0
    %4708 = vmatpush1.xpose.msra.mxu0 0.0
    %4709 = vmatprep.subr.mxu0 0.0
    %4710 = vmatpush1.xpose.msra.mxu0 0.0
    %4711 = vmatprep.subr.mxu0 0.0
    %4712 = vmatpush1.xpose.msra.mxu0 0.0
    %4713 = vmatprep.subr.mxu0 0.0
    %4714 = vmatpush1.xpose.msra.mxu0 0.0
    %4715 = vmatprep.subr.mxu0 0.0
    %4716 = vmatpush1.xpose.msra.mxu0 0.0
    %4717 = vmatprep.subr.mxu0 0.0
    %4718 = vmatpush1.xpose.msra.mxu0 0.0
    %4719 = vmatprep.subr.mxu0 0.0
    %4720 = vmatpush1.xpose.msra.mxu0 0.0
    %4721 = vmatprep.subr.mxu0 0.0
    %4722 = vmatpush1.xpose.msra.mxu0 0.0
    %4723 = vmatprep.subr.mxu0 0.0
    %4724 = vmatpush1.xpose.msra.mxu0 0.0
    %4725 = vmatprep.subr.mxu0 0.0
    %4726 = vmatpush1.xpose.msra.mxu0 0.0
    %4727 = vmatprep.subr.mxu0 0.0
    %4728 = vmatpush1.xpose.msra.mxu0 0.0
    %4729 = vmatprep.subr.mxu0 0.0
    %4730 = vmatpush1.xpose.msra.mxu0 0.0
    %4731 = vmatprep.subr.mxu0 0.0
    %4732 = vmatpush1.xpose.msra.mxu0 0.0
    %4733 = vmatprep.subr.mxu0 0.0
    %4734 = vmatpush1.xpose.msra.mxu0 0.0
    %4735 = vmatprep.subr.mxu0 0.0
    %4736 = vmatpush1.xpose.msra.mxu0 0.0
    %4737 = vmatprep.subr.mxu0 0.0
    %4738 = vmatpush1.xpose.msra.mxu0 %v4705
    %4739 = vmatprep.subr.mxu0 0.0
    %4740 = vmatpush2.xpose.msra.mxu0 0.0
    %4741 = vmatprep.subr.mxu0 0.0
    %4742 = vmatpush2.xpose.msra.mxu0 0.0
    %4743 = vmatprep.subr.mxu0 0.0
    %4744 = vmatpush2.xpose.msra.mxu0 0.0
    %4745 = vmatprep.subr.mxu0 0.0
    %4746 = vmatpush2.xpose.msra.mxu0 0.0
    %4747 = vmatprep.subr.mxu0 0.0
    %4748 = vmatpush2.xpose.msra.mxu0 0.0
    %4749 = vmatprep.subr.mxu0 0.0
    %4750 = vmatpush2.xpose.msra.mxu0 0.0
    %4751 = vmatprep.subr.mxu0 0.0
    %4752 = vmatpush2.xpose.msra.mxu0 0.0
    %4753 = vmatprep.subr.mxu0 0.0
    %4754 = vmatpush2.xpose.msra.mxu0 0.0
    %4755 = vmatprep.subr.mxu0 0.0
    %4756 = vmatpush2.xpose.msra.mxu0 0.0
    %4757 = vmatprep.subr.mxu0 0.0
    %4758 = vmatpush2.xpose.msra.mxu0 0.0
    %4759 = vmatprep.subr.mxu0 0.0
    %4760 = vmatpush2.xpose.msra.mxu0 0.0
    %4761 = vmatprep.subr.mxu0 0.0
    %4762 = vmatpush2.xpose.msra.mxu0 0.0
    %4763 = vmatprep.subr.mxu0 0.0
    %4764 = vmatpush2.xpose.msra.mxu0 0.0
    %4765 = vmatprep.subr.mxu0 0.0
    %4766 = vmatpush2.xpose.msra.mxu0 0.0
    %4767 = vmatprep.subr.mxu0 0.0
    %4768 = vmatpush2.xpose.msra.mxu0 0.0
    %4769 = vmatprep.subr.mxu0 0.0
    %4770 = vmatpush2.xpose.msra.mxu0 0.0
    %4771 = vmatprep.mubr.f32.mxu0 0.0
    %4772 = vmatmul.mubr.f32.gmra.mxu0 %v4702
    %v4773 = vpop.f32.mrf.mxu0
    %v4774 = vadd.f32 %v610, %v4773
    %v4775 = vpop.f32.mrf.mxu0
    %4776 = vdwg.mxu0
    %v4778 = vsel %vm163, %v4506, 0
    %v4781 = vsel %vm163, %v4597, 0
    %4783 = vmatprep.subr.mxu0 0.0
    %4784 = vmatpush1.xpose.msra.mxu0 0.0
    %4785 = vmatprep.subr.mxu0 0.0
    %4786 = vmatpush1.xpose.msra.mxu0 0.0
    %4787 = vmatprep.subr.mxu0 0.0
    %4788 = vmatpush1.xpose.msra.mxu0 0.0
    %4789 = vmatprep.subr.mxu0 0.0
    %4790 = vmatpush1.xpose.msra.mxu0 0.0
    %4791 = vmatprep.subr.mxu0 0.0
    %4792 = vmatpush1.xpose.msra.mxu0 0.0
    %4793 = vmatprep.subr.mxu0 0.0
    %4794 = vmatpush1.xpose.msra.mxu0 0.0
    %4795 = vmatprep.subr.mxu0 0.0
    %4796 = vmatpush1.xpose.msra.mxu0 0.0
    %4797 = vmatprep.subr.mxu0 0.0
    %4798 = vmatpush1.xpose.msra.mxu0 0.0
    %4799 = vmatprep.subr.mxu0 0.0
    %4800 = vmatpush1.xpose.msra.mxu0 0.0
    %4801 = vmatprep.subr.mxu0 0.0
    %4802 = vmatpush1.xpose.msra.mxu0 0.0
    %4803 = vmatprep.subr.mxu0 0.0
    %4804 = vmatpush1.xpose.msra.mxu0 0.0
    %4805 = vmatprep.subr.mxu0 0.0
    %4806 = vmatpush1.xpose.msra.mxu0 0.0
    %4807 = vmatprep.subr.mxu0 0.0
    %4808 = vmatpush1.xpose.msra.mxu0 0.0
    %4809 = vmatprep.subr.mxu0 0.0
    %4810 = vmatpush1.xpose.msra.mxu0 0.0
    %4811 = vmatprep.subr.mxu0 0.0
    %4812 = vmatpush1.xpose.msra.mxu0 0.0
    %4813 = vmatprep.subr.mxu0 0.0
    %4814 = vmatpush1.xpose.msra.mxu0 %v4781
    %4815 = vmatprep.subr.mxu0 0.0
    %4816 = vmatpush2.xpose.msra.mxu0 0.0
    %4817 = vmatprep.subr.mxu0 0.0
    %4818 = vmatpush2.xpose.msra.mxu0 0.0
    %4819 = vmatprep.subr.mxu0 0.0
    %4820 = vmatpush2.xpose.msra.mxu0 0.0
    %4821 = vmatprep.subr.mxu0 0.0
    %4822 = vmatpush2.xpose.msra.mxu0 0.0
    %4823 = vmatprep.subr.mxu0 0.0
    %4824 = vmatpush2.xpose.msra.mxu0 0.0
    %4825 = vmatprep.subr.mxu0 0.0
    %4826 = vmatpush2.xpose.msra.mxu0 0.0
    %4827 = vmatprep.subr.mxu0 0.0
    %4828 = vmatpush2.xpose.msra.mxu0 0.0
    %4829 = vmatprep.subr.mxu0 0.0
    %4830 = vmatpush2.xpose.msra.mxu0 0.0
    %4831 = vmatprep.subr.mxu0 0.0
    %4832 = vmatpush2.xpose.msra.mxu0 0.0
    %4833 = vmatprep.subr.mxu0 0.0
    %4834 = vmatpush2.xpose.msra.mxu0 0.0
    %4835 = vmatprep.subr.mxu0 0.0
    %4836 = vmatpush2.xpose.msra.mxu0 0.0
    %4837 = vmatprep.subr.mxu0 0.0
    %4838 = vmatpush2.xpose.msra.mxu0 0.0
    %4839 = vmatprep.subr.mxu0 0.0
    %4840 = vmatpush2.xpose.msra.mxu0 0.0
    %4841 = vmatprep.subr.mxu0 0.0
    %4842 = vmatpush2.xpose.msra.mxu0 0.0
    %4843 = vmatprep.subr.mxu0 0.0
    %4844 = vmatpush2.xpose.msra.mxu0 0.0
    %4845 = vmatprep.subr.mxu0 0.0
    %4846 = vmatpush2.xpose.msra.mxu0 0.0
    %4847 = vmatprep.mubr.f32.mxu0 0.0
    %4848 = vmatmul.mubr.f32.gmra.mxu0 %v4778
    %v4849 = vpop.f32.mrf.mxu0
    %v4850 = vadd.f32 %v611, %v4849
    %v4851 = vpop.f32.mrf.mxu0
    %4852 = vdwg.mxu0
    %v4854 = vsel %vm163, %v4511, 0
    %v4857 = vsel %vm163, %v4602, 0
    %4859 = vmatprep.subr.mxu0 0.0
    %4860 = vmatpush1.xpose.msra.mxu0 0.0
    %4861 = vmatprep.subr.mxu0 0.0
    %4862 = vmatpush1.xpose.msra.mxu0 0.0
    %4863 = vmatprep.subr.mxu0 0.0
    %4864 = vmatpush1.xpose.msra.mxu0 0.0
    %4865 = vmatprep.subr.mxu0 0.0
    %4866 = vmatpush1.xpose.msra.mxu0 0.0
    %4867 = vmatprep.subr.mxu0 0.0
    %4868 = vmatpush1.xpose.msra.mxu0 0.0
    %4869 = vmatprep.subr.mxu0 0.0
    %4870 = vmatpush1.xpose.msra.mxu0 0.0
    %4871 = vmatprep.subr.mxu0 0.0
    %4872 = vmatpush1.xpose.msra.mxu0 0.0
    %4873 = vmatprep.subr.mxu0 0.0
    %4874 = vmatpush1.xpose.msra.mxu0 0.0
    %4875 = vmatprep.subr.mxu0 0.0
    %4876 = vmatpush1.xpose.msra.mxu0 0.0
    %4877 = vmatprep.subr.mxu0 0.0
    %4878 = vmatpush1.xpose.msra.mxu0 0.0
    %4879 = vmatprep.subr.mxu0 0.0
    %4880 = vmatpush1.xpose.msra.mxu0 0.0
    %4881 = vmatprep.subr.mxu0 0.0
    %4882 = vmatpush1.xpose.msra.mxu0 0.0
    %4883 = vmatprep.subr.mxu0 0.0
    %4884 = vmatpush1.xpose.msra.mxu0 0.0
    %4885 = vmatprep.subr.mxu0 0.0
    %4886 = vmatpush1.xpose.msra.mxu0 0.0
    %4887 = vmatprep.subr.mxu0 0.0
    %4888 = vmatpush1.xpose.msra.mxu0 0.0
    %4889 = vmatprep.subr.mxu0 0.0
    %4890 = vmatpush1.xpose.msra.mxu0 %v4857
    %4891 = vmatprep.subr.mxu0 0.0
    %4892 = vmatpush2.xpose.msra.mxu0 0.0
    %4893 = vmatprep.subr.mxu0 0.0
    %4894 = vmatpush2.xpose.msra.mxu0 0.0
    %4895 = vmatprep.subr.mxu0 0.0
    %4896 = vmatpush2.xpose.msra.mxu0 0.0
    %4897 = vmatprep.subr.mxu0 0.0
    %4898 = vmatpush2.xpose.msra.mxu0 0.0
    %4899 = vmatprep.subr.mxu0 0.0
    %4900 = vmatpush2.xpose.msra.mxu0 0.0
    %4901 = vmatprep.subr.mxu0 0.0
    %4902 = vmatpush2.xpose.msra.mxu0 0.0
    %4903 = vmatprep.subr.mxu0 0.0
    %4904 = vmatpush2.xpose.msra.mxu0 0.0
    %4905 = vmatprep.subr.mxu0 0.0
    %4906 = vmatpush2.xpose.msra.mxu0 0.0
    %4907 = vmatprep.subr.mxu0 0.0
    %4908 = vmatpush2.xpose.msra.mxu0 0.0
    %4909 = vmatprep.subr.mxu0 0.0
    %4910 = vmatpush2.xpose.msra.mxu0 0.0
    %4911 = vmatprep.subr.mxu0 0.0
    %4912 = vmatpush2.xpose.msra.mxu0 0.0
    %4913 = vmatprep.subr.mxu0 0.0
    %4914 = vmatpush2.xpose.msra.mxu0 0.0
    %4915 = vmatprep.subr.mxu0 0.0
    %4916 = vmatpush2.xpose.msra.mxu0 0.0
    %4917 = vmatprep.subr.mxu0 0.0
    %4918 = vmatpush2.xpose.msra.mxu0 0.0
    %4919 = vmatprep.subr.mxu0 0.0
    %4920 = vmatpush2.xpose.msra.mxu0 0.0
    %4921 = vmatprep.subr.mxu0 0.0
    %4922 = vmatpush2.xpose.msra.mxu0 0.0
    %4923 = vmatprep.mubr.f32.mxu0 0.0
    %4924 = vmatmul.mubr.f32.gmra.mxu0 %v4854
    %v4925 = vpop.f32.mrf.mxu0
    %v4926 = vadd.f32 %v612, %v4925
    %v4927 = vpop.f32.mrf.mxu0
    %4928 = vdwg.mxu0
    %v4930 = vsel %vm163, %v4516, 0
    %v4933 = vsel %vm163, %v4607, 0
    %4935 = vmatprep.subr.mxu0 0.0
    %4936 = vmatpush1.xpose.msra.mxu0 0.0
    %4937 = vmatprep.subr.mxu0 0.0
    %4938 = vmatpush1.xpose.msra.mxu0 0.0
    %4939 = vmatprep.subr.mxu0 0.0
    %4940 = vmatpush1.xpose.msra.mxu0 0.0
    %4941 = vmatprep.subr.mxu0 0.0
    %4942 = vmatpush1.xpose.msra.mxu0 0.0
    %4943 = vmatprep.subr.mxu0 0.0
    %4944 = vmatpush1.xpose.msra.mxu0 0.0
    %4945 = vmatprep.subr.mxu0 0.0
    %4946 = vmatpush1.xpose.msra.mxu0 0.0
    %4947 = vmatprep.subr.mxu0 0.0
    %4948 = vmatpush1.xpose.msra.mxu0 0.0
    %4949 = vmatprep.subr.mxu0 0.0
    %4950 = vmatpush1.xpose.msra.mxu0 0.0
    %4951 = vmatprep.subr.mxu0 0.0
    %4952 = vmatpush1.xpose.msra.mxu0 0.0
    %4953 = vmatprep.subr.mxu0 0.0
    %4954 = vmatpush1.xpose.msra.mxu0 0.0
    %4955 = vmatprep.subr.mxu0 0.0
    %4956 = vmatpush1.xpose.msra.mxu0 0.0
    %4957 = vmatprep.subr.mxu0 0.0
    %4958 = vmatpush1.xpose.msra.mxu0 0.0
    %4959 = vmatprep.subr.mxu0 0.0
    %4960 = vmatpush1.xpose.msra.mxu0 0.0
    %4961 = vmatprep.subr.mxu0 0.0
    %4962 = vmatpush1.xpose.msra.mxu0 0.0
    %4963 = vmatprep.subr.mxu0 0.0
    %4964 = vmatpush1.xpose.msra.mxu0 0.0
    %4965 = vmatprep.subr.mxu0 0.0
    %4966 = vmatpush1.xpose.msra.mxu0 %v4933
    %4967 = vmatprep.subr.mxu0 0.0
    %4968 = vmatpush2.xpose.msra.mxu0 0.0
    %4969 = vmatprep.subr.mxu0 0.0
    %4970 = vmatpush2.xpose.msra.mxu0 0.0
    %4971 = vmatprep.subr.mxu0 0.0
    %4972 = vmatpush2.xpose.msra.mxu0 0.0
    %4973 = vmatprep.subr.mxu0 0.0
    %4974 = vmatpush2.xpose.msra.mxu0 0.0
    %4975 = vmatprep.subr.mxu0 0.0
    %4976 = vmatpush2.xpose.msra.mxu0 0.0
    %4977 = vmatprep.subr.mxu0 0.0
    %4978 = vmatpush2.xpose.msra.mxu0 0.0
    %4979 = vmatprep.subr.mxu0 0.0
    %4980 = vmatpush2.xpose.msra.mxu0 0.0
    %4981 = vmatprep.subr.mxu0 0.0
    %4982 = vmatpush2.xpose.msra.mxu0 0.0
    %4983 = vmatprep.subr.mxu0 0.0
    %4984 = vmatpush2.xpose.msra.mxu0 0.0
    %4985 = vmatprep.subr.mxu0 0.0
    %4986 = vmatpush2.xpose.msra.mxu0 0.0
    %4987 = vmatprep.subr.mxu0 0.0
    %4988 = vmatpush2.xpose.msra.mxu0 0.0
    %4989 = vmatprep.subr.mxu0 0.0
    %4990 = vmatpush2.xpose.msra.mxu0 0.0
    %4991 = vmatprep.subr.mxu0 0.0
    %4992 = vmatpush2.xpose.msra.mxu0 0.0
    %4993 = vmatprep.subr.mxu0 0.0
    %4994 = vmatpush2.xpose.msra.mxu0 0.0
    %4995 = vmatprep.subr.mxu0 0.0
    %4996 = vmatpush2.xpose.msra.mxu0 0.0
    %4997 = vmatprep.subr.mxu0 0.0
    %4998 = vmatpush2.xpose.msra.mxu0 0.0
    %4999 = vmatprep.mubr.f32.mxu0 0.0
    %5000 = vmatmul.mubr.f32.gmra.mxu0 %v4930
    %v5001 = vpop.f32.mrf.mxu0
    %v5002 = vadd.f32 %v613, %v5001
    %v5003 = vpop.f32.mrf.mxu0
    %5004 = vdwg.mxu0
    %v5005 = vsel %vm163, %v4774, -inf
    %5006 = vmax.xlane.f32.xlu0 %v5005
    %v5007 = vpop.xlane.xlu0 %5006
    %v5008 = vsel %vm163, %v4850, -inf
    %5009 = vmax.xlane.f32.xlu0 %v5008
    %v5010 = vpop.xlane.xlu0 %5009
    %v5011 = vsel %vm163, %v4926, -inf
    %5012 = vmax.xlane.f32.xlu0 %v5011
    %v5013 = vpop.xlane.xlu0 %5012
    %v5014 = vsel %vm163, %v5002, -inf
    %5015 = vmax.xlane.f32.xlu0 %v5014
    %v5016 = vpop.xlane.xlu0 %5015
    %v5017 = vsub.f32 %v4774, %v5007
    %v5018 = vsub.f32 %v4850, %v5010
    %v5019 = vsub.f32 %v4926, %v5013
    %v5020 = vsub.f32 %v5002, %v5016
    %v5021 = vmul.f32 %v5017, 1.442695
    %v5022 = vpow.pop %v5021
    %v5023 = vmul.f32 %v5018, 1.442695
    %v5024 = vpow.pop %v5023
    %v5025 = vmul.f32 %v5019, 1.442695
    %v5026 = vpow.pop %v5025
    %v5027 = vmul.f32 %v5020, 1.442695
    %v5028 = vpow.pop %v5027
    %v5029 = vsel %vm163, %v5022, 0.0
    %5030 = vadd.xlane.f32.xlu0 %v5029
    %v5031 = vpop.xlane.xlu0 %5030
    %v5032 = vsel %vm163, %v5024, 0.0
    %5033 = vadd.xlane.f32.xlu0 %v5032
    %v5034 = vpop.xlane.xlu0 %5033
    %v5035 = vsel %vm163, %v5026, 0.0
    %5036 = vadd.xlane.f32.xlu0 %v5035
    %v5037 = vpop.xlane.xlu0 %5036
    %v5038 = vsel %vm163, %v5028, 0.0
    %5039 = vadd.xlane.f32.xlu0 %v5038
    %v5040 = vpop.xlane.xlu0 %5039
    %v5041 = vrcp.pop %v5031
    %v5042 = vrcp.pop %v5034
    %v5043 = vrcp.pop %v5037
    %v5044 = vrcp.pop %v5040
    %v5045 = vmul.f32 %v5022, %v5041
    %v5046 = vmul.f32 %v5024, %v5042
    %v5047 = vmul.f32 %v5026, %v5043
    %v5048 = vmul.f32 %v5028, %v5044
    %v5050 = vsel %vm163, %v5045, 0
    %5052 = vmatprep.subr.mxu0 0.0
    %5053 = vmatpush1.msra.mxu0 0.0
    %5054 = vmatprep.subr.mxu0 0.0
    %5055 = vmatpush1.msra.mxu0 0.0
    %5056 = vmatprep.subr.mxu0 0.0
    %5057 = vmatpush1.msra.mxu0 0.0
    %5058 = vmatprep.subr.mxu0 0.0
    %5059 = vmatpush1.msra.mxu0 0.0
    %5060 = vmatprep.subr.mxu0 0.0
    %5061 = vmatpush1.msra.mxu0 0.0
    %5062 = vmatprep.subr.mxu0 0.0
    %5063 = vmatpush1.msra.mxu0 0.0
    %5064 = vmatprep.subr.mxu0 0.0
    %5065 = vmatpush1.msra.mxu0 0.0
    %5066 = vmatprep.subr.mxu0 0.0
    %5067 = vmatpush1.msra.mxu0 0.0
    %5068 = vmatprep.subr.mxu0 0.0
    %5069 = vmatpush1.msra.mxu0 0.0
    %5070 = vmatprep.subr.mxu0 0.0
    %5071 = vmatpush1.msra.mxu0 0.0
    %5072 = vmatprep.subr.mxu0 0.0
    %5073 = vmatpush1.msra.mxu0 0.0
    %5074 = vmatprep.subr.mxu0 0.0
    %5075 = vmatpush1.msra.mxu0 0.0
    %5076 = vmatprep.subr.mxu0 0.0
    %5077 = vmatpush1.msra.mxu0 0.0
    %5078 = vmatprep.subr.mxu0 0.0
    %5079 = vmatpush1.msra.mxu0 0.0
    %5080 = vmatprep.subr.mxu0 0.0
    %5081 = vmatpush1.msra.mxu0 0.0
    %5082 = vmatprep.subr.mxu0 0.0
    %5083 = vmatpush1.msra.mxu0 %v4683
    %5084 = vmatprep.subr.mxu0 0.0
    %5085 = vmatpush2.msra.mxu0 0.0
    %5086 = vmatprep.subr.mxu0 0.0
    %5087 = vmatpush2.msra.mxu0 0.0
    %5088 = vmatprep.subr.mxu0 0.0
    %5089 = vmatpush2.msra.mxu0 0.0
    %5090 = vmatprep.subr.mxu0 0.0
    %5091 = vmatpush2.msra.mxu0 0.0
    %5092 = vmatprep.subr.mxu0 0.0
    %5093 = vmatpush2.msra.mxu0 0.0
    %5094 = vmatprep.subr.mxu0 0.0
    %5095 = vmatpush2.msra.mxu0 0.0
    %5096 = vmatprep.subr.mxu0 0.0
    %5097 = vmatpush2.msra.mxu0 0.0
    %5098 = vmatprep.subr.mxu0 0.0
    %5099 = vmatpush2.msra.mxu0 0.0
    %5100 = vmatprep.subr.mxu0 0.0
    %5101 = vmatpush2.msra.mxu0 0.0
    %5102 = vmatprep.subr.mxu0 0.0
    %5103 = vmatpush2.msra.mxu0 0.0
    %5104 = vmatprep.subr.mxu0 0.0
    %5105 = vmatpush2.msra.mxu0 0.0
    %5106 = vmatprep.subr.mxu0 0.0
    %5107 = vmatpush2.msra.mxu0 0.0
    %5108 = vmatprep.subr.mxu0 0.0
    %5109 = vmatpush2.msra.mxu0 0.0
    %5110 = vmatprep.subr.mxu0 0.0
    %5111 = vmatpush2.msra.mxu0 0.0
    %5112 = vmatprep.subr.mxu0 0.0
    %5113 = vmatpush2.msra.mxu0 0.0
    %5114 = vmatprep.subr.mxu0 0.0
    %5115 = vmatpush2.msra.mxu0 0.0
    %5116 = vmatprep.mubr.f32.mxu0 0.0
    %5117 = vmatmul.mubr.f32.gmra.mxu0 %v5050
    %v5118 = vpop.f32.mrf.mxu0
    %v5119 = vadd.f32 0.0, %v5118
    %v5120 = vpop.f32.mrf.mxu0
    %5121 = vdwg.mxu0
    %v5123 = vsel %vm163, %v5046, 0
    %5125 = vmatprep.subr.mxu0 0.0
    %5126 = vmatpush1.msra.mxu0 0.0
    %5127 = vmatprep.subr.mxu0 0.0
    %5128 = vmatpush1.msra.mxu0 0.0
    %5129 = vmatprep.subr.mxu0 0.0
    %5130 = vmatpush1.msra.mxu0 0.0
    %5131 = vmatprep.subr.mxu0 0.0
    %5132 = vmatpush1.msra.mxu0 0.0
    %5133 = vmatprep.subr.mxu0 0.0
    %5134 = vmatpush1.msra.mxu0 0.0
    %5135 = vmatprep.subr.mxu0 0.0
    %5136 = vmatpush1.msra.mxu0 0.0
    %5137 = vmatprep.subr.mxu0 0.0
    %5138 = vmatpush1.msra.mxu0 0.0
    %5139 = vmatprep.subr.mxu0 0.0
    %5140 = vmatpush1.msra.mxu0 0.0
    %5141 = vmatprep.subr.mxu0 0.0
    %5142 = vmatpush1.msra.mxu0 0.0
    %5143 = vmatprep.subr.mxu0 0.0
    %5144 = vmatpush1.msra.mxu0 0.0
    %5145 = vmatprep.subr.mxu0 0.0
    %5146 = vmatpush1.msra.mxu0 0.0
    %5147 = vmatprep.subr.mxu0 0.0
    %5148 = vmatpush1.msra.mxu0 0.0
    %5149 = vmatprep.subr.mxu0 0.0
    %5150 = vmatpush1.msra.mxu0 0.0
    %5151 = vmatprep.subr.mxu0 0.0
    %5152 = vmatpush1.msra.mxu0 0.0
    %5153 = vmatprep.subr.mxu0 0.0
    %5154 = vmatpush1.msra.mxu0 0.0
    %5155 = vmatprep.subr.mxu0 0.0
    %5156 = vmatpush1.msra.mxu0 %v4688
    %5157 = vmatprep.subr.mxu0 0.0
    %5158 = vmatpush2.msra.mxu0 0.0
    %5159 = vmatprep.subr.mxu0 0.0
    %5160 = vmatpush2.msra.mxu0 0.0
    %5161 = vmatprep.subr.mxu0 0.0
    %5162 = vmatpush2.msra.mxu0 0.0
    %5163 = vmatprep.subr.mxu0 0.0
    %5164 = vmatpush2.msra.mxu0 0.0
    %5165 = vmatprep.subr.mxu0 0.0
    %5166 = vmatpush2.msra.mxu0 0.0
    %5167 = vmatprep.subr.mxu0 0.0
    %5168 = vmatpush2.msra.mxu0 0.0
    %5169 = vmatprep.subr.mxu0 0.0
    %5170 = vmatpush2.msra.mxu0 0.0
    %5171 = vmatprep.subr.mxu0 0.0
    %5172 = vmatpush2.msra.mxu0 0.0
    %5173 = vmatprep.subr.mxu0 0.0
    %5174 = vmatpush2.msra.mxu0 0.0
    %5175 = vmatprep.subr.mxu0 0.0
    %5176 = vmatpush2.msra.mxu0 0.0
    %5177 = vmatprep.subr.mxu0 0.0
    %5178 = vmatpush2.msra.mxu0 0.0
    %5179 = vmatprep.subr.mxu0 0.0
    %5180 = vmatpush2.msra.mxu0 0.0
    %5181 = vmatprep.subr.mxu0 0.0
    %5182 = vmatpush2.msra.mxu0 0.0
    %5183 = vmatprep.subr.mxu0 0.0
    %5184 = vmatpush2.msra.mxu0 0.0
    %5185 = vmatprep.subr.mxu0 0.0
    %5186 = vmatpush2.msra.mxu0 0.0
    %5187 = vmatprep.subr.mxu0 0.0
    %5188 = vmatpush2.msra.mxu0 0.0
    %5189 = vmatprep.mubr.f32.mxu0 0.0
    %5190 = vmatmul.mubr.f32.gmra.mxu0 %v5123
    %v5191 = vpop.f32.mrf.mxu0
    %v5192 = vadd.f32 0.0, %v5191
    %v5193 = vpop.f32.mrf.mxu0
    %5194 = vdwg.mxu0
    %v5196 = vsel %vm163, %v5047, 0
    %5198 = vmatprep.subr.mxu0 0.0
    %5199 = vmatpush1.msra.mxu0 0.0
    %5200 = vmatprep.subr.mxu0 0.0
    %5201 = vmatpush1.msra.mxu0 0.0
    %5202 = vmatprep.subr.mxu0 0.0
    %5203 = vmatpush1.msra.mxu0 0.0
    %5204 = vmatprep.subr.mxu0 0.0
    %5205 = vmatpush1.msra.mxu0 0.0
    %5206 = vmatprep.subr.mxu0 0.0
    %5207 = vmatpush1.msra.mxu0 0.0
    %5208 = vmatprep.subr.mxu0 0.0
    %5209 = vmatpush1.msra.mxu0 0.0
    %5210 = vmatprep.subr.mxu0 0.0
    %5211 = vmatpush1.msra.mxu0 0.0
    %5212 = vmatprep.subr.mxu0 0.0
    %5213 = vmatpush1.msra.mxu0 0.0
    %5214 = vmatprep.subr.mxu0 0.0
    %5215 = vmatpush1.msra.mxu0 0.0
    %5216 = vmatprep.subr.mxu0 0.0
    %5217 = vmatpush1.msra.mxu0 0.0
    %5218 = vmatprep.subr.mxu0 0.0
    %5219 = vmatpush1.msra.mxu0 0.0
    %5220 = vmatprep.subr.mxu0 0.0
    %5221 = vmatpush1.msra.mxu0 0.0
    %5222 = vmatprep.subr.mxu0 0.0
    %5223 = vmatpush1.msra.mxu0 0.0
    %5224 = vmatprep.subr.mxu0 0.0
    %5225 = vmatpush1.msra.mxu0 0.0
    %5226 = vmatprep.subr.mxu0 0.0
    %5227 = vmatpush1.msra.mxu0 0.0
    %5228 = vmatprep.subr.mxu0 0.0
    %5229 = vmatpush1.msra.mxu0 %v4693
    %5230 = vmatprep.subr.mxu0 0.0
    %5231 = vmatpush2.msra.mxu0 0.0
    %5232 = vmatprep.subr.mxu0 0.0
    %5233 = vmatpush2.msra.mxu0 0.0
    %5234 = vmatprep.subr.mxu0 0.0
    %5235 = vmatpush2.msra.mxu0 0.0
    %5236 = vmatprep.subr.mxu0 0.0
    %5237 = vmatpush2.msra.mxu0 0.0
    %5238 = vmatprep.subr.mxu0 0.0
    %5239 = vmatpush2.msra.mxu0 0.0
    %5240 = vmatprep.subr.mxu0 0.0
    %5241 = vmatpush2.msra.mxu0 0.0
    %5242 = vmatprep.subr.mxu0 0.0
    %5243 = vmatpush2.msra.mxu0 0.0
    %5244 = vmatprep.subr.mxu0 0.0
    %5245 = vmatpush2.msra.mxu0 0.0
    %5246 = vmatprep.subr.mxu0 0.0
    %5247 = vmatpush2.msra.mxu0 0.0
    %5248 = vmatprep.subr.mxu0 0.0
    %5249 = vmatpush2.msra.mxu0 0.0
    %5250 = vmatprep.subr.mxu0 0.0
    %5251 = vmatpush2.msra.mxu0 0.0
    %5252 = vmatprep.subr.mxu0 0.0
    %5253 = vmatpush2.msra.mxu0 0.0
    %5254 = vmatprep.subr.mxu0 0.0
    %5255 = vmatpush2.msra.mxu0 0.0
    %5256 = vmatprep.subr.mxu0 0.0
    %5257 = vmatpush2.msra.mxu0 0.0
    %5258 = vmatprep.subr.mxu0 0.0
    %5259 = vmatpush2.msra.mxu0 0.0
    %5260 = vmatprep.subr.mxu0 0.0
    %5261 = vmatpush2.msra.mxu0 0.0
    %5262 = vmatprep.mubr.f32.mxu0 0.0
    %5263 = vmatmul.mubr.f32.gmra.mxu0 %v5196
    %v5264 = vpop.f32.mrf.mxu0
    %v5265 = vadd.f32 0.0, %v5264
    %v5266 = vpop.f32.mrf.mxu0
    %5267 = vdwg.mxu0
    %v5269 = vsel %vm163, %v5048, 0
    %5271 = vmatprep.subr.mxu0 0.0
    %5272 = vmatpush1.msra.mxu0 0.0
    %5273 = vmatprep.subr.mxu0 0.0
    %5274 = vmatpush1.msra.mxu0 0.0
    %5275 = vmatprep.subr.mxu0 0.0
    %5276 = vmatpush1.msra.mxu0 0.0
    %5277 = vmatprep.subr.mxu0 0.0
    %5278 = vmatpush1.msra.mxu0 0.0
    %5279 = vmatprep.subr.mxu0 0.0
    %5280 = vmatpush1.msra.mxu0 0.0
    %5281 = vmatprep.subr.mxu0 0.0
    %5282 = vmatpush1.msra.mxu0 0.0
    %5283 = vmatprep.subr.mxu0 0.0
    %5284 = vmatpush1.msra.mxu0 0.0
    %5285 = vmatprep.subr.mxu0 0.0
    %5286 = vmatpush1.msra.mxu0 0.0
    %5287 = vmatprep.subr.mxu0 0.0
    %5288 = vmatpush1.msra.mxu0 0.0
    %5289 = vmatprep.subr.mxu0 0.0
    %5290 = vmatpush1.msra.mxu0 0.0
    %5291 = vmatprep.subr.mxu0 0.0
    %5292 = vmatpush1.msra.mxu0 0.0
    %5293 = vmatprep.subr.mxu0 0.0
    %5294 = vmatpush1.msra.mxu0 0.0
    %5295 = vmatprep.subr.mxu0 0.0
    %5296 = vmatpush1.msra.mxu0 0.0
    %5297 = vmatprep.subr.mxu0 0.0
    %5298 = vmatpush1.msra.mxu0 0.0
    %5299 = vmatprep.subr.mxu0 0.0
    %5300 = vmatpush1.msra.mxu0 0.0
    %5301 = vmatprep.subr.mxu0 0.0
    %5302 = vmatpush1.msra.mxu0 %v4698
    %5303 = vmatprep.subr.mxu0 0.0
    %5304 = vmatpush2.msra.mxu0 0.0
    %5305 = vmatprep.subr.mxu0 0.0
    %5306 = vmatpush2.msra.mxu0 0.0
    %5307 = vmatprep.subr.mxu0 0.0
    %5308 = vmatpush2.msra.mxu0 0.0
    %5309 = vmatprep.subr.mxu0 0.0
    %5310 = vmatpush2.msra.mxu0 0.0
    %5311 = vmatprep.subr.mxu0 0.0
    %5312 = vmatpush2.msra.mxu0 0.0
    %5313 = vmatprep.subr.mxu0 0.0
    %5314 = vmatpush2.msra.mxu0 0.0
    %5315 = vmatprep.subr.mxu0 0.0
    %5316 = vmatpush2.msra.mxu0 0.0
    %5317 = vmatprep.subr.mxu0 0.0
    %5318 = vmatpush2.msra.mxu0 0.0
    %5319 = vmatprep.subr.mxu0 0.0
    %5320 = vmatpush2.msra.mxu0 0.0
    %5321 = vmatprep.subr.mxu0 0.0
    %5322 = vmatpush2.msra.mxu0 0.0
    %5323 = vmatprep.subr.mxu0 0.0
    %5324 = vmatpush2.msra.mxu0 0.0
    %5325 = vmatprep.subr.mxu0 0.0
    %5326 = vmatpush2.msra.mxu0 0.0
    %5327 = vmatprep.subr.mxu0 0.0
    %5328 = vmatpush2.msra.mxu0 0.0
    %5329 = vmatprep.subr.mxu0 0.0
    %5330 = vmatpush2.msra.mxu0 0.0
    %5331 = vmatprep.subr.mxu0 0.0
    %5332 = vmatpush2.msra.mxu0 0.0
    %5333 = vmatprep.subr.mxu0 0.0
    %5334 = vmatpush2.msra.mxu0 0.0
    %5335 = vmatprep.mubr.f32.mxu0 0.0
    %5336 = vmatmul.mubr.f32.gmra.mxu0 %v5269
    %v5337 = vpop.f32.mrf.mxu0
    %v5338 = vadd.f32 0.0, %v5337
    %v5339 = vpop.f32.mrf.mxu0
    %5340 = vdwg.mxu0
    %5341 = vrot.lane.b32.xlu0 %v4501, 120
    %v5342 = vpop.permute.xlu0 %5341
    %5343 = vrot.lane.b32.xlu0 %v4592, 120
    %v5344 = vpop.permute.xlu0 %5343
    %v5345 = vsel %vm163, %v5342, 0
    %v5347 = vsel %vm163, %v5344, 0
    %5349 = vmatprep.subr.mxu0 0.0
    %5350 = vmatpush1.xpose.msra.mxu0 0.0
    %5351 = vmatprep.subr.mxu0 0.0
    %5352 = vmatpush1.xpose.msra.mxu0 0.0
    %5353 = vmatprep.subr.mxu0 0.0
    %5354 = vmatpush1.xpose.msra.mxu0 0.0
    %5355 = vmatprep.subr.mxu0 0.0
    %5356 = vmatpush1.xpose.msra.mxu0 0.0
    %5357 = vmatprep.subr.mxu0 0.0
    %5358 = vmatpush1.xpose.msra.mxu0 0.0
    %5359 = vmatprep.subr.mxu0 0.0
    %5360 = vmatpush1.xpose.msra.mxu0 0.0
    %5361 = vmatprep.subr.mxu0 0.0
    %5362 = vmatpush1.xpose.msra.mxu0 0.0
    %5363 = vmatprep.subr.mxu0 0.0
    %5364 = vmatpush1.xpose.msra.mxu0 0.0
    %5365 = vmatprep.subr.mxu0 0.0
    %5366 = vmatpush1.xpose.msra.mxu0 0.0
    %5367 = vmatprep.subr.mxu0 0.0
    %5368 = vmatpush1.xpose.msra.mxu0 0.0
    %5369 = vmatprep.subr.mxu0 0.0
    %5370 = vmatpush1.xpose.msra.mxu0 0.0
    %5371 = vmatprep.subr.mxu0 0.0
    %5372 = vmatpush1.xpose.msra.mxu0 0.0
    %5373 = vmatprep.subr.mxu0 0.0
    %5374 = vmatpush1.xpose.msra.mxu0 0.0
    %5375 = vmatprep.subr.mxu0 0.0
    %5376 = vmatpush1.xpose.msra.mxu0 0.0
    %5377 = vmatprep.subr.mxu0 0.0
    %5378 = vmatpush1.xpose.msra.mxu0 0.0
    %5379 = vmatprep.subr.mxu0 0.0
    %5380 = vmatpush1.xpose.msra.mxu0 %v5347
    %5381 = vmatprep.subr.mxu0 0.0
    %5382 = vmatpush2.xpose.msra.mxu0 0.0
    %5383 = vmatprep.subr.mxu0 0.0
    %5384 = vmatpush2.xpose.msra.mxu0 0.0
    %5385 = vmatprep.subr.mxu0 0.0
    %5386 = vmatpush2.xpose.msra.mxu0 0.0
    %5387 = vmatprep.subr.mxu0 0.0
    %5388 = vmatpush2.xpose.msra.mxu0 0.0
    %5389 = vmatprep.subr.mxu0 0.0
    %5390 = vmatpush2.xpose.msra.mxu0 0.0
    %5391 = vmatprep.subr.mxu0 0.0
    %5392 = vmatpush2.xpose.msra.mxu0 0.0
    %5393 = vmatprep.subr.mxu0 0.0
    %5394 = vmatpush2.xpose.msra.mxu0 0.0
    %5395 = vmatprep.subr.mxu0 0.0
    %5396 = vmatpush2.xpose.msra.mxu0 0.0
    %5397 = vmatprep.subr.mxu0 0.0
    %5398 = vmatpush2.xpose.msra.mxu0 0.0
    %5399 = vmatprep.subr.mxu0 0.0
    %5400 = vmatpush2.xpose.msra.mxu0 0.0
    %5401 = vmatprep.subr.mxu0 0.0
    %5402 = vmatpush2.xpose.msra.mxu0 0.0
    %5403 = vmatprep.subr.mxu0 0.0
    %5404 = vmatpush2.xpose.msra.mxu0 0.0
    %5405 = vmatprep.subr.mxu0 0.0
    %5406 = vmatpush2.xpose.msra.mxu0 0.0
    %5407 = vmatprep.subr.mxu0 0.0
    %5408 = vmatpush2.xpose.msra.mxu0 0.0
    %5409 = vmatprep.subr.mxu0 0.0
    %5410 = vmatpush2.xpose.msra.mxu0 0.0
    %5411 = vmatprep.subr.mxu0 0.0
    %5412 = vmatpush2.xpose.msra.mxu0 0.0
    %5413 = vmatprep.mubr.f32.mxu0 0.0
    %5414 = vmatmul.mubr.f32.gmra.mxu0 %v5345
    %v5415 = vpop.f32.mrf.mxu0
    %v5416 = vadd.f32 %v610, %v5415
    %v5417 = vpop.f32.mrf.mxu0
    %5418 = vdwg.mxu0
    %5419 = vrot.lane.b32.xlu0 %v4506, 120
    %v5420 = vpop.permute.xlu0 %5419
    %5421 = vrot.lane.b32.xlu0 %v4597, 120
    %v5422 = vpop.permute.xlu0 %5421
    %v5423 = vsel %vm163, %v5420, 0
    %v5425 = vsel %vm163, %v5422, 0
    %5427 = vmatprep.subr.mxu0 0.0
    %5428 = vmatpush1.xpose.msra.mxu0 0.0
    %5429 = vmatprep.subr.mxu0 0.0
    %5430 = vmatpush1.xpose.msra.mxu0 0.0
    %5431 = vmatprep.subr.mxu0 0.0
    %5432 = vmatpush1.xpose.msra.mxu0 0.0
    %5433 = vmatprep.subr.mxu0 0.0
    %5434 = vmatpush1.xpose.msra.mxu0 0.0
    %5435 = vmatprep.subr.mxu0 0.0
    %5436 = vmatpush1.xpose.msra.mxu0 0.0
    %5437 = vmatprep.subr.mxu0 0.0
    %5438 = vmatpush1.xpose.msra.mxu0 0.0
    %5439 = vmatprep.subr.mxu0 0.0
    %5440 = vmatpush1.xpose.msra.mxu0 0.0
    %5441 = vmatprep.subr.mxu0 0.0
    %5442 = vmatpush1.xpose.msra.mxu0 0.0
    %5443 = vmatprep.subr.mxu0 0.0
    %5444 = vmatpush1.xpose.msra.mxu0 0.0
    %5445 = vmatprep.subr.mxu0 0.0
    %5446 = vmatpush1.xpose.msra.mxu0 0.0
    %5447 = vmatprep.subr.mxu0 0.0
    %5448 = vmatpush1.xpose.msra.mxu0 0.0
    %5449 = vmatprep.subr.mxu0 0.0
    %5450 = vmatpush1.xpose.msra.mxu0 0.0
    %5451 = vmatprep.subr.mxu0 0.0
    %5452 = vmatpush1.xpose.msra.mxu0 0.0
    %5453 = vmatprep.subr.mxu0 0.0
    %5454 = vmatpush1.xpose.msra.mxu0 0.0
    %5455 = vmatprep.subr.mxu0 0.0
    %5456 = vmatpush1.xpose.msra.mxu0 0.0
    %5457 = vmatprep.subr.mxu0 0.0
    %5458 = vmatpush1.xpose.msra.mxu0 %v5425
    %5459 = vmatprep.subr.mxu0 0.0
    %5460 = vmatpush2.xpose.msra.mxu0 0.0
    %5461 = vmatprep.subr.mxu0 0.0
    %5462 = vmatpush2.xpose.msra.mxu0 0.0
    %5463 = vmatprep.subr.mxu0 0.0
    %5464 = vmatpush2.xpose.msra.mxu0 0.0
    %5465 = vmatprep.subr.mxu0 0.0
    %5466 = vmatpush2.xpose.msra.mxu0 0.0
    %5467 = vmatprep.subr.mxu0 0.0
    %5468 = vmatpush2.xpose.msra.mxu0 0.0
    %5469 = vmatprep.subr.mxu0 0.0
    %5470 = vmatpush2.xpose.msra.mxu0 0.0
    %5471 = vmatprep.subr.mxu0 0.0
    %5472 = vmatpush2.xpose.msra.mxu0 0.0
    %5473 = vmatprep.subr.mxu0 0.0
    %5474 = vmatpush2.xpose.msra.mxu0 0.0
    %5475 = vmatprep.subr.mxu0 0.0
    %5476 = vmatpush2.xpose.msra.mxu0 0.0
    %5477 = vmatprep.subr.mxu0 0.0
    %5478 = vmatpush2.xpose.msra.mxu0 0.0
    %5479 = vmatprep.subr.mxu0 0.0
    %5480 = vmatpush2.xpose.msra.mxu0 0.0
    %5481 = vmatprep.subr.mxu0 0.0
    %5482 = vmatpush2.xpose.msra.mxu0 0.0
    %5483 = vmatprep.subr.mxu0 0.0
    %5484 = vmatpush2.xpose.msra.mxu0 0.0
    %5485 = vmatprep.subr.mxu0 0.0
    %5486 = vmatpush2.xpose.msra.mxu0 0.0
    %5487 = vmatprep.subr.mxu0 0.0
    %5488 = vmatpush2.xpose.msra.mxu0 0.0
    %5489 = vmatprep.subr.mxu0 0.0
    %5490 = vmatpush2.xpose.msra.mxu0 0.0
    %5491 = vmatprep.mubr.f32.mxu0 0.0
    %5492 = vmatmul.mubr.f32.gmra.mxu0 %v5423
    %v5493 = vpop.f32.mrf.mxu0
    %v5494 = vadd.f32 %v611, %v5493
    %v5495 = vpop.f32.mrf.mxu0
    %5496 = vdwg.mxu0
    %5497 = vrot.lane.b32.xlu0 %v4511, 120
    %v5498 = vpop.permute.xlu0 %5497
    %5499 = vrot.lane.b32.xlu0 %v4602, 120
    %v5500 = vpop.permute.xlu0 %5499
    %v5501 = vsel %vm163, %v5498, 0
    %v5503 = vsel %vm163, %v5500, 0
    %5505 = vmatprep.subr.mxu0 0.0
    %5506 = vmatpush1.xpose.msra.mxu0 0.0
    %5507 = vmatprep.subr.mxu0 0.0
    %5508 = vmatpush1.xpose.msra.mxu0 0.0
    %5509 = vmatprep.subr.mxu0 0.0
    %5510 = vmatpush1.xpose.msra.mxu0 0.0
    %5511 = vmatprep.subr.mxu0 0.0
    %5512 = vmatpush1.xpose.msra.mxu0 0.0
    %5513 = vmatprep.subr.mxu0 0.0
    %5514 = vmatpush1.xpose.msra.mxu0 0.0
    %5515 = vmatprep.subr.mxu0 0.0
    %5516 = vmatpush1.xpose.msra.mxu0 0.0
    %5517 = vmatprep.subr.mxu0 0.0
    %5518 = vmatpush1.xpose.msra.mxu0 0.0
    %5519 = vmatprep.subr.mxu0 0.0
    %5520 = vmatpush1.xpose.msra.mxu0 0.0
    %5521 = vmatprep.subr.mxu0 0.0
    %5522 = vmatpush1.xpose.msra.mxu0 0.0
    %5523 = vmatprep.subr.mxu0 0.0
    %5524 = vmatpush1.xpose.msra.mxu0 0.0
    %5525 = vmatprep.subr.mxu0 0.0
    %5526 = vmatpush1.xpose.msra.mxu0 0.0
    %5527 = vmatprep.subr.mxu0 0.0
    %5528 = vmatpush1.xpose.msra.mxu0 0.0
    %5529 = vmatprep.subr.mxu0 0.0
    %5530 = vmatpush1.xpose.msra.mxu0 0.0
    %5531 = vmatprep.subr.mxu0 0.0
    %5532 = vmatpush1.xpose.msra.mxu0 0.0
    %5533 = vmatprep.subr.mxu0 0.0
    %5534 = vmatpush1.xpose.msra.mxu0 0.0
    %5535 = vmatprep.subr.mxu0 0.0
    %5536 = vmatpush1.xpose.msra.mxu0 %v5503
    %5537 = vmatprep.subr.mxu0 0.0
    %5538 = vmatpush2.xpose.msra.mxu0 0.0
    %5539 = vmatprep.subr.mxu0 0.0
    %5540 = vmatpush2.xpose.msra.mxu0 0.0
    %5541 = vmatprep.subr.mxu0 0.0
    %5542 = vmatpush2.xpose.msra.mxu0 0.0
    %5543 = vmatprep.subr.mxu0 0.0
    %5544 = vmatpush2.xpose.msra.mxu0 0.0
    %5545 = vmatprep.subr.mxu0 0.0
    %5546 = vmatpush2.xpose.msra.mxu0 0.0
    %5547 = vmatprep.subr.mxu0 0.0
    %5548 = vmatpush2.xpose.msra.mxu0 0.0
    %5549 = vmatprep.subr.mxu0 0.0
    %5550 = vmatpush2.xpose.msra.mxu0 0.0
    %5551 = vmatprep.subr.mxu0 0.0
    %5552 = vmatpush2.xpose.msra.mxu0 0.0
    %5553 = vmatprep.subr.mxu0 0.0
    %5554 = vmatpush2.xpose.msra.mxu0 0.0
    %5555 = vmatprep.subr.mxu0 0.0
    %5556 = vmatpush2.xpose.msra.mxu0 0.0
    %5557 = vmatprep.subr.mxu0 0.0
    %5558 = vmatpush2.xpose.msra.mxu0 0.0
    %5559 = vmatprep.subr.mxu0 0.0
    %5560 = vmatpush2.xpose.msra.mxu0 0.0
    %5561 = vmatprep.subr.mxu0 0.0
    %5562 = vmatpush2.xpose.msra.mxu0 0.0
    %5563 = vmatprep.subr.mxu0 0.0
    %5564 = vmatpush2.xpose.msra.mxu0 0.0
    %5565 = vmatprep.subr.mxu0 0.0
    %5566 = vmatpush2.xpose.msra.mxu0 0.0
    %5567 = vmatprep.subr.mxu0 0.0
    %5568 = vmatpush2.xpose.msra.mxu0 0.0
    %5569 = vmatprep.mubr.f32.mxu0 0.0
    %5570 = vmatmul.mubr.f32.gmra.mxu0 %v5501
    %v5571 = vpop.f32.mrf.mxu0
    %v5572 = vadd.f32 %v612, %v5571
    %v5573 = vpop.f32.mrf.mxu0
    %5574 = vdwg.mxu0
    %5575 = vrot.lane.b32.xlu0 %v4516, 120
    %v5576 = vpop.permute.xlu0 %5575
    %5577 = vrot.lane.b32.xlu0 %v4607, 120
    %v5578 = vpop.permute.xlu0 %5577
    %v5579 = vsel %vm163, %v5576, 0
    %v5581 = vsel %vm163, %v5578, 0
    %5583 = vmatprep.subr.mxu0 0.0
    %5584 = vmatpush1.xpose.msra.mxu0 0.0
    %5585 = vmatprep.subr.mxu0 0.0
    %5586 = vmatpush1.xpose.msra.mxu0 0.0
    %5587 = vmatprep.subr.mxu0 0.0
    %5588 = vmatpush1.xpose.msra.mxu0 0.0
    %5589 = vmatprep.subr.mxu0 0.0
    %5590 = vmatpush1.xpose.msra.mxu0 0.0
    %5591 = vmatprep.subr.mxu0 0.0
    %5592 = vmatpush1.xpose.msra.mxu0 0.0
    %5593 = vmatprep.subr.mxu0 0.0
    %5594 = vmatpush1.xpose.msra.mxu0 0.0
    %5595 = vmatprep.subr.mxu0 0.0
    %5596 = vmatpush1.xpose.msra.mxu0 0.0
    %5597 = vmatprep.subr.mxu0 0.0
    %5598 = vmatpush1.xpose.msra.mxu0 0.0
    %5599 = vmatprep.subr.mxu0 0.0
    %5600 = vmatpush1.xpose.msra.mxu0 0.0
    %5601 = vmatprep.subr.mxu0 0.0
    %5602 = vmatpush1.xpose.msra.mxu0 0.0
    %5603 = vmatprep.subr.mxu0 0.0
    %5604 = vmatpush1.xpose.msra.mxu0 0.0
    %5605 = vmatprep.subr.mxu0 0.0
    %5606 = vmatpush1.xpose.msra.mxu0 0.0
    %5607 = vmatprep.subr.mxu0 0.0
    %5608 = vmatpush1.xpose.msra.mxu0 0.0
    %5609 = vmatprep.subr.mxu0 0.0
    %5610 = vmatpush1.xpose.msra.mxu0 0.0
    %5611 = vmatprep.subr.mxu0 0.0
    %5612 = vmatpush1.xpose.msra.mxu0 0.0
    %5613 = vmatprep.subr.mxu0 0.0
    %5614 = vmatpush1.xpose.msra.mxu0 %v5581
    %5615 = vmatprep.subr.mxu0 0.0
    %5616 = vmatpush2.xpose.msra.mxu0 0.0
    %5617 = vmatprep.subr.mxu0 0.0
    %5618 = vmatpush2.xpose.msra.mxu0 0.0
    %5619 = vmatprep.subr.mxu0 0.0
    %5620 = vmatpush2.xpose.msra.mxu0 0.0
    %5621 = vmatprep.subr.mxu0 0.0
    %5622 = vmatpush2.xpose.msra.mxu0 0.0
    %5623 = vmatprep.subr.mxu0 0.0
    %5624 = vmatpush2.xpose.msra.mxu0 0.0
    %5625 = vmatprep.subr.mxu0 0.0
    %5626 = vmatpush2.xpose.msra.mxu0 0.0
    %5627 = vmatprep.subr.mxu0 0.0
    %5628 = vmatpush2.xpose.msra.mxu0 0.0
    %5629 = vmatprep.subr.mxu0 0.0
    %5630 = vmatpush2.xpose.msra.mxu0 0.0
    %5631 = vmatprep.subr.mxu0 0.0
    %5632 = vmatpush2.xpose.msra.mxu0 0.0
    %5633 = vmatprep.subr.mxu0 0.0
    %5634 = vmatpush2.xpose.msra.mxu0 0.0
    %5635 = vmatprep.subr.mxu0 0.0
    %5636 = vmatpush2.xpose.msra.mxu0 0.0
    %5637 = vmatprep.subr.mxu0 0.0
    %5638 = vmatpush2.xpose.msra.mxu0 0.0
    %5639 = vmatprep.subr.mxu0 0.0
    %5640 = vmatpush2.xpose.msra.mxu0 0.0
    %5641 = vmatprep.subr.mxu0 0.0
    %5642 = vmatpush2.xpose.msra.mxu0 0.0
    %5643 = vmatprep.subr.mxu0 0.0
    %5644 = vmatpush2.xpose.msra.mxu0 0.0
    %5645 = vmatprep.subr.mxu0 0.0
    %5646 = vmatpush2.xpose.msra.mxu0 0.0
    %5647 = vmatprep.mubr.f32.mxu0 0.0
    %5648 = vmatmul.mubr.f32.gmra.mxu0 %v5579
    %v5649 = vpop.f32.mrf.mxu0
    %v5650 = vadd.f32 %v613, %v5649
    %v5651 = vpop.f32.mrf.mxu0
    %5652 = vdwg.mxu0
    %v5653 = vsel %vm163, %v5416, -inf
    %5654 = vmax.xlane.f32.xlu0 %v5653
    %v5655 = vpop.xlane.xlu0 %5654
    %v5656 = vsel %vm163, %v5494, -inf
    %5657 = vmax.xlane.f32.xlu0 %v5656
    %v5658 = vpop.xlane.xlu0 %5657
    %v5659 = vsel %vm163, %v5572, -inf
    %5660 = vmax.xlane.f32.xlu0 %v5659
    %v5661 = vpop.xlane.xlu0 %5660
    %v5662 = vsel %vm163, %v5650, -inf
    %5663 = vmax.xlane.f32.xlu0 %v5662
    %v5664 = vpop.xlane.xlu0 %5663
    %v5665 = vsub.f32 %v5416, %v5655
    %v5666 = vsub.f32 %v5494, %v5658
    %v5667 = vsub.f32 %v5572, %v5661
    %v5668 = vsub.f32 %v5650, %v5664
    %v5669 = vmul.f32 %v5665, 1.442695
    %v5670 = vpow.pop %v5669
    %v5671 = vmul.f32 %v5666, 1.442695
    %v5672 = vpow.pop %v5671
    %v5673 = vmul.f32 %v5667, 1.442695
    %v5674 = vpow.pop %v5673
    %v5675 = vmul.f32 %v5668, 1.442695
    %v5676 = vpow.pop %v5675
    %v5677 = vsel %vm163, %v5670, 0.0
    %5678 = vadd.xlane.f32.xlu0 %v5677
    %v5679 = vpop.xlane.xlu0 %5678
    %v5680 = vsel %vm163, %v5672, 0.0
    %5681 = vadd.xlane.f32.xlu0 %v5680
    %v5682 = vpop.xlane.xlu0 %5681
    %v5683 = vsel %vm163, %v5674, 0.0
    %5684 = vadd.xlane.f32.xlu0 %v5683
    %v5685 = vpop.xlane.xlu0 %5684
    %v5686 = vsel %vm163, %v5676, 0.0
    %5687 = vadd.xlane.f32.xlu0 %v5686
    %v5688 = vpop.xlane.xlu0 %5687
    %v5689 = vrcp.pop %v5679
    %v5690 = vrcp.pop %v5682
    %v5691 = vrcp.pop %v5685
    %v5692 = vrcp.pop %v5688
    %v5693 = vmul.f32 %v5670, %v5689
    %v5694 = vmul.f32 %v5672, %v5690
    %v5695 = vmul.f32 %v5674, %v5691
    %v5696 = vmul.f32 %v5676, %v5692
    %5698 = vrot.lane.b32.xlu0 %v4683, 120
    %v5699 = vpop.permute.xlu0 %5698
    %v5702 = vsel %vm163, %v5693, 0
    %5704 = vmatprep.subr.mxu0 0.0
    %5705 = vmatpush1.msra.mxu0 0.0
    %5706 = vmatprep.subr.mxu0 0.0
    %5707 = vmatpush1.msra.mxu0 0.0
    %5708 = vmatprep.subr.mxu0 0.0
    %5709 = vmatpush1.msra.mxu0 0.0
    %5710 = vmatprep.subr.mxu0 0.0
    %5711 = vmatpush1.msra.mxu0 0.0
    %5712 = vmatprep.subr.mxu0 0.0
    %5713 = vmatpush1.msra.mxu0 0.0
    %5714 = vmatprep.subr.mxu0 0.0
    %5715 = vmatpush1.msra.mxu0 0.0
    %5716 = vmatprep.subr.mxu0 0.0
    %5717 = vmatpush1.msra.mxu0 0.0
    %5718 = vmatprep.subr.mxu0 0.0
    %5719 = vmatpush1.msra.mxu0 0.0
    %5720 = vmatprep.subr.mxu0 0.0
    %5721 = vmatpush1.msra.mxu0 0.0
    %5722 = vmatprep.subr.mxu0 0.0
    %5723 = vmatpush1.msra.mxu0 0.0
    %5724 = vmatprep.subr.mxu0 0.0
    %5725 = vmatpush1.msra.mxu0 0.0
    %5726 = vmatprep.subr.mxu0 0.0
    %5727 = vmatpush1.msra.mxu0 0.0
    %5728 = vmatprep.subr.mxu0 0.0
    %5729 = vmatpush1.msra.mxu0 0.0
    %5730 = vmatprep.subr.mxu0 0.0
    %5731 = vmatpush1.msra.mxu0 0.0
    %5732 = vmatprep.subr.mxu0 0.0
    %5733 = vmatpush1.msra.mxu0 0.0
    %5734 = vmatprep.subr.mxu0 0.0
    %5735 = vmatpush1.msra.mxu0 %v5699
    %5736 = vmatprep.subr.mxu0 0.0
    %5737 = vmatpush2.msra.mxu0 0.0
    %5738 = vmatprep.subr.mxu0 0.0
    %5739 = vmatpush2.msra.mxu0 0.0
    %5740 = vmatprep.subr.mxu0 0.0
    %5741 = vmatpush2.msra.mxu0 0.0
    %5742 = vmatprep.subr.mxu0 0.0
    %5743 = vmatpush2.msra.mxu0 0.0
    %5744 = vmatprep.subr.mxu0 0.0
    %5745 = vmatpush2.msra.mxu0 0.0
    %5746 = vmatprep.subr.mxu0 0.0
    %5747 = vmatpush2.msra.mxu0 0.0
    %5748 = vmatprep.subr.mxu0 0.0
    %5749 = vmatpush2.msra.mxu0 0.0
    %5750 = vmatprep.subr.mxu0 0.0
    %5751 = vmatpush2.msra.mxu0 0.0
    %5752 = vmatprep.subr.mxu0 0.0
    %5753 = vmatpush2.msra.mxu0 0.0
    %5754 = vmatprep.subr.mxu0 0.0
    %5755 = vmatpush2.msra.mxu0 0.0
    %5756 = vmatprep.subr.mxu0 0.0
    %5757 = vmatpush2.msra.mxu0 0.0
    %5758 = vmatprep.subr.mxu0 0.0
    %5759 = vmatpush2.msra.mxu0 0.0
    %5760 = vmatprep.subr.mxu0 0.0
    %5761 = vmatpush2.msra.mxu0 0.0
    %5762 = vmatprep.subr.mxu0 0.0
    %5763 = vmatpush2.msra.mxu0 0.0
    %5764 = vmatprep.subr.mxu0 0.0
    %5765 = vmatpush2.msra.mxu0 0.0
    %5766 = vmatprep.subr.mxu0 0.0
    %5767 = vmatpush2.msra.mxu0 0.0
    %5768 = vmatprep.mubr.f32.mxu0 0.0
    %5769 = vmatmul.mubr.f32.gmra.mxu0 %v5702
    %v5770 = vpop.f32.mrf.mxu0
    %v5771 = vadd.f32 0.0, %v5770
    %v5772 = vpop.f32.mrf.mxu0
    %5773 = vdwg.mxu0
    %5775 = vrot.lane.b32.xlu0 %v4688, 120
    %v5776 = vpop.permute.xlu0 %5775
    %v5779 = vsel %vm163, %v5694, 0
    %5781 = vmatprep.subr.mxu0 0.0
    %5782 = vmatpush1.msra.mxu0 0.0
    %5783 = vmatprep.subr.mxu0 0.0
    %5784 = vmatpush1.msra.mxu0 0.0
    %5785 = vmatprep.subr.mxu0 0.0
    %5786 = vmatpush1.msra.mxu0 0.0
    %5787 = vmatprep.subr.mxu0 0.0
    %5788 = vmatpush1.msra.mxu0 0.0
    %5789 = vmatprep.subr.mxu0 0.0
    %5790 = vmatpush1.msra.mxu0 0.0
    %5791 = vmatprep.subr.mxu0 0.0
    %5792 = vmatpush1.msra.mxu0 0.0
    %5793 = vmatprep.subr.mxu0 0.0
    %5794 = vmatpush1.msra.mxu0 0.0
    %5795 = vmatprep.subr.mxu0 0.0
    %5796 = vmatpush1.msra.mxu0 0.0
    %5797 = vmatprep.subr.mxu0 0.0
    %5798 = vmatpush1.msra.mxu0 0.0
    %5799 = vmatprep.subr.mxu0 0.0
    %5800 = vmatpush1.msra.mxu0 0.0
    %5801 = vmatprep.subr.mxu0 0.0
    %5802 = vmatpush1.msra.mxu0 0.0
    %5803 = vmatprep.subr.mxu0 0.0
    %5804 = vmatpush1.msra.mxu0 0.0
    %5805 = vmatprep.subr.mxu0 0.0
    %5806 = vmatpush1.msra.mxu0 0.0
    %5807 = vmatprep.subr.mxu0 0.0
    %5808 = vmatpush1.msra.mxu0 0.0
    %5809 = vmatprep.subr.mxu0 0.0
    %5810 = vmatpush1.msra.mxu0 0.0
    %5811 = vmatprep.subr.mxu0 0.0
    %5812 = vmatpush1.msra.mxu0 %v5776
    %5813 = vmatprep.subr.mxu0 0.0
    %5814 = vmatpush2.msra.mxu0 0.0
    %5815 = vmatprep.subr.mxu0 0.0
    %5816 = vmatpush2.msra.mxu0 0.0
    %5817 = vmatprep.subr.mxu0 0.0
    %5818 = vmatpush2.msra.mxu0 0.0
    %5819 = vmatprep.subr.mxu0 0.0
    %5820 = vmatpush2.msra.mxu0 0.0
    %5821 = vmatprep.subr.mxu0 0.0
    %5822 = vmatpush2.msra.mxu0 0.0
    %5823 = vmatprep.subr.mxu0 0.0
    %5824 = vmatpush2.msra.mxu0 0.0
    %5825 = vmatprep.subr.mxu0 0.0
    %5826 = vmatpush2.msra.mxu0 0.0
    %5827 = vmatprep.subr.mxu0 0.0
    %5828 = vmatpush2.msra.mxu0 0.0
    %5829 = vmatprep.subr.mxu0 0.0
    %5830 = vmatpush2.msra.mxu0 0.0
    %5831 = vmatprep.subr.mxu0 0.0
    %5832 = vmatpush2.msra.mxu0 0.0
    %5833 = vmatprep.subr.mxu0 0.0
    %5834 = vmatpush2.msra.mxu0 0.0
    %5835 = vmatprep.subr.mxu0 0.0
    %5836 = vmatpush2.msra.mxu0 0.0
    %5837 = vmatprep.subr.mxu0 0.0
    %5838 = vmatpush2.msra.mxu0 0.0
    %5839 = vmatprep.subr.mxu0 0.0
    %5840 = vmatpush2.msra.mxu0 0.0
    %5841 = vmatprep.subr.mxu0 0.0
    %5842 = vmatpush2.msra.mxu0 0.0
    %5843 = vmatprep.subr.mxu0 0.0
    %5844 = vmatpush2.msra.mxu0 0.0
    %5845 = vmatprep.mubr.f32.mxu0 0.0
    %5846 = vmatmul.mubr.f32.gmra.mxu0 %v5779
    %v5847 = vpop.f32.mrf.mxu0
    %v5848 = vadd.f32 0.0, %v5847
    %v5849 = vpop.f32.mrf.mxu0
    %5850 = vdwg.mxu0
    %5852 = vrot.lane.b32.xlu0 %v4693, 120
    %v5853 = vpop.permute.xlu0 %5852
    %v5856 = vsel %vm163, %v5695, 0
    %5858 = vmatprep.subr.mxu0 0.0
    %5859 = vmatpush1.msra.mxu0 0.0
    %5860 = vmatprep.subr.mxu0 0.0
    %5861 = vmatpush1.msra.mxu0 0.0
    %5862 = vmatprep.subr.mxu0 0.0
    %5863 = vmatpush1.msra.mxu0 0.0
    %5864 = vmatprep.subr.mxu0 0.0
    %5865 = vmatpush1.msra.mxu0 0.0
    %5866 = vmatprep.subr.mxu0 0.0
    %5867 = vmatpush1.msra.mxu0 0.0
    %5868 = vmatprep.subr.mxu0 0.0
    %5869 = vmatpush1.msra.mxu0 0.0
    %5870 = vmatprep.subr.mxu0 0.0
    %5871 = vmatpush1.msra.mxu0 0.0
    %5872 = vmatprep.subr.mxu0 0.0
    %5873 = vmatpush1.msra.mxu0 0.0
    %5874 = vmatprep.subr.mxu0 0.0
    %5875 = vmatpush1.msra.mxu0 0.0
    %5876 = vmatprep.subr.mxu0 0.0
    %5877 = vmatpush1.msra.mxu0 0.0
    %5878 = vmatprep.subr.mxu0 0.0
    %5879 = vmatpush1.msra.mxu0 0.0
    %5880 = vmatprep.subr.mxu0 0.0
    %5881 = vmatpush1.msra.mxu0 0.0
    %5882 = vmatprep.subr.mxu0 0.0
    %5883 = vmatpush1.msra.mxu0 0.0
    %5884 = vmatprep.subr.mxu0 0.0
    %5885 = vmatpush1.msra.mxu0 0.0
    %5886 = vmatprep.subr.mxu0 0.0
    %5887 = vmatpush1.msra.mxu0 0.0
    %5888 = vmatprep.subr.mxu0 0.0
    %5889 = vmatpush1.msra.mxu0 %v5853
    %5890 = vmatprep.subr.mxu0 0.0
    %5891 = vmatpush2.msra.mxu0 0.0
    %5892 = vmatprep.subr.mxu0 0.0
    %5893 = vmatpush2.msra.mxu0 0.0
    %5894 = vmatprep.subr.mxu0 0.0
    %5895 = vmatpush2.msra.mxu0 0.0
    %5896 = vmatprep.subr.mxu0 0.0
    %5897 = vmatpush2.msra.mxu0 0.0
    %5898 = vmatprep.subr.mxu0 0.0
    %5899 = vmatpush2.msra.mxu0 0.0
    %5900 = vmatprep.subr.mxu0 0.0
    %5901 = vmatpush2.msra.mxu0 0.0
    %5902 = vmatprep.subr.mxu0 0.0
    %5903 = vmatpush2.msra.mxu0 0.0
    %5904 = vmatprep.subr.mxu0 0.0
    %5905 = vmatpush2.msra.mxu0 0.0
    %5906 = vmatprep.subr.mxu0 0.0
    %5907 = vmatpush2.msra.mxu0 0.0
    %5908 = vmatprep.subr.mxu0 0.0
    %5909 = vmatpush2.msra.mxu0 0.0
    %5910 = vmatprep.subr.mxu0 0.0
    %5911 = vmatpush2.msra.mxu0 0.0
    %5912 = vmatprep.subr.mxu0 0.0
    %5913 = vmatpush2.msra.mxu0 0.0
    %5914 = vmatprep.subr.mxu0 0.0
    %5915 = vmatpush2.msra.mxu0 0.0
    %5916 = vmatprep.subr.mxu0 0.0
    %5917 = vmatpush2.msra.mxu0 0.0
    %5918 = vmatprep.subr.mxu0 0.0
    %5919 = vmatpush2.msra.mxu0 0.0
    %5920 = vmatprep.subr.mxu0 0.0
    %5921 = vmatpush2.msra.mxu0 0.0
    %5922 = vmatprep.mubr.f32.mxu0 0.0
    %5923 = vmatmul.mubr.f32.gmra.mxu0 %v5856
    %v5924 = vpop.f32.mrf.mxu0
    %v5925 = vadd.f32 0.0, %v5924
    %v5926 = vpop.f32.mrf.mxu0
    %5927 = vdwg.mxu0
    %5929 = vrot.lane.b32.xlu0 %v4698, 120
    %v5930 = vpop.permute.xlu0 %5929
    %v5933 = vsel %vm163, %v5696, 0
    %5935 = vmatprep.subr.mxu0 0.0
    %5936 = vmatpush1.msra.mxu0 0.0
    %5937 = vmatprep.subr.mxu0 0.0
    %5938 = vmatpush1.msra.mxu0 0.0
    %5939 = vmatprep.subr.mxu0 0.0
    %5940 = vmatpush1.msra.mxu0 0.0
    %5941 = vmatprep.subr.mxu0 0.0
    %5942 = vmatpush1.msra.mxu0 0.0
    %5943 = vmatprep.subr.mxu0 0.0
    %5944 = vmatpush1.msra.mxu0 0.0
    %5945 = vmatprep.subr.mxu0 0.0
    %5946 = vmatpush1.msra.mxu0 0.0
    %5947 = vmatprep.subr.mxu0 0.0
    %5948 = vmatpush1.msra.mxu0 0.0
    %5949 = vmatprep.subr.mxu0 0.0
    %5950 = vmatpush1.msra.mxu0 0.0
    %5951 = vmatprep.subr.mxu0 0.0
    %5952 = vmatpush1.msra.mxu0 0.0
    %5953 = vmatprep.subr.mxu0 0.0
    %5954 = vmatpush1.msra.mxu0 0.0
    %5955 = vmatprep.subr.mxu0 0.0
    %5956 = vmatpush1.msra.mxu0 0.0
    %5957 = vmatprep.subr.mxu0 0.0
    %5958 = vmatpush1.msra.mxu0 0.0
    %5959 = vmatprep.subr.mxu0 0.0
    %5960 = vmatpush1.msra.mxu0 0.0
    %5961 = vmatprep.subr.mxu0 0.0
    %5962 = vmatpush1.msra.mxu0 0.0
    %5963 = vmatprep.subr.mxu0 0.0
    %5964 = vmatpush1.msra.mxu0 0.0
    %5965 = vmatprep.subr.mxu0 0.0
    %5966 = vmatpush1.msra.mxu0 %v5930
    %5967 = vmatprep.subr.mxu0 0.0
    %5968 = vmatpush2.msra.mxu0 0.0
    %5969 = vmatprep.subr.mxu0 0.0
    %5970 = vmatpush2.msra.mxu0 0.0
    %5971 = vmatprep.subr.mxu0 0.0
    %5972 = vmatpush2.msra.mxu0 0.0
    %5973 = vmatprep.subr.mxu0 0.0
    %5974 = vmatpush2.msra.mxu0 0.0
    %5975 = vmatprep.subr.mxu0 0.0
    %5976 = vmatpush2.msra.mxu0 0.0
    %5977 = vmatprep.subr.mxu0 0.0
    %5978 = vmatpush2.msra.mxu0 0.0
    %5979 = vmatprep.subr.mxu0 0.0
    %5980 = vmatpush2.msra.mxu0 0.0
    %5981 = vmatprep.subr.mxu0 0.0
    %5982 = vmatpush2.msra.mxu0 0.0
    %5983 = vmatprep.subr.mxu0 0.0
    %5984 = vmatpush2.msra.mxu0 0.0
    %5985 = vmatprep.subr.mxu0 0.0
    %5986 = vmatpush2.msra.mxu0 0.0
    %5987 = vmatprep.subr.mxu0 0.0
    %5988 = vmatpush2.msra.mxu0 0.0
    %5989 = vmatprep.subr.mxu0 0.0
    %5990 = vmatpush2.msra.mxu0 0.0
    %5991 = vmatprep.subr.mxu0 0.0
    %5992 = vmatpush2.msra.mxu0 0.0
    %5993 = vmatprep.subr.mxu0 0.0
    %5994 = vmatpush2.msra.mxu0 0.0
    %5995 = vmatprep.subr.mxu0 0.0
    %5996 = vmatpush2.msra.mxu0 0.0
    %5997 = vmatprep.subr.mxu0 0.0
    %5998 = vmatpush2.msra.mxu0 0.0
    %5999 = vmatprep.mubr.f32.mxu0 0.0
    %6000 = vmatmul.mubr.f32.gmra.mxu0 %v5933
    %v6001 = vpop.f32.mrf.mxu0
    %v6002 = vadd.f32 0.0, %v6001
    %v6003 = vpop.f32.mrf.mxu0
    %6004 = vdwg.mxu0
    %v6006 = vsel %vm163, %v5771, 0
    %v6009 = vsel %vm163, %v5848, 0
    %v6012 = vsel %vm163, %v5925, 0
    %v6015 = vsel %vm163, %v6002, 0
    %6017 = vmatprep.subr.mxu0 0.0
    %6018 = vmatpush1.msra.mxu0 0.0
    %6019 = vmatprep.subr.mxu0 0.0
    %6020 = vmatpush1.msra.mxu0 0.0
    %6021 = vmatprep.subr.mxu0 0.0
    %6022 = vmatpush1.msra.mxu0 0.0
    %6023 = vmatprep.subr.mxu0 0.0
    %6024 = vmatpush1.msra.mxu0 0.0
    %6025 = vmatprep.subr.mxu0 0.0
    %6026 = vmatpush1.msra.mxu0 0.0
    %6027 = vmatprep.subr.mxu0 0.0
    %6028 = vmatpush1.msra.mxu0 0.0
    %6029 = vmatprep.subr.mxu0 0.0
    %6030 = vmatpush1.msra.mxu0 0.0
    %6031 = vmatprep.subr.mxu0 0.0
    %6032 = vmatpush1.msra.mxu0 0.0
    %6033 = vmatprep.subr.mxu0 0.0
    %6034 = vmatpush1.msra.mxu0 0.0
    %6035 = vmatprep.subr.mxu0 0.0
    %6036 = vmatpush1.msra.mxu0 0.0
    %6037 = vmatprep.subr.mxu0 0.0
    %6038 = vmatpush1.msra.mxu0 0.0
    %6039 = vmatprep.subr.mxu0 0.0
    %6040 = vmatpush1.msra.mxu0 0.0
    %6041 = vmatprep.subr.mxu0 0.0
    %6042 = vmatpush1.msra.mxu0 0.0
    %6043 = vmatprep.subr.mxu0 0.0
    %6044 = vmatpush1.msra.mxu0 0.0
    %6045 = vmatprep.subr.mxu0 0.0
    %6046 = vmatpush1.msra.mxu0 0.0
    %6047 = vmatprep.subr.mxu0 0.0
    %6048 = vmatpush1.msra.mxu0 %v4385
    %6049 = vmatprep.subr.mxu0 0.0
    %6050 = vmatpush2.msra.mxu0 0.0
    %6051 = vmatprep.subr.mxu0 0.0
    %6052 = vmatpush2.msra.mxu0 0.0
    %6053 = vmatprep.subr.mxu0 0.0
    %6054 = vmatpush2.msra.mxu0 0.0
    %6055 = vmatprep.subr.mxu0 0.0
    %6056 = vmatpush2.msra.mxu0 0.0
    %6057 = vmatprep.subr.mxu0 0.0
    %6058 = vmatpush2.msra.mxu0 0.0
    %6059 = vmatprep.subr.mxu0 0.0
    %6060 = vmatpush2.msra.mxu0 0.0
    %6061 = vmatprep.subr.mxu0 0.0
    %6062 = vmatpush2.msra.mxu0 0.0
    %6063 = vmatprep.subr.mxu0 0.0
    %6064 = vmatpush2.msra.mxu0 0.0
    %6065 = vmatprep.subr.mxu0 0.0
    %6066 = vmatpush2.msra.mxu0 0.0
    %6067 = vmatprep.subr.mxu0 0.0
    %6068 = vmatpush2.msra.mxu0 0.0
    %6069 = vmatprep.subr.mxu0 0.0
    %6070 = vmatpush2.msra.mxu0 0.0
    %6071 = vmatprep.subr.mxu0 0.0
    %6072 = vmatpush2.msra.mxu0 0.0
    %6073 = vmatprep.subr.mxu0 0.0
    %6074 = vmatpush2.msra.mxu0 0.0
    %6075 = vmatprep.subr.mxu0 0.0
    %6076 = vmatpush2.msra.mxu0 0.0
    %6077 = vmatprep.subr.mxu0 0.0
    %6078 = vmatpush2.msra.mxu0 0.0
    %6079 = vmatprep.subr.mxu0 0.0
    %6080 = vmatpush2.msra.mxu0 0.0
    %6081 = vmatprep.mubr.f32.mxu0 0.0
    %6082 = vmatmul.mubr.f32.gmra.mxu0 %v6006
    %v6083 = vpop.f32.mrf.mxu0
    %v6084 = vadd.f32 0.0, %v6083
    %v6085 = vpop.f32.mrf.mxu0
    %6086 = vmatprep.mubr.f32.mxu0 0.0
    %6087 = vmatmul.mubr.f32.gmra.mxu0 %v6009
    %v6088 = vpop.f32.mrf.mxu0
    %v6089 = vadd.f32 0.0, %v6088
    %v6090 = vpop.f32.mrf.mxu0
    %6091 = vmatprep.mubr.f32.mxu0 0.0
    %6092 = vmatmul.mubr.f32.gmra.mxu0 %v6012
    %v6093 = vpop.f32.mrf.mxu0
    %v6094 = vadd.f32 0.0, %v6093
    %v6095 = vpop.f32.mrf.mxu0
    %6096 = vmatprep.mubr.f32.mxu0 0.0
    %6097 = vmatmul.mubr.f32.gmra.mxu0 %v6015
    %v6098 = vpop.f32.mrf.mxu0
    %v6099 = vadd.f32 0.0, %v6098
    %v6100 = vpop.f32.mrf.mxu0
    %6101 = vdwg.mxu0
    %v6103 = vsel %vm163, %v5119, 0
    %v6106 = vsel %vm163, %v5192, 0
    %v6109 = vsel %vm163, %v5265, 0
    %v6112 = vsel %vm163, %v5338, 0
    %6114 = vmatprep.subr.mxu0 0.0
    %6115 = vmatpush1.msra.mxu0 0.0
    %6116 = vmatprep.subr.mxu0 0.0
    %6117 = vmatpush1.msra.mxu0 0.0
    %6118 = vmatprep.subr.mxu0 0.0
    %6119 = vmatpush1.msra.mxu0 0.0
    %6120 = vmatprep.subr.mxu0 0.0
    %6121 = vmatpush1.msra.mxu0 0.0
    %6122 = vmatprep.subr.mxu0 0.0
    %6123 = vmatpush1.msra.mxu0 0.0
    %6124 = vmatprep.subr.mxu0 0.0
    %6125 = vmatpush1.msra.mxu0 0.0
    %6126 = vmatprep.subr.mxu0 0.0
    %6127 = vmatpush1.msra.mxu0 0.0
    %6128 = vmatprep.subr.mxu0 0.0
    %6129 = vmatpush1.msra.mxu0 0.0
    %6130 = vmatprep.subr.mxu0 0.0
    %6131 = vmatpush1.msra.mxu0 0.0
    %6132 = vmatprep.subr.mxu0 0.0
    %6133 = vmatpush1.msra.mxu0 0.0
    %6134 = vmatprep.subr.mxu0 0.0
    %6135 = vmatpush1.msra.mxu0 0.0
    %6136 = vmatprep.subr.mxu0 0.0
    %6137 = vmatpush1.msra.mxu0 0.0
    %6138 = vmatprep.subr.mxu0 0.0
    %6139 = vmatpush1.msra.mxu0 0.0
    %6140 = vmatprep.subr.mxu0 0.0
    %6141 = vmatpush1.msra.mxu0 0.0
    %6142 = vmatprep.subr.mxu0 0.0
    %6143 = vmatpush1.msra.mxu0 0.0
    %6144 = vmatprep.subr.mxu0 0.0
    %6145 = vmatpush1.msra.mxu0 %v4384
    %6146 = vmatprep.subr.mxu0 0.0
    %6147 = vmatpush2.msra.mxu0 0.0
    %6148 = vmatprep.subr.mxu0 0.0
    %6149 = vmatpush2.msra.mxu0 0.0
    %6150 = vmatprep.subr.mxu0 0.0
    %6151 = vmatpush2.msra.mxu0 0.0
    %6152 = vmatprep.subr.mxu0 0.0
    %6153 = vmatpush2.msra.mxu0 0.0
    %6154 = vmatprep.subr.mxu0 0.0
    %6155 = vmatpush2.msra.mxu0 0.0
    %6156 = vmatprep.subr.mxu0 0.0
    %6157 = vmatpush2.msra.mxu0 0.0
    %6158 = vmatprep.subr.mxu0 0.0
    %6159 = vmatpush2.msra.mxu0 0.0
    %6160 = vmatprep.subr.mxu0 0.0
    %6161 = vmatpush2.msra.mxu0 0.0
    %6162 = vmatprep.subr.mxu0 0.0
    %6163 = vmatpush2.msra.mxu0 0.0
    %6164 = vmatprep.subr.mxu0 0.0
    %6165 = vmatpush2.msra.mxu0 0.0
    %6166 = vmatprep.subr.mxu0 0.0
    %6167 = vmatpush2.msra.mxu0 0.0
    %6168 = vmatprep.subr.mxu0 0.0
    %6169 = vmatpush2.msra.mxu0 0.0
    %6170 = vmatprep.subr.mxu0 0.0
    %6171 = vmatpush2.msra.mxu0 0.0
    %6172 = vmatprep.subr.mxu0 0.0
    %6173 = vmatpush2.msra.mxu0 0.0
    %6174 = vmatprep.subr.mxu0 0.0
    %6175 = vmatpush2.msra.mxu0 0.0
    %6176 = vmatprep.subr.mxu0 0.0
    %6177 = vmatpush2.msra.mxu0 0.0
    %6178 = vmatprep.mubr.f32.mxu0 0.0
    %6179 = vmatmul.mubr.f32.gmra.mxu0 %v6103
    %v6180 = vpop.f32.mrf.mxu0
    %v6181 = vadd.f32 %v6084, %v6180
    %v6182 = vpop.f32.mrf.mxu0
    %6183 = vmatprep.mubr.f32.mxu0 0.0
    %6184 = vmatmul.mubr.f32.gmra.mxu0 %v6106
    %v6185 = vpop.f32.mrf.mxu0
    %v6186 = vadd.f32 %v6089, %v6185
    %v6187 = vpop.f32.mrf.mxu0
    %6188 = vmatprep.mubr.f32.mxu0 0.0
    %6189 = vmatmul.mubr.f32.gmra.mxu0 %v6109
    %v6190 = vpop.f32.mrf.mxu0
    %v6191 = vadd.f32 %v6094, %v6190
    %v6192 = vpop.f32.mrf.mxu0
    %6193 = vmatprep.mubr.f32.mxu0 0.0
    %6194 = vmatmul.mubr.f32.gmra.mxu0 %v6112
    %v6195 = vpop.f32.mrf.mxu0
    %v6196 = vadd.f32 %v6099, %v6195
    %v6197 = vpop.f32.mrf.mxu0
    %6198 = vdwg.mxu0
    %6199 = vrot.lane.b32.xlu0 %v4501, 112
    %v6200 = vpop.permute.xlu0 %6199
    %6201 = vrot.lane.b32.xlu0 %v4592, 112
    %v6202 = vpop.permute.xlu0 %6201
    %v6203 = vsel %vm163, %v6200, 0
    %v6205 = vsel %vm163, %v6202, 0
    %6207 = vmatprep.subr.mxu0 0.0
    %6208 = vmatpush1.xpose.msra.mxu0 0.0
    %6209 = vmatprep.subr.mxu0 0.0
    %6210 = vmatpush1.xpose.msra.mxu0 0.0
    %6211 = vmatprep.subr.mxu0 0.0
    %6212 = vmatpush1.xpose.msra.mxu0 0.0
    %6213 = vmatprep.subr.mxu0 0.0
    %6214 = vmatpush1.xpose.msra.mxu0 0.0
    %6215 = vmatprep.subr.mxu0 0.0
    %6216 = vmatpush1.xpose.msra.mxu0 0.0
    %6217 = vmatprep.subr.mxu0 0.0
    %6218 = vmatpush1.xpose.msra.mxu0 0.0
    %6219 = vmatprep.subr.mxu0 0.0
    %6220 = vmatpush1.xpose.msra.mxu0 0.0
    %6221 = vmatprep.subr.mxu0 0.0
    %6222 = vmatpush1.xpose.msra.mxu0 0.0
    %6223 = vmatprep.subr.mxu0 0.0
    %6224 = vmatpush1.xpose.msra.mxu0 0.0
    %6225 = vmatprep.subr.mxu0 0.0
    %6226 = vmatpush1.xpose.msra.mxu0 0.0
    %6227 = vmatprep.subr.mxu0 0.0
    %6228 = vmatpush1.xpose.msra.mxu0 0.0
    %6229 = vmatprep.subr.mxu0 0.0
    %6230 = vmatpush1.xpose.msra.mxu0 0.0
    %6231 = vmatprep.subr.mxu0 0.0
    %6232 = vmatpush1.xpose.msra.mxu0 0.0
    %6233 = vmatprep.subr.mxu0 0.0
    %6234 = vmatpush1.xpose.msra.mxu0 0.0
    %6235 = vmatprep.subr.mxu0 0.0
    %6236 = vmatpush1.xpose.msra.mxu0 0.0
    %6237 = vmatprep.subr.mxu0 0.0
    %6238 = vmatpush1.xpose.msra.mxu0 %v6205
    %6239 = vmatprep.subr.mxu0 0.0
    %6240 = vmatpush2.xpose.msra.mxu0 0.0
    %6241 = vmatprep.subr.mxu0 0.0
    %6242 = vmatpush2.xpose.msra.mxu0 0.0
    %6243 = vmatprep.subr.mxu0 0.0
    %6244 = vmatpush2.xpose.msra.mxu0 0.0
    %6245 = vmatprep.subr.mxu0 0.0
    %6246 = vmatpush2.xpose.msra.mxu0 0.0
    %6247 = vmatprep.subr.mxu0 0.0
    %6248 = vmatpush2.xpose.msra.mxu0 0.0
    %6249 = vmatprep.subr.mxu0 0.0
    %6250 = vmatpush2.xpose.msra.mxu0 0.0
    %6251 = vmatprep.subr.mxu0 0.0
    %6252 = vmatpush2.xpose.msra.mxu0 0.0
    %6253 = vmatprep.subr.mxu0 0.0
    %6254 = vmatpush2.xpose.msra.mxu0 0.0
    %6255 = vmatprep.subr.mxu0 0.0
    %6256 = vmatpush2.xpose.msra.mxu0 0.0
    %6257 = vmatprep.subr.mxu0 0.0
    %6258 = vmatpush2.xpose.msra.mxu0 0.0
    %6259 = vmatprep.subr.mxu0 0.0
    %6260 = vmatpush2.xpose.msra.mxu0 0.0
    %6261 = vmatprep.subr.mxu0 0.0
    %6262 = vmatpush2.xpose.msra.mxu0 0.0
    %6263 = vmatprep.subr.mxu0 0.0
    %6264 = vmatpush2.xpose.msra.mxu0 0.0
    %6265 = vmatprep.subr.mxu0 0.0
    %6266 = vmatpush2.xpose.msra.mxu0 0.0
    %6267 = vmatprep.subr.mxu0 0.0
    %6268 = vmatpush2.xpose.msra.mxu0 0.0
    %6269 = vmatprep.subr.mxu0 0.0
    %6270 = vmatpush2.xpose.msra.mxu0 0.0
    %6271 = vmatprep.mubr.f32.mxu0 0.0
    %6272 = vmatmul.mubr.f32.gmra.mxu0 %v6203
    %v6273 = vpop.f32.mrf.mxu0
    %v6274 = vadd.f32 %v610, %v6273
    %v6275 = vpop.f32.mrf.mxu0
    %6276 = vdwg.mxu0
    %6277 = vrot.lane.b32.xlu0 %v4506, 112
    %v6278 = vpop.permute.xlu0 %6277
    %6279 = vrot.lane.b32.xlu0 %v4597, 112
    %v6280 = vpop.permute.xlu0 %6279
    %v6281 = vsel %vm163, %v6278, 0
    %v6283 = vsel %vm163, %v6280, 0
    %6285 = vmatprep.subr.mxu0 0.0
    %6286 = vmatpush1.xpose.msra.mxu0 0.0
    %6287 = vmatprep.subr.mxu0 0.0
    %6288 = vmatpush1.xpose.msra.mxu0 0.0
    %6289 = vmatprep.subr.mxu0 0.0
    %6290 = vmatpush1.xpose.msra.mxu0 0.0
    %6291 = vmatprep.subr.mxu0 0.0
    %6292 = vmatpush1.xpose.msra.mxu0 0.0
    %6293 = vmatprep.subr.mxu0 0.0
    %6294 = vmatpush1.xpose.msra.mxu0 0.0
    %6295 = vmatprep.subr.mxu0 0.0
    %6296 = vmatpush1.xpose.msra.mxu0 0.0
    %6297 = vmatprep.subr.mxu0 0.0
    %6298 = vmatpush1.xpose.msra.mxu0 0.0
    %6299 = vmatprep.subr.mxu0 0.0
    %6300 = vmatpush1.xpose.msra.mxu0 0.0
    %6301 = vmatprep.subr.mxu0 0.0
    %6302 = vmatpush1.xpose.msra.mxu0 0.0
    %6303 = vmatprep.subr.mxu0 0.0
    %6304 = vmatpush1.xpose.msra.mxu0 0.0
    %6305 = vmatprep.subr.mxu0 0.0
    %6306 = vmatpush1.xpose.msra.mxu0 0.0
    %6307 = vmatprep.subr.mxu0 0.0
    %6308 = vmatpush1.xpose.msra.mxu0 0.0
    %6309 = vmatprep.subr.mxu0 0.0
    %6310 = vmatpush1.xpose.msra.mxu0 0.0
    %6311 = vmatprep.subr.mxu0 0.0
    %6312 = vmatpush1.xpose.msra.mxu0 0.0
    %6313 = vmatprep.subr.mxu0 0.0
    %6314 = vmatpush1.xpose.msra.mxu0 0.0
    %6315 = vmatprep.subr.mxu0 0.0
    %6316 = vmatpush1.xpose.msra.mxu0 %v6283
    %6317 = vmatprep.subr.mxu0 0.0
    %6318 = vmatpush2.xpose.msra.mxu0 0.0
    %6319 = vmatprep.subr.mxu0 0.0
    %6320 = vmatpush2.xpose.msra.mxu0 0.0
    %6321 = vmatprep.subr.mxu0 0.0
    %6322 = vmatpush2.xpose.msra.mxu0 0.0
    %6323 = vmatprep.subr.mxu0 0.0
    %6324 = vmatpush2.xpose.msra.mxu0 0.0
    %6325 = vmatprep.subr.mxu0 0.0
    %6326 = vmatpush2.xpose.msra.mxu0 0.0
    %6327 = vmatprep.subr.mxu0 0.0
    %6328 = vmatpush2.xpose.msra.mxu0 0.0
    %6329 = vmatprep.subr.mxu0 0.0
    %6330 = vmatpush2.xpose.msra.mxu0 0.0
    %6331 = vmatprep.subr.mxu0 0.0
    %6332 = vmatpush2.xpose.msra.mxu0 0.0
    %6333 = vmatprep.subr.mxu0 0.0
    %6334 = vmatpush2.xpose.msra.mxu0 0.0
    %6335 = vmatprep.subr.mxu0 0.0
    %6336 = vmatpush2.xpose.msra.mxu0 0.0
    %6337 = vmatprep.subr.mxu0 0.0
    %6338 = vmatpush2.xpose.msra.mxu0 0.0
    %6339 = vmatprep.subr.mxu0 0.0
    %6340 = vmatpush2.xpose.msra.mxu0 0.0
    %6341 = vmatprep.subr.mxu0 0.0
    %6342 = vmatpush2.xpose.msra.mxu0 0.0
    %6343 = vmatprep.subr.mxu0 0.0
    %6344 = vmatpush2.xpose.msra.mxu0 0.0
    %6345 = vmatprep.subr.mxu0 0.0
    %6346 = vmatpush2.xpose.msra.mxu0 0.0
    %6347 = vmatprep.subr.mxu0 0.0
    %6348 = vmatpush2.xpose.msra.mxu0 0.0
    %6349 = vmatprep.mubr.f32.mxu0 0.0
    %6350 = vmatmul.mubr.f32.gmra.mxu0 %v6281
    %v6351 = vpop.f32.mrf.mxu0
    %v6352 = vadd.f32 %v611, %v6351
    %v6353 = vpop.f32.mrf.mxu0
    %6354 = vdwg.mxu0
    %6355 = vrot.lane.b32.xlu0 %v4511, 112
    %v6356 = vpop.permute.xlu0 %6355
    %6357 = vrot.lane.b32.xlu0 %v4602, 112
    %v6358 = vpop.permute.xlu0 %6357
    %v6359 = vsel %vm163, %v6356, 0
    %v6361 = vsel %vm163, %v6358, 0
    %6363 = vmatprep.subr.mxu0 0.0
    %6364 = vmatpush1.xpose.msra.mxu0 0.0
    %6365 = vmatprep.subr.mxu0 0.0
    %6366 = vmatpush1.xpose.msra.mxu0 0.0
    %6367 = vmatprep.subr.mxu0 0.0
    %6368 = vmatpush1.xpose.msra.mxu0 0.0
    %6369 = vmatprep.subr.mxu0 0.0
    %6370 = vmatpush1.xpose.msra.mxu0 0.0
    %6371 = vmatprep.subr.mxu0 0.0
    %6372 = vmatpush1.xpose.msra.mxu0 0.0
    %6373 = vmatprep.subr.mxu0 0.0
    %6374 = vmatpush1.xpose.msra.mxu0 0.0
    %6375 = vmatprep.subr.mxu0 0.0
    %6376 = vmatpush1.xpose.msra.mxu0 0.0
    %6377 = vmatprep.subr.mxu0 0.0
    %6378 = vmatpush1.xpose.msra.mxu0 0.0
    %6379 = vmatprep.subr.mxu0 0.0
    %6380 = vmatpush1.xpose.msra.mxu0 0.0
    %6381 = vmatprep.subr.mxu0 0.0
    %6382 = vmatpush1.xpose.msra.mxu0 0.0
    %6383 = vmatprep.subr.mxu0 0.0
    %6384 = vmatpush1.xpose.msra.mxu0 0.0
    %6385 = vmatprep.subr.mxu0 0.0
    %6386 = vmatpush1.xpose.msra.mxu0 0.0
    %6387 = vmatprep.subr.mxu0 0.0
    %6388 = vmatpush1.xpose.msra.mxu0 0.0
    %6389 = vmatprep.subr.mxu0 0.0
    %6390 = vmatpush1.xpose.msra.mxu0 0.0
    %6391 = vmatprep.subr.mxu0 0.0
    %6392 = vmatpush1.xpose.msra.mxu0 0.0
    %6393 = vmatprep.subr.mxu0 0.0
    %6394 = vmatpush1.xpose.msra.mxu0 %v6361
    %6395 = vmatprep.subr.mxu0 0.0
    %6396 = vmatpush2.xpose.msra.mxu0 0.0
    %6397 = vmatprep.subr.mxu0 0.0
    %6398 = vmatpush2.xpose.msra.mxu0 0.0
    %6399 = vmatprep.subr.mxu0 0.0
    %6400 = vmatpush2.xpose.msra.mxu0 0.0
    %6401 = vmatprep.subr.mxu0 0.0
    %6402 = vmatpush2.xpose.msra.mxu0 0.0
    %6403 = vmatprep.subr.mxu0 0.0
    %6404 = vmatpush2.xpose.msra.mxu0 0.0
    %6405 = vmatprep.subr.mxu0 0.0
    %6406 = vmatpush2.xpose.msra.mxu0 0.0
    %6407 = vmatprep.subr.mxu0 0.0
    %6408 = vmatpush2.xpose.msra.mxu0 0.0
    %6409 = vmatprep.subr.mxu0 0.0
    %6410 = vmatpush2.xpose.msra.mxu0 0.0
    %6411 = vmatprep.subr.mxu0 0.0
    %6412 = vmatpush2.xpose.msra.mxu0 0.0
    %6413 = vmatprep.subr.mxu0 0.0
    %6414 = vmatpush2.xpose.msra.mxu0 0.0
    %6415 = vmatprep.subr.mxu0 0.0
    %6416 = vmatpush2.xpose.msra.mxu0 0.0
    %6417 = vmatprep.subr.mxu0 0.0
    %6418 = vmatpush2.xpose.msra.mxu0 0.0
    %6419 = vmatprep.subr.mxu0 0.0
    %6420 = vmatpush2.xpose.msra.mxu0 0.0
    %6421 = vmatprep.subr.mxu0 0.0
    %6422 = vmatpush2.xpose.msra.mxu0 0.0
    %6423 = vmatprep.subr.mxu0 0.0
    %6424 = vmatpush2.xpose.msra.mxu0 0.0
    %6425 = vmatprep.subr.mxu0 0.0
    %6426 = vmatpush2.xpose.msra.mxu0 0.0
    %6427 = vmatprep.mubr.f32.mxu0 0.0
    %6428 = vmatmul.mubr.f32.gmra.mxu0 %v6359
    %v6429 = vpop.f32.mrf.mxu0
    %v6430 = vadd.f32 %v612, %v6429
    %v6431 = vpop.f32.mrf.mxu0
    %6432 = vdwg.mxu0
    %6433 = vrot.lane.b32.xlu0 %v4516, 112
    %v6434 = vpop.permute.xlu0 %6433
    %6435 = vrot.lane.b32.xlu0 %v4607, 112
    %v6436 = vpop.permute.xlu0 %6435
    %v6437 = vsel %vm163, %v6434, 0
    %v6439 = vsel %vm163, %v6436, 0
    %6441 = vmatprep.subr.mxu0 0.0
    %6442 = vmatpush1.xpose.msra.mxu0 0.0
    %6443 = vmatprep.subr.mxu0 0.0
    %6444 = vmatpush1.xpose.msra.mxu0 0.0
    %6445 = vmatprep.subr.mxu0 0.0
    %6446 = vmatpush1.xpose.msra.mxu0 0.0
    %6447 = vmatprep.subr.mxu0 0.0
    %6448 = vmatpush1.xpose.msra.mxu0 0.0
    %6449 = vmatprep.subr.mxu0 0.0
    %6450 = vmatpush1.xpose.msra.mxu0 0.0
    %6451 = vmatprep.subr.mxu0 0.0
    %6452 = vmatpush1.xpose.msra.mxu0 0.0
    %6453 = vmatprep.subr.mxu0 0.0
    %6454 = vmatpush1.xpose.msra.mxu0 0.0
    %6455 = vmatprep.subr.mxu0 0.0
    %6456 = vmatpush1.xpose.msra.mxu0 0.0
    %6457 = vmatprep.subr.mxu0 0.0
    %6458 = vmatpush1.xpose.msra.mxu0 0.0
    %6459 = vmatprep.subr.mxu0 0.0
    %6460 = vmatpush1.xpose.msra.mxu0 0.0
    %6461 = vmatprep.subr.mxu0 0.0
    %6462 = vmatpush1.xpose.msra.mxu0 0.0
    %6463 = vmatprep.subr.mxu0 0.0
    %6464 = vmatpush1.xpose.msra.mxu0 0.0
    %6465 = vmatprep.subr.mxu0 0.0
    %6466 = vmatpush1.xpose.msra.mxu0 0.0
    %6467 = vmatprep.subr.mxu0 0.0
    %6468 = vmatpush1.xpose.msra.mxu0 0.0
    %6469 = vmatprep.subr.mxu0 0.0
    %6470 = vmatpush1.xpose.msra.mxu0 0.0
    %6471 = vmatprep.subr.mxu0 0.0
    %6472 = vmatpush1.xpose.msra.mxu0 %v6439
    %6473 = vmatprep.subr.mxu0 0.0
    %6474 = vmatpush2.xpose.msra.mxu0 0.0
    %6475 = vmatprep.subr.mxu0 0.0
    %6476 = vmatpush2.xpose.msra.mxu0 0.0
    %6477 = vmatprep.subr.mxu0 0.0
    %6478 = vmatpush2.xpose.msra.mxu0 0.0
    %6479 = vmatprep.subr.mxu0 0.0
    %6480 = vmatpush2.xpose.msra.mxu0 0.0
    %6481 = vmatprep.subr.mxu0 0.0
    %6482 = vmatpush2.xpose.msra.mxu0 0.0
    %6483 = vmatprep.subr.mxu0 0.0
    %6484 = vmatpush2.xpose.msra.mxu0 0.0
    %6485 = vmatprep.subr.mxu0 0.0
    %6486 = vmatpush2.xpose.msra.mxu0 0.0
    %6487 = vmatprep.subr.mxu0 0.0
    %6488 = vmatpush2.xpose.msra.mxu0 0.0
    %6489 = vmatprep.subr.mxu0 0.0
    %6490 = vmatpush2.xpose.msra.mxu0 0.0
    %6491 = vmatprep.subr.mxu0 0.0
    %6492 = vmatpush2.xpose.msra.mxu0 0.0
    %6493 = vmatprep.subr.mxu0 0.0
    %6494 = vmatpush2.xpose.msra.mxu0 0.0
    %6495 = vmatprep.subr.mxu0 0.0
    %6496 = vmatpush2.xpose.msra.mxu0 0.0
    %6497 = vmatprep.subr.mxu0 0.0
    %6498 = vmatpush2.xpose.msra.mxu0 0.0
    %6499 = vmatprep.subr.mxu0 0.0
    %6500 = vmatpush2.xpose.msra.mxu0 0.0
    %6501 = vmatprep.subr.mxu0 0.0
    %6502 = vmatpush2.xpose.msra.mxu0 0.0
    %6503 = vmatprep.subr.mxu0 0.0
    %6504 = vmatpush2.xpose.msra.mxu0 0.0
    %6505 = vmatprep.mubr.f32.mxu0 0.0
    %6506 = vmatmul.mubr.f32.gmra.mxu0 %v6437
    %v6507 = vpop.f32.mrf.mxu0
    %v6508 = vadd.f32 %v613, %v6507
    %v6509 = vpop.f32.mrf.mxu0
    %6510 = vdwg.mxu0
    %v6511 = vsel %vm163, %v6274, -inf
    %6512 = vmax.xlane.f32.xlu0 %v6511
    %v6513 = vpop.xlane.xlu0 %6512
    %v6514 = vsel %vm163, %v6352, -inf
    %6515 = vmax.xlane.f32.xlu0 %v6514
    %v6516 = vpop.xlane.xlu0 %6515
    %v6517 = vsel %vm163, %v6430, -inf
    %6518 = vmax.xlane.f32.xlu0 %v6517
    %v6519 = vpop.xlane.xlu0 %6518
    %v6520 = vsel %vm163, %v6508, -inf
    %6521 = vmax.xlane.f32.xlu0 %v6520
    %v6522 = vpop.xlane.xlu0 %6521
    %v6523 = vsub.f32 %v6274, %v6513
    %v6524 = vsub.f32 %v6352, %v6516
    %v6525 = vsub.f32 %v6430, %v6519
    %v6526 = vsub.f32 %v6508, %v6522
    %v6527 = vmul.f32 %v6523, 1.442695
    %v6528 = vpow.pop %v6527
    %v6529 = vmul.f32 %v6524, 1.442695
    %v6530 = vpow.pop %v6529
    %v6531 = vmul.f32 %v6525, 1.442695
    %v6532 = vpow.pop %v6531
    %v6533 = vmul.f32 %v6526, 1.442695
    %v6534 = vpow.pop %v6533
    %v6535 = vsel %vm163, %v6528, 0.0
    %6536 = vadd.xlane.f32.xlu0 %v6535
    %v6537 = vpop.xlane.xlu0 %6536
    %v6538 = vsel %vm163, %v6530, 0.0
    %6539 = vadd.xlane.f32.xlu0 %v6538
    %v6540 = vpop.xlane.xlu0 %6539
    %v6541 = vsel %vm163, %v6532, 0.0
    %6542 = vadd.xlane.f32.xlu0 %v6541
    %v6543 = vpop.xlane.xlu0 %6542
    %v6544 = vsel %vm163, %v6534, 0.0
    %6545 = vadd.xlane.f32.xlu0 %v6544
    %v6546 = vpop.xlane.xlu0 %6545
    %v6547 = vrcp.pop %v6537
    %v6548 = vrcp.pop %v6540
    %v6549 = vrcp.pop %v6543
    %v6550 = vrcp.pop %v6546
    %v6551 = vmul.f32 %v6528, %v6547
    %v6552 = vmul.f32 %v6530, %v6548
    %v6553 = vmul.f32 %v6532, %v6549
    %v6554 = vmul.f32 %v6534, %v6550
    %6555 = vrot.lane.b32.xlu0 %v4683, 112
    %v6556 = vpop.permute.xlu0 %6555
    %v6559 = vsel %vm163, %v6551, 0
    %6561 = vmatprep.subr.mxu0 0.0
    %6562 = vmatpush1.msra.mxu0 0.0
    %6563 = vmatprep.subr.mxu0 0.0
    %6564 = vmatpush1.msra.mxu0 0.0
    %6565 = vmatprep.subr.mxu0 0.0
    %6566 = vmatpush1.msra.mxu0 0.0
    %6567 = vmatprep.subr.mxu0 0.0
    %6568 = vmatpush1.msra.mxu0 0.0
    %6569 = vmatprep.subr.mxu0 0.0
    %6570 = vmatpush1.msra.mxu0 0.0
    %6571 = vmatprep.subr.mxu0 0.0
    %6572 = vmatpush1.msra.mxu0 0.0
    %6573 = vmatprep.subr.mxu0 0.0
    %6574 = vmatpush1.msra.mxu0 0.0
    %6575 = vmatprep.subr.mxu0 0.0
    %6576 = vmatpush1.msra.mxu0 0.0
    %6577 = vmatprep.subr.mxu0 0.0
    %6578 = vmatpush1.msra.mxu0 0.0
    %6579 = vmatprep.subr.mxu0 0.0
    %6580 = vmatpush1.msra.mxu0 0.0
    %6581 = vmatprep.subr.mxu0 0.0
    %6582 = vmatpush1.msra.mxu0 0.0
    %6583 = vmatprep.subr.mxu0 0.0
    %6584 = vmatpush1.msra.mxu0 0.0
    %6585 = vmatprep.subr.mxu0 0.0
    %6586 = vmatpush1.msra.mxu0 0.0
    %6587 = vmatprep.subr.mxu0 0.0
    %6588 = vmatpush1.msra.mxu0 0.0
    %6589 = vmatprep.subr.mxu0 0.0
    %6590 = vmatpush1.msra.mxu0 0.0
    %6591 = vmatprep.subr.mxu0 0.0
    %6592 = vmatpush1.msra.mxu0 %v6556
    %6593 = vmatprep.subr.mxu0 0.0
    %6594 = vmatpush2.msra.mxu0 0.0
    %6595 = vmatprep.subr.mxu0 0.0
    %6596 = vmatpush2.msra.mxu0 0.0
    %6597 = vmatprep.subr.mxu0 0.0
    %6598 = vmatpush2.msra.mxu0 0.0
    %6599 = vmatprep.subr.mxu0 0.0
    %6600 = vmatpush2.msra.mxu0 0.0
    %6601 = vmatprep.subr.mxu0 0.0
    %6602 = vmatpush2.msra.mxu0 0.0
    %6603 = vmatprep.subr.mxu0 0.0
    %6604 = vmatpush2.msra.mxu0 0.0
    %6605 = vmatprep.subr.mxu0 0.0
    %6606 = vmatpush2.msra.mxu0 0.0
    %6607 = vmatprep.subr.mxu0 0.0
    %6608 = vmatpush2.msra.mxu0 0.0
    %6609 = vmatprep.subr.mxu0 0.0
    %6610 = vmatpush2.msra.mxu0 0.0
    %6611 = vmatprep.subr.mxu0 0.0
    %6612 = vmatpush2.msra.mxu0 0.0
    %6613 = vmatprep.subr.mxu0 0.0
    %6614 = vmatpush2.msra.mxu0 0.0
    %6615 = vmatprep.subr.mxu0 0.0
    %6616 = vmatpush2.msra.mxu0 0.0
    %6617 = vmatprep.subr.mxu0 0.0
    %6618 = vmatpush2.msra.mxu0 0.0
    %6619 = vmatprep.subr.mxu0 0.0
    %6620 = vmatpush2.msra.mxu0 0.0
    %6621 = vmatprep.subr.mxu0 0.0
    %6622 = vmatpush2.msra.mxu0 0.0
    %6623 = vmatprep.subr.mxu0 0.0
    %6624 = vmatpush2.msra.mxu0 0.0
    %6625 = vmatprep.mubr.f32.mxu0 0.0
    %6626 = vmatmul.mubr.f32.gmra.mxu0 %v6559
    %v6627 = vpop.f32.mrf.mxu0
    %v6628 = vadd.f32 0.0, %v6627
    %v6629 = vpop.f32.mrf.mxu0
    %6630 = vdwg.mxu0
    %6631 = vrot.lane.b32.xlu0 %v4688, 112
    %v6632 = vpop.permute.xlu0 %6631
    %v6635 = vsel %vm163, %v6552, 0
    %6637 = vmatprep.subr.mxu0 0.0
    %6638 = vmatpush1.msra.mxu0 0.0
    %6639 = vmatprep.subr.mxu0 0.0
    %6640 = vmatpush1.msra.mxu0 0.0
    %6641 = vmatprep.subr.mxu0 0.0
    %6642 = vmatpush1.msra.mxu0 0.0
    %6643 = vmatprep.subr.mxu0 0.0
    %6644 = vmatpush1.msra.mxu0 0.0
    %6645 = vmatprep.subr.mxu0 0.0
    %6646 = vmatpush1.msra.mxu0 0.0
    %6647 = vmatprep.subr.mxu0 0.0
    %6648 = vmatpush1.msra.mxu0 0.0
    %6649 = vmatprep.subr.mxu0 0.0
    %6650 = vmatpush1.msra.mxu0 0.0
    %6651 = vmatprep.subr.mxu0 0.0
    %6652 = vmatpush1.msra.mxu0 0.0
    %6653 = vmatprep.subr.mxu0 0.0
    %6654 = vmatpush1.msra.mxu0 0.0
    %6655 = vmatprep.subr.mxu0 0.0
    %6656 = vmatpush1.msra.mxu0 0.0
    %6657 = vmatprep.subr.mxu0 0.0
    %6658 = vmatpush1.msra.mxu0 0.0
    %6659 = vmatprep.subr.mxu0 0.0
    %6660 = vmatpush1.msra.mxu0 0.0
    %6661 = vmatprep.subr.mxu0 0.0
    %6662 = vmatpush1.msra.mxu0 0.0
    %6663 = vmatprep.subr.mxu0 0.0
    %6664 = vmatpush1.msra.mxu0 0.0
    %6665 = vmatprep.subr.mxu0 0.0
    %6666 = vmatpush1.msra.mxu0 0.0
    %6667 = vmatprep.subr.mxu0 0.0
    %6668 = vmatpush1.msra.mxu0 %v6632
    %6669 = vmatprep.subr.mxu0 0.0
    %6670 = vmatpush2.msra.mxu0 0.0
    %6671 = vmatprep.subr.mxu0 0.0
    %6672 = vmatpush2.msra.mxu0 0.0
    %6673 = vmatprep.subr.mxu0 0.0
    %6674 = vmatpush2.msra.mxu0 0.0
    %6675 = vmatprep.subr.mxu0 0.0
    %6676 = vmatpush2.msra.mxu0 0.0
    %6677 = vmatprep.subr.mxu0 0.0
    %6678 = vmatpush2.msra.mxu0 0.0
    %6679 = vmatprep.subr.mxu0 0.0
    %6680 = vmatpush2.msra.mxu0 0.0
    %6681 = vmatprep.subr.mxu0 0.0
    %6682 = vmatpush2.msra.mxu0 0.0
    %6683 = vmatprep.subr.mxu0 0.0
    %6684 = vmatpush2.msra.mxu0 0.0
    %6685 = vmatprep.subr.mxu0 0.0
    %6686 = vmatpush2.msra.mxu0 0.0
    %6687 = vmatprep.subr.mxu0 0.0
    %6688 = vmatpush2.msra.mxu0 0.0
    %6689 = vmatprep.subr.mxu0 0.0
    %6690 = vmatpush2.msra.mxu0 0.0
    %6691 = vmatprep.subr.mxu0 0.0
    %6692 = vmatpush2.msra.mxu0 0.0
    %6693 = vmatprep.subr.mxu0 0.0
    %6694 = vmatpush2.msra.mxu0 0.0
    %6695 = vmatprep.subr.mxu0 0.0
    %6696 = vmatpush2.msra.mxu0 0.0
    %6697 = vmatprep.subr.mxu0 0.0
    %6698 = vmatpush2.msra.mxu0 0.0
    %6699 = vmatprep.subr.mxu0 0.0
    %6700 = vmatpush2.msra.mxu0 0.0
    %6701 = vmatprep.mubr.f32.mxu0 0.0
    %6702 = vmatmul.mubr.f32.gmra.mxu0 %v6635
    %v6703 = vpop.f32.mrf.mxu0
    %v6704 = vadd.f32 0.0, %v6703
    %v6705 = vpop.f32.mrf.mxu0
    %6706 = vdwg.mxu0
    %6707 = vrot.lane.b32.xlu0 %v4693, 112
    %v6708 = vpop.permute.xlu0 %6707
    %v6711 = vsel %vm163, %v6553, 0
    %6713 = vmatprep.subr.mxu0 0.0
    %6714 = vmatpush1.msra.mxu0 0.0
    %6715 = vmatprep.subr.mxu0 0.0
    %6716 = vmatpush1.msra.mxu0 0.0
    %6717 = vmatprep.subr.mxu0 0.0
    %6718 = vmatpush1.msra.mxu0 0.0
    %6719 = vmatprep.subr.mxu0 0.0
    %6720 = vmatpush1.msra.mxu0 0.0
    %6721 = vmatprep.subr.mxu0 0.0
    %6722 = vmatpush1.msra.mxu0 0.0
    %6723 = vmatprep.subr.mxu0 0.0
    %6724 = vmatpush1.msra.mxu0 0.0
    %6725 = vmatprep.subr.mxu0 0.0
    %6726 = vmatpush1.msra.mxu0 0.0
    %6727 = vmatprep.subr.mxu0 0.0
    %6728 = vmatpush1.msra.mxu0 0.0
    %6729 = vmatprep.subr.mxu0 0.0
    %6730 = vmatpush1.msra.mxu0 0.0
    %6731 = vmatprep.subr.mxu0 0.0
    %6732 = vmatpush1.msra.mxu0 0.0
    %6733 = vmatprep.subr.mxu0 0.0
    %6734 = vmatpush1.msra.mxu0 0.0
    %6735 = vmatprep.subr.mxu0 0.0
    %6736 = vmatpush1.msra.mxu0 0.0
    %6737 = vmatprep.subr.mxu0 0.0
    %6738 = vmatpush1.msra.mxu0 0.0
    %6739 = vmatprep.subr.mxu0 0.0
    %6740 = vmatpush1.msra.mxu0 0.0
    %6741 = vmatprep.subr.mxu0 0.0
    %6742 = vmatpush1.msra.mxu0 0.0
    %6743 = vmatprep.subr.mxu0 0.0
    %6744 = vmatpush1.msra.mxu0 %v6708
    %6745 = vmatprep.subr.mxu0 0.0
    %6746 = vmatpush2.msra.mxu0 0.0
    %6747 = vmatprep.subr.mxu0 0.0
    %6748 = vmatpush2.msra.mxu0 0.0
    %6749 = vmatprep.subr.mxu0 0.0
    %6750 = vmatpush2.msra.mxu0 0.0
    %6751 = vmatprep.subr.mxu0 0.0
    %6752 = vmatpush2.msra.mxu0 0.0
    %6753 = vmatprep.subr.mxu0 0.0
    %6754 = vmatpush2.msra.mxu0 0.0
    %6755 = vmatprep.subr.mxu0 0.0
    %6756 = vmatpush2.msra.mxu0 0.0
    %6757 = vmatprep.subr.mxu0 0.0
    %6758 = vmatpush2.msra.mxu0 0.0
    %6759 = vmatprep.subr.mxu0 0.0
    %6760 = vmatpush2.msra.mxu0 0.0
    %6761 = vmatprep.subr.mxu0 0.0
    %6762 = vmatpush2.msra.mxu0 0.0
    %6763 = vmatprep.subr.mxu0 0.0
    %6764 = vmatpush2.msra.mxu0 0.0
    %6765 = vmatprep.subr.mxu0 0.0
    %6766 = vmatpush2.msra.mxu0 0.0
    %6767 = vmatprep.subr.mxu0 0.0
    %6768 = vmatpush2.msra.mxu0 0.0
    %6769 = vmatprep.subr.mxu0 0.0
    %6770 = vmatpush2.msra.mxu0 0.0
    %6771 = vmatprep.subr.mxu0 0.0
    %6772 = vmatpush2.msra.mxu0 0.0
    %6773 = vmatprep.subr.mxu0 0.0
    %6774 = vmatpush2.msra.mxu0 0.0
    %6775 = vmatprep.subr.mxu0 0.0
    %6776 = vmatpush2.msra.mxu0 0.0
    %6777 = vmatprep.mubr.f32.mxu0 0.0
    %6778 = vmatmul.mubr.f32.gmra.mxu0 %v6711
    %v6779 = vpop.f32.mrf.mxu0
    %v6780 = vadd.f32 0.0, %v6779
    %v6781 = vpop.f32.mrf.mxu0
    %6782 = vdwg.mxu0
    %6783 = vrot.lane.b32.xlu0 %v4698, 112
    %v6784 = vpop.permute.xlu0 %6783
    %v6787 = vsel %vm163, %v6554, 0
    %6789 = vmatprep.subr.mxu0 0.0
    %6790 = vmatpush1.msra.mxu0 0.0
    %6791 = vmatprep.subr.mxu0 0.0
    %6792 = vmatpush1.msra.mxu0 0.0
    %6793 = vmatprep.subr.mxu0 0.0
    %6794 = vmatpush1.msra.mxu0 0.0
    %6795 = vmatprep.subr.mxu0 0.0
    %6796 = vmatpush1.msra.mxu0 0.0
    %6797 = vmatprep.subr.mxu0 0.0
    %6798 = vmatpush1.msra.mxu0 0.0
    %6799 = vmatprep.subr.mxu0 0.0
    %6800 = vmatpush1.msra.mxu0 0.0
    %6801 = vmatprep.subr.mxu0 0.0
    %6802 = vmatpush1.msra.mxu0 0.0
    %6803 = vmatprep.subr.mxu0 0.0
    %6804 = vmatpush1.msra.mxu0 0.0
    %6805 = vmatprep.subr.mxu0 0.0
    %6806 = vmatpush1.msra.mxu0 0.0
    %6807 = vmatprep.subr.mxu0 0.0
    %6808 = vmatpush1.msra.mxu0 0.0
    %6809 = vmatprep.subr.mxu0 0.0
    %6810 = vmatpush1.msra.mxu0 0.0
    %6811 = vmatprep.subr.mxu0 0.0
    %6812 = vmatpush1.msra.mxu0 0.0
    %6813 = vmatprep.subr.mxu0 0.0
    %6814 = vmatpush1.msra.mxu0 0.0
    %6815 = vmatprep.subr.mxu0 0.0
    %6816 = vmatpush1.msra.mxu0 0.0
    %6817 = vmatprep.subr.mxu0 0.0
    %6818 = vmatpush1.msra.mxu0 0.0
    %6819 = vmatprep.subr.mxu0 0.0
    %6820 = vmatpush1.msra.mxu0 %v6784
    %6821 = vmatprep.subr.mxu0 0.0
    %6822 = vmatpush2.msra.mxu0 0.0
    %6823 = vmatprep.subr.mxu0 0.0
    %6824 = vmatpush2.msra.mxu0 0.0
    %6825 = vmatprep.subr.mxu0 0.0
    %6826 = vmatpush2.msra.mxu0 0.0
    %6827 = vmatprep.subr.mxu0 0.0
    %6828 = vmatpush2.msra.mxu0 0.0
    %6829 = vmatprep.subr.mxu0 0.0
    %6830 = vmatpush2.msra.mxu0 0.0
    %6831 = vmatprep.subr.mxu0 0.0
    %6832 = vmatpush2.msra.mxu0 0.0
    %6833 = vmatprep.subr.mxu0 0.0
    %6834 = vmatpush2.msra.mxu0 0.0
    %6835 = vmatprep.subr.mxu0 0.0
    %6836 = vmatpush2.msra.mxu0 0.0
    %6837 = vmatprep.subr.mxu0 0.0
    %6838 = vmatpush2.msra.mxu0 0.0
    %6839 = vmatprep.subr.mxu0 0.0
    %6840 = vmatpush2.msra.mxu0 0.0
    %6841 = vmatprep.subr.mxu0 0.0
    %6842 = vmatpush2.msra.mxu0 0.0
    %6843 = vmatprep.subr.mxu0 0.0
    %6844 = vmatpush2.msra.mxu0 0.0
    %6845 = vmatprep.subr.mxu0 0.0
    %6846 = vmatpush2.msra.mxu0 0.0
    %6847 = vmatprep.subr.mxu0 0.0
    %6848 = vmatpush2.msra.mxu0 0.0
    %6849 = vmatprep.subr.mxu0 0.0
    %6850 = vmatpush2.msra.mxu0 0.0
    %6851 = vmatprep.subr.mxu0 0.0
    %6852 = vmatpush2.msra.mxu0 0.0
    %6853 = vmatprep.mubr.f32.mxu0 0.0
    %6854 = vmatmul.mubr.f32.gmra.mxu0 %v6787
    %v6855 = vpop.f32.mrf.mxu0
    %v6856 = vadd.f32 0.0, %v6855
    %v6857 = vpop.f32.mrf.mxu0
    %6858 = vdwg.mxu0
    %v6860 = vsel %vm163, %v6628, 0
    %v6863 = vsel %vm163, %v6704, 0
    %v6866 = vsel %vm163, %v6780, 0
    %v6869 = vsel %vm163, %v6856, 0
    %6871 = vmatprep.subr.mxu0 0.0
    %6872 = vmatpush1.msra.mxu0 0.0
    %6873 = vmatprep.subr.mxu0 0.0
    %6874 = vmatpush1.msra.mxu0 0.0
    %6875 = vmatprep.subr.mxu0 0.0
    %6876 = vmatpush1.msra.mxu0 0.0
    %6877 = vmatprep.subr.mxu0 0.0
    %6878 = vmatpush1.msra.mxu0 0.0
    %6879 = vmatprep.subr.mxu0 0.0
    %6880 = vmatpush1.msra.mxu0 0.0
    %6881 = vmatprep.subr.mxu0 0.0
    %6882 = vmatpush1.msra.mxu0 0.0
    %6883 = vmatprep.subr.mxu0 0.0
    %6884 = vmatpush1.msra.mxu0 0.0
    %6885 = vmatprep.subr.mxu0 0.0
    %6886 = vmatpush1.msra.mxu0 0.0
    %6887 = vmatprep.subr.mxu0 0.0
    %6888 = vmatpush1.msra.mxu0 0.0
    %6889 = vmatprep.subr.mxu0 0.0
    %6890 = vmatpush1.msra.mxu0 0.0
    %6891 = vmatprep.subr.mxu0 0.0
    %6892 = vmatpush1.msra.mxu0 0.0
    %6893 = vmatprep.subr.mxu0 0.0
    %6894 = vmatpush1.msra.mxu0 0.0
    %6895 = vmatprep.subr.mxu0 0.0
    %6896 = vmatpush1.msra.mxu0 0.0
    %6897 = vmatprep.subr.mxu0 0.0
    %6898 = vmatpush1.msra.mxu0 0.0
    %6899 = vmatprep.subr.mxu0 0.0
    %6900 = vmatpush1.msra.mxu0 0.0
    %6901 = vmatprep.subr.mxu0 0.0
    %6902 = vmatpush1.msra.mxu0 %v4386
    %6903 = vmatprep.subr.mxu0 0.0
    %6904 = vmatpush2.msra.mxu0 0.0
    %6905 = vmatprep.subr.mxu0 0.0
    %6906 = vmatpush2.msra.mxu0 0.0
    %6907 = vmatprep.subr.mxu0 0.0
    %6908 = vmatpush2.msra.mxu0 0.0
    %6909 = vmatprep.subr.mxu0 0.0
    %6910 = vmatpush2.msra.mxu0 0.0
    %6911 = vmatprep.subr.mxu0 0.0
    %6912 = vmatpush2.msra.mxu0 0.0
    %6913 = vmatprep.subr.mxu0 0.0
    %6914 = vmatpush2.msra.mxu0 0.0
    %6915 = vmatprep.subr.mxu0 0.0
    %6916 = vmatpush2.msra.mxu0 0.0
    %6917 = vmatprep.subr.mxu0 0.0
    %6918 = vmatpush2.msra.mxu0 0.0
    %6919 = vmatprep.subr.mxu0 0.0
    %6920 = vmatpush2.msra.mxu0 0.0
    %6921 = vmatprep.subr.mxu0 0.0
    %6922 = vmatpush2.msra.mxu0 0.0
    %6923 = vmatprep.subr.mxu0 0.0
    %6924 = vmatpush2.msra.mxu0 0.0
    %6925 = vmatprep.subr.mxu0 0.0
    %6926 = vmatpush2.msra.mxu0 0.0
    %6927 = vmatprep.subr.mxu0 0.0
    %6928 = vmatpush2.msra.mxu0 0.0
    %6929 = vmatprep.subr.mxu0 0.0
    %6930 = vmatpush2.msra.mxu0 0.0
    %6931 = vmatprep.subr.mxu0 0.0
    %6932 = vmatpush2.msra.mxu0 0.0
    %6933 = vmatprep.subr.mxu0 0.0
    %6934 = vmatpush2.msra.mxu0 0.0
    %6935 = vmatprep.mubr.f32.mxu0 0.0
    %6936 = vmatmul.mubr.f32.gmra.mxu0 %v6860
    %v6937 = vpop.f32.mrf.mxu0
    %v6938 = vadd.f32 0.0, %v6937
    %v6939 = vpop.f32.mrf.mxu0
    %6940 = vmatprep.mubr.f32.mxu0 0.0
    %6941 = vmatmul.mubr.f32.gmra.mxu0 %v6863
    %v6942 = vpop.f32.mrf.mxu0
    %v6943 = vadd.f32 0.0, %v6942
    %v6944 = vpop.f32.mrf.mxu0
    %6945 = vmatprep.mubr.f32.mxu0 0.0
    %6946 = vmatmul.mubr.f32.gmra.mxu0 %v6866
    %v6947 = vpop.f32.mrf.mxu0
    %v6948 = vadd.f32 0.0, %v6947
    %v6949 = vpop.f32.mrf.mxu0
    %6950 = vmatprep.mubr.f32.mxu0 0.0
    %6951 = vmatmul.mubr.f32.gmra.mxu0 %v6869
    %v6952 = vpop.f32.mrf.mxu0
    %v6953 = vadd.f32 0.0, %v6952
    %v6954 = vpop.f32.mrf.mxu0
    %6955 = vdwg.mxu0
    %v6956 = vadd.f32 %v6181, %v6938
    %v6957 = vadd.f32 %v6186, %v6943
    %v6958 = vadd.f32 %v6191, %v6948
    %v6959 = vadd.f32 %v6196, %v6953
    %6960 = vrot.lane.b32.xlu0 %v4501, 104
    %v6961 = vpop.permute.xlu0 %6960
    %6962 = vrot.lane.b32.xlu0 %v4592, 104
    %v6963 = vpop.permute.xlu0 %6962
    %v6964 = vsel %vm163, %v6961, 0
    %v6966 = vsel %vm163, %v6963, 0
    %6968 = vmatprep.subr.mxu0 0.0
    %6969 = vmatpush1.xpose.msra.mxu0 0.0
    %6970 = vmatprep.subr.mxu0 0.0
    %6971 = vmatpush1.xpose.msra.mxu0 0.0
    %6972 = vmatprep.subr.mxu0 0.0
    %6973 = vmatpush1.xpose.msra.mxu0 0.0
    %6974 = vmatprep.subr.mxu0 0.0
    %6975 = vmatpush1.xpose.msra.mxu0 0.0
    %6976 = vmatprep.subr.mxu0 0.0
    %6977 = vmatpush1.xpose.msra.mxu0 0.0
    %6978 = vmatprep.subr.mxu0 0.0
    %6979 = vmatpush1.xpose.msra.mxu0 0.0
    %6980 = vmatprep.subr.mxu0 0.0
    %6981 = vmatpush1.xpose.msra.mxu0 0.0
    %6982 = vmatprep.subr.mxu0 0.0
    %6983 = vmatpush1.xpose.msra.mxu0 0.0
    %6984 = vmatprep.subr.mxu0 0.0
    %6985 = vmatpush1.xpose.msra.mxu0 0.0
    %6986 = vmatprep.subr.mxu0 0.0
    %6987 = vmatpush1.xpose.msra.mxu0 0.0
    %6988 = vmatprep.subr.mxu0 0.0
    %6989 = vmatpush1.xpose.msra.mxu0 0.0
    %6990 = vmatprep.subr.mxu0 0.0
    %6991 = vmatpush1.xpose.msra.mxu0 0.0
    %6992 = vmatprep.subr.mxu0 0.0
    %6993 = vmatpush1.xpose.msra.mxu0 0.0
    %6994 = vmatprep.subr.mxu0 0.0
    %6995 = vmatpush1.xpose.msra.mxu0 0.0
    %6996 = vmatprep.subr.mxu0 0.0
    %6997 = vmatpush1.xpose.msra.mxu0 0.0
    %6998 = vmatprep.subr.mxu0 0.0
    %6999 = vmatpush1.xpose.msra.mxu0 %v6966
    %7000 = vmatprep.subr.mxu0 0.0
    %7001 = vmatpush2.xpose.msra.mxu0 0.0
    %7002 = vmatprep.subr.mxu0 0.0
    %7003 = vmatpush2.xpose.msra.mxu0 0.0
    %7004 = vmatprep.subr.mxu0 0.0
    %7005 = vmatpush2.xpose.msra.mxu0 0.0
    %7006 = vmatprep.subr.mxu0 0.0
    %7007 = vmatpush2.xpose.msra.mxu0 0.0
    %7008 = vmatprep.subr.mxu0 0.0
    %7009 = vmatpush2.xpose.msra.mxu0 0.0
    %7010 = vmatprep.subr.mxu0 0.0
    %7011 = vmatpush2.xpose.msra.mxu0 0.0
    %7012 = vmatprep.subr.mxu0 0.0
    %7013 = vmatpush2.xpose.msra.mxu0 0.0
    %7014 = vmatprep.subr.mxu0 0.0
    %7015 = vmatpush2.xpose.msra.mxu0 0.0
    %7016 = vmatprep.subr.mxu0 0.0
    %7017 = vmatpush2.xpose.msra.mxu0 0.0
    %7018 = vmatprep.subr.mxu0 0.0
    %7019 = vmatpush2.xpose.msra.mxu0 0.0
    %7020 = vmatprep.subr.mxu0 0.0
    %7021 = vmatpush2.xpose.msra.mxu0 0.0
    %7022 = vmatprep.subr.mxu0 0.0
    %7023 = vmatpush2.xpose.msra.mxu0 0.0
    %7024 = vmatprep.subr.mxu0 0.0
    %7025 = vmatpush2.xpose.msra.mxu0 0.0
    %7026 = vmatprep.subr.mxu0 0.0
    %7027 = vmatpush2.xpose.msra.mxu0 0.0
    %7028 = vmatprep.subr.mxu0 0.0
    %7029 = vmatpush2.xpose.msra.mxu0 0.0
    %7030 = vmatprep.subr.mxu0 0.0
    %7031 = vmatpush2.xpose.msra.mxu0 0.0
    %7032 = vmatprep.mubr.f32.mxu0 0.0
    %7033 = vmatmul.mubr.f32.gmra.mxu0 %v6964
    %v7034 = vpop.f32.mrf.mxu0
    %v7035 = vadd.f32 %v610, %v7034
    %v7036 = vpop.f32.mrf.mxu0
    %7037 = vdwg.mxu0
    %7038 = vrot.lane.b32.xlu0 %v4506, 104
    %v7039 = vpop.permute.xlu0 %7038
    %7040 = vrot.lane.b32.xlu0 %v4597, 104
    %v7041 = vpop.permute.xlu0 %7040
    %v7042 = vsel %vm163, %v7039, 0
    %v7044 = vsel %vm163, %v7041, 0
    %7046 = vmatprep.subr.mxu0 0.0
    %7047 = vmatpush1.xpose.msra.mxu0 0.0
    %7048 = vmatprep.subr.mxu0 0.0
    %7049 = vmatpush1.xpose.msra.mxu0 0.0
    %7050 = vmatprep.subr.mxu0 0.0
    %7051 = vmatpush1.xpose.msra.mxu0 0.0
    %7052 = vmatprep.subr.mxu0 0.0
    %7053 = vmatpush1.xpose.msra.mxu0 0.0
    %7054 = vmatprep.subr.mxu0 0.0
    %7055 = vmatpush1.xpose.msra.mxu0 0.0
    %7056 = vmatprep.subr.mxu0 0.0
    %7057 = vmatpush1.xpose.msra.mxu0 0.0
    %7058 = vmatprep.subr.mxu0 0.0
    %7059 = vmatpush1.xpose.msra.mxu0 0.0
    %7060 = vmatprep.subr.mxu0 0.0
    %7061 = vmatpush1.xpose.msra.mxu0 0.0
    %7062 = vmatprep.subr.mxu0 0.0
    %7063 = vmatpush1.xpose.msra.mxu0 0.0
    %7064 = vmatprep.subr.mxu0 0.0
    %7065 = vmatpush1.xpose.msra.mxu0 0.0
    %7066 = vmatprep.subr.mxu0 0.0
    %7067 = vmatpush1.xpose.msra.mxu0 0.0
    %7068 = vmatprep.subr.mxu0 0.0
    %7069 = vmatpush1.xpose.msra.mxu0 0.0
    %7070 = vmatprep.subr.mxu0 0.0
    %7071 = vmatpush1.xpose.msra.mxu0 0.0
    %7072 = vmatprep.subr.mxu0 0.0
    %7073 = vmatpush1.xpose.msra.mxu0 0.0
    %7074 = vmatprep.subr.mxu0 0.0
    %7075 = vmatpush1.xpose.msra.mxu0 0.0
    %7076 = vmatprep.subr.mxu0 0.0
    %7077 = vmatpush1.xpose.msra.mxu0 %v7044
    %7078 = vmatprep.subr.mxu0 0.0
    %7079 = vmatpush2.xpose.msra.mxu0 0.0
    %7080 = vmatprep.subr.mxu0 0.0
    %7081 = vmatpush2.xpose.msra.mxu0 0.0
    %7082 = vmatprep.subr.mxu0 0.0
    %7083 = vmatpush2.xpose.msra.mxu0 0.0
    %7084 = vmatprep.subr.mxu0 0.0
    %7085 = vmatpush2.xpose.msra.mxu0 0.0
    %7086 = vmatprep.subr.mxu0 0.0
    %7087 = vmatpush2.xpose.msra.mxu0 0.0
    %7088 = vmatprep.subr.mxu0 0.0
    %7089 = vmatpush2.xpose.msra.mxu0 0.0
    %7090 = vmatprep.subr.mxu0 0.0
    %7091 = vmatpush2.xpose.msra.mxu0 0.0
    %7092 = vmatprep.subr.mxu0 0.0
    %7093 = vmatpush2.xpose.msra.mxu0 0.0
    %7094 = vmatprep.subr.mxu0 0.0
    %7095 = vmatpush2.xpose.msra.mxu0 0.0
    %7096 = vmatprep.subr.mxu0 0.0
    %7097 = vmatpush2.xpose.msra.mxu0 0.0
    %7098 = vmatprep.subr.mxu0 0.0
    %7099 = vmatpush2.xpose.msra.mxu0 0.0
    %7100 = vmatprep.subr.mxu0 0.0
    %7101 = vmatpush2.xpose.msra.mxu0 0.0
    %7102 = vmatprep.subr.mxu0 0.0
    %7103 = vmatpush2.xpose.msra.mxu0 0.0
    %7104 = vmatprep.subr.mxu0 0.0
    %7105 = vmatpush2.xpose.msra.mxu0 0.0
    %7106 = vmatprep.subr.mxu0 0.0
    %7107 = vmatpush2.xpose.msra.mxu0 0.0
    %7108 = vmatprep.subr.mxu0 0.0
    %7109 = vmatpush2.xpose.msra.mxu0 0.0
    %7110 = vmatprep.mubr.f32.mxu0 0.0
    %7111 = vmatmul.mubr.f32.gmra.mxu0 %v7042
    %v7112 = vpop.f32.mrf.mxu0
    %v7113 = vadd.f32 %v611, %v7112
    %v7114 = vpop.f32.mrf.mxu0
    %7115 = vdwg.mxu0
    %7116 = vrot.lane.b32.xlu0 %v4511, 104
    %v7117 = vpop.permute.xlu0 %7116
    %7118 = vrot.lane.b32.xlu0 %v4602, 104
    %v7119 = vpop.permute.xlu0 %7118
    %v7120 = vsel %vm163, %v7117, 0
    %v7122 = vsel %vm163, %v7119, 0
    %7124 = vmatprep.subr.mxu0 0.0
    %7125 = vmatpush1.xpose.msra.mxu0 0.0
    %7126 = vmatprep.subr.mxu0 0.0
    %7127 = vmatpush1.xpose.msra.mxu0 0.0
    %7128 = vmatprep.subr.mxu0 0.0
    %7129 = vmatpush1.xpose.msra.mxu0 0.0
    %7130 = vmatprep.subr.mxu0 0.0
    %7131 = vmatpush1.xpose.msra.mxu0 0.0
    %7132 = vmatprep.subr.mxu0 0.0
    %7133 = vmatpush1.xpose.msra.mxu0 0.0
    %7134 = vmatprep.subr.mxu0 0.0
    %7135 = vmatpush1.xpose.msra.mxu0 0.0
    %7136 = vmatprep.subr.mxu0 0.0
    %7137 = vmatpush1.xpose.msra.mxu0 0.0
    %7138 = vmatprep.subr.mxu0 0.0
    %7139 = vmatpush1.xpose.msra.mxu0 0.0
    %7140 = vmatprep.subr.mxu0 0.0
    %7141 = vmatpush1.xpose.msra.mxu0 0.0
    %7142 = vmatprep.subr.mxu0 0.0
    %7143 = vmatpush1.xpose.msra.mxu0 0.0
    %7144 = vmatprep.subr.mxu0 0.0
    %7145 = vmatpush1.xpose.msra.mxu0 0.0
    %7146 = vmatprep.subr.mxu0 0.0
    %7147 = vmatpush1.xpose.msra.mxu0 0.0
    %7148 = vmatprep.subr.mxu0 0.0
    %7149 = vmatpush1.xpose.msra.mxu0 0.0
    %7150 = vmatprep.subr.mxu0 0.0
    %7151 = vmatpush1.xpose.msra.mxu0 0.0
    %7152 = vmatprep.subr.mxu0 0.0
    %7153 = vmatpush1.xpose.msra.mxu0 0.0
    %7154 = vmatprep.subr.mxu0 0.0
    %7155 = vmatpush1.xpose.msra.mxu0 %v7122
    %7156 = vmatprep.subr.mxu0 0.0
    %7157 = vmatpush2.xpose.msra.mxu0 0.0
    %7158 = vmatprep.subr.mxu0 0.0
    %7159 = vmatpush2.xpose.msra.mxu0 0.0
    %7160 = vmatprep.subr.mxu0 0.0
    %7161 = vmatpush2.xpose.msra.mxu0 0.0
    %7162 = vmatprep.subr.mxu0 0.0
    %7163 = vmatpush2.xpose.msra.mxu0 0.0
    %7164 = vmatprep.subr.mxu0 0.0
    %7165 = vmatpush2.xpose.msra.mxu0 0.0
    %7166 = vmatprep.subr.mxu0 0.0
    %7167 = vmatpush2.xpose.msra.mxu0 0.0
    %7168 = vmatprep.subr.mxu0 0.0
    %7169 = vmatpush2.xpose.msra.mxu0 0.0
    %7170 = vmatprep.subr.mxu0 0.0
    %7171 = vmatpush2.xpose.msra.mxu0 0.0
    %7172 = vmatprep.subr.mxu0 0.0
    %7173 = vmatpush2.xpose.msra.mxu0 0.0
    %7174 = vmatprep.subr.mxu0 0.0
    %7175 = vmatpush2.xpose.msra.mxu0 0.0
    %7176 = vmatprep.subr.mxu0 0.0
    %7177 = vmatpush2.xpose.msra.mxu0 0.0
    %7178 = vmatprep.subr.mxu0 0.0
    %7179 = vmatpush2.xpose.msra.mxu0 0.0
    %7180 = vmatprep.subr.mxu0 0.0
    %7181 = vmatpush2.xpose.msra.mxu0 0.0
    %7182 = vmatprep.subr.mxu0 0.0
    %7183 = vmatpush2.xpose.msra.mxu0 0.0
    %7184 = vmatprep.subr.mxu0 0.0
    %7185 = vmatpush2.xpose.msra.mxu0 0.0
    %7186 = vmatprep.subr.mxu0 0.0
    %7187 = vmatpush2.xpose.msra.mxu0 0.0
    %7188 = vmatprep.mubr.f32.mxu0 0.0
    %7189 = vmatmul.mubr.f32.gmra.mxu0 %v7120
    %v7190 = vpop.f32.mrf.mxu0
    %v7191 = vadd.f32 %v612, %v7190
    %v7192 = vpop.f32.mrf.mxu0
    %7193 = vdwg.mxu0
    %7194 = vrot.lane.b32.xlu0 %v4516, 104
    %v7195 = vpop.permute.xlu0 %7194
    %7196 = vrot.lane.b32.xlu0 %v4607, 104
    %v7197 = vpop.permute.xlu0 %7196
    %v7198 = vsel %vm163, %v7195, 0
    %v7200 = vsel %vm163, %v7197, 0
    %7202 = vmatprep.subr.mxu0 0.0
    %7203 = vmatpush1.xpose.msra.mxu0 0.0
    %7204 = vmatprep.subr.mxu0 0.0
    %7205 = vmatpush1.xpose.msra.mxu0 0.0
    %7206 = vmatprep.subr.mxu0 0.0
    %7207 = vmatpush1.xpose.msra.mxu0 0.0
    %7208 = vmatprep.subr.mxu0 0.0
    %7209 = vmatpush1.xpose.msra.mxu0 0.0
    %7210 = vmatprep.subr.mxu0 0.0
    %7211 = vmatpush1.xpose.msra.mxu0 0.0
    %7212 = vmatprep.subr.mxu0 0.0
    %7213 = vmatpush1.xpose.msra.mxu0 0.0
    %7214 = vmatprep.subr.mxu0 0.0
    %7215 = vmatpush1.xpose.msra.mxu0 0.0
    %7216 = vmatprep.subr.mxu0 0.0
    %7217 = vmatpush1.xpose.msra.mxu0 0.0
    %7218 = vmatprep.subr.mxu0 0.0
    %7219 = vmatpush1.xpose.msra.mxu0 0.0
    %7220 = vmatprep.subr.mxu0 0.0
    %7221 = vmatpush1.xpose.msra.mxu0 0.0
    %7222 = vmatprep.subr.mxu0 0.0
    %7223 = vmatpush1.xpose.msra.mxu0 0.0
    %7224 = vmatprep.subr.mxu0 0.0
    %7225 = vmatpush1.xpose.msra.mxu0 0.0
    %7226 = vmatprep.subr.mxu0 0.0
    %7227 = vmatpush1.xpose.msra.mxu0 0.0
    %7228 = vmatprep.subr.mxu0 0.0
    %7229 = vmatpush1.xpose.msra.mxu0 0.0
    %7230 = vmatprep.subr.mxu0 0.0
    %7231 = vmatpush1.xpose.msra.mxu0 0.0
    %7232 = vmatprep.subr.mxu0 0.0
    %7233 = vmatpush1.xpose.msra.mxu0 %v7200
    %7234 = vmatprep.subr.mxu0 0.0
    %7235 = vmatpush2.xpose.msra.mxu0 0.0
    %7236 = vmatprep.subr.mxu0 0.0
    %7237 = vmatpush2.xpose.msra.mxu0 0.0
    %7238 = vmatprep.subr.mxu0 0.0
    %7239 = vmatpush2.xpose.msra.mxu0 0.0
    %7240 = vmatprep.subr.mxu0 0.0
    %7241 = vmatpush2.xpose.msra.mxu0 0.0
    %7242 = vmatprep.subr.mxu0 0.0
    %7243 = vmatpush2.xpose.msra.mxu0 0.0
    %7244 = vmatprep.subr.mxu0 0.0
    %7245 = vmatpush2.xpose.msra.mxu0 0.0
    %7246 = vmatprep.subr.mxu0 0.0
    %7247 = vmatpush2.xpose.msra.mxu0 0.0
    %7248 = vmatprep.subr.mxu0 0.0
    %7249 = vmatpush2.xpose.msra.mxu0 0.0
    %7250 = vmatprep.subr.mxu0 0.0
    %7251 = vmatpush2.xpose.msra.mxu0 0.0
    %7252 = vmatprep.subr.mxu0 0.0
    %7253 = vmatpush2.xpose.msra.mxu0 0.0
    %7254 = vmatprep.subr.mxu0 0.0
    %7255 = vmatpush2.xpose.msra.mxu0 0.0
    %7256 = vmatprep.subr.mxu0 0.0
    %7257 = vmatpush2.xpose.msra.mxu0 0.0
    %7258 = vmatprep.subr.mxu0 0.0
    %7259 = vmatpush2.xpose.msra.mxu0 0.0
    %7260 = vmatprep.subr.mxu0 0.0
    %7261 = vmatpush2.xpose.msra.mxu0 0.0
    %7262 = vmatprep.subr.mxu0 0.0
    %7263 = vmatpush2.xpose.msra.mxu0 0.0
    %7264 = vmatprep.subr.mxu0 0.0
    %7265 = vmatpush2.xpose.msra.mxu0 0.0
    %7266 = vmatprep.mubr.f32.mxu0 0.0
    %7267 = vmatmul.mubr.f32.gmra.mxu0 %v7198
    %v7268 = vpop.f32.mrf.mxu0
    %v7269 = vadd.f32 %v613, %v7268
    %v7270 = vpop.f32.mrf.mxu0
    %7271 = vdwg.mxu0
    %v7272 = vsel %vm163, %v7035, -inf
    %7273 = vmax.xlane.f32.xlu0 %v7272
    %v7274 = vpop.xlane.xlu0 %7273
    %v7275 = vsel %vm163, %v7113, -inf
    %7276 = vmax.xlane.f32.xlu0 %v7275
    %v7277 = vpop.xlane.xlu0 %7276
    %v7278 = vsel %vm163, %v7191, -inf
    %7279 = vmax.xlane.f32.xlu0 %v7278
    %v7280 = vpop.xlane.xlu0 %7279
    %v7281 = vsel %vm163, %v7269, -inf
    %7282 = vmax.xlane.f32.xlu0 %v7281
    %v7283 = vpop.xlane.xlu0 %7282
    %v7284 = vsub.f32 %v7035, %v7274
    %v7285 = vsub.f32 %v7113, %v7277
    %v7286 = vsub.f32 %v7191, %v7280
    %v7287 = vsub.f32 %v7269, %v7283
    %v7288 = vmul.f32 %v7284, 1.442695
    %v7289 = vpow.pop %v7288
    %v7290 = vmul.f32 %v7285, 1.442695
    %v7291 = vpow.pop %v7290
    %v7292 = vmul.f32 %v7286, 1.442695
    %v7293 = vpow.pop %v7292
    %v7294 = vmul.f32 %v7287, 1.442695
    %v7295 = vpow.pop %v7294
    %v7296 = vsel %vm163, %v7289, 0.0
    %7297 = vadd.xlane.f32.xlu0 %v7296
    %v7298 = vpop.xlane.xlu0 %7297
    %v7299 = vsel %vm163, %v7291, 0.0
    %7300 = vadd.xlane.f32.xlu0 %v7299
    %v7301 = vpop.xlane.xlu0 %7300
    %v7302 = vsel %vm163, %v7293, 0.0
    %7303 = vadd.xlane.f32.xlu0 %v7302
    %v7304 = vpop.xlane.xlu0 %7303
    %v7305 = vsel %vm163, %v7295, 0.0
    %7306 = vadd.xlane.f32.xlu0 %v7305
    %v7307 = vpop.xlane.xlu0 %7306
    %v7308 = vrcp.pop %v7298
    %v7309 = vrcp.pop %v7301
    %v7310 = vrcp.pop %v7304
    %v7311 = vrcp.pop %v7307
    %v7312 = vmul.f32 %v7289, %v7308
    %v7313 = vmul.f32 %v7291, %v7309
    %v7314 = vmul.f32 %v7293, %v7310
    %v7315 = vmul.f32 %v7295, %v7311
    %7316 = vrot.lane.b32.xlu0 %v4683, 104
    %v7317 = vpop.permute.xlu0 %7316
    %v7320 = vsel %vm163, %v7312, 0
    %7322 = vmatprep.subr.mxu0 0.0
    %7323 = vmatpush1.msra.mxu0 0.0
    %7324 = vmatprep.subr.mxu0 0.0
    %7325 = vmatpush1.msra.mxu0 0.0
    %7326 = vmatprep.subr.mxu0 0.0
    %7327 = vmatpush1.msra.mxu0 0.0
    %7328 = vmatprep.subr.mxu0 0.0
    %7329 = vmatpush1.msra.mxu0 0.0
    %7330 = vmatprep.subr.mxu0 0.0
    %7331 = vmatpush1.msra.mxu0 0.0
    %7332 = vmatprep.subr.mxu0 0.0
    %7333 = vmatpush1.msra.mxu0 0.0
    %7334 = vmatprep.subr.mxu0 0.0
    %7335 = vmatpush1.msra.mxu0 0.0
    %7336 = vmatprep.subr.mxu0 0.0
    %7337 = vmatpush1.msra.mxu0 0.0
    %7338 = vmatprep.subr.mxu0 0.0
    %7339 = vmatpush1.msra.mxu0 0.0
    %7340 = vmatprep.subr.mxu0 0.0
    %7341 = vmatpush1.msra.mxu0 0.0
    %7342 = vmatprep.subr.mxu0 0.0
    %7343 = vmatpush1.msra.mxu0 0.0
    %7344 = vmatprep.subr.mxu0 0.0
    %7345 = vmatpush1.msra.mxu0 0.0
    %7346 = vmatprep.subr.mxu0 0.0
    %7347 = vmatpush1.msra.mxu0 0.0
    %7348 = vmatprep.subr.mxu0 0.0
    %7349 = vmatpush1.msra.mxu0 0.0
    %7350 = vmatprep.subr.mxu0 0.0
    %7351 = vmatpush1.msra.mxu0 0.0
    %7352 = vmatprep.subr.mxu0 0.0
    %7353 = vmatpush1.msra.mxu0 %v7317
    %7354 = vmatprep.subr.mxu0 0.0
    %7355 = vmatpush2.msra.mxu0 0.0
    %7356 = vmatprep.subr.mxu0 0.0
    %7357 = vmatpush2.msra.mxu0 0.0
    %7358 = vmatprep.subr.mxu0 0.0
    %7359 = vmatpush2.msra.mxu0 0.0
    %7360 = vmatprep.subr.mxu0 0.0
    %7361 = vmatpush2.msra.mxu0 0.0
    %7362 = vmatprep.subr.mxu0 0.0
    %7363 = vmatpush2.msra.mxu0 0.0
    %7364 = vmatprep.subr.mxu0 0.0
    %7365 = vmatpush2.msra.mxu0 0.0
    %7366 = vmatprep.subr.mxu0 0.0
    %7367 = vmatpush2.msra.mxu0 0.0
    %7368 = vmatprep.subr.mxu0 0.0
    %7369 = vmatpush2.msra.mxu0 0.0
    %7370 = vmatprep.subr.mxu0 0.0
    %7371 = vmatpush2.msra.mxu0 0.0
    %7372 = vmatprep.subr.mxu0 0.0
    %7373 = vmatpush2.msra.mxu0 0.0
    %7374 = vmatprep.subr.mxu0 0.0
    %7375 = vmatpush2.msra.mxu0 0.0
    %7376 = vmatprep.subr.mxu0 0.0
    %7377 = vmatpush2.msra.mxu0 0.0
    %7378 = vmatprep.subr.mxu0 0.0
    %7379 = vmatpush2.msra.mxu0 0.0
    %7380 = vmatprep.subr.mxu0 0.0
    %7381 = vmatpush2.msra.mxu0 0.0
    %7382 = vmatprep.subr.mxu0 0.0
    %7383 = vmatpush2.msra.mxu0 0.0
    %7384 = vmatprep.subr.mxu0 0.0
    %7385 = vmatpush2.msra.mxu0 0.0
    %7386 = vmatprep.mubr.f32.mxu0 0.0
    %7387 = vmatmul.mubr.f32.gmra.mxu0 %v7320
    %v7388 = vpop.f32.mrf.mxu0
    %v7389 = vadd.f32 0.0, %v7388
    %v7390 = vpop.f32.mrf.mxu0
    %7391 = vdwg.mxu0
    %7392 = vrot.lane.b32.xlu0 %v4688, 104
    %v7393 = vpop.permute.xlu0 %7392
    %v7396 = vsel %vm163, %v7313, 0
    %7398 = vmatprep.subr.mxu0 0.0
    %7399 = vmatpush1.msra.mxu0 0.0
    %7400 = vmatprep.subr.mxu0 0.0
    %7401 = vmatpush1.msra.mxu0 0.0
    %7402 = vmatprep.subr.mxu0 0.0
    %7403 = vmatpush1.msra.mxu0 0.0
    %7404 = vmatprep.subr.mxu0 0.0
    %7405 = vmatpush1.msra.mxu0 0.0
    %7406 = vmatprep.subr.mxu0 0.0
    %7407 = vmatpush1.msra.mxu0 0.0
    %7408 = vmatprep.subr.mxu0 0.0
    %7409 = vmatpush1.msra.mxu0 0.0
    %7410 = vmatprep.subr.mxu0 0.0
    %7411 = vmatpush1.msra.mxu0 0.0
    %7412 = vmatprep.subr.mxu0 0.0
    %7413 = vmatpush1.msra.mxu0 0.0
    %7414 = vmatprep.subr.mxu0 0.0
    %7415 = vmatpush1.msra.mxu0 0.0
    %7416 = vmatprep.subr.mxu0 0.0
    %7417 = vmatpush1.msra.mxu0 0.0
    %7418 = vmatprep.subr.mxu0 0.0
    %7419 = vmatpush1.msra.mxu0 0.0
    %7420 = vmatprep.subr.mxu0 0.0
    %7421 = vmatpush1.msra.mxu0 0.0
    %7422 = vmatprep.subr.mxu0 0.0
    %7423 = vmatpush1.msra.mxu0 0.0
    %7424 = vmatprep.subr.mxu0 0.0
    %7425 = vmatpush1.msra.mxu0 0.0
    %7426 = vmatprep.subr.mxu0 0.0
    %7427 = vmatpush1.msra.mxu0 0.0
    %7428 = vmatprep.subr.mxu0 0.0
    %7429 = vmatpush1.msra.mxu0 %v7393
    %7430 = vmatprep.subr.mxu0 0.0
    %7431 = vmatpush2.msra.mxu0 0.0
    %7432 = vmatprep.subr.mxu0 0.0
    %7433 = vmatpush2.msra.mxu0 0.0
    %7434 = vmatprep.subr.mxu0 0.0
    %7435 = vmatpush2.msra.mxu0 0.0
    %7436 = vmatprep.subr.mxu0 0.0
    %7437 = vmatpush2.msra.mxu0 0.0
    %7438 = vmatprep.subr.mxu0 0.0
    %7439 = vmatpush2.msra.mxu0 0.0
    %7440 = vmatprep.subr.mxu0 0.0
    %7441 = vmatpush2.msra.mxu0 0.0
    %7442 = vmatprep.subr.mxu0 0.0
    %7443 = vmatpush2.msra.mxu0 0.0
    %7444 = vmatprep.subr.mxu0 0.0
    %7445 = vmatpush2.msra.mxu0 0.0
    %7446 = vmatprep.subr.mxu0 0.0
    %7447 = vmatpush2.msra.mxu0 0.0
    %7448 = vmatprep.subr.mxu0 0.0
    %7449 = vmatpush2.msra.mxu0 0.0
    %7450 = vmatprep.subr.mxu0 0.0
    %7451 = vmatpush2.msra.mxu0 0.0
    %7452 = vmatprep.subr.mxu0 0.0
    %7453 = vmatpush2.msra.mxu0 0.0
    %7454 = vmatprep.subr.mxu0 0.0
    %7455 = vmatpush2.msra.mxu0 0.0
    %7456 = vmatprep.subr.mxu0 0.0
    %7457 = vmatpush2.msra.mxu0 0.0
    %7458 = vmatprep.subr.mxu0 0.0
    %7459 = vmatpush2.msra.mxu0 0.0
    %7460 = vmatprep.subr.mxu0 0.0
    %7461 = vmatpush2.msra.mxu0 0.0
    %7462 = vmatprep.mubr.f32.mxu0 0.0
    %7463 = vmatmul.mubr.f32.gmra.mxu0 %v7396
    %v7464 = vpop.f32.mrf.mxu0
    %v7465 = vadd.f32 0.0, %v7464
    %v7466 = vpop.f32.mrf.mxu0
    %7467 = vdwg.mxu0
    %7468 = vrot.lane.b32.xlu0 %v4693, 104
    %v7469 = vpop.permute.xlu0 %7468
    %v7472 = vsel %vm163, %v7314, 0
    %7474 = vmatprep.subr.mxu0 0.0
    %7475 = vmatpush1.msra.mxu0 0.0
    %7476 = vmatprep.subr.mxu0 0.0
    %7477 = vmatpush1.msra.mxu0 0.0
    %7478 = vmatprep.subr.mxu0 0.0
    %7479 = vmatpush1.msra.mxu0 0.0
    %7480 = vmatprep.subr.mxu0 0.0
    %7481 = vmatpush1.msra.mxu0 0.0
    %7482 = vmatprep.subr.mxu0 0.0
    %7483 = vmatpush1.msra.mxu0 0.0
    %7484 = vmatprep.subr.mxu0 0.0
    %7485 = vmatpush1.msra.mxu0 0.0
    %7486 = vmatprep.subr.mxu0 0.0
    %7487 = vmatpush1.msra.mxu0 0.0
    %7488 = vmatprep.subr.mxu0 0.0
    %7489 = vmatpush1.msra.mxu0 0.0
    %7490 = vmatprep.subr.mxu0 0.0
    %7491 = vmatpush1.msra.mxu0 0.0
    %7492 = vmatprep.subr.mxu0 0.0
    %7493 = vmatpush1.msra.mxu0 0.0
    %7494 = vmatprep.subr.mxu0 0.0
    %7495 = vmatpush1.msra.mxu0 0.0
    %7496 = vmatprep.subr.mxu0 0.0
    %7497 = vmatpush1.msra.mxu0 0.0
    %7498 = vmatprep.subr.mxu0 0.0
    %7499 = vmatpush1.msra.mxu0 0.0
    %7500 = vmatprep.subr.mxu0 0.0
    %7501 = vmatpush1.msra.mxu0 0.0
    %7502 = vmatprep.subr.mxu0 0.0
    %7503 = vmatpush1.msra.mxu0 0.0
    %7504 = vmatprep.subr.mxu0 0.0
    %7505 = vmatpush1.msra.mxu0 %v7469
    %7506 = vmatprep.subr.mxu0 0.0
    %7507 = vmatpush2.msra.mxu0 0.0
    %7508 = vmatprep.subr.mxu0 0.0
    %7509 = vmatpush2.msra.mxu0 0.0
    %7510 = vmatprep.subr.mxu0 0.0
    %7511 = vmatpush2.msra.mxu0 0.0
    %7512 = vmatprep.subr.mxu0 0.0
    %7513 = vmatpush2.msra.mxu0 0.0
    %7514 = vmatprep.subr.mxu0 0.0
    %7515 = vmatpush2.msra.mxu0 0.0
    %7516 = vmatprep.subr.mxu0 0.0
    %7517 = vmatpush2.msra.mxu0 0.0
    %7518 = vmatprep.subr.mxu0 0.0
    %7519 = vmatpush2.msra.mxu0 0.0
    %7520 = vmatprep.subr.mxu0 0.0
    %7521 = vmatpush2.msra.mxu0 0.0
    %7522 = vmatprep.subr.mxu0 0.0
    %7523 = vmatpush2.msra.mxu0 0.0
    %7524 = vmatprep.subr.mxu0 0.0
    %7525 = vmatpush2.msra.mxu0 0.0
    %7526 = vmatprep.subr.mxu0 0.0
    %7527 = vmatpush2.msra.mxu0 0.0
    %7528 = vmatprep.subr.mxu0 0.0
    %7529 = vmatpush2.msra.mxu0 0.0
    %7530 = vmatprep.subr.mxu0 0.0
    %7531 = vmatpush2.msra.mxu0 0.0
    %7532 = vmatprep.subr.mxu0 0.0
    %7533 = vmatpush2.msra.mxu0 0.0
    %7534 = vmatprep.subr.mxu0 0.0
    %7535 = vmatpush2.msra.mxu0 0.0
    %7536 = vmatprep.subr.mxu0 0.0
    %7537 = vmatpush2.msra.mxu0 0.0
    %7538 = vmatprep.mubr.f32.mxu0 0.0
    %7539 = vmatmul.mubr.f32.gmra.mxu0 %v7472
    %v7540 = vpop.f32.mrf.mxu0
    %v7541 = vadd.f32 0.0, %v7540
    %v7542 = vpop.f32.mrf.mxu0
    %7543 = vdwg.mxu0
    %7544 = vrot.lane.b32.xlu0 %v4698, 104
    %v7545 = vpop.permute.xlu0 %7544
    %v7548 = vsel %vm163, %v7315, 0
    %7550 = vmatprep.subr.mxu0 0.0
    %7551 = vmatpush1.msra.mxu0 0.0
    %7552 = vmatprep.subr.mxu0 0.0
    %7553 = vmatpush1.msra.mxu0 0.0
    %7554 = vmatprep.subr.mxu0 0.0
    %7555 = vmatpush1.msra.mxu0 0.0
    %7556 = vmatprep.subr.mxu0 0.0
    %7557 = vmatpush1.msra.mxu0 0.0
    %7558 = vmatprep.subr.mxu0 0.0
    %7559 = vmatpush1.msra.mxu0 0.0
    %7560 = vmatprep.subr.mxu0 0.0
    %7561 = vmatpush1.msra.mxu0 0.0
    %7562 = vmatprep.subr.mxu0 0.0
    %7563 = vmatpush1.msra.mxu0 0.0
    %7564 = vmatprep.subr.mxu0 0.0
    %7565 = vmatpush1.msra.mxu0 0.0
    %7566 = vmatprep.subr.mxu0 0.0
    %7567 = vmatpush1.msra.mxu0 0.0
    %7568 = vmatprep.subr.mxu0 0.0
    %7569 = vmatpush1.msra.mxu0 0.0
    %7570 = vmatprep.subr.mxu0 0.0
    %7571 = vmatpush1.msra.mxu0 0.0
    %7572 = vmatprep.subr.mxu0 0.0
    %7573 = vmatpush1.msra.mxu0 0.0
    %7574 = vmatprep.subr.mxu0 0.0
    %7575 = vmatpush1.msra.mxu0 0.0
    %7576 = vmatprep.subr.mxu0 0.0
    %7577 = vmatpush1.msra.mxu0 0.0
    %7578 = vmatprep.subr.mxu0 0.0
    %7579 = vmatpush1.msra.mxu0 0.0
    %7580 = vmatprep.subr.mxu0 0.0
    %7581 = vmatpush1.msra.mxu0 %v7545
    %7582 = vmatprep.subr.mxu0 0.0
    %7583 = vmatpush2.msra.mxu0 0.0
    %7584 = vmatprep.subr.mxu0 0.0
    %7585 = vmatpush2.msra.mxu0 0.0
    %7586 = vmatprep.subr.mxu0 0.0
    %7587 = vmatpush2.msra.mxu0 0.0
    %7588 = vmatprep.subr.mxu0 0.0
    %7589 = vmatpush2.msra.mxu0 0.0
    %7590 = vmatprep.subr.mxu0 0.0
    %7591 = vmatpush2.msra.mxu0 0.0
    %7592 = vmatprep.subr.mxu0 0.0
    %7593 = vmatpush2.msra.mxu0 0.0
    %7594 = vmatprep.subr.mxu0 0.0
    %7595 = vmatpush2.msra.mxu0 0.0
    %7596 = vmatprep.subr.mxu0 0.0
    %7597 = vmatpush2.msra.mxu0 0.0
    %7598 = vmatprep.subr.mxu0 0.0
    %7599 = vmatpush2.msra.mxu0 0.0
    %7600 = vmatprep.subr.mxu0 0.0
    %7601 = vmatpush2.msra.mxu0 0.0
    %7602 = vmatprep.subr.mxu0 0.0
    %7603 = vmatpush2.msra.mxu0 0.0
    %7604 = vmatprep.subr.mxu0 0.0
    %7605 = vmatpush2.msra.mxu0 0.0
    %7606 = vmatprep.subr.mxu0 0.0
    %7607 = vmatpush2.msra.mxu0 0.0
    %7608 = vmatprep.subr.mxu0 0.0
    %7609 = vmatpush2.msra.mxu0 0.0
    %7610 = vmatprep.subr.mxu0 0.0
    %7611 = vmatpush2.msra.mxu0 0.0
    %7612 = vmatprep.subr.mxu0 0.0
    %7613 = vmatpush2.msra.mxu0 0.0
    %7614 = vmatprep.mubr.f32.mxu0 0.0
    %7615 = vmatmul.mubr.f32.gmra.mxu0 %v7548
    %v7616 = vpop.f32.mrf.mxu0
    %v7617 = vadd.f32 0.0, %v7616
    %v7618 = vpop.f32.mrf.mxu0
    %7619 = vdwg.mxu0
    %v7621 = vsel %vm163, %v7389, 0
    %v7624 = vsel %vm163, %v7465, 0
    %v7627 = vsel %vm163, %v7541, 0
    %v7630 = vsel %vm163, %v7617, 0
    %7632 = vmatprep.subr.mxu0 0.0
    %7633 = vmatpush1.msra.mxu0 0.0
    %7634 = vmatprep.subr.mxu0 0.0
    %7635 = vmatpush1.msra.mxu0 0.0
    %7636 = vmatprep.subr.mxu0 0.0
    %7637 = vmatpush1.msra.mxu0 0.0
    %7638 = vmatprep.subr.mxu0 0.0
    %7639 = vmatpush1.msra.mxu0 0.0
    %7640 = vmatprep.subr.mxu0 0.0
    %7641 = vmatpush1.msra.mxu0 0.0
    %7642 = vmatprep.subr.mxu0 0.0
    %7643 = vmatpush1.msra.mxu0 0.0
    %7644 = vmatprep.subr.mxu0 0.0
    %7645 = vmatpush1.msra.mxu0 0.0
    %7646 = vmatprep.subr.mxu0 0.0
    %7647 = vmatpush1.msra.mxu0 0.0
    %7648 = vmatprep.subr.mxu0 0.0
    %7649 = vmatpush1.msra.mxu0 0.0
    %7650 = vmatprep.subr.mxu0 0.0
    %7651 = vmatpush1.msra.mxu0 0.0
    %7652 = vmatprep.subr.mxu0 0.0
    %7653 = vmatpush1.msra.mxu0 0.0
    %7654 = vmatprep.subr.mxu0 0.0
    %7655 = vmatpush1.msra.mxu0 0.0
    %7656 = vmatprep.subr.mxu0 0.0
    %7657 = vmatpush1.msra.mxu0 0.0
    %7658 = vmatprep.subr.mxu0 0.0
    %7659 = vmatpush1.msra.mxu0 0.0
    %7660 = vmatprep.subr.mxu0 0.0
    %7661 = vmatpush1.msra.mxu0 0.0
    %7662 = vmatprep.subr.mxu0 0.0
    %7663 = vmatpush1.msra.mxu0 %v4387
    %7664 = vmatprep.subr.mxu0 0.0
    %7665 = vmatpush2.msra.mxu0 0.0
    %7666 = vmatprep.subr.mxu0 0.0
    %7667 = vmatpush2.msra.mxu0 0.0
    %7668 = vmatprep.subr.mxu0 0.0
    %7669 = vmatpush2.msra.mxu0 0.0
    %7670 = vmatprep.subr.mxu0 0.0
    %7671 = vmatpush2.msra.mxu0 0.0
    %7672 = vmatprep.subr.mxu0 0.0
    %7673 = vmatpush2.msra.mxu0 0.0
    %7674 = vmatprep.subr.mxu0 0.0
    %7675 = vmatpush2.msra.mxu0 0.0
    %7676 = vmatprep.subr.mxu0 0.0
    %7677 = vmatpush2.msra.mxu0 0.0
    %7678 = vmatprep.subr.mxu0 0.0
    %7679 = vmatpush2.msra.mxu0 0.0
    %7680 = vmatprep.subr.mxu0 0.0
    %7681 = vmatpush2.msra.mxu0 0.0
    %7682 = vmatprep.subr.mxu0 0.0
    %7683 = vmatpush2.msra.mxu0 0.0
    %7684 = vmatprep.subr.mxu0 0.0
    %7685 = vmatpush2.msra.mxu0 0.0
    %7686 = vmatprep.subr.mxu0 0.0
    %7687 = vmatpush2.msra.mxu0 0.0
    %7688 = vmatprep.subr.mxu0 0.0
    %7689 = vmatpush2.msra.mxu0 0.0
    %7690 = vmatprep.subr.mxu0 0.0
    %7691 = vmatpush2.msra.mxu0 0.0
    %7692 = vmatprep.subr.mxu0 0.0
    %7693 = vmatpush2.msra.mxu0 0.0
    %7694 = vmatprep.subr.mxu0 0.0
    %7695 = vmatpush2.msra.mxu0 0.0
    %7696 = vmatprep.mubr.f32.mxu0 0.0
    %7697 = vmatmul.mubr.f32.gmra.mxu0 %v7621
    %v7698 = vpop.f32.mrf.mxu0
    %v7699 = vadd.f32 0.0, %v7698
    %v7700 = vpop.f32.mrf.mxu0
    %7701 = vmatprep.mubr.f32.mxu0 0.0
    %7702 = vmatmul.mubr.f32.gmra.mxu0 %v7624
    %v7703 = vpop.f32.mrf.mxu0
    %v7704 = vadd.f32 0.0, %v7703
    %v7705 = vpop.f32.mrf.mxu0
    %7706 = vmatprep.mubr.f32.mxu0 0.0
    %7707 = vmatmul.mubr.f32.gmra.mxu0 %v7627
    %v7708 = vpop.f32.mrf.mxu0
    %v7709 = vadd.f32 0.0, %v7708
    %v7710 = vpop.f32.mrf.mxu0
    %7711 = vmatprep.mubr.f32.mxu0 0.0
    %7712 = vmatmul.mubr.f32.gmra.mxu0 %v7630
    %v7713 = vpop.f32.mrf.mxu0
    %v7714 = vadd.f32 0.0, %v7713
    %v7715 = vpop.f32.mrf.mxu0
    %7716 = vdwg.mxu0
    %v7717 = vadd.f32 %v6956, %v7699
    %v7718 = vadd.f32 %v6957, %v7704
    %v7719 = vadd.f32 %v6958, %v7709
    %v7720 = vadd.f32 %v6959, %v7714
    %v7722 = vlaneseq
    %v7723 = vshrl.u32 %v7722, 7
    %v7724 = vsub.s32 0, %v7723
    %v7725 = vrot.slane %v4389, %v7724
    %v7727 = vadd.f32 %v7717, %v7725
    %v7728 = vadd.f32 %v7718, %v7725
    %v7729 = vadd.f32 %v7719, %v7725
    %v7730 = vadd.f32 %v7720, %v7725
    %v7731 = vadd.f32 %v4358, %v7727
    %v7732 = vadd.f32 %v4359, %v7728
    %v7733 = vadd.f32 %v4360, %v7729
    %v7734 = vadd.f32 %v4361, %v7730
    %v7735 = vsel %vm532, %v7731, 0.0
    %7736 = vadd.xlane.f32.xlu0 %v7735
    %v7737 = vpop.xlane.xlu0 %7736
    %v7738 = vsel %vm532, %v7732, 0.0
    %7739 = vadd.xlane.f32.xlu0 %v7738
    %v7740 = vpop.xlane.xlu0 %7739
    %v7741 = vsel %vm532, %v7733, 0.0
    %7742 = vadd.xlane.f32.xlu0 %v7741
    %v7743 = vpop.xlane.xlu0 %7742
    %v7744 = vsel %vm532, %v7734, 0.0
    %7745 = vadd.xlane.f32.xlu0 %v7744
    %v7746 = vpop.xlane.xlu0 %7745
    %v7747 = vmul.f32 %v7737, %v545
    %v7748 = vmul.f32 %v7740, %v545
    %v7749 = vmul.f32 %v7743, %v545
    %v7750 = vmul.f32 %v7746, %v545
    %v7751 = vsub.f32 %v7731, %v7747
    %v7752 = vsub.f32 %v7732, %v7748
    %v7753 = vsub.f32 %v7733, %v7749
    %v7754 = vsub.f32 %v7734, %v7750
    %v7755 = vmul.f32 %v7751, %v7751
    %v7756 = vmul.f32 %v7752, %v7752
    %v7757 = vmul.f32 %v7753, %v7753
    %v7758 = vmul.f32 %v7754, %v7754
    %v7759 = vsel %vm532, %v7755, 0.0
    %7760 = vadd.xlane.f32.xlu0 %v7759
    %v7761 = vpop.xlane.xlu0 %7760
    %v7762 = vsel %vm532, %v7756, 0.0
    %7763 = vadd.xlane.f32.xlu0 %v7762
    %v7764 = vpop.xlane.xlu0 %7763
    %v7765 = vsel %vm532, %v7757, 0.0
    %7766 = vadd.xlane.f32.xlu0 %v7765
    %v7767 = vpop.xlane.xlu0 %7766
    %v7768 = vsel %vm532, %v7758, 0.0
    %7769 = vadd.xlane.f32.xlu0 %v7768
    %v7770 = vpop.xlane.xlu0 %7769
    %v7771 = vmul.f32 %v7761, %v545
    %v7772 = vmul.f32 %v7764, %v545
    %v7773 = vmul.f32 %v7767, %v545
    %v7774 = vmul.f32 %v7770, %v545
    %v7775 = vadd.f32 %v7771, 1e-05
    %v7776 = vadd.f32 %v7772, 1e-05
    %v7777 = vadd.f32 %v7773, 1e-05
    %v7778 = vadd.f32 %v7774, 1e-05
    %v7779 = vrsqrt.pop %v7775
    %v7780 = vrsqrt.pop %v7776
    %v7781 = vrsqrt.pop %v7777
    %v7782 = vrsqrt.pop %v7778
    %v7783 = vmul.f32 %v7751, %v7779
    %v7784 = vmul.f32 %v7752, %v7780
    %v7785 = vmul.f32 %v7753, %v7781
    %v7786 = vmul.f32 %v7754, %v7782
    %v7788 = vlaneseq
    %v7789 = vshrl.u32 %v7788, 7
    %v7790 = vsub.s32 0, %v7789
    %v7791 = vrot.slane %v4391, %v7790
    %v7793 = vmul.f32 %v7783, %v7791
    %v7794 = vmul.f32 %v7784, %v7791
    %v7795 = vmul.f32 %v7785, %v7791
    %v7796 = vmul.f32 %v7786, %v7791
    %v7798 = vlaneseq
    %v7799 = vshrl.u32 %v7798, 7
    %v7800 = vsub.s32 0, %v7799
    %v7801 = vrot.slane %v4393, %v7800
    %v7803 = vadd.f32 %v7793, %v7801
    %v7804 = vadd.f32 %v7794, %v7801
    %v7805 = vadd.f32 %v7795, %v7801
    %v7806 = vadd.f32 %v7796, %v7801
    %v7808 = vlaneseq
    %v7809 = vshrl.u32 %v7808, 7
    %v7810 = vsub.s32 0, %v7809
    %v7811 = vrot.slane %v4400, %v7810
    %v7814 = vsel %vm532, %v7803, 0
    %v7817 = vsel %vm532, %v7804, 0
    %v7820 = vsel %vm532, %v7805, 0
    %v7823 = vsel %vm532, %v7806, 0
    %7825 = vmatprep.subr.mxu0 0.0
    %7826 = vmatpush1.msra.mxu0 0.0
    %7827 = vmatprep.subr.mxu0 0.0
    %7828 = vmatpush1.msra.mxu0 0.0
    %7829 = vmatprep.subr.mxu0 0.0
    %7830 = vmatpush1.msra.mxu0 0.0
    %7831 = vmatprep.subr.mxu0 0.0
    %7832 = vmatpush1.msra.mxu0 0.0
    %7833 = vmatprep.subr.mxu0 0.0
    %7834 = vmatpush1.msra.mxu0 0.0
    %7835 = vmatprep.subr.mxu0 0.0
    %7836 = vmatpush1.msra.mxu0 0.0
    %7837 = vmatprep.subr.mxu0 0.0
    %7838 = vmatpush1.msra.mxu0 0.0
    %7839 = vmatprep.subr.mxu0 0.0
    %7840 = vmatpush1.msra.mxu0 0.0
    %7841 = vmatprep.subr.mxu0 0.0
    %7842 = vmatpush1.msra.mxu0 0.0
    %7843 = vmatprep.subr.mxu0 0.0
    %7844 = vmatpush1.msra.mxu0 0.0
    %7845 = vmatprep.subr.mxu0 0.0
    %7846 = vmatpush1.msra.mxu0 0.0
    %7847 = vmatprep.subr.mxu0 0.0
    %7848 = vmatpush1.msra.mxu0 0.0
    %7849 = vmatprep.subr.mxu0 0.0
    %7850 = vmatpush1.msra.mxu0 %v4398
    %7851 = vmatprep.subr.mxu0 0.0
    %7852 = vmatpush1.msra.mxu0 %v4397
    %7853 = vmatprep.subr.mxu0 0.0
    %7854 = vmatpush1.msra.mxu0 %v4396
    %7855 = vmatprep.subr.mxu0 0.0
    %7856 = vmatpush1.msra.mxu0 %v4395
    %7857 = vmatprep.subr.mxu0 0.0
    %7858 = vmatpush2.msra.mxu0 0.0
    %7859 = vmatprep.subr.mxu0 0.0
    %7860 = vmatpush2.msra.mxu0 0.0
    %7861 = vmatprep.subr.mxu0 0.0
    %7862 = vmatpush2.msra.mxu0 0.0
    %7863 = vmatprep.subr.mxu0 0.0
    %7864 = vmatpush2.msra.mxu0 0.0
    %7865 = vmatprep.subr.mxu0 0.0
    %7866 = vmatpush2.msra.mxu0 0.0
    %7867 = vmatprep.subr.mxu0 0.0
    %7868 = vmatpush2.msra.mxu0 0.0
    %7869 = vmatprep.subr.mxu0 0.0
    %7870 = vmatpush2.msra.mxu0 0.0
    %7871 = vmatprep.subr.mxu0 0.0
    %7872 = vmatpush2.msra.mxu0 0.0
    %7873 = vmatprep.subr.mxu0 0.0
    %7874 = vmatpush2.msra.mxu0 0.0
    %7875 = vmatprep.subr.mxu0 0.0
    %7876 = vmatpush2.msra.mxu0 0.0
    %7877 = vmatprep.subr.mxu0 0.0
    %7878 = vmatpush2.msra.mxu0 0.0
    %7879 = vmatprep.subr.mxu0 0.0
    %7880 = vmatpush2.msra.mxu0 0.0
    %7881 = vmatprep.subr.mxu0 0.0
    %7882 = vmatpush2.msra.mxu0 0.0
    %7883 = vmatprep.subr.mxu0 0.0
    %7884 = vmatpush2.msra.mxu0 0.0
    %7885 = vmatprep.subr.mxu0 0.0
    %7886 = vmatpush2.msra.mxu0 0.0
    %7887 = vmatprep.subr.mxu0 0.0
    %7888 = vmatpush2.msra.mxu0 0.0
    %7889 = vmatprep.mubr.f32.mxu0 0.0
    %7890 = vmatmul.mubr.f32.gmra.mxu0 %v7814
    %v7891 = vpop.f32.mrf.mxu0
    %v7892 = vadd.f32 %v7811, %v7891
    %v7893 = vpop.f32.mrf.mxu0
    %7894 = vmatprep.mubr.f32.mxu0 0.0
    %7895 = vmatmul.mubr.f32.gmra.mxu0 %v7817
    %v7896 = vpop.f32.mrf.mxu0
    %v7897 = vadd.f32 %v7811, %v7896
    %v7898 = vpop.f32.mrf.mxu0
    %7899 = vmatprep.mubr.f32.mxu0 0.0
    %7900 = vmatmul.mubr.f32.gmra.mxu0 %v7820
    %v7901 = vpop.f32.mrf.mxu0
    %v7902 = vadd.f32 %v7811, %v7901
    %v7903 = vpop.f32.mrf.mxu0
    %7904 = vmatprep.mubr.f32.mxu0 0.0
    %7905 = vmatmul.mubr.f32.gmra.mxu0 %v7823
    %v7906 = vpop.f32.mrf.mxu0
    %v7907 = vadd.f32 %v7811, %v7906
    %v7908 = vpop.f32.mrf.mxu0
    %7909 = vdwg.mxu0
    %v7910 = vmul.f32 %v7892, %v7892
    %v7911 = vmul.f32 %v7897, %v7897
    %v7912 = vmul.f32 %v7902, %v7902
    %v7913 = vmul.f32 %v7907, %v7907
    %v7914 = vmul.f32 %v7892, %v7910
    %v7915 = vmul.f32 %v7897, %v7911
    %v7916 = vmul.f32 %v7902, %v7912
    %v7917 = vmul.f32 %v7907, %v7913
    %v7918 = vmul.f32 %v7914, 0.044715
    %v7919 = vmul.f32 %v7915, 0.044715
    %v7920 = vmul.f32 %v7916, 0.044715
    %v7921 = vmul.f32 %v7917, 0.044715
    %v7922 = vadd.f32 %v7892, %v7918
    %v7923 = vadd.f32 %v7897, %v7919
    %v7924 = vadd.f32 %v7902, %v7920
    %v7925 = vadd.f32 %v7907, %v7921
    %v7926 = vmul.f32 %v7922, 0.7978846
    %v7927 = vmul.f32 %v7923, 0.7978846
    %v7928 = vmul.f32 %v7924, 0.7978846
    %v7929 = vmul.f32 %v7925, 0.7978846
    %v7930 = vtanh.pop %v7926
    %v7931 = vtanh.pop %v7927
    %v7932 = vtanh.pop %v7928
    %v7933 = vtanh.pop %v7929
    %v7934 = vadd.f32 %v7930, 1.0
    %v7935 = vadd.f32 %v7931, 1.0
    %v7936 = vadd.f32 %v7932, 1.0
    %v7937 = vadd.f32 %v7933, 1.0
    %v7938 = vmul.f32 %v7934, 0.5
    %v7939 = vmul.f32 %v7935, 0.5
    %v7940 = vmul.f32 %v7936, 0.5
    %v7941 = vmul.f32 %v7937, 0.5
    %v7942 = vmul.f32 %v7892, %v7938
    %v7943 = vmul.f32 %v7897, %v7939
    %v7944 = vmul.f32 %v7902, %v7940
    %v7945 = vmul.f32 %v7907, %v7941
    %v7947 = vlaneseq
    %v7948 = vshrl.u32 %v7947, 7
    %v7949 = vsub.s32 0, %v7948
    %v7950 = vrot.slane %v4411, %v7949
    %v7953 = vsel %vm4188, %v7942, 0
    %v7956 = vsel %vm4188, %v7943, 0
    %v7959 = vsel %vm4188, %v7944, 0
    %v7962 = vsel %vm4188, %v7945, 0
    %7964 = vmatprep.subr.mxu0 0.0
    %7965 = vmatpush1.msra.mxu0 0.0
    %7966 = vmatprep.subr.mxu0 0.0
    %7967 = vmatpush1.msra.mxu0 0.0
    %7968 = vmatprep.subr.mxu0 0.0
    %7969 = vmatpush1.msra.mxu0 0.0
    %7970 = vmatprep.subr.mxu0 0.0
    %7971 = vmatpush1.msra.mxu0 0.0
    %7972 = vmatprep.subr.mxu0 0.0
    %7973 = vmatpush1.msra.mxu0 0.0
    %7974 = vmatprep.subr.mxu0 0.0
    %7975 = vmatpush1.msra.mxu0 0.0
    %7976 = vmatprep.subr.mxu0 0.0
    %7977 = vmatpush1.msra.mxu0 0.0
    %7978 = vmatprep.subr.mxu0 0.0
    %7979 = vmatpush1.msra.mxu0 0.0
    %7980 = vmatprep.subr.mxu0 0.0
    %7981 = vmatpush1.msra.mxu0 %v4409
    %7982 = vmatprep.subr.mxu0 0.0
    %7983 = vmatpush1.msra.mxu0 %v4408
    %7984 = vmatprep.subr.mxu0 0.0
    %7985 = vmatpush1.msra.mxu0 %v4407
    %7986 = vmatprep.subr.mxu0 0.0
    %7987 = vmatpush1.msra.mxu0 %v4406
    %7988 = vmatprep.subr.mxu0 0.0
    %7989 = vmatpush1.msra.mxu0 %v4405
    %7990 = vmatprep.subr.mxu0 0.0
    %7991 = vmatpush1.msra.mxu0 %v4404
    %7992 = vmatprep.subr.mxu0 0.0
    %7993 = vmatpush1.msra.mxu0 %v4403
    %7994 = vmatprep.subr.mxu0 0.0
    %7995 = vmatpush1.msra.mxu0 %v4402
    %7996 = vmatprep.subr.mxu0 0.0
    %7997 = vmatpush2.msra.mxu0 0.0
    %7998 = vmatprep.subr.mxu0 0.0
    %7999 = vmatpush2.msra.mxu0 0.0
    %8000 = vmatprep.subr.mxu0 0.0
    %8001 = vmatpush2.msra.mxu0 0.0
    %8002 = vmatprep.subr.mxu0 0.0
    %8003 = vmatpush2.msra.mxu0 0.0
    %8004 = vmatprep.subr.mxu0 0.0
    %8005 = vmatpush2.msra.mxu0 0.0
    %8006 = vmatprep.subr.mxu0 0.0
    %8007 = vmatpush2.msra.mxu0 0.0
    %8008 = vmatprep.subr.mxu0 0.0
    %8009 = vmatpush2.msra.mxu0 0.0
    %8010 = vmatprep.subr.mxu0 0.0
    %8011 = vmatpush2.msra.mxu0 0.0
    %8012 = vmatprep.subr.mxu0 0.0
    %8013 = vmatpush2.msra.mxu0 0.0
    %8014 = vmatprep.subr.mxu0 0.0
    %8015 = vmatpush2.msra.mxu0 0.0
    %8016 = vmatprep.subr.mxu0 0.0
    %8017 = vmatpush2.msra.mxu0 0.0
    %8018 = vmatprep.subr.mxu0 0.0
    %8019 = vmatpush2.msra.mxu0 0.0
    %8020 = vmatprep.subr.mxu0 0.0
    %8021 = vmatpush2.msra.mxu0 0.0
    %8022 = vmatprep.subr.mxu0 0.0
    %8023 = vmatpush2.msra.mxu0 0.0
    %8024 = vmatprep.subr.mxu0 0.0
    %8025 = vmatpush2.msra.mxu0 0.0
    %8026 = vmatprep.subr.mxu0 0.0
    %8027 = vmatpush2.msra.mxu0 0.0
    %8028 = vmatprep.mubr.f32.mxu0 0.0
    %8029 = vmatmul.mubr.f32.gmra.mxu0 %v7953
    %v8030 = vpop.f32.mrf.mxu0
    %v8031 = vadd.f32 %v7950, %v8030
    %v8032 = vpop.f32.mrf.mxu0
    %8033 = vmatprep.mubr.f32.mxu0 0.0
    %8034 = vmatmul.mubr.f32.gmra.mxu0 %v7956
    %v8035 = vpop.f32.mrf.mxu0
    %v8036 = vadd.f32 %v7950, %v8035
    %v8037 = vpop.f32.mrf.mxu0
    %8038 = vmatprep.mubr.f32.mxu0 0.0
    %8039 = vmatmul.mubr.f32.gmra.mxu0 %v7959
    %v8040 = vpop.f32.mrf.mxu0
    %v8041 = vadd.f32 %v7950, %v8040
    %v8042 = vpop.f32.mrf.mxu0
    %8043 = vmatprep.mubr.f32.mxu0 0.0
    %8044 = vmatmul.mubr.f32.gmra.mxu0 %v7962
    %v8045 = vpop.f32.mrf.mxu0
    %v8046 = vadd.f32 %v7950, %v8045
    %v8047 = vpop.f32.mrf.mxu0
    %8048 = vdwg.mxu0
    %v8049 = vadd.f32 %v7803, %v8031
    %v8050 = vadd.f32 %v7804, %v8036
    %v8051 = vadd.f32 %v7805, %v8041
    %v8052 = vadd.f32 %v7806, %v8046
    %v8053 = vsel %vm532, %v8049, 0.0
    %8054 = vadd.xlane.f32.xlu0 %v8053
    %v8055 = vpop.xlane.xlu0 %8054
    %v8056 = vsel %vm532, %v8050, 0.0
    %8057 = vadd.xlane.f32.xlu0 %v8056
    %v8058 = vpop.xlane.xlu0 %8057
    %v8059 = vsel %vm532, %v8051, 0.0
    %8060 = vadd.xlane.f32.xlu0 %v8059
    %v8061 = vpop.xlane.xlu0 %8060
    %v8062 = vsel %vm532, %v8052, 0.0
    %8063 = vadd.xlane.f32.xlu0 %v8062
    %v8064 = vpop.xlane.xlu0 %8063
    %v8065 = vmul.f32 %v8055, %v545
    %v8066 = vmul.f32 %v8058, %v545
    %v8067 = vmul.f32 %v8061, %v545
    %v8068 = vmul.f32 %v8064, %v545
    %v8069 = vsub.f32 %v8049, %v8065
    %v8070 = vsub.f32 %v8050, %v8066
    %v8071 = vsub.f32 %v8051, %v8067
    %v8072 = vsub.f32 %v8052, %v8068
    %v8073 = vmul.f32 %v8069, %v8069
    %v8074 = vmul.f32 %v8070, %v8070
    %v8075 = vmul.f32 %v8071, %v8071
    %v8076 = vmul.f32 %v8072, %v8072
    %v8077 = vsel %vm532, %v8073, 0.0
    %8078 = vadd.xlane.f32.xlu0 %v8077
    %v8079 = vpop.xlane.xlu0 %8078
    %v8080 = vsel %vm532, %v8074, 0.0
    %8081 = vadd.xlane.f32.xlu0 %v8080
    %v8082 = vpop.xlane.xlu0 %8081
    %v8083 = vsel %vm532, %v8075, 0.0
    %8084 = vadd.xlane.f32.xlu0 %v8083
    %v8085 = vpop.xlane.xlu0 %8084
    %v8086 = vsel %vm532, %v8076, 0.0
    %8087 = vadd.xlane.f32.xlu0 %v8086
    %v8088 = vpop.xlane.xlu0 %8087
    %v8089 = vmul.f32 %v8079, %v545
    %v8090 = vmul.f32 %v8082, %v545
    %v8091 = vmul.f32 %v8085, %v545
    %v8092 = vmul.f32 %v8088, %v545
    %v8093 = vadd.f32 %v8089, 1e-05
    %v8094 = vadd.f32 %v8090, 1e-05
    %v8095 = vadd.f32 %v8091, 1e-05
    %v8096 = vadd.f32 %v8092, 1e-05
    %v8097 = vrsqrt.pop %v8093
    %v8098 = vrsqrt.pop %v8094
    %v8099 = vrsqrt.pop %v8095
    %v8100 = vrsqrt.pop %v8096
    %v8101 = vmul.f32 %v8069, %v8097
    %v8102 = vmul.f32 %v8070, %v8098
    %v8103 = vmul.f32 %v8071, %v8099
    %v8104 = vmul.f32 %v8072, %v8100
    %v8106 = vlaneseq
    %v8107 = vshrl.u32 %v8106, 7
    %v8108 = vsub.s32 0, %v8107
    %v8109 = vrot.slane %v4413, %v8108
    %v8111 = vmul.f32 %v8101, %v8109
    %v8112 = vmul.f32 %v8102, %v8109
    %v8113 = vmul.f32 %v8103, %v8109
    %v8114 = vmul.f32 %v8104, %v8109
    %v8116 = vlaneseq
    %v8117 = vshrl.u32 %v8116, 7
    %v8118 = vsub.s32 0, %v8117
    %v8119 = vrot.slane %v4415, %v8118
    %v8121 = vadd.f32 %v8111, %v8119
    %v8122 = vadd.f32 %v8112, %v8119
    %v8123 = vadd.f32 %v8113, %v8119
    %v8124 = vadd.f32 %v8114, %v8119
    %v8125 = vld [vmem:[%s24] sm:$0xff]
    %v8126 = vld [vmem:[%s24 + $0x8] sm:$0xff]
    %v8127 = vld [vmem:[%s24 + $0x10] sm:$0xff]
    %v8128 = vld [vmem:[%s24 + $0x18] sm:$0xff]
    %v8129 = vld [vmem:[%s24 + $0x20] sm:$0xff]
    %v8130 = vld [vmem:[%s24 + $0x28] sm:$0xff]
    %v8131 = vld [vmem:[%s24 + $0x30] sm:$0xff]
    %v8132 = vld [vmem:[%s24 + $0x38] sm:$0xff]
    %v8134 = vrot.slane %v8123, 7
    %vm8136 = vcmask 1040384
    %v8137 = vsel %vm8136, %v8121, %v8134
    %v8139 = vrot.slane %v8124, 7
    %v8141 = vsel %vm8136, %v8122, %v8139
    %v8143 = vsel %vm532, %v8141, 0
    %8145 = vmatprep.subr.mxu0 0.0
    %8146 = vmatpush1.msra.mxu0 0.0
    %8147 = vmatprep.subr.mxu0 0.0
    %8148 = vmatpush1.msra.mxu0 0.0
    %8149 = vmatprep.subr.mxu0 0.0
    %8150 = vmatpush1.msra.mxu0 0.0
    %8151 = vmatprep.subr.mxu0 0.0
    %8152 = vmatpush1.msra.mxu0 0.0
    %8153 = vmatprep.subr.mxu0 0.0
    %8154 = vmatpush1.msra.mxu0 0.0
    %8155 = vmatprep.subr.mxu0 0.0
    %8156 = vmatpush1.msra.mxu0 0.0
    %8157 = vmatprep.subr.mxu0 0.0
    %8158 = vmatpush1.msra.mxu0 0.0
    %8159 = vmatprep.subr.mxu0 0.0
    %8160 = vmatpush1.msra.mxu0 0.0
    %8161 = vmatprep.subr.mxu0 0.0
    %8162 = vmatpush1.msra.mxu0 0.0
    %8163 = vmatprep.subr.mxu0 0.0
    %8164 = vmatpush1.msra.mxu0 0.0
    %8165 = vmatprep.subr.mxu0 0.0
    %8166 = vmatpush1.msra.mxu0 0.0
    %8167 = vmatprep.subr.mxu0 0.0
    %8168 = vmatpush1.msra.mxu0 0.0
    %8169 = vmatprep.subr.mxu0 0.0
    %8170 = vmatpush1.msra.mxu0 %v8132
    %8171 = vmatprep.subr.mxu0 0.0
    %8172 = vmatpush1.msra.mxu0 %v8131
    %8173 = vmatprep.subr.mxu0 0.0
    %8174 = vmatpush1.msra.mxu0 %v8130
    %8175 = vmatprep.subr.mxu0 0.0
    %8176 = vmatpush1.msra.mxu0 %v8129
    %8177 = vmatprep.subr.mxu0 0.0
    %8178 = vmatpush2.msra.mxu0 0.0
    %8179 = vmatprep.subr.mxu0 0.0
    %8180 = vmatpush2.msra.mxu0 0.0
    %8181 = vmatprep.subr.mxu0 0.0
    %8182 = vmatpush2.msra.mxu0 0.0
    %8183 = vmatprep.subr.mxu0 0.0
    %8184 = vmatpush2.msra.mxu0 0.0
    %8185 = vmatprep.subr.mxu0 0.0
    %8186 = vmatpush2.msra.mxu0 0.0
    %8187 = vmatprep.subr.mxu0 0.0
    %8188 = vmatpush2.msra.mxu0 0.0
    %8189 = vmatprep.subr.mxu0 0.0
    %8190 = vmatpush2.msra.mxu0 0.0
    %8191 = vmatprep.subr.mxu0 0.0
    %8192 = vmatpush2.msra.mxu0 0.0
    %8193 = vmatprep.subr.mxu0 0.0
    %8194 = vmatpush2.msra.mxu0 0.0
    %8195 = vmatprep.subr.mxu0 0.0
    %8196 = vmatpush2.msra.mxu0 0.0
    %8197 = vmatprep.subr.mxu0 0.0
    %8198 = vmatpush2.msra.mxu0 0.0
    %8199 = vmatprep.subr.mxu0 0.0
    %8200 = vmatpush2.msra.mxu0 0.0
    %8201 = vmatprep.subr.mxu0 0.0
    %8202 = vmatpush2.msra.mxu0 0.0
    %8203 = vmatprep.subr.mxu0 0.0
    %8204 = vmatpush2.msra.mxu0 0.0
    %8205 = vmatprep.subr.mxu0 0.0
    %8206 = vmatpush2.msra.mxu0 0.0
    %8207 = vmatprep.subr.mxu0 0.0
    %8208 = vmatpush2.msra.mxu0 0.0
    %8209 = vmatprep.mubr.f32.mxu0 0.0
    %8210 = vmatmul.mubr.f32.gmra.mxu0 %v8143
    %v8211 = vpop.f32.mrf.mxu0
    %v8212 = vadd.f32 0.0, %v8211
    %v8213 = vpop.f32.mrf.mxu0
    %8214 = vdwg.mxu0
    %v8216 = vsel %vm532, %v8137, 0
    %8218 = vmatprep.subr.mxu0 0.0
    %8219 = vmatpush1.msra.mxu0 0.0
    %8220 = vmatprep.subr.mxu0 0.0
    %8221 = vmatpush1.msra.mxu0 0.0
    %8222 = vmatprep.subr.mxu0 0.0
    %8223 = vmatpush1.msra.mxu0 0.0
    %8224 = vmatprep.subr.mxu0 0.0
    %8225 = vmatpush1.msra.mxu0 0.0
    %8226 = vmatprep.subr.mxu0 0.0
    %8227 = vmatpush1.msra.mxu0 0.0
    %8228 = vmatprep.subr.mxu0 0.0
    %8229 = vmatpush1.msra.mxu0 0.0
    %8230 = vmatprep.subr.mxu0 0.0
    %8231 = vmatpush1.msra.mxu0 0.0
    %8232 = vmatprep.subr.mxu0 0.0
    %8233 = vmatpush1.msra.mxu0 0.0
    %8234 = vmatprep.subr.mxu0 0.0
    %8235 = vmatpush1.msra.mxu0 0.0
    %8236 = vmatprep.subr.mxu0 0.0
    %8237 = vmatpush1.msra.mxu0 0.0
    %8238 = vmatprep.subr.mxu0 0.0
    %8239 = vmatpush1.msra.mxu0 0.0
    %8240 = vmatprep.subr.mxu0 0.0
    %8241 = vmatpush1.msra.mxu0 0.0
    %8242 = vmatprep.subr.mxu0 0.0
    %8243 = vmatpush1.msra.mxu0 %v8128
    %8244 = vmatprep.subr.mxu0 0.0
    %8245 = vmatpush1.msra.mxu0 %v8127
    %8246 = vmatprep.subr.mxu0 0.0
    %8247 = vmatpush1.msra.mxu0 %v8126
    %8248 = vmatprep.subr.mxu0 0.0
    %8249 = vmatpush1.msra.mxu0 %v8125
    %8250 = vmatprep.subr.mxu0 0.0
    %8251 = vmatpush2.msra.mxu0 0.0
    %8252 = vmatprep.subr.mxu0 0.0
    %8253 = vmatpush2.msra.mxu0 0.0
    %8254 = vmatprep.subr.mxu0 0.0
    %8255 = vmatpush2.msra.mxu0 0.0
    %8256 = vmatprep.subr.mxu0 0.0
    %8257 = vmatpush2.msra.mxu0 0.0
    %8258 = vmatprep.subr.mxu0 0.0
    %8259 = vmatpush2.msra.mxu0 0.0
    %8260 = vmatprep.subr.mxu0 0.0
    %8261 = vmatpush2.msra.mxu0 0.0
    %8262 = vmatprep.subr.mxu0 0.0
    %8263 = vmatpush2.msra.mxu0 0.0
    %8264 = vmatprep.subr.mxu0 0.0
    %8265 = vmatpush2.msra.mxu0 0.0
    %8266 = vmatprep.subr.mxu0 0.0
    %8267 = vmatpush2.msra.mxu0 0.0
    %8268 = vmatprep.subr.mxu0 0.0
    %8269 = vmatpush2.msra.mxu0 0.0
    %8270 = vmatprep.subr.mxu0 0.0
    %8271 = vmatpush2.msra.mxu0 0.0
    %8272 = vmatprep.subr.mxu0 0.0
    %8273 = vmatpush2.msra.mxu0 0.0
    %8274 = vmatprep.subr.mxu0 0.0
    %8275 = vmatpush2.msra.mxu0 0.0
    %8276 = vmatprep.subr.mxu0 0.0
    %8277 = vmatpush2.msra.mxu0 0.0
    %8278 = vmatprep.subr.mxu0 0.0
    %8279 = vmatpush2.msra.mxu0 0.0
    %8280 = vmatprep.subr.mxu0 0.0
    %8281 = vmatpush2.msra.mxu0 0.0
    %8282 = vmatprep.mubr.f32.mxu0 0.0
    %8283 = vmatmul.mubr.f32.gmra.mxu0 %v8216
    %v8284 = vpop.f32.mrf.mxu0
    %v8285 = vadd.f32 %v8212, %v8284
    %v8286 = vpop.f32.mrf.mxu0
    %8287 = vdwg.mxu0
    %v8288 = vld [vmem:[%s25] sm:$0x1]
    %v8290 = vlaneseq
    %v8291 = vshrl.u32 %v8290, 7
    %v8292 = vsub.s32 0, %v8291
    %v8293 = vrot.slane %v8288, %v8292
    %v8295 = vadd.f32 %v8285, %v8293
    %v8296 = vtanh.pop %v8295
    %v8297 = vld [vmem:[%s26] sm:$0xff]
    %v8298 = vld [vmem:[%s26 + $0x8] sm:$0xff]
    %v8299 = vld [vmem:[%s26 + $0x10] sm:$0xff]
    %v8300 = vld [vmem:[%s26 + $0x18] sm:$0xff]
    %v8301 = vld [vmem:[%s27] sm:$0x1]
    %v8303 = vlaneseq
    %v8304 = vshrl.u32 %v8303, 7
    %v8305 = vsub.s32 0, %v8304
    %v8306 = vrot.slane %v8301, %v8305
    %v8309 = vsel %vm532, %v8296, 0
    %8311 = vmatprep.subr.mxu0 0.0
    %8312 = vmatpush1.msra.mxu0 0.0
    %8313 = vmatprep.subr.mxu0 0.0
    %8314 = vmatpush1.msra.mxu0 0.0
    %8315 = vmatprep.subr.mxu0 0.0
    %8316 = vmatpush1.msra.mxu0 0.0
    %8317 = vmatprep.subr.mxu0 0.0
    %8318 = vmatpush1.msra.mxu0 0.0
    %8319 = vmatprep.subr.mxu0 0.0
    %8320 = vmatpush1.msra.mxu0 0.0
    %8321 = vmatprep.subr.mxu0 0.0
    %8322 = vmatpush1.msra.mxu0 0.0
    %8323 = vmatprep.subr.mxu0 0.0
    %8324 = vmatpush1.msra.mxu0 0.0
    %8325 = vmatprep.subr.mxu0 0.0
    %8326 = vmatpush1.msra.mxu0 0.0
    %8327 = vmatprep.subr.mxu0 0.0
    %8328 = vmatpush1.msra.mxu0 0.0
    %8329 = vmatprep.subr.mxu0 0.0
    %8330 = vmatpush1.msra.mxu0 0.0
    %8331 = vmatprep.subr.mxu0 0.0
    %8332 = vmatpush1.msra.mxu0 0.0
    %8333 = vmatprep.subr.mxu0 0.0
    %8334 = vmatpush1.msra.mxu0 0.0
    %8335 = vmatprep.subr.mxu0 0.0
    %8336 = vmatpush1.msra.mxu0 %v8300
    %8337 = vmatprep.subr.mxu0 0.0
    %8338 = vmatpush1.msra.mxu0 %v8299
    %8339 = vmatprep.subr.mxu0 0.0
    %8340 = vmatpush1.msra.mxu0 %v8298
    %8341 = vmatprep.subr.mxu0 0.0
    %8342 = vmatpush1.msra.mxu0 %v8297
    %8343 = vmatprep.subr.mxu0 0.0
    %8344 = vmatpush2.msra.mxu0 0.0
    %8345 = vmatprep.subr.mxu0 0.0
    %8346 = vmatpush2.msra.mxu0 0.0
    %8347 = vmatprep.subr.mxu0 0.0
    %8348 = vmatpush2.msra.mxu0 0.0
    %8349 = vmatprep.subr.mxu0 0.0
    %8350 = vmatpush2.msra.mxu0 0.0
    %8351 = vmatprep.subr.mxu0 0.0
    %8352 = vmatpush2.msra.mxu0 0.0
    %8353 = vmatprep.subr.mxu0 0.0
    %8354 = vmatpush2.msra.mxu0 0.0
    %8355 = vmatprep.subr.mxu0 0.0
    %8356 = vmatpush2.msra.mxu0 0.0
    %8357 = vmatprep.subr.mxu0 0.0
    %8358 = vmatpush2.msra.mxu0 0.0
    %8359 = vmatprep.subr.mxu0 0.0
    %8360 = vmatpush2.msra.mxu0 0.0
    %8361 = vmatprep.subr.mxu0 0.0
    %8362 = vmatpush2.msra.mxu0 0.0
    %8363 = vmatprep.subr.mxu0 0.0
    %8364 = vmatpush2.msra.mxu0 0.0
    %8365 = vmatprep.subr.mxu0 0.0
    %8366 = vmatpush2.msra.mxu0 0.0
    %8367 = vmatprep.subr.mxu0 0.0
    %8368 = vmatpush2.msra.mxu0 0.0
    %8369 = vmatprep.subr.mxu0 0.0
    %8370 = vmatpush2.msra.mxu0 0.0
    %8371 = vmatprep.subr.mxu0 0.0
    %8372 = vmatpush2.msra.mxu0 0.0
    %8373 = vmatprep.subr.mxu0 0.0
    %8374 = vmatpush2.msra.mxu0 0.0
    %8375 = vmatprep.mubr.f32.mxu0 0.0
    %8376 = vmatmul.mubr.f32.gmra.mxu0 %v8309
    %v8377 = vpop.f32.mrf.mxu0
    %v8378 = vadd.f32 %v8306, %v8377
    %v8379 = vpop.f32.mrf.mxu0
    %8380 = vdwg.mxu0
    %vm8381 = vcmask 9216
    %v8382 = vsel %vm8381, %v8378, -inf
    %8383 = vmax.xlane.f32.xlu0 %v8382
    %v8384 = vpop.xlane.xlu0 %8383
    %v8385 = vsub.f32 %v8378, %v8384
    %v8386 = vmul.f32 %v8385, 1.442695
    %v8387 = vpow.pop %v8386
    %v8388 = vsel %vm8381, %v8387, 0.0
    %8389 = vadd.xlane.f32.xlu0 %v8388
    %v8390 = vpop.xlane.xlu0 %8389
    %v8391 = vrcp.pop %v8390
    %v8392 = vmul.f32 %v8387, %v8391
    %8393 = vst.msk [vmem:[#allocation2] sm:$0x3] %vm8381, %v8392
    // Predicated region
    $region114: #{model_forward.1} parent=1 // pred_check
      _
    $region115: #{model_forward.1} parent=1 // pred_check_branch
      %8395 = sbr.rel (0) target = $region117
    $region116: #{model_forward.1} parent=1 // pred_region
      %s8397 = ssub.s32 32, 32
      %8398 = vsyncadd [#allocation3], %s8397
      %s8400 = sshll.u32 [#allocation2], 4
      %s8401 = int_to_ptr.vmem [resolvable:$true] %s8400
      %8403 = dma.vmem_to_hbm [thread:$0]  %s8401, 32, %s28, [#allocation3]
    $region117: #{model_forward.1} parent=1 // pred_fallthru
      _
    // Predicated region
    $region118: #{model_forward.1} parent=1 // pred_check
      _
    $region119: #{model_forward.1} parent=1 // pred_check_branch
      %8405 = sbr.rel (0) target = $region121
    $region120: #{model_forward.1} parent=1 // pred_region
      %8406 = dma.done [#allocation3], 32
    $region121: #{model_forward.1} parent=1 // pred_fallthru
      _
    %8407 = vsyncpa [#allocation3], 1

</llo_original>
